<compile_context>
chip_gen: v7x
topology: tpu7x:2x2x1
jax: 0.10.0
libtpu: 0.0.40
codegen_flags: <defaults>
</compile_context>

<pallas_src>
import functools
import math

import jax
import jax.numpy as jnp
from jax.experimental import pallas as pl
from jax.experimental.pallas import tpu as pltpu


# Set False for an exact-reciprocal fallback (review correctness note).
APPROX_RECIP = True


# ---------------------------------------------------------------------------
# In-kernel helpers.
# ---------------------------------------------------------------------------
def _packed_complex_layernorm(xp, gw, gb, E, eps):
    """Whitening complex LayerNorm on a packed (N, 2E) = [real | imag] slab (f32).

    gw: (4, E) rows = [g_rr, g_ri, g_ir, g_ii]; gb: (1, 2E) packed bias."""
    xr = xp[:, :E]
    xi = xp[:, E:]
    mur = jnp.mean(xr, axis=-1, keepdims=True)
    mui = jnp.mean(xi, axis=-1, keepdims=True)
    cr = xr - mur
    ci = xi - mui
    vrr = jnp.mean(cr * cr, axis=-1, keepdims=True) + eps
    vii = jnp.mean(ci * ci, axis=-1, keepdims=True) + eps
    vri = jnp.mean(cr * ci, axis=-1, keepdims=True)
    det = jnp.maximum(vrr * vii - vri * vri, eps * eps)   # guard fp rounding only
    s = jnp.sqrt(det)
    t = jnp.sqrt(vrr + vii + 2.0 * s)
    inv = pl.reciprocal(s * t, approx=APPROX_RECIP)       # EUP, not a VALU divide
    wrr = (vii + s) * inv
    wii = (vrr + s) * inv
    wri = -vri * inv
    nr = wrr * cr + wri * ci
    ni = wri * cr + wii * ci
    outr = gw[0:1, :] * nr + gw[1:2, :] * ni
    outi = gw[2:3, :] * nr + gw[3:4, :] * ni
    return jnp.concatenate([outr, outi], axis=-1) + gb


# ---------------------------------------------------------------------------
# Pallas kernel: one grid step = one batch tile (BT batch elements, all tokens).
# ---------------------------------------------------------------------------
def encoder_layer_kernel(BT, L, H, eps,
                         src_ref,                 # (Nt, 2E) f32, Nt = BT*L, [re|im]
                         wattn_ref, battn_ref,    # (2E, 8E) bf16, (1, 8E) f32
                         wout_ref, bout_ref,      # (2E, 2E) bf16, (1, 2E) f32
                         w1_ref, b1_ref,          # (2E, 2F) bf16, (1, 2F) f32
                         w2_ref, b2_ref,          # (2F, 2E) bf16, (1, 2E) f32
                         n1w_ref, n1b_ref,        # (4, E) f32,   (1, 2E) f32
                         n2w_ref, n2b_ref,        # (4, E) f32,   (1, 2E) f32
                         out_ref):                # (Nt, 2E) f32
    Nt, E2 = src_ref.shape
    E = E2 // 2
    Dh = E // H
    dh2 = 2 * Dh

    xp = src_ref[...]                              # f32 packed activations [xr | xi]
    xb = xp.astype(jnp.bfloat16)

    # ---------------- self-attention --------------------------------------
    # One packed bf16 in-projection for all of Q/K/V, all heads, both components,
    # in role-major column order [Q | Ka | Kb | V]  (1/sqrt(Dh) folded into Q).
    proj = jnp.dot(xb, wattn_ref[...], preferred_element_type=jnp.float32)
    proj = proj + battn_ref[...]

    def head_slice(role, h):                       # lane-aligned (dh2 % 128 == 0)
        lo = role * E2 + h * dh2
        return proj[:, lo:lo + dh2].reshape(BT, L, dh2).astype(jnp.bfloat16)

    heads_out = []
    for h in range(H):            # static unroll; 3 batch(BT)-batched dots per head
        qh = head_slice(0, h)     # [Qr | Qi]   (pre-scaled)
        ka = head_slice(1, h)     # [Kr | -Ki]
        kb = head_slice(2, h)     # [Ki |  Kr]
        vh = head_slice(3, h)     # [Vr | Vi]
        # complex scores via packed contraction: 2 dots instead of 4
        sr = jnp.einsum('bld,bmd->blm', qh, ka, preferred_element_type=jnp.float32)
        si = jnp.einsum('bld,bmd->blm', qh, kb, preferred_element_type=jnp.float32)
        mag = jnp.sqrt(sr * sr + si * si)                          # f32
        p = jnp.exp(mag - jnp.max(mag, axis=-1, keepdims=True))
        p = p * pl.reciprocal(jnp.sum(p, axis=-1, keepdims=True), approx=APPROX_RECIP)
        # P @ [Vr|Vi]: one dot instead of two; per-head output is [Or | Oi]
        oh = jnp.einsum('blm,bmd->bld', p.astype(jnp.bfloat16), vh,
                        preferred_element_type=jnp.float32)
        heads_out.append(oh.reshape(Nt, dh2))
    # Register-level lane concat (all pieces 128-lane aligned) -> no scratch,
    # no masked stores.
    attn = jnp.concatenate(heads_out, axis=-1)     # (Nt, 2E), per-head [Or | Oi]

    # out-proj weight rows were pre-permuted to consume the per-head [Or|Oi] order.
    sa = jnp.dot(attn.astype(jnp.bfloat16), wout_ref[...],
                 preferred_element_type=jnp.float32) + bout_ref[...]

    # residual + norm1 (post-norm); dropout = identity in eval mode
    x = xp + sa
    x = _packed_complex_layernorm(x, n1w_ref[...], n1b_ref[...], E, eps)

    # ---------------- feed-forward -----------------------------------------
    h1 = jnp.dot(x.astype(jnp.bfloat16), w1_ref[...],
                 preferred_element_type=jnp.float32) + b1_ref[...]
    h1 = jnp.maximum(h1, 0.0)      # CReLU is per-component => plain relu on packed
    ff = jnp.dot(h1.astype(jnp.bfloat16), w2_ref[...],
                 preferred_element_type=jnp.float32) + b2_ref[...]

    x = x + ff
    x = _packed_complex_layernorm(x, n2w_ref[...], n2b_ref[...], E, eps)
    out_ref[...] = x               # lane-dense full-width store


# ---------------------------------------------------------------------------
# Wrapper (complex <-> packed-real layout, pallas_call with a parallel batch grid).
# ---------------------------------------------------------------------------
def transformer_encoder_layer(src, packed, nhead, eps=1e-5, batch_tile=None):
    """src: complex64 (L, B, E) — batch_first=False, like the PyTorch module.

    For multi-layer use, keep activations in the packed (N, 2E) real layout across
    layers (pack once at model input, unpack once at the end)."""
    L, B, E = src.shape
    assert E % nhead == 0
    # Design point: 2E must be a multiple of 128 lanes for dense stores; the
    # per-head width 2*(E//nhead) should also be a multiple of 128 (perf only).
    assert (2 * E) % 128 == 0, "pick d_model with 2*d_model % 128 == 0"

    N = B * L
    xr = jnp.real(src).astype(jnp.float32)
    xi = jnp.imag(src).astype(jnp.float32)
    xp = jnp.concatenate([xr, xi], axis=-1)                 # (L, B, 2E) packed
    xp = jnp.transpose(xp, (1, 0, 2)).reshape(N, 2 * E)     # batch-major rows

    BT = batch_tile if batch_tile is not None else (B // 2 if B % 2 == 0 else B)
    assert B % BT == 0
    nb = B // BT
    Nt = BT * L

    kernel = functools.partial(encoder_layer_kernel, BT, L, nhead, eps)

    row_spec = pl.BlockSpec((Nt, 2 * E), lambda i: (i, 0))

    def full_spec(arr):                 # weights: same block every step => resident
        return pl.BlockSpec(arr.shape, lambda i: (0, 0))

    weight_order = ["w_attn", "b_attn", "w_out", "b_out",
                    "w1", "b1", "w2", "b2", "n1w", "n1b", "n2w", "n2b"]
    weights = [packed[k] for k in weight_order]

    # vmem budget from the actual live set (double-buffered I/O tiles + weights +
    # generous temporaries), capped below v7x's 64 MiB physical VMEM.
    bytes_of = lambda a: int(a.size) * a.dtype.itemsize
    weight_bytes = sum(bytes_of(w) for w in weights)
    tile_bytes = Nt * 2 * E * 4
    temp_bytes = Nt * 8 * E * 4 * 2
    vmem_limit = int(min(max(2 * (weight_bytes + 4 * tile_bytes + temp_bytes),
                             16 << 20), 48 << 20))

    out = pl.pallas_call(
        kernel,
        out_shape=jax.ShapeDtypeStruct((N, 2 * E), jnp.float32),
        grid=(nb,),
        in_specs=[row_spec] + [full_spec(w) for w in weights],
        out_specs=row_spec,
        compiler_params=pltpu.CompilerParams(
            dimension_semantics=("parallel",),        # v7x: shard over both TCs
            vmem_limit_bytes=vmem_limit),
    )(xp, *weights)

    out = jnp.transpose(out.reshape(B, L, 2 * E), (1, 0, 2))   # (L, B, 2E)
    return (out[..., :E] + 1j * out[..., E:]).astype(jnp.complex64)


# ---------------------------------------------------------------------------
# One-time parameter packing (wrapper-side, constant-folded per set of params).
# ---------------------------------------------------------------------------
def pack_params(p, E, H, matmul_dtype=jnp.bfloat16):
    """Build kernel-ready real-packed weights from the raw complex params.

    Complex linear y = x W + b (W as (in, out)) becomes one real matmul:
      [x_r|x_i] @ [[W_r, W_i], [-W_i, W_r]] + [b_r|b_i].
    The attention in-projection is emitted ROLE-MAJOR: [Q | Ka | Kb | V]
    (per role head-major, per head [comp0(Dh) | comp1(Dh)]),
      Q  -> [Qr | Qi] (with 1/sqrt(Dh) folded in), Ka -> [Kr | -Ki],
      Kb -> [Ki | Kr], V -> [Vr | Vi].
    GEMM weights are cast to bf16 (MXU-native); biases / LN params stay f32."""
    Dh = E // H
    scale = 1.0 / math.sqrt(Dh)

    iwr, iwi = p["in_w"][0], p["in_w"][1]          # (E, 3E)
    ibr, ibi = p["in_b"][0], p["in_b"][1]          # (3E,)

    def split(off, sc):
        return (iwr[:, off:off + E] * sc, iwi[:, off:off + E] * sc,
                ibr[off:off + E] * sc, ibi[off:off + E] * sc)

    qwr, qwi, qbr, qbi = split(0, scale)           # scale folded into Q (+bias)
    kwr, kwi, kbr, kbi = split(E, 1.0)
    vwr, vwi, vbr, vbi = split(2 * E, 1.0)

    def re_cols(wr, wi, br):                       # columns producing Re(x@W)+br
        return jnp.concatenate([wr, -wi], axis=0), br

    def im_cols(wr, wi, bi):                       # columns producing Im(x@W)+bi
        return jnp.concatenate([wi, wr], axis=0), bi

    wcols, bcols = [], []

    def emit(w, b):
        wcols.append(w)
        bcols.append(b)

    for h in range(H):                             # Role Q: per head [Qr | Qi]
        s = slice(h * Dh, (h + 1) * Dh)
        w, b = re_cols(qwr[:, s], qwi[:, s], qbr[s]); emit(w, b)
        w, b = im_cols(qwr[:, s], qwi[:, s], qbi[s]); emit(w, b)
    for h in range(H):                             # Role Ka: per head [Kr | -Ki]
        s = slice(h * Dh, (h + 1) * Dh)
        w, b = re_cols(kwr[:, s], kwi[:, s], kbr[s]); emit(w, b)
        w, b = im_cols(kwr[:, s], kwi[:, s], kbi[s]); emit(-w, -b)
    for h in range(H):                             # Role Kb: per head [Ki | Kr]
        s = slice(h * Dh, (h + 1) * Dh)
        w, b = im_cols(kwr[:, s], kwi[:, s], kbi[s]); emit(w, b)
        w, b = re_cols(kwr[:, s], kwi[:, s], kbr[s]); emit(w, b)
    for h in range(H):                             # Role V: per head [Vr | Vi]
        s = slice(h * Dh, (h + 1) * Dh)
        w, b = re_cols(vwr[:, s], vwi[:, s], vbr[s]); emit(w, b)
        w, b = im_cols(vwr[:, s], vwi[:, s], vbi[s]); emit(w, b)

    w_attn = jnp.concatenate(wcols, axis=1)        # (2E, 8E)
    b_attn = jnp.concatenate(bcols)[None, :]       # (1, 8E)

    def pack_linear(w, b):                         # (2,in,out),(2,out)
        wr, wi = w[0], w[1]
        top = jnp.concatenate([wr, wi], axis=1)
        bot = jnp.concatenate([-wi, wr], axis=1)
        return (jnp.concatenate([top, bot], axis=0),
                jnp.concatenate([b[0], b[1]])[None, :])

    w_out, b_out = pack_linear(p["out_w"], p["out_b"])
    # Permute out-proj input rows to the attention output order (per head [Or|Oi]).
    c = jnp.arange(2 * E)
    perm = ((c % (2 * Dh)) // Dh) * E + (c // (2 * Dh)) * Dh + (c % Dh)
    w_out = w_out[perm, :]

    w1, b1 = pack_linear(p["w1"], p["b1"])
    w2, b2 = pack_linear(p["w2"], p["b2"])
    packb = lambda b: jnp.concatenate([b[0], b[1]])[None, :]
    mm = lambda w: w.astype(matmul_dtype)          # bf16 MXU operands
    return dict(w_attn=mm(w_attn), b_attn=b_attn, w_out=mm(w_out), b_out=b_out,
                w1=mm(w1), b1=b1, w2=mm(w2), b2=b2,
                n1w=p["n1w"], n1b=packb(p["n1b"]),
                n2w=p["n2w"], n2b=packb(p["n2b"]))


# ---------------------------------------------------------------------------
# Deterministic parameter init (synthetic, mirrors module shapes & _reset_parameters).
# ---------------------------------------------------------------------------
def init_params(key, E, H, F):
    def cxavier(k, out_f, in_f):
        # complex Xavier uniform: bound = sqrt(6/(fan_in+fan_out)) / sqrt(2) per comp
        bound = math.sqrt(6.0 / (in_f + out_f)) / math.sqrt(2.0)
        k1, k2 = jax.random.split(k)
        return jnp.stack([
            jax.random.uniform(k1, (out_f, in_f), jnp.float32, -bound, bound),
            jax.random.uniform(k2, (out_f, in_f), jnp.float32, -bound, bound),
        ])  # (2, out_f, in_f)

    ks = jax.random.split(key, 4)
    in_w = cxavier(ks[0], 3 * E, E)      # in_proj_weight (3E, E)
    out_w = cxavier(ks[1], E, E)         # out_proj.weight (E, E)
    w1 = cxavier(ks[2], F, E)            # linear1.weight  (F, E)
    w2 = cxavier(ks[3], E, F)            # linear2.weight  (E, F)
    tT = lambda w: jnp.transpose(w, (0, 2, 1))   # pre-transpose to (in, out)
    zeros = lambda n: jnp.zeros((2, n), jnp.float32)
    inv_sqrt2 = 1.0 / math.sqrt(2.0)
    ln_w = jnp.stack([jnp.full((E,), inv_sqrt2), jnp.zeros((E,)),
                      jnp.zeros((E,)), jnp.full((E,), inv_sqrt2)]).astype(jnp.float32)
    return dict(
        in_w=tT(in_w), in_b=zeros(3 * E),
        out_w=tT(out_w), out_b=zeros(E),
        w1=tT(w1), b1=zeros(F),
        w2=tT(w2), b2=zeros(E),
        n1w=ln_w, n1b=zeros(E),
        n2w=ln_w, n2b=zeros(E),
    )


# ---------------------------------------------------------------------------
# Pure-JAX complex reference (same semantics) for validation.
# ---------------------------------------------------------------------------
def reference(src, params, nhead, eps=1e-5):
    PREC = jax.lax.Precision.HIGHEST
    L, B, E = src.shape
    Dh = E // nhead
    c = lambda p: (p[0] + 1j * p[1]).astype(jnp.complex64)
    in_w, in_b = c(params["in_w"]), c(params["in_b"])
    out_w, out_b = c(params["out_w"]), c(params["out_b"])
    w1, b1 = c(params["w1"]), c(params["b1"])
    w2, b2 = c(params["w2"]), c(params["b2"])

    def ln(x, gw, gb):
        mu = jnp.mean(x, axis=-1, keepdims=True)
        cc = x - mu
        cr, ci = jnp.real(cc), jnp.imag(cc)
        vrr = jnp.mean(cr * cr, -1, keepdims=True) + eps
        vii = jnp.mean(ci * ci, -1, keepdims=True) + eps
        vri = jnp.mean(cr * ci, -1, keepdims=True)
        s = jnp.sqrt(vrr * vii - vri * vri)
        t = jnp.sqrt(vrr + vii + 2.0 * s)
        inv = 1.0 / (s * t)
        nr = (vii + s) * inv * cr + (-vri * inv) * ci
        ni = (-vri * inv) * cr + (vrr + s) * inv * ci
        outr = gw[0] * nr + gw[1] * ni + gb[0]
        outi = gw[2] * nr + gw[3] * ni + gb[1]
        return (outr + 1j * outi).astype(jnp.complex64)

    x = src
    qkv = jnp.einsum("lbe,ef->lbf", x, in_w, precision=PREC) + in_b
    q, k, v = qkv[..., :E], qkv[..., E:2 * E], qkv[..., 2 * E:]
    heads = lambda t: jnp.transpose(t.reshape(L, B, nhead, Dh), (1, 2, 0, 3))
    qh, kh, vh = heads(q), heads(k), heads(v)
    scores = jnp.einsum("bhld,bhmd->bhlm", qh, kh, precision=PREC) / math.sqrt(Dh)
    p = jax.nn.softmax(jnp.abs(scores), axis=-1).astype(jnp.complex64)
    oh = jnp.einsum("bhlm,bhmd->bhld", p, vh, precision=PREC)
    o = jnp.transpose(oh, (2, 0, 1, 3)).reshape(L, B, E)
    x = x + jnp.einsum("lbe,ef->lbf", o, out_w, precision=PREC) + out_b
    x = ln(x, params["n1w"], params["n1b"])
    h = jnp.einsum("lbe,ef->lbf", x, w1, precision=PREC) + b1
    h = (jnp.maximum(jnp.real(h), 0.0) + 1j * jnp.maximum(jnp.imag(h), 0.0)).astype(jnp.complex64)
    x = x + jnp.einsum("lbf,fe->lbe", h, w2, precision=PREC) + b2
    x = ln(x, params["n2w"], params["n2b"])
    return x


if __name__ == "__main__":
    # d_model=128, nhead=2 (packed head width = 128 lanes), dim_feedforward=256,
    # seq=32, batch=8, batch_first=False  ->  256 GEMM rows, 2 "parallel" grid steps.
    L, B, E, H, F = 32, 8, 128, 2, 256
    key = jax.random.PRNGKey(0)
    k_src_r, k_src_i, k_par = jax.random.split(key, 3)
    src = (jax.random.normal(k_src_r, (L, B, E), jnp.float32)
           + 1j * jax.random.normal(k_src_i, (L, B, E), jnp.float32)).astype(jnp.complex64)
    params = init_params(k_par, E, H, F)
    packed = pack_params(params, E, H)

    out = jax.block_until_ready(transformer_encoder_layer(src, packed, nhead=H))
    ref = jax.block_until_ready(reference(src, params, nhead=H))

    # bf16 matmul operands + approx reciprocals vs. complex64/HIGHEST reference.
    if not bool(jnp.allclose(out, ref, atol=5e-2, rtol=5e-2)):
        raise AssertionError(
            f"Pallas output mismatch, max |err| = {float(jnp.max(jnp.abs(out - ref)))}")
    print("KERNEL_OK")
</pallas_src>

<mosaic_0001>
module attributes {stable_mosaic.version = 11 : i64} {
  func.func @encoder_layer_kernel(%arg0: i32, %arg1: memref<128x256xf32, #tpu.memory_space<vmem>>, %arg2: memref<256x1024xbf16, #tpu.memory_space<vmem>>, %arg3: memref<1x1024xf32, #tpu.memory_space<vmem>>, %arg4: memref<256x256xbf16, #tpu.memory_space<vmem>>, %arg5: memref<1x256xf32, #tpu.memory_space<vmem>>, %arg6: memref<256x512xbf16, #tpu.memory_space<vmem>>, %arg7: memref<1x512xf32, #tpu.memory_space<vmem>>, %arg8: memref<512x256xbf16, #tpu.memory_space<vmem>>, %arg9: memref<1x256xf32, #tpu.memory_space<vmem>>, %arg10: memref<4x128xf32, #tpu.memory_space<vmem>>, %arg11: memref<1x256xf32, #tpu.memory_space<vmem>>, %arg12: memref<4x128xf32, #tpu.memory_space<vmem>>, %arg13: memref<1x256xf32, #tpu.memory_space<vmem>>, %arg14: memref<128x256xf32, #tpu.memory_space<vmem>>) attributes {dimension_semantics = [#tpu.dimension_semantics<parallel>], iteration_bounds = array<i64: 2>, scalar_prefetch = 0 : i64, scratch_operands = 0 : i64, tpu.core_type = #tpu.core_type<tc>, window_params = [{transform_indices = @transform_0, window_bounds = array<i64: 128, 256>}, {pipeline_mode = #tpu.pipeline_mode<synchronous>, transform_indices = @transform_1, window_bounds = array<i64: 256, 1024>}, {pipeline_mode = #tpu.pipeline_mode<synchronous>, transform_indices = @transform_2, window_bounds = array<i64: 1, 1024>}, {pipeline_mode = #tpu.pipeline_mode<synchronous>, transform_indices = @transform_3, window_bounds = array<i64: 256, 256>}, {pipeline_mode = #tpu.pipeline_mode<synchronous>, transform_indices = @transform_4, window_bounds = array<i64: 1, 256>}, {pipeline_mode = #tpu.pipeline_mode<synchronous>, transform_indices = @transform_5, window_bounds = array<i64: 256, 512>}, {pipeline_mode = #tpu.pipeline_mode<synchronous>, transform_indices = @transform_6, window_bounds = array<i64: 1, 512>}, {pipeline_mode = #tpu.pipeline_mode<synchronous>, transform_indices = @transform_7, window_bounds = array<i64: 512, 256>}, {pipeline_mode = #tpu.pipeline_mode<synchronous>, transform_indices = @transform_8, window_bounds = array<i64: 1, 256>}, {pipeline_mode = #tpu.pipeline_mode<synchronous>, transform_indices = @transform_9, window_bounds = array<i64: 4, 128>}, {pipeline_mode = #tpu.pipeline_mode<synchronous>, transform_indices = @transform_10, window_bounds = array<i64: 1, 256>}, {pipeline_mode = #tpu.pipeline_mode<synchronous>, transform_indices = @transform_11, window_bounds = array<i64: 4, 128>}, {pipeline_mode = #tpu.pipeline_mode<synchronous>, transform_indices = @transform_12, window_bounds = array<i64: 1, 256>}, {transform_indices = @transform_13, window_bounds = array<i64: 128, 256>}]} {
    %c0 = arith.constant 0 : index
    %c0_0 = arith.constant 0 : index
    %0 = vector.load %arg1[%c0, %c0_0] : memref<128x256xf32, #tpu.memory_space<vmem>>, vector<128x256xf32>
    %1 = arith.truncf %0 : vector<128x256xf32> to vector<128x256xbf16>
    %c0_1 = arith.constant 0 : index
    %c0_2 = arith.constant 0 : index
    %2 = vector.load %arg2[%c0_1, %c0_2] : memref<256x1024xbf16, #tpu.memory_space<vmem>>, vector<256x1024xbf16>
    %cst = arith.constant dense<0.000000e+00> : vector<128x1024xf32>
    %3 = tpu.matmul %1, %2, %cst {dimension_numbers = #tpu.dot_dimension_numbers<[1], [0], [0], [1], [0, 0, 1, 1], [], []>} : vector<128x256xbf16>, vector<256x1024xbf16>, vector<128x1024xf32> -> vector<128x1024xf32>
    %c0_3 = arith.constant 0 : index
    %c0_4 = arith.constant 0 : index
    %4 = vector.load %arg3[%c0_3, %c0_4] : memref<1x1024xf32, #tpu.memory_space<vmem>>, vector<1x1024xf32>
    %5 = vector.broadcast %4 : vector<1x1024xf32> to vector<128x1024xf32>
    %6 = arith.addf %3, %5 : vector<128x1024xf32>
    %7 = vector.extract_strided_slice %6 {offsets = [0, 0], sizes = [128, 128], strides = [1, 1]} : vector<128x1024xf32> to vector<128x128xf32>
    %8 = vector.shape_cast %7 : vector<128x128xf32> to vector<4x32x128xf32>
    %9 = arith.truncf %8 : vector<4x32x128xf32> to vector<4x32x128xbf16>
    %10 = vector.extract_strided_slice %6 {offsets = [0, 256], sizes = [128, 128], strides = [1, 1]} : vector<128x1024xf32> to vector<128x128xf32>
    %11 = vector.shape_cast %10 : vector<128x128xf32> to vector<4x32x128xf32>
    %12 = arith.truncf %11 : vector<4x32x128xf32> to vector<4x32x128xbf16>
    %13 = vector.extract_strided_slice %6 {offsets = [0, 512], sizes = [128, 128], strides = [1, 1]} : vector<128x1024xf32> to vector<128x128xf32>
    %14 = vector.shape_cast %13 : vector<128x128xf32> to vector<4x32x128xf32>
    %15 = arith.truncf %14 : vector<4x32x128xf32> to vector<4x32x128xbf16>
    %16 = vector.extract_strided_slice %6 {offsets = [0, 768], sizes = [128, 128], strides = [1, 1]} : vector<128x1024xf32> to vector<128x128xf32>
    %17 = vector.shape_cast %16 : vector<128x128xf32> to vector<4x32x128xf32>
    %18 = arith.truncf %17 : vector<4x32x128xf32> to vector<4x32x128xbf16>
    "tpu.trace_start"() <{level = 10 : i32, message = "bld,bmd->blm"}> : () -> ()
    %cst_5 = arith.constant dense<0.000000e+00> : vector<4x32x32xf32>
    %19 = tpu.matmul %9, %12, %cst_5 {dimension_numbers = #tpu.dot_dimension_numbers<[2], [2], [1], [1], [0, 0, 0, 1, 1, 1], [0], [0]>} : vector<4x32x128xbf16>, vector<4x32x128xbf16>, vector<4x32x32xf32> -> vector<4x32x32xf32>
    %cst_6 = arith.constant dense<0.000000e+00> : vector<4x32x32xf32>
    %20 = tpu.matmul %9, %15, %cst_6 {dimension_numbers = #tpu.dot_dimension_numbers<[2], [2], [1], [1], [0, 0, 0, 1, 1, 1], [0], [0]>} : vector<4x32x128xbf16>, vector<4x32x128xbf16>, vector<4x32x32xf32> -> vector<4x32x32xf32>
    "tpu.trace_stop"() : () -> ()
    %21 = arith.mulf %19, %19 : vector<4x32x32xf32>
    %22 = arith.mulf %20, %20 : vector<4x32x32xf32>
    %23 = arith.addf %21, %22 : vector<4x32x32xf32>
    %24 = math.sqrt %23 : vector<4x32x32xf32>
    %cst_7 = arith.constant dense<0xFF800000> : vector<4x32xf32>
    %25 = vector.multi_reduction <maximumf>, %24, %cst_7 [2] : vector<4x32x32xf32> to vector<4x32xf32>
    %26 = vector.shape_cast %25 : vector<4x32xf32> to vector<4x32x1xf32>
    %27 = vector.broadcast %26 : vector<4x32x1xf32> to vector<4x32x32xf32>
    %28 = arith.subf %24, %27 : vector<4x32x32xf32>
    %29 = math.exp %28 : vector<4x32x32xf32>
    %cst_8 = arith.constant dense<0.000000e+00> : vector<4x32xf32>
    %30 = vector.multi_reduction <add>, %29, %cst_8 [2] : vector<4x32x32xf32> to vector<4x32xf32>
    %31 = vector.shape_cast %30 : vector<4x32xf32> to vector<4x32x1xf32>
    %32 = tpu.reciprocal %31 {approx = true} : vector<4x32x1xf32> -> vector<4x32x1xf32>
    %33 = vector.broadcast %32 : vector<4x32x1xf32> to vector<4x32x32xf32>
    %34 = arith.mulf %29, %33 : vector<4x32x32xf32>
    %35 = arith.truncf %34 : vector<4x32x32xf32> to vector<4x32x32xbf16>
    "tpu.trace_start"() <{level = 10 : i32, message = "blm,bmd->bld"}> : () -> ()
    %cst_9 = arith.constant dense<0.000000e+00> : vector<4x32x128xf32>
    %36 = tpu.matmul %35, %18, %cst_9 {dimension_numbers = #tpu.dot_dimension_numbers<[2], [1], [1], [2], [0, 0, 0, 1, 1, 2], [0], [0]>} : vector<4x32x32xbf16>, vector<4x32x128xbf16>, vector<4x32x128xf32> -> vector<4x32x128xf32>
    "tpu.trace_stop"() : () -> ()
    %37 = vector.shape_cast %36 : vector<4x32x128xf32> to vector<128x128xf32>
    %38 = vector.extract_strided_slice %6 {offsets = [0, 128], sizes = [128, 128], strides = [1, 1]} : vector<128x1024xf32> to vector<128x128xf32>
    %39 = vector.shape_cast %38 : vector<128x128xf32> to vector<4x32x128xf32>
    %40 = arith.truncf %39 : vector<4x32x128xf32> to vector<4x32x128xbf16>
    %41 = vector.extract_strided_slice %6 {offsets = [0, 384], sizes = [128, 128], strides = [1, 1]} : vector<128x1024xf32> to vector<128x128xf32>
    %42 = vector.shape_cast %41 : vector<128x128xf32> to vector<4x32x128xf32>
    %43 = arith.truncf %42 : vector<4x32x128xf32> to vector<4x32x128xbf16>
    %44 = vector.extract_strided_slice %6 {offsets = [0, 640], sizes = [128, 128], strides = [1, 1]} : vector<128x1024xf32> to vector<128x128xf32>
    %45 = vector.shape_cast %44 : vector<128x128xf32> to vector<4x32x128xf32>
    %46 = arith.truncf %45 : vector<4x32x128xf32> to vector<4x32x128xbf16>
    %47 = vector.extract_strided_slice %6 {offsets = [0, 896], sizes = [128, 128], strides = [1, 1]} : vector<128x1024xf32> to vector<128x128xf32>
    %48 = vector.shape_cast %47 : vector<128x128xf32> to vector<4x32x128xf32>
    %49 = arith.truncf %48 : vector<4x32x128xf32> to vector<4x32x128xbf16>
    "tpu.trace_start"() <{level = 10 : i32, message = "bld,bmd->blm"}> : () -> ()
    %cst_10 = arith.constant dense<0.000000e+00> : vector<4x32x32xf32>
    %50 = tpu.matmul %40, %43, %cst_10 {dimension_numbers = #tpu.dot_dimension_numbers<[2], [2], [1], [1], [0, 0, 0, 1, 1, 1], [0], [0]>} : vector<4x32x128xbf16>, vector<4x32x128xbf16>, vector<4x32x32xf32> -> vector<4x32x32xf32>
    %cst_11 = arith.constant dense<0.000000e+00> : vector<4x32x32xf32>
    %51 = tpu.matmul %40, %46, %cst_11 {dimension_numbers = #tpu.dot_dimension_numbers<[2], [2], [1], [1], [0, 0, 0, 1, 1, 1], [0], [0]>} : vector<4x32x128xbf16>, vector<4x32x128xbf16>, vector<4x32x32xf32> -> vector<4x32x32xf32>
    "tpu.trace_stop"() : () -> ()
    %52 = arith.mulf %50, %50 : vector<4x32x32xf32>
    %53 = arith.mulf %51, %51 : vector<4x32x32xf32>
    %54 = arith.addf %52, %53 : vector<4x32x32xf32>
    %55 = math.sqrt %54 : vector<4x32x32xf32>
    %cst_12 = arith.constant dense<0xFF800000> : vector<4x32xf32>
    %56 = vector.multi_reduction <maximumf>, %55, %cst_12 [2] : vector<4x32x32xf32> to vector<4x32xf32>
    %57 = vector.shape_cast %56 : vector<4x32xf32> to vector<4x32x1xf32>
    %58 = vector.broadcast %57 : vector<4x32x1xf32> to vector<4x32x32xf32>
    %59 = arith.subf %55, %58 : vector<4x32x32xf32>
    %60 = math.exp %59 : vector<4x32x32xf32>
    %cst_13 = arith.constant dense<0.000000e+00> : vector<4x32xf32>
    %61 = vector.multi_reduction <add>, %60, %cst_13 [2] : vector<4x32x32xf32> to vector<4x32xf32>
    %62 = vector.shape_cast %61 : vector<4x32xf32> to vector<4x32x1xf32>
    %63 = tpu.reciprocal %62 {approx = true} : vector<4x32x1xf32> -> vector<4x32x1xf32>
    %64 = vector.broadcast %63 : vector<4x32x1xf32> to vector<4x32x32xf32>
    %65 = arith.mulf %60, %64 : vector<4x32x32xf32>
    %66 = arith.truncf %65 : vector<4x32x32xf32> to vector<4x32x32xbf16>
    "tpu.trace_start"() <{level = 10 : i32, message = "blm,bmd->bld"}> : () -> ()
    %cst_14 = arith.constant dense<0.000000e+00> : vector<4x32x128xf32>
    %67 = tpu.matmul %66, %49, %cst_14 {dimension_numbers = #tpu.dot_dimension_numbers<[2], [1], [1], [2], [0, 0, 0, 1, 1, 2], [0], [0]>} : vector<4x32x32xbf16>, vector<4x32x128xbf16>, vector<4x32x128xf32> -> vector<4x32x128xf32>
    "tpu.trace_stop"() : () -> ()
    %68 = vector.shape_cast %67 : vector<4x32x128xf32> to vector<128x128xf32>
    %69 = tpu.concatenate %37, %68 in 1 : vector<128x128xf32>, vector<128x128xf32> -> vector<128x256xf32>
    %70 = arith.truncf %69 : vector<128x256xf32> to vector<128x256xbf16>
    %c0_15 = arith.constant 0 : index
    %c0_16 = arith.constant 0 : index
    %71 = vector.load %arg4[%c0_15, %c0_16] : memref<256x256xbf16, #tpu.memory_space<vmem>>, vector<256x256xbf16>
    %cst_17 = arith.constant dense<0.000000e+00> : vector<128x256xf32>
    %72 = tpu.matmul %70, %71, %cst_17 {dimension_numbers = #tpu.dot_dimension_numbers<[1], [0], [0], [1], [0, 0, 1, 1], [], []>} : vector<128x256xbf16>, vector<256x256xbf16>, vector<128x256xf32> -> vector<128x256xf32>
    %c0_18 = arith.constant 0 : index
    %c0_19 = arith.constant 0 : index
    %73 = vector.load %arg5[%c0_18, %c0_19] : memref<1x256xf32, #tpu.memory_space<vmem>>, vector<1x256xf32>
    %74 = vector.broadcast %73 : vector<1x256xf32> to vector<128x256xf32>
    %75 = arith.addf %72, %74 : vector<128x256xf32>
    %76 = arith.addf %0, %75 : vector<128x256xf32>
    %c0_20 = arith.constant 0 : index
    %c0_21 = arith.constant 0 : index
    %77 = vector.load %arg10[%c0_20, %c0_21] : memref<4x128xf32, #tpu.memory_space<vmem>>, vector<4x128xf32>
    %c0_22 = arith.constant 0 : index
    %c0_23 = arith.constant 0 : index
    %78 = vector.load %arg11[%c0_22, %c0_23] : memref<1x256xf32, #tpu.memory_space<vmem>>, vector<1x256xf32>
    %79 = vector.extract_strided_slice %76 {offsets = [0, 0], sizes = [128, 128], strides = [1, 1]} : vector<128x256xf32> to vector<128x128xf32>
    %80 = vector.extract_strided_slice %76 {offsets = [0, 128], sizes = [128, 128], strides = [1, 1]} : vector<128x256xf32> to vector<128x128xf32>
    %cst_24 = arith.constant dense<0.000000e+00> : vector<128xf32>
    %81 = vector.multi_reduction <add>, %79, %cst_24 [1] : vector<128x128xf32> to vector<128xf32>
    %82 = vector.shape_cast %81 : vector<128xf32> to vector<128x1xf32>
    %cst_25 = arith.constant 1.280000e+02 : f32
    %83 = vector.broadcast %cst_25 : f32 to vector<128x1xf32>
    %84 = arith.divf %82, %83 : vector<128x1xf32>
    %cst_26 = arith.constant dense<0.000000e+00> : vector<128xf32>
    %85 = vector.multi_reduction <add>, %80, %cst_26 [1] : vector<128x128xf32> to vector<128xf32>
    %86 = vector.shape_cast %85 : vector<128xf32> to vector<128x1xf32>
    %cst_27 = arith.constant 1.280000e+02 : f32
    %87 = vector.broadcast %cst_27 : f32 to vector<128x1xf32>
    %88 = arith.divf %86, %87 : vector<128x1xf32>
    %89 = vector.broadcast %84 : vector<128x1xf32> to vector<128x128xf32>
    %90 = arith.subf %79, %89 : vector<128x128xf32>
    %91 = vector.broadcast %88 : vector<128x1xf32> to vector<128x128xf32>
    %92 = arith.subf %80, %91 : vector<128x128xf32>
    %93 = arith.mulf %90, %90 : vector<128x128xf32>
    %cst_28 = arith.constant dense<0.000000e+00> : vector<128xf32>
    %94 = vector.multi_reduction <add>, %93, %cst_28 [1] : vector<128x128xf32> to vector<128xf32>
    %95 = vector.shape_cast %94 : vector<128xf32> to vector<128x1xf32>
    %cst_29 = arith.constant 1.280000e+02 : f32
    %96 = vector.broadcast %cst_29 : f32 to vector<128x1xf32>
    %97 = arith.divf %95, %96 : vector<128x1xf32>
    %cst_30 = arith.constant 9.99999974E-6 : f32
    %98 = vector.broadcast %cst_30 : f32 to vector<128x1xf32>
    %99 = arith.addf %97, %98 : vector<128x1xf32>
    %100 = arith.mulf %92, %92 : vector<128x128xf32>
    %cst_31 = arith.constant dense<0.000000e+00> : vector<128xf32>
    %101 = vector.multi_reduction <add>, %100, %cst_31 [1] : vector<128x128xf32> to vector<128xf32>
    %102 = vector.shape_cast %101 : vector<128xf32> to vector<128x1xf32>
    %cst_32 = arith.constant 1.280000e+02 : f32
    %103 = vector.broadcast %cst_32 : f32 to vector<128x1xf32>
    %104 = arith.divf %102, %103 : vector<128x1xf32>
    %cst_33 = arith.constant 9.99999974E-6 : f32
    %105 = vector.broadcast %cst_33 : f32 to vector<128x1xf32>
    %106 = arith.addf %104, %105 : vector<128x1xf32>
    %107 = arith.mulf %90, %92 : vector<128x128xf32>
    %cst_34 = arith.constant dense<0.000000e+00> : vector<128xf32>
    %108 = vector.multi_reduction <add>, %107, %cst_34 [1] : vector<128x128xf32> to vector<128xf32>
    %109 = vector.shape_cast %108 : vector<128xf32> to vector<128x1xf32>
    %cst_35 = arith.constant 1.280000e+02 : f32
    %110 = vector.broadcast %cst_35 : f32 to vector<128x1xf32>
    %111 = arith.divf %109, %110 : vector<128x1xf32>
    %112 = arith.mulf %99, %106 : vector<128x1xf32>
    %113 = arith.mulf %111, %111 : vector<128x1xf32>
    %114 = arith.subf %112, %113 : vector<128x1xf32>
    %cst_36 = arith.constant 1.000000e-10 : f32
    %115 = vector.broadcast %cst_36 : f32 to vector<128x1xf32>
    %116 = arith.maximumf %114, %115 : vector<128x1xf32>
    %117 = math.sqrt %116 : vector<128x1xf32>
    %118 = arith.addf %99, %106 : vector<128x1xf32>
    %cst_37 = arith.constant 2.000000e+00 : f32
    %119 = vector.broadcast %cst_37 : f32 to vector<128x1xf32>
    %120 = arith.mulf %119, %117 : vector<128x1xf32>
    %121 = arith.addf %118, %120 : vector<128x1xf32>
    %122 = math.sqrt %121 : vector<128x1xf32>
    %123 = arith.mulf %117, %122 : vector<128x1xf32>
    %124 = tpu.reciprocal %123 {approx = true} : vector<128x1xf32> -> vector<128x1xf32>
    %125 = arith.addf %106, %117 : vector<128x1xf32>
    %126 = arith.mulf %125, %124 : vector<128x1xf32>
    %127 = arith.addf %99, %117 : vector<128x1xf32>
    %128 = arith.mulf %127, %124 : vector<128x1xf32>
    %cst_38 = arith.constant 0.000000e+00 : f32
    %129 = vector.broadcast %cst_38 : f32 to vector<128x1xf32>
    %130 = arith.subf %129, %111 : vector<128x1xf32>
    %131 = arith.mulf %130, %124 : vector<128x1xf32>
    %132 = vector.broadcast %126 : vector<128x1xf32> to vector<128x128xf32>
    %133 = arith.mulf %132, %90 : vector<128x128xf32>
    %134 = vector.broadcast %131 : vector<128x1xf32> to vector<128x128xf32>
    %135 = arith.mulf %134, %92 : vector<128x128xf32>
    %136 = arith.addf %133, %135 : vector<128x128xf32>
    %137 = vector.broadcast %131 : vector<128x1xf32> to vector<128x128xf32>
    %138 = arith.mulf %137, %90 : vector<128x128xf32>
    %139 = vector.broadcast %128 : vector<128x1xf32> to vector<128x128xf32>
    %140 = arith.mulf %139, %92 : vector<128x128xf32>
    %141 = arith.addf %138, %140 : vector<128x128xf32>
    %142 = vector.extract_strided_slice %77 {offsets = [0, 0], sizes = [1, 128], strides = [1, 1]} : vector<4x128xf32> to vector<1x128xf32>
    %143 = vector.broadcast %142 : vector<1x128xf32> to vector<128x128xf32>
    %144 = arith.mulf %143, %136 : vector<128x128xf32>
    %145 = vector.extract_strided_slice %77 {offsets = [1, 0], sizes = [1, 128], strides = [1, 1]} : vector<4x128xf32> to vector<1x128xf32>
    %146 = vector.broadcast %145 : vector<1x128xf32> to vector<128x128xf32>
    %147 = arith.mulf %146, %141 : vector<128x128xf32>
    %148 = arith.addf %144, %147 : vector<128x128xf32>
    %149 = vector.extract_strided_slice %77 {offsets = [2, 0], sizes = [1, 128], strides = [1, 1]} : vector<4x128xf32> to vector<1x128xf32>
    %150 = vector.broadcast %149 : vector<1x128xf32> to vector<128x128xf32>
    %151 = arith.mulf %150, %136 : vector<128x128xf32>
    %152 = vector.extract_strided_slice %77 {offsets = [3, 0], sizes = [1, 128], strides = [1, 1]} : vector<4x128xf32> to vector<1x128xf32>
    %153 = vector.broadcast %152 : vector<1x128xf32> to vector<128x128xf32>
    %154 = arith.mulf %153, %141 : vector<128x128xf32>
    %155 = arith.addf %151, %154 : vector<128x128xf32>
    %156 = tpu.concatenate %148, %155 in 1 : vector<128x128xf32>, vector<128x128xf32> -> vector<128x256xf32>
    %157 = vector.broadcast %78 : vector<1x256xf32> to vector<128x256xf32>
    %158 = arith.addf %156, %157 : vector<128x256xf32>
    %159 = arith.truncf %158 : vector<128x256xf32> to vector<128x256xbf16>
    %c0_39 = arith.constant 0 : index
    %c0_40 = arith.constant 0 : index
    %160 = vector.load %arg6[%c0_39, %c0_40] : memref<256x512xbf16, #tpu.memory_space<vmem>>, vector<256x512xbf16>
    %cst_41 = arith.constant dense<0.000000e+00> : vector<128x512xf32>
    %161 = tpu.matmul %159, %160, %cst_41 {dimension_numbers = #tpu.dot_dimension_numbers<[1], [0], [0], [1], [0, 0, 1, 1], [], []>} : vector<128x256xbf16>, vector<256x512xbf16>, vector<128x512xf32> -> vector<128x512xf32>
    %c0_42 = arith.constant 0 : index
    %c0_43 = arith.constant 0 : index
    %162 = vector.load %arg7[%c0_42, %c0_43] : memref<1x512xf32, #tpu.memory_space<vmem>>, vector<1x512xf32>
    %163 = vector.broadcast %162 : vector<1x512xf32> to vector<128x512xf32>
    %164 = arith.addf %161, %163 : vector<128x512xf32>
    %cst_44 = arith.constant 0.000000e+00 : f32
    %165 = vector.broadcast %cst_44 : f32 to vector<128x512xf32>
    %166 = arith.maximumf %164, %165 : vector<128x512xf32>
    %167 = arith.truncf %166 : vector<128x512xf32> to vector<128x512xbf16>
    %c0_45 = arith.constant 0 : index
    %c0_46 = arith.constant 0 : index
    %168 = vector.load %arg8[%c0_45, %c0_46] : memref<512x256xbf16, #tpu.memory_space<vmem>>, vector<512x256xbf16>
    %cst_47 = arith.constant dense<0.000000e+00> : vector<128x256xf32>
    %169 = tpu.matmul %167, %168, %cst_47 {dimension_numbers = #tpu.dot_dimension_numbers<[1], [0], [0], [1], [0, 0, 1, 1], [], []>} : vector<128x512xbf16>, vector<512x256xbf16>, vector<128x256xf32> -> vector<128x256xf32>
    %c0_48 = arith.constant 0 : index
    %c0_49 = arith.constant 0 : index
    %170 = vector.load %arg9[%c0_48, %c0_49] : memref<1x256xf32, #tpu.memory_space<vmem>>, vector<1x256xf32>
    %171 = vector.broadcast %170 : vector<1x256xf32> to vector<128x256xf32>
    %172 = arith.addf %169, %171 : vector<128x256xf32>
    %173 = arith.addf %158, %172 : vector<128x256xf32>
    %c0_50 = arith.constant 0 : index
    %c0_51 = arith.constant 0 : index
    %174 = vector.load %arg12[%c0_50, %c0_51] : memref<4x128xf32, #tpu.memory_space<vmem>>, vector<4x128xf32>
    %c0_52 = arith.constant 0 : index
    %c0_53 = arith.constant 0 : index
    %175 = vector.load %arg13[%c0_52, %c0_53] : memref<1x256xf32, #tpu.memory_space<vmem>>, vector<1x256xf32>
    %176 = vector.extract_strided_slice %173 {offsets = [0, 0], sizes = [128, 128], strides = [1, 1]} : vector<128x256xf32> to vector<128x128xf32>
    %177 = vector.extract_strided_slice %173 {offsets = [0, 128], sizes = [128, 128], strides = [1, 1]} : vector<128x256xf32> to vector<128x128xf32>
    %cst_54 = arith.constant dense<0.000000e+00> : vector<128xf32>
    %178 = vector.multi_reduction <add>, %176, %cst_54 [1] : vector<128x128xf32> to vector<128xf32>
    %179 = vector.shape_cast %178 : vector<128xf32> to vector<128x1xf32>
    %cst_55 = arith.constant 1.280000e+02 : f32
    %180 = vector.broadcast %cst_55 : f32 to vector<128x1xf32>
    %181 = arith.divf %179, %180 : vector<128x1xf32>
    %cst_56 = arith.constant dense<0.000000e+00> : vector<128xf32>
    %182 = vector.multi_reduction <add>, %177, %cst_56 [1] : vector<128x128xf32> to vector<128xf32>
    %183 = vector.shape_cast %182 : vector<128xf32> to vector<128x1xf32>
    %cst_57 = arith.constant 1.280000e+02 : f32
    %184 = vector.broadcast %cst_57 : f32 to vector<128x1xf32>
    %185 = arith.divf %183, %184 : vector<128x1xf32>
    %186 = vector.broadcast %181 : vector<128x1xf32> to vector<128x128xf32>
    %187 = arith.subf %176, %186 : vector<128x128xf32>
    %188 = vector.broadcast %185 : vector<128x1xf32> to vector<128x128xf32>
    %189 = arith.subf %177, %188 : vector<128x128xf32>
    %190 = arith.mulf %187, %187 : vector<128x128xf32>
    %cst_58 = arith.constant dense<0.000000e+00> : vector<128xf32>
    %191 = vector.multi_reduction <add>, %190, %cst_58 [1] : vector<128x128xf32> to vector<128xf32>
    %192 = vector.shape_cast %191 : vector<128xf32> to vector<128x1xf32>
    %cst_59 = arith.constant 1.280000e+02 : f32
    %193 = vector.broadcast %cst_59 : f32 to vector<128x1xf32>
    %194 = arith.divf %192, %193 : vector<128x1xf32>
    %cst_60 = arith.constant 9.99999974E-6 : f32
    %195 = vector.broadcast %cst_60 : f32 to vector<128x1xf32>
    %196 = arith.addf %194, %195 : vector<128x1xf32>
    %197 = arith.mulf %189, %189 : vector<128x128xf32>
    %cst_61 = arith.constant dense<0.000000e+00> : vector<128xf32>
    %198 = vector.multi_reduction <add>, %197, %cst_61 [1] : vector<128x128xf32> to vector<128xf32>
    %199 = vector.shape_cast %198 : vector<128xf32> to vector<128x1xf32>
    %cst_62 = arith.constant 1.280000e+02 : f32
    %200 = vector.broadcast %cst_62 : f32 to vector<128x1xf32>
    %201 = arith.divf %199, %200 : vector<128x1xf32>
    %cst_63 = arith.constant 9.99999974E-6 : f32
    %202 = vector.broadcast %cst_63 : f32 to vector<128x1xf32>
    %203 = arith.addf %201, %202 : vector<128x1xf32>
    %204 = arith.mulf %187, %189 : vector<128x128xf32>
    %cst_64 = arith.constant dense<0.000000e+00> : vector<128xf32>
    %205 = vector.multi_reduction <add>, %204, %cst_64 [1] : vector<128x128xf32> to vector<128xf32>
    %206 = vector.shape_cast %205 : vector<128xf32> to vector<128x1xf32>
    %cst_65 = arith.constant 1.280000e+02 : f32
    %207 = vector.broadcast %cst_65 : f32 to vector<128x1xf32>
    %208 = arith.divf %206, %207 : vector<128x1xf32>
    %209 = arith.mulf %196, %203 : vector<128x1xf32>
    %210 = arith.mulf %208, %208 : vector<128x1xf32>
    %211 = arith.subf %209, %210 : vector<128x1xf32>
    %cst_66 = arith.constant 1.000000e-10 : f32
    %212 = vector.broadcast %cst_66 : f32 to vector<128x1xf32>
    %213 = arith.maximumf %211, %212 : vector<128x1xf32>
    %214 = math.sqrt %213 : vector<128x1xf32>
    %215 = arith.addf %196, %203 : vector<128x1xf32>
    %cst_67 = arith.constant 2.000000e+00 : f32
    %216 = vector.broadcast %cst_67 : f32 to vector<128x1xf32>
    %217 = arith.mulf %216, %214 : vector<128x1xf32>
    %218 = arith.addf %215, %217 : vector<128x1xf32>
    %219 = math.sqrt %218 : vector<128x1xf32>
    %220 = arith.mulf %214, %219 : vector<128x1xf32>
    %221 = tpu.reciprocal %220 {approx = true} : vector<128x1xf32> -> vector<128x1xf32>
    %222 = arith.addf %203, %214 : vector<128x1xf32>
    %223 = arith.mulf %222, %221 : vector<128x1xf32>
    %224 = arith.addf %196, %214 : vector<128x1xf32>
    %225 = arith.mulf %224, %221 : vector<128x1xf32>
    %cst_68 = arith.constant 0.000000e+00 : f32
    %226 = vector.broadcast %cst_68 : f32 to vector<128x1xf32>
    %227 = arith.subf %226, %208 : vector<128x1xf32>
    %228 = arith.mulf %227, %221 : vector<128x1xf32>
    %229 = vector.broadcast %223 : vector<128x1xf32> to vector<128x128xf32>
    %230 = arith.mulf %229, %187 : vector<128x128xf32>
    %231 = vector.broadcast %228 : vector<128x1xf32> to vector<128x128xf32>
    %232 = arith.mulf %231, %189 : vector<128x128xf32>
    %233 = arith.addf %230, %232 : vector<128x128xf32>
    %234 = vector.broadcast %228 : vector<128x1xf32> to vector<128x128xf32>
    %235 = arith.mulf %234, %187 : vector<128x128xf32>
    %236 = vector.broadcast %225 : vector<128x1xf32> to vector<128x128xf32>
    %237 = arith.mulf %236, %189 : vector<128x128xf32>
    %238 = arith.addf %235, %237 : vector<128x128xf32>
    %239 = vector.extract_strided_slice %174 {offsets = [0, 0], sizes = [1, 128], strides = [1, 1]} : vector<4x128xf32> to vector<1x128xf32>
    %240 = vector.broadcast %239 : vector<1x128xf32> to vector<128x128xf32>
    %241 = arith.mulf %240, %233 : vector<128x128xf32>
    %242 = vector.extract_strided_slice %174 {offsets = [1, 0], sizes = [1, 128], strides = [1, 1]} : vector<4x128xf32> to vector<1x128xf32>
    %243 = vector.broadcast %242 : vector<1x128xf32> to vector<128x128xf32>
    %244 = arith.mulf %243, %238 : vector<128x128xf32>
    %245 = arith.addf %241, %244 : vector<128x128xf32>
    %246 = vector.extract_strided_slice %174 {offsets = [2, 0], sizes = [1, 128], strides = [1, 1]} : vector<4x128xf32> to vector<1x128xf32>
    %247 = vector.broadcast %246 : vector<1x128xf32> to vector<128x128xf32>
    %248 = arith.mulf %247, %233 : vector<128x128xf32>
    %249 = vector.extract_strided_slice %174 {offsets = [3, 0], sizes = [1, 128], strides = [1, 1]} : vector<4x128xf32> to vector<1x128xf32>
    %250 = vector.broadcast %249 : vector<1x128xf32> to vector<128x128xf32>
    %251 = arith.mulf %250, %238 : vector<128x128xf32>
    %252 = arith.addf %248, %251 : vector<128x128xf32>
    %253 = tpu.concatenate %245, %252 in 1 : vector<128x128xf32>, vector<128x128xf32> -> vector<128x256xf32>
    %254 = vector.broadcast %175 : vector<1x256xf32> to vector<128x256xf32>
    %255 = arith.addf %253, %254 : vector<128x256xf32>
    %c0_69 = arith.constant 0 : index
    %c0_70 = arith.constant 0 : index
    %256 = vector.load %arg14[%c0_69, %c0_70] : memref<128x256xf32, #tpu.memory_space<vmem>>, vector<128x256xf32>
    tpu.vector_store %arg14[%c0_69, %c0_70], %255 {strides = array<i32>} : memref<128x256xf32, #tpu.memory_space<vmem>>, vector<128x256xf32>,
    return
  }
  func.func @transform_0(%arg0: i32) -> (i32, i32) {
    %c0_i32 = arith.constant 0 : i32
    %c0_i32_0 = arith.constant 0 : i32
    return %arg0, %c0_i32 : i32, i32
  }
  func.func @transform_1(%arg0: i32) -> (i32, i32) {
    %c0_i32 = arith.constant 0 : i32
    %c0_i32_0 = arith.constant 0 : i32
    %c0_i32_1 = arith.constant 0 : i32
    return %c0_i32, %c0_i32_0 : i32, i32
  }
  func.func @transform_2(%arg0: i32) -> (i32, i32) {
    %c0_i32 = arith.constant 0 : i32
    %c0_i32_0 = arith.constant 0 : i32
    %c0_i32_1 = arith.constant 0 : i32
    return %c0_i32, %c0_i32_0 : i32, i32
  }
  func.func @transform_3(%arg0: i32) -> (i32, i32) {
    %c0_i32 = arith.constant 0 : i32
    %c0_i32_0 = arith.constant 0 : i32
    %c0_i32_1 = arith.constant 0 : i32
    return %c0_i32, %c0_i32_0 : i32, i32
  }
  func.func @transform_4(%arg0: i32) -> (i32, i32) {
    %c0_i32 = arith.constant 0 : i32
    %c0_i32_0 = arith.constant 0 : i32
    %c0_i32_1 = arith.constant 0 : i32
    return %c0_i32, %c0_i32_0 : i32, i32
  }
  func.func @transform_5(%arg0: i32) -> (i32, i32) {
    %c0_i32 = arith.constant 0 : i32
    %c0_i32_0 = arith.constant 0 : i32
    %c0_i32_1 = arith.constant 0 : i32
    return %c0_i32, %c0_i32_0 : i32, i32
  }
  func.func @transform_6(%arg0: i32) -> (i32, i32) {
    %c0_i32 = arith.constant 0 : i32
    %c0_i32_0 = arith.constant 0 : i32
    %c0_i32_1 = arith.constant 0 : i32
    return %c0_i32, %c0_i32_0 : i32, i32
  }
  func.func @transform_7(%arg0: i32) -> (i32, i32) {
    %c0_i32 = arith.constant 0 : i32
    %c0_i32_0 = arith.constant 0 : i32
    %c0_i32_1 = arith.constant 0 : i32
    return %c0_i32, %c0_i32_0 : i32, i32
  }
  func.func @transform_8(%arg0: i32) -> (i32, i32) {
    %c0_i32 = arith.constant 0 : i32
    %c0_i32_0 = arith.constant 0 : i32
    %c0_i32_1 = arith.constant 0 : i32
    return %c0_i32, %c0_i32_0 : i32, i32
  }
  func.func @transform_9(%arg0: i32) -> (i32, i32) {
    %c0_i32 = arith.constant 0 : i32
    %c0_i32_0 = arith.constant 0 : i32
    %c0_i32_1 = arith.constant 0 : i32
    return %c0_i32, %c0_i32_0 : i32, i32
  }
  func.func @transform_10(%arg0: i32) -> (i32, i32) {
    %c0_i32 = arith.constant 0 : i32
    %c0_i32_0 = arith.constant 0 : i32
    %c0_i32_1 = arith.constant 0 : i32
    return %c0_i32, %c0_i32_0 : i32, i32
  }
  func.func @transform_11(%arg0: i32) -> (i32, i32) {
    %c0_i32 = arith.constant 0 : i32
    %c0_i32_0 = arith.constant 0 : i32
    %c0_i32_1 = arith.constant 0 : i32
    return %c0_i32, %c0_i32_0 : i32, i32
  }
  func.func @transform_12(%arg0: i32) -> (i32, i32) {
    %c0_i32 = arith.constant 0 : i32
    %c0_i32_0 = arith.constant 0 : i32
    %c0_i32_1 = arith.constant 0 : i32
    return %c0_i32, %c0_i32_0 : i32, i32
  }
  func.func @transform_13(%arg0: i32) -> (i32, i32) {
    %c0_i32 = arith.constant 0 : i32
    %c0_i32_0 = arith.constant 0 : i32
    return %arg0, %c0_i32 : i32, i32
  }
}

</mosaic_0001>

<llo_original>
// kernel: tpu_custom_call.1
$region0: #{tpu_custom_call.1}
  #allocation0 [shape = 'u32[]', space=smem, size = 0x4, offset = 0x4, fixed_abs, tag = 'smem constant byte address 0x4 - core index']
  #allocation1 [shape = 'u32[144,128]{1,0:T(1,128)}', space=vmem, size = 0x12000, scoped, tag = 'internal scratch']
  %s0 = inlined_call_operand.hbm [shape: f32[256,256], index: 0, kind: input, shape index: {}]
  %s1 = inlined_call_operand.hbm [shape: bf16[256,1024], index: 1, kind: input, shape index: {}]
  %s2 = inlined_call_operand.hbm [shape: f32[1,1024], index: 2, kind: input, shape index: {}]
  %s3 = inlined_call_operand.hbm [shape: bf16[256,256], index: 3, kind: input, shape index: {}]
  %s4 = inlined_call_operand.vmem [shape: f32[1,256], index: 4, kind: input, shape index: {}]
  %s5 = inlined_call_operand.hbm [shape: bf16[256,512], index: 5, kind: input, shape index: {}]
  %s6 = inlined_call_operand.vmem [shape: f32[1,512], index: 6, kind: input, shape index: {}]
  %s7 = inlined_call_operand.hbm [shape: bf16[512,256], index: 7, kind: input, shape index: {}]
  %s8 = inlined_call_operand.vmem [shape: f32[1,256], index: 8, kind: input, shape index: {}]
  %s9 = inlined_call_operand.vmem [shape: f32[4,128], index: 9, kind: input, shape index: {}]
  %s10 = inlined_call_operand.vmem [shape: f32[1,256], index: 10, kind: input, shape index: {}]
  %s11 = inlined_call_operand.vmem [shape: f32[4,128], index: 11, kind: input, shape index: {}]
  %s12 = inlined_call_operand.vmem [shape: f32[1,256], index: 12, kind: input, shape index: {}]
  %s13 = inlined_call_operand.hbm [shape: f32[256,256], index: 13, kind: output, shape index: {}]
  %s14 = sld [smem:[#allocation0]]
  $region109: #{tpu_custom_call.1} parent=0
    _
  %s16 = ssub.s32 1, %s14
  %s17 = scalar_select 0, %s16, %s14
  $region1: #{tpu_custom_call.1} parent=0
    #allocation2 [shape = 'u8[262144]{0}', space=vmem, size = 0x40000, scoped, tag = 'input window, operand 0']
    #allocation3 [shape = 's32[2]{0}', space=sflag, size = 0x8, scoped, tag = 'scoped memory for tpu_custom_call.1']
    #allocation4 [shape = 's32[2]{0}', space=sflag, size = 0x8, scoped, tag = 'scoped memory for tpu_custom_call.1']
    #allocation5 [shape = 'u8[524288]{0}', space=vmem, size = 0x80000, scoped, tag = 'input window, operand 1, single buffered']
    #allocation6 [shape = 's32[1]{0}', space=sflag, size = 0x4, scoped, tag = 'scoped memory for tpu_custom_call.1']
    #allocation7 [shape = 'u8[4096]{0}', space=vmem, size = 0x1000, scoped, tag = 'input window, operand 2, single buffered']
    #allocation8 [shape = 'u8[131072]{0}', space=vmem, size = 0x20000, scoped, tag = 'input window, operand 3, single buffered']
    #allocation9 [shape = 's32[1]{0}', space=sflag, size = 0x4, scoped, tag = 'scoped memory for tpu_custom_call.1']
    #allocation10 [shape = 'u8[262144]{0}', space=vmem, size = 0x40000, scoped, tag = 'input window, operand 5, single buffered']
    #allocation11 [shape = 'u8[262144]{0}', space=vmem, size = 0x40000, scoped, tag = 'input window, operand 7, single buffered']
    #allocation12 [shape = 's32[1]{0}', space=sflag, size = 0x4, scoped, tag = 'scoped memory for tpu_custom_call.1']
    #allocation13 [shape = 'u8[262144]{0}', space=vmem, size = 0x40000, scoped, tag = 'output window, operand 0']
    %18 = vsyncpa [#allocation3], 0
    %s19 = scalar_lea.sflag [#allocation3], 1
    %20 = vsyncpa %s19, 0
    %21 = vsyncpa [#allocation6], 0
    %22 = vsyncpa [#allocation9], 0
    %23 = vsyncpa [#allocation12], 0
    %24 = vsyncpa [#allocation4], 0
    %s25 = scalar_lea.sflag [#allocation4], 1
    %26 = vsyncpa %s25, 0
    loop: start=0, step=1, limit=4
    $region2: #{tpu_custom_call.1} parent=1 // loop_pre_header
      _
    $region3: #{tpu_custom_call.1} parent=1 // loop_header
      %s28 = sphi 0, %s32
      %p29 = scmp.ge.s32.totalorder %s28, 4
      %s38 = sphi 0, %s40
      %s41 = sphi 0, %s38
      %s42 = sphi 0, %s41
      %s58 = sphi 0, %s42
      %s62 = sphi 0, %s62
      %s64 = sphi 0, %s62
      %s65 = sphi 0, %s64
      %s79 = sphi 0, %s65
      %s83 = sphi 0, %s83
      %s85 = sphi 0, %s83
      %s86 = sphi 0, %s85
      %s100 = sphi 0, %s86
      %s104 = sphi 0, %s104
      %s106 = sphi 0, %s104
      %s107 = sphi 0, %s106
      %s121 = sphi 0, %s107
      %s125 = sphi 0, %s125
      %s127 = sphi 0, %s125
      %s128 = sphi 0, %s127
      %s142 = sphi 0, %s128
      %s146 = sphi 0, %s146
      %s148 = sphi 0, %s146
      %s149 = sphi 0, %s148
      %s163 = sphi 0, %s149
      %s167 = sphi 0, %s167
      %s169 = sphi 0, %s167
      %s170 = sphi 0, %s169
      %s184 = sphi 0, %s170
      %s188 = sphi 0, %s188
      %s190 = sphi 0, %s188
      %s191 = sphi 0, %s190
      %s205 = sphi 0, %s191
      %s209 = sphi 0, %s209
      %s211 = sphi 0, %s209
      %s212 = sphi 0, %s211
      %s226 = sphi 0, %s212
      %s230 = sphi 0, %s230
      %s232 = sphi 0, %s230
      %s233 = sphi 0, %s232
      %s247 = sphi 0, %s233
      %s251 = sphi 0, %s251
      %s253 = sphi 0, %s251
      %s254 = sphi 0, %s253
      %s268 = sphi 0, %s254
      %s272 = sphi 0, %s272
      %s274 = sphi 0, %s272
      %s275 = sphi 0, %s274
      %s289 = sphi 0, %s275
      %s293 = sphi 0, %s293
      %s295 = sphi 0, %s293
      %s296 = sphi 0, %s295
      %s310 = sphi 0, %s296
      %s316 = sphi 0, %s318
      %s319 = sphi 0, %s316
      %s320 = sphi 0, %s319
      %s336 = sphi 0, %s320
    $region4: #{tpu_custom_call.1} parent=1 // loop_header_branch
      %31 = sbr.rel (%p29) target = $region8
    $region5: #{tpu_custom_call.1} parent=1 // loop_body
      %s33 = ssub.s32 %s28, 1
      %s34 = ssub.s32 %s28, 2
      %s35 = sadd.s32 %s28, 1
      %s36 = ssub.s32 %s28, %s35
      %p37 = scmp.eq.s32.totalorder %s36, 0
      %s39 = sadd.s32 %s38, 1
      %s40 = scalar_select %p37, %s38, %s39
      %p43 = pneg %p37
      %p44 = scmp.eq.s32.totalorder %s28, 1
      %p45 = por %p43, %p44
      %p46 = scmp.ne.s32.totalorder %s38, %s41
      %p47 = scmp.eq.s32.totalorder %s28, 0
      %p48 = por %p46, %p47
      %p49 = scmp.ne.s32.totalorder %s38, %s41
      %p50 = scmp.eq.s32.totalorder %s33, 1
      %p51 = por %p49, %p50
      %p52 = scmp.ne.s32.totalorder %s41, %s42
      %p53 = scmp.eq.s32.totalorder %s33, 0
      %p54 = por %p52, %p53
      %p55 = scmp.ne.s32.totalorder %s41, %s42
      %p56 = scmp.eq.s32.totalorder %s34, 1
      %p57 = por %p55, %p56
      %p59 = scmp.ne.s32.totalorder %s42, %s58
      %p60 = scmp.eq.s32.totalorder %s34, 0
      %p61 = por %p59, %p60
      %s63 = sadd.s32 %s62, 1
      %p66 = scmp.eq.s32.totalorder %s28, 1
      %p67 = scmp.ne.s32.totalorder %s62, %s64
      %p68 = scmp.eq.s32.totalorder %s28, 0
      %p69 = por %p67, %p68
      %p70 = scmp.ne.s32.totalorder %s62, %s64
      %p71 = scmp.eq.s32.totalorder %s33, 1
      %p72 = por %p70, %p71
      %p73 = scmp.ne.s32.totalorder %s64, %s65
      %p74 = scmp.eq.s32.totalorder %s33, 0
      %p75 = por %p73, %p74
      %p76 = scmp.ne.s32.totalorder %s64, %s65
      %p77 = scmp.eq.s32.totalorder %s34, 1
      %p78 = por %p76, %p77
      %p80 = scmp.ne.s32.totalorder %s65, %s79
      %p81 = scmp.eq.s32.totalorder %s34, 0
      %p82 = por %p80, %p81
      %s84 = sadd.s32 %s83, 1
      %p87 = scmp.eq.s32.totalorder %s28, 1
      %p88 = scmp.ne.s32.totalorder %s83, %s85
      %p89 = scmp.eq.s32.totalorder %s28, 0
      %p90 = por %p88, %p89
      %p91 = scmp.ne.s32.totalorder %s83, %s85
      %p92 = scmp.eq.s32.totalorder %s33, 1
      %p93 = por %p91, %p92
      %p94 = scmp.ne.s32.totalorder %s85, %s86
      %p95 = scmp.eq.s32.totalorder %s33, 0
      %p96 = por %p94, %p95
      %p97 = scmp.ne.s32.totalorder %s85, %s86
      %p98 = scmp.eq.s32.totalorder %s34, 1
      %p99 = por %p97, %p98
      %p101 = scmp.ne.s32.totalorder %s86, %s100
      %p102 = scmp.eq.s32.totalorder %s34, 0
      %p103 = por %p101, %p102
      %s105 = sadd.s32 %s104, 1
      %p108 = scmp.eq.s32.totalorder %s28, 1
      %p109 = scmp.ne.s32.totalorder %s104, %s106
      %p110 = scmp.eq.s32.totalorder %s28, 0
      %p111 = por %p109, %p110
      %p112 = scmp.ne.s32.totalorder %s104, %s106
      %p113 = scmp.eq.s32.totalorder %s33, 1
      %p114 = por %p112, %p113
      %p115 = scmp.ne.s32.totalorder %s106, %s107
      %p116 = scmp.eq.s32.totalorder %s33, 0
      %p117 = por %p115, %p116
      %p118 = scmp.ne.s32.totalorder %s106, %s107
      %p119 = scmp.eq.s32.totalorder %s34, 1
      %p120 = por %p118, %p119
      %p122 = scmp.ne.s32.totalorder %s107, %s121
      %p123 = scmp.eq.s32.totalorder %s34, 0
      %p124 = por %p122, %p123
      %s126 = sadd.s32 %s125, 1
      %p129 = scmp.eq.s32.totalorder %s28, 1
      %p130 = scmp.ne.s32.totalorder %s125, %s127
      %p131 = scmp.eq.s32.totalorder %s28, 0
      %p132 = por %p130, %p131
      %p133 = scmp.ne.s32.totalorder %s125, %s127
      %p134 = scmp.eq.s32.totalorder %s33, 1
      %p135 = por %p133, %p134
      %p136 = scmp.ne.s32.totalorder %s127, %s128
      %p137 = scmp.eq.s32.totalorder %s33, 0
      %p138 = por %p136, %p137
      %p139 = scmp.ne.s32.totalorder %s127, %s128
      %p140 = scmp.eq.s32.totalorder %s34, 1
      %p141 = por %p139, %p140
      %p143 = scmp.ne.s32.totalorder %s128, %s142
      %p144 = scmp.eq.s32.totalorder %s34, 0
      %p145 = por %p143, %p144
      %s147 = sadd.s32 %s146, 1
      %p150 = scmp.eq.s32.totalorder %s28, 1
      %p151 = scmp.ne.s32.totalorder %s146, %s148
      %p152 = scmp.eq.s32.totalorder %s28, 0
      %p153 = por %p151, %p152
      %p154 = scmp.ne.s32.totalorder %s146, %s148
      %p155 = scmp.eq.s32.totalorder %s33, 1
      %p156 = por %p154, %p155
      %p157 = scmp.ne.s32.totalorder %s148, %s149
      %p158 = scmp.eq.s32.totalorder %s33, 0
      %p159 = por %p157, %p158
      %p160 = scmp.ne.s32.totalorder %s148, %s149
      %p161 = scmp.eq.s32.totalorder %s34, 1
      %p162 = por %p160, %p161
      %p164 = scmp.ne.s32.totalorder %s149, %s163
      %p165 = scmp.eq.s32.totalorder %s34, 0
      %p166 = por %p164, %p165
      %s168 = sadd.s32 %s167, 1
      %p171 = scmp.eq.s32.totalorder %s28, 1
      %p172 = scmp.ne.s32.totalorder %s167, %s169
      %p173 = scmp.eq.s32.totalorder %s28, 0
      %p174 = por %p172, %p173
      %p175 = scmp.ne.s32.totalorder %s167, %s169
      %p176 = scmp.eq.s32.totalorder %s33, 1
      %p177 = por %p175, %p176
      %p178 = scmp.ne.s32.totalorder %s169, %s170
      %p179 = scmp.eq.s32.totalorder %s33, 0
      %p180 = por %p178, %p179
      %p181 = scmp.ne.s32.totalorder %s169, %s170
      %p182 = scmp.eq.s32.totalorder %s34, 1
      %p183 = por %p181, %p182
      %p185 = scmp.ne.s32.totalorder %s170, %s184
      %p186 = scmp.eq.s32.totalorder %s34, 0
      %p187 = por %p185, %p186
      %s189 = sadd.s32 %s188, 1
      %p192 = scmp.eq.s32.totalorder %s28, 1
      %p193 = scmp.ne.s32.totalorder %s188, %s190
      %p194 = scmp.eq.s32.totalorder %s28, 0
      %p195 = por %p193, %p194
      %p196 = scmp.ne.s32.totalorder %s188, %s190
      %p197 = scmp.eq.s32.totalorder %s33, 1
      %p198 = por %p196, %p197
      %p199 = scmp.ne.s32.totalorder %s190, %s191
      %p200 = scmp.eq.s32.totalorder %s33, 0
      %p201 = por %p199, %p200
      %p202 = scmp.ne.s32.totalorder %s190, %s191
      %p203 = scmp.eq.s32.totalorder %s34, 1
      %p204 = por %p202, %p203
      %p206 = scmp.ne.s32.totalorder %s191, %s205
      %p207 = scmp.eq.s32.totalorder %s34, 0
      %p208 = por %p206, %p207
      %s210 = sadd.s32 %s209, 1
      %p213 = scmp.eq.s32.totalorder %s28, 1
      %p214 = scmp.ne.s32.totalorder %s209, %s211
      %p215 = scmp.eq.s32.totalorder %s28, 0
      %p216 = por %p214, %p215
      %p217 = scmp.ne.s32.totalorder %s209, %s211
      %p218 = scmp.eq.s32.totalorder %s33, 1
      %p219 = por %p217, %p218
      %p220 = scmp.ne.s32.totalorder %s211, %s212
      %p221 = scmp.eq.s32.totalorder %s33, 0
      %p222 = por %p220, %p221
      %p223 = scmp.ne.s32.totalorder %s211, %s212
      %p224 = scmp.eq.s32.totalorder %s34, 1
      %p225 = por %p223, %p224
      %p227 = scmp.ne.s32.totalorder %s212, %s226
      %p228 = scmp.eq.s32.totalorder %s34, 0
      %p229 = por %p227, %p228
      %s231 = sadd.s32 %s230, 1
      %p234 = scmp.eq.s32.totalorder %s28, 1
      %p235 = scmp.ne.s32.totalorder %s230, %s232
      %p236 = scmp.eq.s32.totalorder %s28, 0
      %p237 = por %p235, %p236
      %p238 = scmp.ne.s32.totalorder %s230, %s232
      %p239 = scmp.eq.s32.totalorder %s33, 1
      %p240 = por %p238, %p239
      %p241 = scmp.ne.s32.totalorder %s232, %s233
      %p242 = scmp.eq.s32.totalorder %s33, 0
      %p243 = por %p241, %p242
      %p244 = scmp.ne.s32.totalorder %s232, %s233
      %p245 = scmp.eq.s32.totalorder %s34, 1
      %p246 = por %p244, %p245
      %p248 = scmp.ne.s32.totalorder %s233, %s247
      %p249 = scmp.eq.s32.totalorder %s34, 0
      %p250 = por %p248, %p249
      %s252 = sadd.s32 %s251, 1
      %p255 = scmp.eq.s32.totalorder %s28, 1
      %p256 = scmp.ne.s32.totalorder %s251, %s253
      %p257 = scmp.eq.s32.totalorder %s28, 0
      %p258 = por %p256, %p257
      %p259 = scmp.ne.s32.totalorder %s251, %s253
      %p260 = scmp.eq.s32.totalorder %s33, 1
      %p261 = por %p259, %p260
      %p262 = scmp.ne.s32.totalorder %s253, %s254
      %p263 = scmp.eq.s32.totalorder %s33, 0
      %p264 = por %p262, %p263
      %p265 = scmp.ne.s32.totalorder %s253, %s254
      %p266 = scmp.eq.s32.totalorder %s34, 1
      %p267 = por %p265, %p266
      %p269 = scmp.ne.s32.totalorder %s254, %s268
      %p270 = scmp.eq.s32.totalorder %s34, 0
      %p271 = por %p269, %p270
      %s273 = sadd.s32 %s272, 1
      %p276 = scmp.eq.s32.totalorder %s28, 1
      %p277 = scmp.ne.s32.totalorder %s272, %s274
      %p278 = scmp.eq.s32.totalorder %s28, 0
      %p279 = por %p277, %p278
      %p280 = scmp.ne.s32.totalorder %s272, %s274
      %p281 = scmp.eq.s32.totalorder %s33, 1
      %p282 = por %p280, %p281
      %p283 = scmp.ne.s32.totalorder %s274, %s275
      %p284 = scmp.eq.s32.totalorder %s33, 0
      %p285 = por %p283, %p284
      %p286 = scmp.ne.s32.totalorder %s274, %s275
      %p287 = scmp.eq.s32.totalorder %s34, 1
      %p288 = por %p286, %p287
      %p290 = scmp.ne.s32.totalorder %s275, %s289
      %p291 = scmp.eq.s32.totalorder %s34, 0
      %p292 = por %p290, %p291
      %s294 = sadd.s32 %s293, 1
      %p297 = scmp.eq.s32.totalorder %s28, 1
      %p298 = scmp.ne.s32.totalorder %s293, %s295
      %p299 = scmp.eq.s32.totalorder %s28, 0
      %p300 = por %p298, %p299
      %p301 = scmp.ne.s32.totalorder %s293, %s295
      %p302 = scmp.eq.s32.totalorder %s33, 1
      %p303 = por %p301, %p302
      %p304 = scmp.ne.s32.totalorder %s295, %s296
      %p305 = scmp.eq.s32.totalorder %s33, 0
      %p306 = por %p304, %p305
      %p307 = scmp.ne.s32.totalorder %s295, %s296
      %p308 = scmp.eq.s32.totalorder %s34, 1
      %p309 = por %p307, %p308
      %p311 = scmp.ne.s32.totalorder %s296, %s310
      %p312 = scmp.eq.s32.totalorder %s34, 0
      %p313 = por %p311, %p312
      %s314 = ssub.s32 %s28, %s35
      %p315 = scmp.eq.s32.totalorder %s314, 0
      %s317 = sadd.s32 %s316, 1
      %s318 = scalar_select %p315, %s316, %s317
      %p321 = pneg %p315
      %p322 = scmp.eq.s32.totalorder %s28, 1
      %p323 = por %p321, %p322
      %p324 = scmp.ne.s32.totalorder %s316, %s319
      %p325 = scmp.eq.s32.totalorder %s28, 0
      %p326 = por %p324, %p325
      %p327 = scmp.ne.s32.totalorder %s316, %s319
      %p328 = scmp.eq.s32.totalorder %s33, 1
      %p329 = por %p327, %p328
      %p330 = scmp.ne.s32.totalorder %s319, %s320
      %p331 = scmp.eq.s32.totalorder %s33, 0
      %p332 = por %p330, %p331
      %p333 = scmp.ne.s32.totalorder %s319, %s320
      %p334 = scmp.eq.s32.totalorder %s34, 1
      %p335 = por %p333, %p334
      %p337 = scmp.ne.s32.totalorder %s320, %s336
      %p338 = scmp.eq.s32.totalorder %s34, 0
      %p339 = por %p337, %p338
      %p340 = scmp.le.s32.totalorder 1, %s28
      %p341 = scmp.lt.s32.totalorder %s28, 3
      %p342 = pnand %p340, %p341
      %p343 = pneg %p342
      // Predicated region
      $region9: #{tpu_custom_call.1} parent=5 // pred_check
        _
      $region10: #{tpu_custom_call.1} parent=5 // pred_check_branch
        %345 = sbr.rel (%p342) target = $region12
      $region11: #{tpu_custom_call.1} parent=5 // pred_region
        %s346 = ssub.s32 %s28, 1
        // Predicated region
        $region13: #{tpu_custom_call.1} parent=11 // pred_check
          %p347 = pneg %p75
        $region14: #{tpu_custom_call.1} parent=11 // pred_check_branch
          %349 = sbr.rel (%p347) target = $region16
        $region15: #{tpu_custom_call.1} parent=11 // pred_region
          %s351 = ssub.s32 16384, 16384
          %352 = vsyncadd [#allocation6], %s351
          %s353 = sshll.u32 [#allocation5], 4
          %s354 = int_to_ptr.vmem [resolvable:$true] %s353
          %359 = dma.hbm_to_vmem [thread:$0]  %s1, 16384, %s354, [#allocation6], 512, 512, 32
        $region16: #{tpu_custom_call.1} parent=11 // pred_fallthru
          _
        // Predicated region
        $region17: #{tpu_custom_call.1} parent=11 // pred_check
          %p360 = pneg %p96
        $region18: #{tpu_custom_call.1} parent=11 // pred_check_branch
          %362 = sbr.rel (%p360) target = $region20
        $region19: #{tpu_custom_call.1} parent=11 // pred_region
          %s364 = ssub.s32 128, 128
          %365 = vsyncadd [#allocation6], %s364
          %s367 = sshll.u32 [#allocation7], 4
          %s368 = int_to_ptr.vmem [resolvable:$true] %s367
          %370 = dma.hbm_to_vmem [thread:$0]  %s2, 128, %s368, [#allocation6]
        $region20: #{tpu_custom_call.1} parent=11 // pred_fallthru
          _
        // Predicated region
        $region21: #{tpu_custom_call.1} parent=11 // pred_check
          %p371 = pneg %p117
        $region22: #{tpu_custom_call.1} parent=11 // pred_check_branch
          %373 = sbr.rel (%p371) target = $region24
        $region23: #{tpu_custom_call.1} parent=11 // pred_region
          %s375 = ssub.s32 4096, 4096
          %376 = vsyncadd [#allocation9], %s375
          %s377 = sshll.u32 [#allocation8], 4
          %s378 = int_to_ptr.vmem [resolvable:$true] %s377
          %383 = dma.hbm_to_vmem [thread:$0]  %s3, 4096, %s378, [#allocation9], 128, 128, 8
        $region24: #{tpu_custom_call.1} parent=11 // pred_fallthru
          _
        // Predicated region
        $region25: #{tpu_custom_call.1} parent=11 // pred_check
          %p384 = pneg %p138
        $region26: #{tpu_custom_call.1} parent=11 // pred_check_branch
          %386 = sbr.rel (%p384) target = $region28
        $region27: #{tpu_custom_call.1} parent=11 // pred_region
          _
        $region28: #{tpu_custom_call.1} parent=11 // pred_fallthru
          _
        // Predicated region
        $region29: #{tpu_custom_call.1} parent=11 // pred_check
          %p387 = pneg %p159
        $region30: #{tpu_custom_call.1} parent=11 // pred_check_branch
          %389 = sbr.rel (%p387) target = $region32
        $region31: #{tpu_custom_call.1} parent=11 // pred_region
          %s391 = ssub.s32 8192, 8192
          %392 = vsyncadd [#allocation9], %s391
          %s393 = sshll.u32 [#allocation10], 4
          %s394 = int_to_ptr.vmem [resolvable:$true] %s393
          %399 = dma.hbm_to_vmem [thread:$0]  %s5, 8192, %s394, [#allocation9], 256, 256, 16
        $region32: #{tpu_custom_call.1} parent=11 // pred_fallthru
          _
        // Predicated region
        $region33: #{tpu_custom_call.1} parent=11 // pred_check
          %p400 = pneg %p180
        $region34: #{tpu_custom_call.1} parent=11 // pred_check_branch
          %402 = sbr.rel (%p400) target = $region36
        $region35: #{tpu_custom_call.1} parent=11 // pred_region
          _
        $region36: #{tpu_custom_call.1} parent=11 // pred_fallthru
          _
        // Predicated region
        $region37: #{tpu_custom_call.1} parent=11 // pred_check
          %p403 = pneg %p201
        $region38: #{tpu_custom_call.1} parent=11 // pred_check_branch
          %405 = sbr.rel (%p403) target = $region40
        $region39: #{tpu_custom_call.1} parent=11 // pred_region
          %s407 = ssub.s32 8192, 8192
          %408 = vsyncadd [#allocation12], %s407
          %s409 = sshll.u32 [#allocation11], 4
          %s410 = int_to_ptr.vmem [resolvable:$true] %s409
          %415 = dma.hbm_to_vmem [thread:$0]  %s7, 8192, %s410, [#allocation12], 128, 128, 8
        $region40: #{tpu_custom_call.1} parent=11 // pred_fallthru
          _
        // Predicated region
        $region41: #{tpu_custom_call.1} parent=11 // pred_check
          %p416 = pneg %p222
        $region42: #{tpu_custom_call.1} parent=11 // pred_check_branch
          %418 = sbr.rel (%p416) target = $region44
        $region43: #{tpu_custom_call.1} parent=11 // pred_region
          _
        $region44: #{tpu_custom_call.1} parent=11 // pred_fallthru
          _
        // Predicated region
        $region45: #{tpu_custom_call.1} parent=11 // pred_check
          %p419 = pneg %p243
        $region46: #{tpu_custom_call.1} parent=11 // pred_check_branch
          %421 = sbr.rel (%p419) target = $region48
        $region47: #{tpu_custom_call.1} parent=11 // pred_region
          _
        $region48: #{tpu_custom_call.1} parent=11 // pred_fallthru
          _
        // Predicated region
        $region49: #{tpu_custom_call.1} parent=11 // pred_check
          %p422 = pneg %p264
        $region50: #{tpu_custom_call.1} parent=11 // pred_check_branch
          %424 = sbr.rel (%p422) target = $region52
        $region51: #{tpu_custom_call.1} parent=11 // pred_region
          _
        $region52: #{tpu_custom_call.1} parent=11 // pred_fallthru
          _
        // Predicated region
        $region53: #{tpu_custom_call.1} parent=11 // pred_check
          %p425 = pneg %p285
        $region54: #{tpu_custom_call.1} parent=11 // pred_check_branch
          %427 = sbr.rel (%p425) target = $region56
        $region55: #{tpu_custom_call.1} parent=11 // pred_region
          _
        $region56: #{tpu_custom_call.1} parent=11 // pred_fallthru
          _
        // Predicated region
        $region57: #{tpu_custom_call.1} parent=11 // pred_check
          %p428 = pneg %p306
        $region58: #{tpu_custom_call.1} parent=11 // pred_check_branch
          %430 = sbr.rel (%p428) target = $region60
        $region59: #{tpu_custom_call.1} parent=11 // pred_region
          _
        $region60: #{tpu_custom_call.1} parent=11 // pred_fallthru
          _
      $region12: #{tpu_custom_call.1} parent=5 // pred_fallthru
        _
      %p431 = scmp.lt.s32.totalorder %s28, 2
      // Predicated region
      $region61: #{tpu_custom_call.1} parent=5 // pred_check
        %p432 = pneg %p431
      $region62: #{tpu_custom_call.1} parent=5 // pred_check_branch
        %434 = sbr.rel (%p432) target = $region64
      $region63: #{tpu_custom_call.1} parent=5 // pred_region
        // Predicated region
        $region65: #{tpu_custom_call.1} parent=63 // pred_check
          %p435 = pneg %p48
        $region66: #{tpu_custom_call.1} parent=63 // pred_check_branch
          %437 = sbr.rel (%p435) target = $region68
        $region67: #{tpu_custom_call.1} parent=63 // pred_region
          %s438 = sand.u32 %s38, 1
          %s439 = scalar_lea.sflag [#allocation3], %s438
          %s440 = sand.u32 %s38, 1
          %s441 = smul.addr %s440, 256
          %s442 = scalar_lea.vmem [#allocation2], %s441
          %s443 = smul.u32 16, %s28
          %s445 = ssub.s32 4096, 4096
          %446 = vsyncadd %s439, %s445
          %s447 = smul.addr %s443, 2
          %s448 = smul.addr %s447, 128
          %s449 = scalar_lea.hbm %s0, %s448
          %s450 = sshll.u32 %s442, 4
          %s451 = int_to_ptr.vmem [resolvable:$true] %s450
          %456 = dma.hbm_to_vmem [thread:$0]  %s449, 4096, %s451, %s439, 256, 256, 16
        $region68: #{tpu_custom_call.1} parent=63 // pred_fallthru
          _
      $region64: #{tpu_custom_call.1} parent=5 // pred_fallthru
        _
      %p457 = scmp.le.s32.totalorder 1, %s28
      %p458 = scmp.lt.s32.totalorder %s28, 3
      %p459 = pnand %p457, %p458
      %p460 = pneg %p459
      // Predicated region
      $region69: #{tpu_custom_call.1} parent=5 // pred_check
        _
      $region70: #{tpu_custom_call.1} parent=5 // pred_check_branch
        %462 = sbr.rel (%p459) target = $region72
      $region71: #{tpu_custom_call.1} parent=5 // pred_region
        %s463 = ssub.s32 %s28, 1
        %s464 = sand.u32 %s41, 1
        %s465 = scalar_lea.sflag [#allocation3], %s464
        %s466 = sand.u32 %s41, 1
        %s467 = smul.addr %s466, 256
        %s468 = scalar_lea.vmem [#allocation2], %s467
        // Predicated region
        $region73: #{tpu_custom_call.1} parent=71 // pred_check
          %p469 = pneg %p54
        $region74: #{tpu_custom_call.1} parent=71 // pred_check_branch
          %471 = sbr.rel (%p469) target = $region76
        $region75: #{tpu_custom_call.1} parent=71 // pred_region
          %472 = dma.done %s465, 4096
        $region76: #{tpu_custom_call.1} parent=71 // pred_fallthru
          _
        // Predicated region
        $region77: #{tpu_custom_call.1} parent=71 // pred_check
          %p473 = pneg %p75
        $region78: #{tpu_custom_call.1} parent=71 // pred_check_branch
          %475 = sbr.rel (%p473) target = $region80
        $region79: #{tpu_custom_call.1} parent=71 // pred_region
          %476 = dma.done [#allocation6], 16384
        $region80: #{tpu_custom_call.1} parent=71 // pred_fallthru
          _
        // Predicated region
        $region81: #{tpu_custom_call.1} parent=71 // pred_check
          %p477 = pneg %p96
        $region82: #{tpu_custom_call.1} parent=71 // pred_check_branch
          %479 = sbr.rel (%p477) target = $region84
        $region83: #{tpu_custom_call.1} parent=71 // pred_region
          %480 = dma.done [#allocation6], 128
        $region84: #{tpu_custom_call.1} parent=71 // pred_fallthru
          _
        // Predicated region
        $region85: #{tpu_custom_call.1} parent=71 // pred_check
          %p481 = pneg %p117
        $region86: #{tpu_custom_call.1} parent=71 // pred_check_branch
          %483 = sbr.rel (%p481) target = $region88
        $region87: #{tpu_custom_call.1} parent=71 // pred_region
          %484 = dma.done [#allocation9], 4096
        $region88: #{tpu_custom_call.1} parent=71 // pred_fallthru
          _
        // Predicated region
        $region89: #{tpu_custom_call.1} parent=71 // pred_check
          %p485 = pneg %p159
        $region90: #{tpu_custom_call.1} parent=71 // pred_check_branch
          %487 = sbr.rel (%p485) target = $region92
        $region91: #{tpu_custom_call.1} parent=71 // pred_region
          %488 = dma.done [#allocation9], 8192
        $region92: #{tpu_custom_call.1} parent=71 // pred_fallthru
          _
        // Predicated region
        $region93: #{tpu_custom_call.1} parent=71 // pred_check
          %p489 = pneg %p201
        $region94: #{tpu_custom_call.1} parent=71 // pred_check_branch
          %491 = sbr.rel (%p489) target = $region96
        $region95: #{tpu_custom_call.1} parent=71 // pred_region
          %492 = dma.done [#allocation12], 8192
        $region96: #{tpu_custom_call.1} parent=71 // pred_fallthru
          _
        %s493 = sand.u32 %s41, 1
        %s494 = scalar_lea.sflag [#allocation3], %s493
        %s495 = sand.u32 %s41, 1
        %s496 = smul.addr %s495, 256
        %s497 = scalar_lea.vmem [#allocation2], %s496
        %p498 = pneg %p54
        %p499 = pneg %p51
        %p500 = pneg %p75
        %p501 = pneg %p72
        %p502 = pneg %p96
        %p503 = pneg %p93
        %p504 = pneg %p117
        %p505 = pneg %p114
        %p506 = pneg %p138
        %p507 = pneg %p135
        %p508 = pneg %p159
        %p509 = pneg %p156
        %p510 = pneg %p180
        %p511 = pneg %p177
        %p512 = pneg %p201
        %p513 = pneg %p198
        %p514 = pneg %p222
        %p515 = pneg %p219
        %p516 = pneg %p243
        %p517 = pneg %p240
        %p518 = pneg %p264
        %p519 = pneg %p261
        %p520 = pneg %p285
        %p521 = pneg %p282
        %p522 = pneg %p306
        %p523 = pneg %p303
        %p524 = pneg %p332
        %p525 = pneg %p329
        %s526 = sand.u32 %s319, 1
        %s527 = scalar_lea.sflag [#allocation4], %s526
        %s528 = sand.u32 %s319, 1
        %s529 = smul.addr %s528, 256
        %s530 = scalar_lea.vmem [#allocation13], %s529
        %s531 = smul.u32 16, %s33
        %s532 = smul.u32 16, %s33
        %v534 = vld [vmem:[%s468] sm:$0xff]
        %v535 = vld [vmem:[%s468 + $0x8] sm:$0xff]
        %v536 = vld [vmem:[%s468 + $0x10] sm:$0xff]
        %v537 = vld [vmem:[%s468 + $0x18] sm:$0xff]
        %v538 = vld [vmem:[%s468 + $0x20] sm:$0xff]
        %v539 = vld [vmem:[%s468 + $0x28] sm:$0xff]
        %v540 = vld [vmem:[%s468 + $0x30] sm:$0xff]
        %v541 = vld [vmem:[%s468 + $0x38] sm:$0xff]
        %v542 = vld [vmem:[%s468 + $0x40] sm:$0xff]
        %v543 = vld [vmem:[%s468 + $0x48] sm:$0xff]
        %v544 = vld [vmem:[%s468 + $0x50] sm:$0xff]
        %v545 = vld [vmem:[%s468 + $0x58] sm:$0xff]
        %v546 = vld [vmem:[%s468 + $0x60] sm:$0xff]
        %v547 = vld [vmem:[%s468 + $0x68] sm:$0xff]
        %v548 = vld [vmem:[%s468 + $0x70] sm:$0xff]
        %v549 = vld [vmem:[%s468 + $0x78] sm:$0xff]
        %v550 = vld [vmem:[%s468 + $0x80] sm:$0xff]
        %v551 = vld [vmem:[%s468 + $0x88] sm:$0xff]
        %v552 = vld [vmem:[%s468 + $0x90] sm:$0xff]
        %v553 = vld [vmem:[%s468 + $0x98] sm:$0xff]
        %v554 = vld [vmem:[%s468 + $0xa0] sm:$0xff]
        %v555 = vld [vmem:[%s468 + $0xa8] sm:$0xff]
        %v556 = vld [vmem:[%s468 + $0xb0] sm:$0xff]
        %v557 = vld [vmem:[%s468 + $0xb8] sm:$0xff]
        %v558 = vld [vmem:[%s468 + $0xc0] sm:$0xff]
        %v559 = vld [vmem:[%s468 + $0xc8] sm:$0xff]
        %v560 = vld [vmem:[%s468 + $0xd0] sm:$0xff]
        %v561 = vld [vmem:[%s468 + $0xd8] sm:$0xff]
        %v562 = vld [vmem:[%s468 + $0xe0] sm:$0xff]
        %v563 = vld [vmem:[%s468 + $0xe8] sm:$0xff]
        %v564 = vld [vmem:[%s468 + $0xf0] sm:$0xff]
        %v565 = vld [vmem:[%s468 + $0xf8] sm:$0xff]
        %v566 = vpack.c.bf16 %v536, %v534
        %v567 = vpack.c.bf16 %v537, %v535
        %v568 = vpack.c.bf16 %v540, %v538
        %v569 = vpack.c.bf16 %v541, %v539
        %v570 = vpack.c.bf16 %v544, %v542
        %v571 = vpack.c.bf16 %v545, %v543
        %v572 = vpack.c.bf16 %v548, %v546
        %v573 = vpack.c.bf16 %v549, %v547
        %v574 = vpack.c.bf16 %v552, %v550
        %v575 = vpack.c.bf16 %v553, %v551
        %v576 = vpack.c.bf16 %v556, %v554
        %v577 = vpack.c.bf16 %v557, %v555
        %v578 = vpack.c.bf16 %v560, %v558
        %v579 = vpack.c.bf16 %v561, %v559
        %v580 = vpack.c.bf16 %v564, %v562
        %v581 = vpack.c.bf16 %v565, %v563
        %v582 = vld [vmem:[#allocation5] sm:$0xff]
        %v583 = vld [vmem:[#allocation5 + $0x8] sm:$0xff]
        %v584 = vld [vmem:[#allocation5 + $0x10] sm:$0xff]
        %v585 = vld [vmem:[#allocation5 + $0x18] sm:$0xff]
        %v586 = vld [vmem:[#allocation5 + $0x20] sm:$0xff]
        %v587 = vld [vmem:[#allocation5 + $0x28] sm:$0xff]
        %v588 = vld [vmem:[#allocation5 + $0x30] sm:$0xff]
        %v589 = vld [vmem:[#allocation5 + $0x38] sm:$0xff]
        %v590 = vld [vmem:[#allocation5 + $0x40] sm:$0xff]
        %v591 = vld [vmem:[#allocation5 + $0x48] sm:$0xff]
        %v592 = vld [vmem:[#allocation5 + $0x50] sm:$0xff]
        %v593 = vld [vmem:[#allocation5 + $0x58] sm:$0xff]
        %v594 = vld [vmem:[#allocation5 + $0x60] sm:$0xff]
        %v595 = vld [vmem:[#allocation5 + $0x68] sm:$0xff]
        %v596 = vld [vmem:[#allocation5 + $0x70] sm:$0xff]
        %v597 = vld [vmem:[#allocation5 + $0x78] sm:$0xff]
        %v598 = vld [vmem:[#allocation5 + $0x80] sm:$0xff]
        %v599 = vld [vmem:[#allocation5 + $0x88] sm:$0xff]
        %v600 = vld [vmem:[#allocation5 + $0x90] sm:$0xff]
        %v601 = vld [vmem:[#allocation5 + $0x98] sm:$0xff]
        %v602 = vld [vmem:[#allocation5 + $0xa0] sm:$0xff]
        %v603 = vld [vmem:[#allocation5 + $0xa8] sm:$0xff]
        %v604 = vld [vmem:[#allocation5 + $0xb0] sm:$0xff]
        %v605 = vld [vmem:[#allocation5 + $0xb8] sm:$0xff]
        %v606 = vld [vmem:[#allocation5 + $0xc0] sm:$0xff]
        %v607 = vld [vmem:[#allocation5 + $0xc8] sm:$0xff]
        %v608 = vld [vmem:[#allocation5 + $0xd0] sm:$0xff]
        %v609 = vld [vmem:[#allocation5 + $0xd8] sm:$0xff]
        %v610 = vld [vmem:[#allocation5 + $0xe0] sm:$0xff]
        %v611 = vld [vmem:[#allocation5 + $0xe8] sm:$0xff]
        %v612 = vld [vmem:[#allocation5 + $0xf0] sm:$0xff]
        %v613 = vld [vmem:[#allocation5 + $0xf8] sm:$0xff]
        %v614 = vld [vmem:[#allocation5 + $0x100] sm:$0xff]
        %v615 = vld [vmem:[#allocation5 + $0x108] sm:$0xff]
        %v616 = vld [vmem:[#allocation5 + $0x110] sm:$0xff]
        %v617 = vld [vmem:[#allocation5 + $0x118] sm:$0xff]
        %v618 = vld [vmem:[#allocation5 + $0x120] sm:$0xff]
        %v619 = vld [vmem:[#allocation5 + $0x128] sm:$0xff]
        %v620 = vld [vmem:[#allocation5 + $0x130] sm:$0xff]
        %v621 = vld [vmem:[#allocation5 + $0x138] sm:$0xff]
        %v622 = vld [vmem:[#allocation5 + $0x140] sm:$0xff]
        %v623 = vld [vmem:[#allocation5 + $0x148] sm:$0xff]
        %v624 = vld [vmem:[#allocation5 + $0x150] sm:$0xff]
        %v625 = vld [vmem:[#allocation5 + $0x158] sm:$0xff]
        %v626 = vld [vmem:[#allocation5 + $0x160] sm:$0xff]
        %v627 = vld [vmem:[#allocation5 + $0x168] sm:$0xff]
        %v628 = vld [vmem:[#allocation5 + $0x170] sm:$0xff]
        %v629 = vld [vmem:[#allocation5 + $0x178] sm:$0xff]
        %v630 = vld [vmem:[#allocation5 + $0x180] sm:$0xff]
        %v631 = vld [vmem:[#allocation5 + $0x188] sm:$0xff]
        %v632 = vld [vmem:[#allocation5 + $0x190] sm:$0xff]
        %v633 = vld [vmem:[#allocation5 + $0x198] sm:$0xff]
        %v634 = vld [vmem:[#allocation5 + $0x1a0] sm:$0xff]
        %v635 = vld [vmem:[#allocation5 + $0x1a8] sm:$0xff]
        %v636 = vld [vmem:[#allocation5 + $0x1b0] sm:$0xff]
        %v637 = vld [vmem:[#allocation5 + $0x1b8] sm:$0xff]
        %v638 = vld [vmem:[#allocation5 + $0x1c0] sm:$0xff]
        %v639 = vld [vmem:[#allocation5 + $0x1c8] sm:$0xff]
        %v640 = vld [vmem:[#allocation5 + $0x1d0] sm:$0xff]
        %v641 = vld [vmem:[#allocation5 + $0x1d8] sm:$0xff]
        %v642 = vld [vmem:[#allocation5 + $0x1e0] sm:$0xff]
        %v643 = vld [vmem:[#allocation5 + $0x1e8] sm:$0xff]
        %v644 = vld [vmem:[#allocation5 + $0x1f0] sm:$0xff]
        %v645 = vld [vmem:[#allocation5 + $0x1f8] sm:$0xff]
        %v646 = vld [vmem:[#allocation5 + $0x200] sm:$0xff]
        %v647 = vld [vmem:[#allocation5 + $0x208] sm:$0xff]
        %v648 = vld [vmem:[#allocation5 + $0x210] sm:$0xff]
        %v649 = vld [vmem:[#allocation5 + $0x218] sm:$0xff]
        %v650 = vld [vmem:[#allocation5 + $0x220] sm:$0xff]
        %v651 = vld [vmem:[#allocation5 + $0x228] sm:$0xff]
        %v652 = vld [vmem:[#allocation5 + $0x230] sm:$0xff]
        %v653 = vld [vmem:[#allocation5 + $0x238] sm:$0xff]
        %v654 = vld [vmem:[#allocation5 + $0x240] sm:$0xff]
        %v655 = vld [vmem:[#allocation5 + $0x248] sm:$0xff]
        %v656 = vld [vmem:[#allocation5 + $0x250] sm:$0xff]
        %v657 = vld [vmem:[#allocation5 + $0x258] sm:$0xff]
        %v658 = vld [vmem:[#allocation5 + $0x260] sm:$0xff]
        %v659 = vld [vmem:[#allocation5 + $0x268] sm:$0xff]
        %v660 = vld [vmem:[#allocation5 + $0x270] sm:$0xff]
        %v661 = vld [vmem:[#allocation5 + $0x278] sm:$0xff]
        %v662 = vld [vmem:[#allocation5 + $0x280] sm:$0xff]
        %v663 = vld [vmem:[#allocation5 + $0x288] sm:$0xff]
        %v664 = vld [vmem:[#allocation5 + $0x290] sm:$0xff]
        %v665 = vld [vmem:[#allocation5 + $0x298] sm:$0xff]
        %v666 = vld [vmem:[#allocation5 + $0x2a0] sm:$0xff]
        %v667 = vld [vmem:[#allocation5 + $0x2a8] sm:$0xff]
        %v668 = vld [vmem:[#allocation5 + $0x2b0] sm:$0xff]
        %v669 = vld [vmem:[#allocation5 + $0x2b8] sm:$0xff]
        %v670 = vld [vmem:[#allocation5 + $0x2c0] sm:$0xff]
        %v671 = vld [vmem:[#allocation5 + $0x2c8] sm:$0xff]
        %v672 = vld [vmem:[#allocation5 + $0x2d0] sm:$0xff]
        %v673 = vld [vmem:[#allocation5 + $0x2d8] sm:$0xff]
        %v674 = vld [vmem:[#allocation5 + $0x2e0] sm:$0xff]
        %v675 = vld [vmem:[#allocation5 + $0x2e8] sm:$0xff]
        %v676 = vld [vmem:[#allocation5 + $0x2f0] sm:$0xff]
        %v677 = vld [vmem:[#allocation5 + $0x2f8] sm:$0xff]
        %v678 = vld [vmem:[#allocation5 + $0x300] sm:$0xff]
        %v679 = vld [vmem:[#allocation5 + $0x308] sm:$0xff]
        %v680 = vld [vmem:[#allocation5 + $0x310] sm:$0xff]
        %v681 = vld [vmem:[#allocation5 + $0x318] sm:$0xff]
        %v682 = vld [vmem:[#allocation5 + $0x320] sm:$0xff]
        %v683 = vld [vmem:[#allocation5 + $0x328] sm:$0xff]
        %v684 = vld [vmem:[#allocation5 + $0x330] sm:$0xff]
        %v685 = vld [vmem:[#allocation5 + $0x338] sm:$0xff]
        %v686 = vld [vmem:[#allocation5 + $0x340] sm:$0xff]
        %v687 = vld [vmem:[#allocation5 + $0x348] sm:$0xff]
        %v688 = vld [vmem:[#allocation5 + $0x350] sm:$0xff]
        %v689 = vld [vmem:[#allocation5 + $0x358] sm:$0xff]
        %v690 = vld [vmem:[#allocation5 + $0x360] sm:$0xff]
        %v691 = vld [vmem:[#allocation5 + $0x368] sm:$0xff]
        %v692 = vld [vmem:[#allocation5 + $0x370] sm:$0xff]
        %v693 = vld [vmem:[#allocation5 + $0x378] sm:$0xff]
        %v694 = vld [vmem:[#allocation5 + $0x380] sm:$0xff]
        %v695 = vld [vmem:[#allocation5 + $0x388] sm:$0xff]
        %v696 = vld [vmem:[#allocation5 + $0x390] sm:$0xff]
        %v697 = vld [vmem:[#allocation5 + $0x398] sm:$0xff]
        %v698 = vld [vmem:[#allocation5 + $0x3a0] sm:$0xff]
        %v699 = vld [vmem:[#allocation5 + $0x3a8] sm:$0xff]
        %v700 = vld [vmem:[#allocation5 + $0x3b0] sm:$0xff]
        %v701 = vld [vmem:[#allocation5 + $0x3b8] sm:$0xff]
        %v702 = vld [vmem:[#allocation5 + $0x3c0] sm:$0xff]
        %v703 = vld [vmem:[#allocation5 + $0x3c8] sm:$0xff]
        %v704 = vld [vmem:[#allocation5 + $0x3d0] sm:$0xff]
        %v705 = vld [vmem:[#allocation5 + $0x3d8] sm:$0xff]
        %v706 = vld [vmem:[#allocation5 + $0x3e0] sm:$0xff]
        %v707 = vld [vmem:[#allocation5 + $0x3e8] sm:$0xff]
        %v708 = vld [vmem:[#allocation5 + $0x3f0] sm:$0xff]
        %v709 = vld [vmem:[#allocation5 + $0x3f8] sm:$0xff]
        %v710 = vld [vmem:[#allocation7] sm:$0xff]
        %v712 = vlaneseq
        %v713 = vshrl.u32 %v712, 7
        %v714 = vsub.s32 0, %v713
        %v715 = vrot.slane %v710, %v714
        %v716 = vlaneseq
        %v717 = vshrl.u32 %v716, 7
        %v718 = vsub.s32 1, %v717
        %v719 = vrot.slane %v710, %v718
        %v720 = vlaneseq
        %v721 = vshrl.u32 %v720, 7
        %v722 = vsub.s32 2, %v721
        %v723 = vrot.slane %v710, %v722
        %v724 = vlaneseq
        %v725 = vshrl.u32 %v724, 7
        %v726 = vsub.s32 3, %v725
        %v727 = vrot.slane %v710, %v726
        %v728 = vlaneseq
        %v729 = vshrl.u32 %v728, 7
        %v730 = vsub.s32 4, %v729
        %v731 = vrot.slane %v710, %v730
        %v732 = vlaneseq
        %v733 = vshrl.u32 %v732, 7
        %v734 = vsub.s32 5, %v733
        %v735 = vrot.slane %v710, %v734
        %v736 = vlaneseq
        %v737 = vshrl.u32 %v736, 7
        %v738 = vsub.s32 6, %v737
        %v739 = vrot.slane %v710, %v738
        %v740 = vlaneseq
        %v741 = vshrl.u32 %v740, 7
        %v742 = vsub.s32 7, %v741
        %v743 = vrot.slane %v710, %v742
        %v880 = vunpack.c.l.b16 %v582
        %v881 = vunpack.c.h.b16 %v582
        %v882 = vunpack.c.l.b16 %v583
        %v883 = vunpack.c.h.b16 %v583
        %v884 = vunpack.c.l.b16 %v584
        %v885 = vunpack.c.h.b16 %v584
        %v886 = vunpack.c.l.b16 %v585
        %v887 = vunpack.c.h.b16 %v585
        %v888 = vunpack.c.l.b16 %v586
        %v889 = vunpack.c.h.b16 %v586
        %v890 = vunpack.c.l.b16 %v587
        %v891 = vunpack.c.h.b16 %v587
        %v892 = vunpack.c.l.b16 %v588
        %v893 = vunpack.c.h.b16 %v588
        %v894 = vunpack.c.l.b16 %v589
        %v895 = vunpack.c.h.b16 %v589
        %v896 = vunpack.c.l.b16 %v590
        %v897 = vunpack.c.h.b16 %v590
        %v898 = vunpack.c.l.b16 %v591
        %v899 = vunpack.c.h.b16 %v591
        %v900 = vunpack.c.l.b16 %v592
        %v901 = vunpack.c.h.b16 %v592
        %v902 = vunpack.c.l.b16 %v593
        %v903 = vunpack.c.h.b16 %v593
        %v904 = vunpack.c.l.b16 %v594
        %v905 = vunpack.c.h.b16 %v594
        %v906 = vunpack.c.l.b16 %v595
        %v907 = vunpack.c.h.b16 %v595
        %v908 = vunpack.c.l.b16 %v596
        %v909 = vunpack.c.h.b16 %v596
        %v910 = vunpack.c.l.b16 %v597
        %v911 = vunpack.c.h.b16 %v597
        %v912 = vunpack.c.l.b16 %v598
        %v913 = vunpack.c.h.b16 %v598
        %v914 = vunpack.c.l.b16 %v599
        %v915 = vunpack.c.h.b16 %v599
        %v916 = vunpack.c.l.b16 %v600
        %v917 = vunpack.c.h.b16 %v600
        %v918 = vunpack.c.l.b16 %v601
        %v919 = vunpack.c.h.b16 %v601
        %v920 = vunpack.c.l.b16 %v602
        %v921 = vunpack.c.h.b16 %v602
        %v922 = vunpack.c.l.b16 %v603
        %v923 = vunpack.c.h.b16 %v603
        %v924 = vunpack.c.l.b16 %v604
        %v925 = vunpack.c.h.b16 %v604
        %v926 = vunpack.c.l.b16 %v605
        %v927 = vunpack.c.h.b16 %v605
        %v928 = vunpack.c.l.b16 %v606
        %v929 = vunpack.c.h.b16 %v606
        %v930 = vunpack.c.l.b16 %v607
        %v931 = vunpack.c.h.b16 %v607
        %v932 = vunpack.c.l.b16 %v608
        %v933 = vunpack.c.h.b16 %v608
        %v934 = vunpack.c.l.b16 %v609
        %v935 = vunpack.c.h.b16 %v609
        %v936 = vunpack.c.l.b16 %v610
        %v937 = vunpack.c.h.b16 %v610
        %v938 = vunpack.c.l.b16 %v611
        %v939 = vunpack.c.h.b16 %v611
        %v940 = vunpack.c.l.b16 %v612
        %v941 = vunpack.c.h.b16 %v612
        %v942 = vunpack.c.l.b16 %v613
        %v943 = vunpack.c.h.b16 %v613
        %v944 = vunpack.c.l.b16 %v614
        %v945 = vunpack.c.h.b16 %v614
        %v946 = vunpack.c.l.b16 %v615
        %v947 = vunpack.c.h.b16 %v615
        %v948 = vunpack.c.l.b16 %v616
        %v949 = vunpack.c.h.b16 %v616
        %v950 = vunpack.c.l.b16 %v617
        %v951 = vunpack.c.h.b16 %v617
        %v952 = vunpack.c.l.b16 %v618
        %v953 = vunpack.c.h.b16 %v618
        %v954 = vunpack.c.l.b16 %v619
        %v955 = vunpack.c.h.b16 %v619
        %v956 = vunpack.c.l.b16 %v620
        %v957 = vunpack.c.h.b16 %v620
        %v958 = vunpack.c.l.b16 %v621
        %v959 = vunpack.c.h.b16 %v621
        %v960 = vunpack.c.l.b16 %v622
        %v961 = vunpack.c.h.b16 %v622
        %v962 = vunpack.c.l.b16 %v623
        %v963 = vunpack.c.h.b16 %v623
        %v964 = vunpack.c.l.b16 %v624
        %v965 = vunpack.c.h.b16 %v624
        %v966 = vunpack.c.l.b16 %v625
        %v967 = vunpack.c.h.b16 %v625
        %v968 = vunpack.c.l.b16 %v626
        %v969 = vunpack.c.h.b16 %v626
        %v970 = vunpack.c.l.b16 %v627
        %v971 = vunpack.c.h.b16 %v627
        %v972 = vunpack.c.l.b16 %v628
        %v973 = vunpack.c.h.b16 %v628
        %v974 = vunpack.c.l.b16 %v629
        %v975 = vunpack.c.h.b16 %v629
        %v976 = vunpack.c.l.b16 %v630
        %v977 = vunpack.c.h.b16 %v630
        %v978 = vunpack.c.l.b16 %v631
        %v979 = vunpack.c.h.b16 %v631
        %v980 = vunpack.c.l.b16 %v632
        %v981 = vunpack.c.h.b16 %v632
        %v982 = vunpack.c.l.b16 %v633
        %v983 = vunpack.c.h.b16 %v633
        %v984 = vunpack.c.l.b16 %v634
        %v985 = vunpack.c.h.b16 %v634
        %v986 = vunpack.c.l.b16 %v635
        %v987 = vunpack.c.h.b16 %v635
        %v988 = vunpack.c.l.b16 %v636
        %v989 = vunpack.c.h.b16 %v636
        %v990 = vunpack.c.l.b16 %v637
        %v991 = vunpack.c.h.b16 %v637
        %v992 = vunpack.c.l.b16 %v638
        %v993 = vunpack.c.h.b16 %v638
        %v994 = vunpack.c.l.b16 %v639
        %v995 = vunpack.c.h.b16 %v639
        %v996 = vunpack.c.l.b16 %v640
        %v997 = vunpack.c.h.b16 %v640
        %v998 = vunpack.c.l.b16 %v641
        %v999 = vunpack.c.h.b16 %v641
        %v1000 = vunpack.c.l.b16 %v642
        %v1001 = vunpack.c.h.b16 %v642
        %v1002 = vunpack.c.l.b16 %v643
        %v1003 = vunpack.c.h.b16 %v643
        %v1004 = vunpack.c.l.b16 %v644
        %v1005 = vunpack.c.h.b16 %v644
        %v1006 = vunpack.c.l.b16 %v645
        %v1007 = vunpack.c.h.b16 %v645
        %v1008 = vunpack.c.l.b16 %v646
        %v1009 = vunpack.c.h.b16 %v646
        %v1010 = vunpack.c.l.b16 %v647
        %v1011 = vunpack.c.h.b16 %v647
        %v1012 = vunpack.c.l.b16 %v648
        %v1013 = vunpack.c.h.b16 %v648
        %v1014 = vunpack.c.l.b16 %v649
        %v1015 = vunpack.c.h.b16 %v649
        %v1016 = vunpack.c.l.b16 %v650
        %v1017 = vunpack.c.h.b16 %v650
        %v1018 = vunpack.c.l.b16 %v651
        %v1019 = vunpack.c.h.b16 %v651
        %v1020 = vunpack.c.l.b16 %v652
        %v1021 = vunpack.c.h.b16 %v652
        %v1022 = vunpack.c.l.b16 %v653
        %v1023 = vunpack.c.h.b16 %v653
        %v1024 = vunpack.c.l.b16 %v654
        %v1025 = vunpack.c.h.b16 %v654
        %v1026 = vunpack.c.l.b16 %v655
        %v1027 = vunpack.c.h.b16 %v655
        %v1028 = vunpack.c.l.b16 %v656
        %v1029 = vunpack.c.h.b16 %v656
        %v1030 = vunpack.c.l.b16 %v657
        %v1031 = vunpack.c.h.b16 %v657
        %v1032 = vunpack.c.l.b16 %v658
        %v1033 = vunpack.c.h.b16 %v658
        %v1034 = vunpack.c.l.b16 %v659
        %v1035 = vunpack.c.h.b16 %v659
        %v1036 = vunpack.c.l.b16 %v660
        %v1037 = vunpack.c.h.b16 %v660
        %v1038 = vunpack.c.l.b16 %v661
        %v1039 = vunpack.c.h.b16 %v661
        %v1040 = vunpack.c.l.b16 %v662
        %v1041 = vunpack.c.h.b16 %v662
        %v1042 = vunpack.c.l.b16 %v663
        %v1043 = vunpack.c.h.b16 %v663
        %v1044 = vunpack.c.l.b16 %v664
        %v1045 = vunpack.c.h.b16 %v664
        %v1046 = vunpack.c.l.b16 %v665
        %v1047 = vunpack.c.h.b16 %v665
        %v1048 = vunpack.c.l.b16 %v666
        %v1049 = vunpack.c.h.b16 %v666
        %v1050 = vunpack.c.l.b16 %v667
        %v1051 = vunpack.c.h.b16 %v667
        %v1052 = vunpack.c.l.b16 %v668
        %v1053 = vunpack.c.h.b16 %v668
        %v1054 = vunpack.c.l.b16 %v669
        %v1055 = vunpack.c.h.b16 %v669
        %v1056 = vunpack.c.l.b16 %v670
        %v1057 = vunpack.c.h.b16 %v670
        %v1058 = vunpack.c.l.b16 %v671
        %v1059 = vunpack.c.h.b16 %v671
        %v1060 = vunpack.c.l.b16 %v672
        %v1061 = vunpack.c.h.b16 %v672
        %v1062 = vunpack.c.l.b16 %v673
        %v1063 = vunpack.c.h.b16 %v673
        %v1064 = vunpack.c.l.b16 %v674
        %v1065 = vunpack.c.h.b16 %v674
        %v1066 = vunpack.c.l.b16 %v675
        %v1067 = vunpack.c.h.b16 %v675
        %v1068 = vunpack.c.l.b16 %v676
        %v1069 = vunpack.c.h.b16 %v676
        %v1070 = vunpack.c.l.b16 %v677
        %v1071 = vunpack.c.h.b16 %v677
        %v1072 = vunpack.c.l.b16 %v678
        %v1073 = vunpack.c.h.b16 %v678
        %v1074 = vunpack.c.l.b16 %v679
        %v1075 = vunpack.c.h.b16 %v679
        %v1076 = vunpack.c.l.b16 %v680
        %v1077 = vunpack.c.h.b16 %v680
        %v1078 = vunpack.c.l.b16 %v681
        %v1079 = vunpack.c.h.b16 %v681
        %v1080 = vunpack.c.l.b16 %v682
        %v1081 = vunpack.c.h.b16 %v682
        %v1082 = vunpack.c.l.b16 %v683
        %v1083 = vunpack.c.h.b16 %v683
        %v1084 = vunpack.c.l.b16 %v684
        %v1085 = vunpack.c.h.b16 %v684
        %v1086 = vunpack.c.l.b16 %v685
        %v1087 = vunpack.c.h.b16 %v685
        %v1088 = vunpack.c.l.b16 %v686
        %v1089 = vunpack.c.h.b16 %v686
        %v1090 = vunpack.c.l.b16 %v687
        %v1091 = vunpack.c.h.b16 %v687
        %v1092 = vunpack.c.l.b16 %v688
        %v1093 = vunpack.c.h.b16 %v688
        %v1094 = vunpack.c.l.b16 %v689
        %v1095 = vunpack.c.h.b16 %v689
        %v1096 = vunpack.c.l.b16 %v690
        %v1097 = vunpack.c.h.b16 %v690
        %v1098 = vunpack.c.l.b16 %v691
        %v1099 = vunpack.c.h.b16 %v691
        %v1100 = vunpack.c.l.b16 %v692
        %v1101 = vunpack.c.h.b16 %v692
        %v1102 = vunpack.c.l.b16 %v693
        %v1103 = vunpack.c.h.b16 %v693
        %v1104 = vunpack.c.l.b16 %v694
        %v1105 = vunpack.c.h.b16 %v694
        %v1106 = vunpack.c.l.b16 %v695
        %v1107 = vunpack.c.h.b16 %v695
        %v1108 = vunpack.c.l.b16 %v696
        %v1109 = vunpack.c.h.b16 %v696
        %v1110 = vunpack.c.l.b16 %v697
        %v1111 = vunpack.c.h.b16 %v697
        %v1112 = vunpack.c.l.b16 %v698
        %v1113 = vunpack.c.h.b16 %v698
        %v1114 = vunpack.c.l.b16 %v699
        %v1115 = vunpack.c.h.b16 %v699
        %v1116 = vunpack.c.l.b16 %v700
        %v1117 = vunpack.c.h.b16 %v700
        %v1118 = vunpack.c.l.b16 %v701
        %v1119 = vunpack.c.h.b16 %v701
        %v1120 = vunpack.c.l.b16 %v702
        %v1121 = vunpack.c.h.b16 %v702
        %v1122 = vunpack.c.l.b16 %v703
        %v1123 = vunpack.c.h.b16 %v703
        %v1124 = vunpack.c.l.b16 %v704
        %v1125 = vunpack.c.h.b16 %v704
        %v1126 = vunpack.c.l.b16 %v705
        %v1127 = vunpack.c.h.b16 %v705
        %v1128 = vunpack.c.l.b16 %v706
        %v1129 = vunpack.c.h.b16 %v706
        %v1130 = vunpack.c.l.b16 %v707
        %v1131 = vunpack.c.h.b16 %v707
        %v1132 = vunpack.c.l.b16 %v708
        %v1133 = vunpack.c.h.b16 %v708
        %v1134 = vunpack.c.l.b16 %v709
        %v1135 = vunpack.c.h.b16 %v709
        %v1136 = vpack.c.b16 %v888, %v880
        %v1137 = vpack.c.b16 %v889, %v881
        %v1138 = vpack.c.b16 %v890, %v882
        %v1139 = vpack.c.b16 %v891, %v883
        %v1140 = vpack.c.b16 %v892, %v884
        %v1141 = vpack.c.b16 %v893, %v885
        %v1142 = vpack.c.b16 %v894, %v886
        %v1143 = vpack.c.b16 %v895, %v887
        %v1144 = vpack.c.b16 %v904, %v896
        %v1145 = vpack.c.b16 %v905, %v897
        %v1146 = vpack.c.b16 %v906, %v898
        %v1147 = vpack.c.b16 %v907, %v899
        %v1148 = vpack.c.b16 %v908, %v900
        %v1149 = vpack.c.b16 %v909, %v901
        %v1150 = vpack.c.b16 %v910, %v902
        %v1151 = vpack.c.b16 %v911, %v903
        %v1152 = vpack.c.b16 %v920, %v912
        %v1153 = vpack.c.b16 %v921, %v913
        %v1154 = vpack.c.b16 %v922, %v914
        %v1155 = vpack.c.b16 %v923, %v915
        %v1156 = vpack.c.b16 %v924, %v916
        %v1157 = vpack.c.b16 %v925, %v917
        %v1158 = vpack.c.b16 %v926, %v918
        %v1159 = vpack.c.b16 %v927, %v919
        %v1160 = vpack.c.b16 %v936, %v928
        %v1161 = vpack.c.b16 %v937, %v929
        %v1162 = vpack.c.b16 %v938, %v930
        %v1163 = vpack.c.b16 %v939, %v931
        %v1164 = vpack.c.b16 %v940, %v932
        %v1165 = vpack.c.b16 %v941, %v933
        %v1166 = vpack.c.b16 %v942, %v934
        %v1167 = vpack.c.b16 %v943, %v935
        %v1168 = vpack.c.b16 %v952, %v944
        %v1169 = vpack.c.b16 %v953, %v945
        %v1170 = vpack.c.b16 %v954, %v946
        %v1171 = vpack.c.b16 %v955, %v947
        %v1172 = vpack.c.b16 %v956, %v948
        %v1173 = vpack.c.b16 %v957, %v949
        %v1174 = vpack.c.b16 %v958, %v950
        %v1175 = vpack.c.b16 %v959, %v951
        %v1176 = vpack.c.b16 %v968, %v960
        %v1177 = vpack.c.b16 %v969, %v961
        %v1178 = vpack.c.b16 %v970, %v962
        %v1179 = vpack.c.b16 %v971, %v963
        %v1180 = vpack.c.b16 %v972, %v964
        %v1181 = vpack.c.b16 %v973, %v965
        %v1182 = vpack.c.b16 %v974, %v966
        %v1183 = vpack.c.b16 %v975, %v967
        %v1184 = vpack.c.b16 %v984, %v976
        %v1185 = vpack.c.b16 %v985, %v977
        %v1186 = vpack.c.b16 %v986, %v978
        %v1187 = vpack.c.b16 %v987, %v979
        %v1188 = vpack.c.b16 %v988, %v980
        %v1189 = vpack.c.b16 %v989, %v981
        %v1190 = vpack.c.b16 %v990, %v982
        %v1191 = vpack.c.b16 %v991, %v983
        %v1192 = vpack.c.b16 %v1000, %v992
        %v1193 = vpack.c.b16 %v1001, %v993
        %v1194 = vpack.c.b16 %v1002, %v994
        %v1195 = vpack.c.b16 %v1003, %v995
        %v1196 = vpack.c.b16 %v1004, %v996
        %v1197 = vpack.c.b16 %v1005, %v997
        %v1198 = vpack.c.b16 %v1006, %v998
        %v1199 = vpack.c.b16 %v1007, %v999
        %v1200 = vpack.c.b16 %v1016, %v1008
        %v1201 = vpack.c.b16 %v1017, %v1009
        %v1202 = vpack.c.b16 %v1018, %v1010
        %v1203 = vpack.c.b16 %v1019, %v1011
        %v1204 = vpack.c.b16 %v1020, %v1012
        %v1205 = vpack.c.b16 %v1021, %v1013
        %v1206 = vpack.c.b16 %v1022, %v1014
        %v1207 = vpack.c.b16 %v1023, %v1015
        %v1208 = vpack.c.b16 %v1032, %v1024
        %v1209 = vpack.c.b16 %v1033, %v1025
        %v1210 = vpack.c.b16 %v1034, %v1026
        %v1211 = vpack.c.b16 %v1035, %v1027
        %v1212 = vpack.c.b16 %v1036, %v1028
        %v1213 = vpack.c.b16 %v1037, %v1029
        %v1214 = vpack.c.b16 %v1038, %v1030
        %v1215 = vpack.c.b16 %v1039, %v1031
        %v1216 = vpack.c.b16 %v1048, %v1040
        %v1217 = vpack.c.b16 %v1049, %v1041
        %v1218 = vpack.c.b16 %v1050, %v1042
        %v1219 = vpack.c.b16 %v1051, %v1043
        %v1220 = vpack.c.b16 %v1052, %v1044
        %v1221 = vpack.c.b16 %v1053, %v1045
        %v1222 = vpack.c.b16 %v1054, %v1046
        %v1223 = vpack.c.b16 %v1055, %v1047
        %v1224 = vpack.c.b16 %v1064, %v1056
        %v1225 = vpack.c.b16 %v1065, %v1057
        %v1226 = vpack.c.b16 %v1066, %v1058
        %v1227 = vpack.c.b16 %v1067, %v1059
        %v1228 = vpack.c.b16 %v1068, %v1060
        %v1229 = vpack.c.b16 %v1069, %v1061
        %v1230 = vpack.c.b16 %v1070, %v1062
        %v1231 = vpack.c.b16 %v1071, %v1063
        %v1232 = vpack.c.b16 %v1080, %v1072
        %v1233 = vpack.c.b16 %v1081, %v1073
        %v1234 = vpack.c.b16 %v1082, %v1074
        %v1235 = vpack.c.b16 %v1083, %v1075
        %v1236 = vpack.c.b16 %v1084, %v1076
        %v1237 = vpack.c.b16 %v1085, %v1077
        %v1238 = vpack.c.b16 %v1086, %v1078
        %v1239 = vpack.c.b16 %v1087, %v1079
        %v1240 = vpack.c.b16 %v1096, %v1088
        %v1241 = vpack.c.b16 %v1097, %v1089
        %v1242 = vpack.c.b16 %v1098, %v1090
        %v1243 = vpack.c.b16 %v1099, %v1091
        %v1244 = vpack.c.b16 %v1100, %v1092
        %v1245 = vpack.c.b16 %v1101, %v1093
        %v1246 = vpack.c.b16 %v1102, %v1094
        %v1247 = vpack.c.b16 %v1103, %v1095
        %v1248 = vpack.c.b16 %v1112, %v1104
        %v1249 = vpack.c.b16 %v1113, %v1105
        %v1250 = vpack.c.b16 %v1114, %v1106
        %v1251 = vpack.c.b16 %v1115, %v1107
        %v1252 = vpack.c.b16 %v1116, %v1108
        %v1253 = vpack.c.b16 %v1117, %v1109
        %v1254 = vpack.c.b16 %v1118, %v1110
        %v1255 = vpack.c.b16 %v1119, %v1111
        %v1256 = vpack.c.b16 %v1128, %v1120
        %v1257 = vpack.c.b16 %v1129, %v1121
        %v1258 = vpack.c.b16 %v1130, %v1122
        %v1259 = vpack.c.b16 %v1131, %v1123
        %v1260 = vpack.c.b16 %v1132, %v1124
        %v1261 = vpack.c.b16 %v1133, %v1125
        %v1262 = vpack.c.b16 %v1134, %v1126
        %v1263 = vpack.c.b16 %v1135, %v1127
        %1392 = vmatprep.subr.bf16.mxu0 %v1137
        %1393 = vmatpush1.bf16.msra.mxu0 %v1136
        %1394 = vmatprep.subr.bf16.mxu0 %v1145
        %1395 = vmatpush1.bf16.msra.mxu0 %v1144
        %1396 = vmatprep.subr.bf16.mxu0 %v1153
        %1397 = vmatpush1.bf16.msra.mxu0 %v1152
        %1398 = vmatprep.subr.bf16.mxu0 %v1161
        %1399 = vmatpush1.bf16.msra.mxu0 %v1160
        %1400 = vmatprep.subr.bf16.mxu0 %v1169
        %1401 = vmatpush1.bf16.msra.mxu0 %v1168
        %1402 = vmatprep.subr.bf16.mxu0 %v1177
        %1403 = vmatpush1.bf16.msra.mxu0 %v1176
        %1404 = vmatprep.subr.bf16.mxu0 %v1185
        %1405 = vmatpush1.bf16.msra.mxu0 %v1184
        %1406 = vmatprep.subr.bf16.mxu0 %v1193
        %1407 = vmatpush1.bf16.msra.mxu0 %v1192
        %1408 = vmatprep.subr.bf16.mxu0 %v1201
        %1409 = vmatpush1.bf16.msra.mxu0 %v1200
        %1410 = vmatprep.subr.bf16.mxu0 %v1209
        %1411 = vmatpush1.bf16.msra.mxu0 %v1208
        %1412 = vmatprep.subr.bf16.mxu0 %v1217
        %1413 = vmatpush1.bf16.msra.mxu0 %v1216
        %1414 = vmatprep.subr.bf16.mxu0 %v1225
        %1415 = vmatpush1.bf16.msra.mxu0 %v1224
        %1416 = vmatprep.subr.bf16.mxu0 %v1233
        %1417 = vmatpush1.bf16.msra.mxu0 %v1232
        %1418 = vmatprep.subr.bf16.mxu0 %v1241
        %1419 = vmatpush1.bf16.msra.mxu0 %v1240
        %1420 = vmatprep.subr.bf16.mxu0 %v1249
        %1421 = vmatpush1.bf16.msra.mxu0 %v1248
        %1422 = vmatprep.subr.bf16.mxu0 %v1257
        %1423 = vmatpush1.bf16.msra.mxu0 %v1256
        %1424 = vmatprep.mubr.bf16.mxu0 %v567
        %1425 = vmatmul.mubr.bf16.gmra.mrb[0].mxu0 %v566
        %v1426 = vpop.f32.mrb[0].mxu0
        %v1427 = vadd.f32 %v715, %v1426
        %v1428 = vpop.f32.mrb[0].mxu0
        %v1429 = vadd.f32 %v719, %v1428
        %v1430 = vpop.f32.mrb[0].mxu0
        %v1431 = vadd.f32 %v715, %v1430
        %v1432 = vpop.f32.mrb[0].mxu0
        %v1433 = vadd.f32 %v719, %v1432
        %1434 = vmatprep.mubr.bf16.mxu0 %v569
        %1435 = vmatmul.mubr.bf16.gmra.mrb[0].mxu0 %v568
        %v1436 = vpop.f32.mrb[0].mxu0
        %v1437 = vadd.f32 %v715, %v1436
        %v1438 = vpop.f32.mrb[0].mxu0
        %v1439 = vadd.f32 %v719, %v1438
        %v1440 = vpop.f32.mrb[0].mxu0
        %v1441 = vadd.f32 %v715, %v1440
        %v1442 = vpop.f32.mrb[0].mxu0
        %v1443 = vadd.f32 %v719, %v1442
        %1444 = vmatprep.mubr.bf16.mxu0 %v571
        %1445 = vmatmul.mubr.bf16.gmra.mrb[0].mxu0 %v570
        %v1446 = vpop.f32.mrb[0].mxu0
        %v1447 = vadd.f32 %v715, %v1446
        %v1448 = vpop.f32.mrb[0].mxu0
        %v1449 = vadd.f32 %v719, %v1448
        %v1450 = vpop.f32.mrb[0].mxu0
        %v1451 = vadd.f32 %v715, %v1450
        %v1452 = vpop.f32.mrb[0].mxu0
        %v1453 = vadd.f32 %v719, %v1452
        %1454 = vmatprep.mubr.bf16.mxu0 %v573
        %1455 = vmatmul.mubr.bf16.gmra.mrb[0].mxu0 %v572
        %v1456 = vpop.f32.mrb[0].mxu0
        %v1457 = vadd.f32 %v715, %v1456
        %v1458 = vpop.f32.mrb[0].mxu0
        %v1459 = vadd.f32 %v719, %v1458
        %v1460 = vpop.f32.mrb[0].mxu0
        %v1461 = vadd.f32 %v715, %v1460
        %v1462 = vpop.f32.mrb[0].mxu0
        %v1463 = vadd.f32 %v719, %v1462
        %1464 = vmatprep.mubr.bf16.mxu0 %v575
        %1465 = vmatmul.mubr.bf16.gmra.mrb[0].mxu0 %v574
        %v1466 = vpop.f32.mrb[0].mxu0
        %v1467 = vadd.f32 %v715, %v1466
        %v1468 = vpop.f32.mrb[0].mxu0
        %v1469 = vadd.f32 %v719, %v1468
        %v1470 = vpop.f32.mrb[0].mxu0
        %v1471 = vadd.f32 %v715, %v1470
        %v1472 = vpop.f32.mrb[0].mxu0
        %v1473 = vadd.f32 %v719, %v1472
        %1474 = vmatprep.mubr.bf16.mxu0 %v577
        %1475 = vmatmul.mubr.bf16.gmra.mrb[0].mxu0 %v576
        %v1476 = vpop.f32.mrb[0].mxu0
        %v1477 = vadd.f32 %v715, %v1476
        %v1478 = vpop.f32.mrb[0].mxu0
        %v1479 = vadd.f32 %v719, %v1478
        %v1480 = vpop.f32.mrb[0].mxu0
        %v1481 = vadd.f32 %v715, %v1480
        %v1482 = vpop.f32.mrb[0].mxu0
        %v1483 = vadd.f32 %v719, %v1482
        %1484 = vmatprep.mubr.bf16.mxu0 %v579
        %1485 = vmatmul.mubr.bf16.gmra.mrb[0].mxu0 %v578
        %v1486 = vpop.f32.mrb[0].mxu0
        %v1487 = vadd.f32 %v715, %v1486
        %v1488 = vpop.f32.mrb[0].mxu0
        %v1489 = vadd.f32 %v719, %v1488
        %v1490 = vpop.f32.mrb[0].mxu0
        %v1491 = vadd.f32 %v715, %v1490
        %v1492 = vpop.f32.mrb[0].mxu0
        %v1493 = vadd.f32 %v719, %v1492
        %1494 = vmatprep.mubr.bf16.mxu0 %v581
        %1495 = vmatmul.mubr.bf16.gmra.mrb[0].mxu0 %v580
        %v1496 = vpop.f32.mrb[0].mxu0
        %v1497 = vadd.f32 %v715, %v1496
        %v1498 = vpop.f32.mrb[0].mxu0
        %v1499 = vadd.f32 %v719, %v1498
        %v1500 = vpop.f32.mrb[0].mxu0
        %v1501 = vadd.f32 %v715, %v1500
        %v1502 = vpop.f32.mrb[0].mxu0
        %v1503 = vadd.f32 %v719, %v1502
        %1504 = vdwg.mxu0
        %1505 = vmatprep.subr.bf16.mxu0 %v1139
        %1506 = vmatpush1.bf16.msra.mxu0 %v1138
        %1507 = vmatprep.subr.bf16.mxu0 %v1147
        %1508 = vmatpush1.bf16.msra.mxu0 %v1146
        %1509 = vmatprep.subr.bf16.mxu0 %v1155
        %1510 = vmatpush1.bf16.msra.mxu0 %v1154
        %1511 = vmatprep.subr.bf16.mxu0 %v1163
        %1512 = vmatpush1.bf16.msra.mxu0 %v1162
        %1513 = vmatprep.subr.bf16.mxu0 %v1171
        %1514 = vmatpush1.bf16.msra.mxu0 %v1170
        %1515 = vmatprep.subr.bf16.mxu0 %v1179
        %1516 = vmatpush1.bf16.msra.mxu0 %v1178
        %1517 = vmatprep.subr.bf16.mxu0 %v1187
        %1518 = vmatpush1.bf16.msra.mxu0 %v1186
        %1519 = vmatprep.subr.bf16.mxu0 %v1195
        %1520 = vmatpush1.bf16.msra.mxu0 %v1194
        %1521 = vmatprep.subr.bf16.mxu0 %v1203
        %1522 = vmatpush1.bf16.msra.mxu0 %v1202
        %1523 = vmatprep.subr.bf16.mxu0 %v1211
        %1524 = vmatpush1.bf16.msra.mxu0 %v1210
        %1525 = vmatprep.subr.bf16.mxu0 %v1219
        %1526 = vmatpush1.bf16.msra.mxu0 %v1218
        %1527 = vmatprep.subr.bf16.mxu0 %v1227
        %1528 = vmatpush1.bf16.msra.mxu0 %v1226
        %1529 = vmatprep.subr.bf16.mxu0 %v1235
        %1530 = vmatpush1.bf16.msra.mxu0 %v1234
        %1531 = vmatprep.subr.bf16.mxu0 %v1243
        %1532 = vmatpush1.bf16.msra.mxu0 %v1242
        %1533 = vmatprep.subr.bf16.mxu0 %v1251
        %1534 = vmatpush1.bf16.msra.mxu0 %v1250
        %1535 = vmatprep.subr.bf16.mxu0 %v1259
        %1536 = vmatpush1.bf16.msra.mxu0 %v1258
        %1537 = vmatprep.mubr.bf16.mxu0 %v567
        %1538 = vmatmul.mubr.bf16.gmra.mrb[0].mxu0 %v566
        %v1539 = vpop.f32.mrb[0].mxu0
        %v1540 = vadd.f32 %v723, %v1539
        %v1541 = vpop.f32.mrb[0].mxu0
        %v1542 = vadd.f32 %v727, %v1541
        %v1543 = vpop.f32.mrb[0].mxu0
        %v1544 = vadd.f32 %v723, %v1543
        %v1545 = vpop.f32.mrb[0].mxu0
        %v1546 = vadd.f32 %v727, %v1545
        %1547 = vmatprep.mubr.bf16.mxu0 %v569
        %1548 = vmatmul.mubr.bf16.gmra.mrb[0].mxu0 %v568
        %v1549 = vpop.f32.mrb[0].mxu0
        %v1550 = vadd.f32 %v723, %v1549
        %v1551 = vpop.f32.mrb[0].mxu0
        %v1552 = vadd.f32 %v727, %v1551
        %v1553 = vpop.f32.mrb[0].mxu0
        %v1554 = vadd.f32 %v723, %v1553
        %v1555 = vpop.f32.mrb[0].mxu0
        %v1556 = vadd.f32 %v727, %v1555
        %1557 = vmatprep.mubr.bf16.mxu0 %v571
        %1558 = vmatmul.mubr.bf16.gmra.mrb[0].mxu0 %v570
        %v1559 = vpop.f32.mrb[0].mxu0
        %v1560 = vadd.f32 %v723, %v1559
        %v1561 = vpop.f32.mrb[0].mxu0
        %v1562 = vadd.f32 %v727, %v1561
        %v1563 = vpop.f32.mrb[0].mxu0
        %v1564 = vadd.f32 %v723, %v1563
        %v1565 = vpop.f32.mrb[0].mxu0
        %v1566 = vadd.f32 %v727, %v1565
        %1567 = vmatprep.mubr.bf16.mxu0 %v573
        %1568 = vmatmul.mubr.bf16.gmra.mrb[0].mxu0 %v572
        %v1569 = vpop.f32.mrb[0].mxu0
        %v1570 = vadd.f32 %v723, %v1569
        %v1571 = vpop.f32.mrb[0].mxu0
        %v1572 = vadd.f32 %v727, %v1571
        %v1573 = vpop.f32.mrb[0].mxu0
        %v1574 = vadd.f32 %v723, %v1573
        %v1575 = vpop.f32.mrb[0].mxu0
        %v1576 = vadd.f32 %v727, %v1575
        %1577 = vmatprep.mubr.bf16.mxu0 %v575
        %1578 = vmatmul.mubr.bf16.gmra.mrb[0].mxu0 %v574
        %v1579 = vpop.f32.mrb[0].mxu0
        %v1580 = vadd.f32 %v723, %v1579
        %v1581 = vpop.f32.mrb[0].mxu0
        %v1582 = vadd.f32 %v727, %v1581
        %v1583 = vpop.f32.mrb[0].mxu0
        %v1584 = vadd.f32 %v723, %v1583
        %v1585 = vpop.f32.mrb[0].mxu0
        %v1586 = vadd.f32 %v727, %v1585
        %1587 = vmatprep.mubr.bf16.mxu0 %v577
        %1588 = vmatmul.mubr.bf16.gmra.mrb[0].mxu0 %v576
        %v1589 = vpop.f32.mrb[0].mxu0
        %v1590 = vadd.f32 %v723, %v1589
        %v1591 = vpop.f32.mrb[0].mxu0
        %v1592 = vadd.f32 %v727, %v1591
        %v1593 = vpop.f32.mrb[0].mxu0
        %v1594 = vadd.f32 %v723, %v1593
        %v1595 = vpop.f32.mrb[0].mxu0
        %v1596 = vadd.f32 %v727, %v1595
        %1597 = vmatprep.mubr.bf16.mxu0 %v579
        %1598 = vmatmul.mubr.bf16.gmra.mrb[0].mxu0 %v578
        %v1599 = vpop.f32.mrb[0].mxu0
        %v1600 = vadd.f32 %v723, %v1599
        %v1601 = vpop.f32.mrb[0].mxu0
        %v1602 = vadd.f32 %v727, %v1601
        %v1603 = vpop.f32.mrb[0].mxu0
        %v1604 = vadd.f32 %v723, %v1603
        %v1605 = vpop.f32.mrb[0].mxu0
        %v1606 = vadd.f32 %v727, %v1605
        %1607 = vmatprep.mubr.bf16.mxu0 %v581
        %1608 = vmatmul.mubr.bf16.gmra.mrb[0].mxu0 %v580
        %v1609 = vpop.f32.mrb[0].mxu0
        %v1610 = vadd.f32 %v723, %v1609
        %v1611 = vpop.f32.mrb[0].mxu0
        %v1612 = vadd.f32 %v727, %v1611
        %v1613 = vpop.f32.mrb[0].mxu0
        %v1614 = vadd.f32 %v723, %v1613
        %v1615 = vpop.f32.mrb[0].mxu0
        %v1616 = vadd.f32 %v727, %v1615
        %1617 = vdwg.mxu0
        %1618 = vmatprep.subr.bf16.mxu0 %v1141
        %1619 = vmatpush1.bf16.msra.mxu0 %v1140
        %1620 = vmatprep.subr.bf16.mxu0 %v1149
        %1621 = vmatpush1.bf16.msra.mxu0 %v1148
        %1622 = vmatprep.subr.bf16.mxu0 %v1157
        %1623 = vmatpush1.bf16.msra.mxu0 %v1156
        %1624 = vmatprep.subr.bf16.mxu0 %v1165
        %1625 = vmatpush1.bf16.msra.mxu0 %v1164
        %1626 = vmatprep.subr.bf16.mxu0 %v1173
        %1627 = vmatpush1.bf16.msra.mxu0 %v1172
        %1628 = vmatprep.subr.bf16.mxu0 %v1181
        %1629 = vmatpush1.bf16.msra.mxu0 %v1180
        %1630 = vmatprep.subr.bf16.mxu0 %v1189
        %1631 = vmatpush1.bf16.msra.mxu0 %v1188
        %1632 = vmatprep.subr.bf16.mxu0 %v1197
        %1633 = vmatpush1.bf16.msra.mxu0 %v1196
        %1634 = vmatprep.subr.bf16.mxu0 %v1205
        %1635 = vmatpush1.bf16.msra.mxu0 %v1204
        %1636 = vmatprep.subr.bf16.mxu0 %v1213
        %1637 = vmatpush1.bf16.msra.mxu0 %v1212
        %1638 = vmatprep.subr.bf16.mxu0 %v1221
        %1639 = vmatpush1.bf16.msra.mxu0 %v1220
        %1640 = vmatprep.subr.bf16.mxu0 %v1229
        %1641 = vmatpush1.bf16.msra.mxu0 %v1228
        %1642 = vmatprep.subr.bf16.mxu0 %v1237
        %1643 = vmatpush1.bf16.msra.mxu0 %v1236
        %1644 = vmatprep.subr.bf16.mxu0 %v1245
        %1645 = vmatpush1.bf16.msra.mxu0 %v1244
        %1646 = vmatprep.subr.bf16.mxu0 %v1253
        %1647 = vmatpush1.bf16.msra.mxu0 %v1252
        %1648 = vmatprep.subr.bf16.mxu0 %v1261
        %1649 = vmatpush1.bf16.msra.mxu0 %v1260
        %1650 = vmatprep.mubr.bf16.mxu0 %v567
        %1651 = vmatmul.mubr.bf16.gmra.mrb[0].mxu0 %v566
        %v1652 = vpop.f32.mrb[0].mxu0
        %v1653 = vadd.f32 %v731, %v1652
        %v1654 = vpop.f32.mrb[0].mxu0
        %v1655 = vadd.f32 %v735, %v1654
        %v1656 = vpop.f32.mrb[0].mxu0
        %v1657 = vadd.f32 %v731, %v1656
        %v1658 = vpop.f32.mrb[0].mxu0
        %v1659 = vadd.f32 %v735, %v1658
        %1660 = vmatprep.mubr.bf16.mxu0 %v569
        %1661 = vmatmul.mubr.bf16.gmra.mrb[0].mxu0 %v568
        %v1662 = vpop.f32.mrb[0].mxu0
        %v1663 = vadd.f32 %v731, %v1662
        %v1664 = vpop.f32.mrb[0].mxu0
        %v1665 = vadd.f32 %v735, %v1664
        %v1666 = vpop.f32.mrb[0].mxu0
        %v1667 = vadd.f32 %v731, %v1666
        %v1668 = vpop.f32.mrb[0].mxu0
        %v1669 = vadd.f32 %v735, %v1668
        %1670 = vmatprep.mubr.bf16.mxu0 %v571
        %1671 = vmatmul.mubr.bf16.gmra.mrb[0].mxu0 %v570
        %v1672 = vpop.f32.mrb[0].mxu0
        %v1673 = vadd.f32 %v731, %v1672
        %v1674 = vpop.f32.mrb[0].mxu0
        %v1675 = vadd.f32 %v735, %v1674
        %v1676 = vpop.f32.mrb[0].mxu0
        %v1677 = vadd.f32 %v731, %v1676
        %v1678 = vpop.f32.mrb[0].mxu0
        %v1679 = vadd.f32 %v735, %v1678
        %1680 = vmatprep.mubr.bf16.mxu0 %v573
        %1681 = vmatmul.mubr.bf16.gmra.mrb[0].mxu0 %v572
        %v1682 = vpop.f32.mrb[0].mxu0
        %v1683 = vadd.f32 %v731, %v1682
        %v1684 = vpop.f32.mrb[0].mxu0
        %v1685 = vadd.f32 %v735, %v1684
        %v1686 = vpop.f32.mrb[0].mxu0
        %v1687 = vadd.f32 %v731, %v1686
        %v1688 = vpop.f32.mrb[0].mxu0
        %v1689 = vadd.f32 %v735, %v1688
        %1690 = vmatprep.mubr.bf16.mxu0 %v575
        %1691 = vmatmul.mubr.bf16.gmra.mrb[0].mxu0 %v574
        %v1692 = vpop.f32.mrb[0].mxu0
        %v1693 = vadd.f32 %v731, %v1692
        %v1694 = vpop.f32.mrb[0].mxu0
        %v1695 = vadd.f32 %v735, %v1694
        %v1696 = vpop.f32.mrb[0].mxu0
        %v1697 = vadd.f32 %v731, %v1696
        %v1698 = vpop.f32.mrb[0].mxu0
        %v1699 = vadd.f32 %v735, %v1698
        %1700 = vmatprep.mubr.bf16.mxu0 %v577
        %1701 = vmatmul.mubr.bf16.gmra.mrb[0].mxu0 %v576
        %v1702 = vpop.f32.mrb[0].mxu0
        %v1703 = vadd.f32 %v731, %v1702
        %v1704 = vpop.f32.mrb[0].mxu0
        %v1705 = vadd.f32 %v735, %v1704
        %v1706 = vpop.f32.mrb[0].mxu0
        %v1707 = vadd.f32 %v731, %v1706
        %v1708 = vpop.f32.mrb[0].mxu0
        %v1709 = vadd.f32 %v735, %v1708
        %1710 = vmatprep.mubr.bf16.mxu0 %v579
        %1711 = vmatmul.mubr.bf16.gmra.mrb[0].mxu0 %v578
        %v1712 = vpop.f32.mrb[0].mxu0
        %v1713 = vadd.f32 %v731, %v1712
        %v1714 = vpop.f32.mrb[0].mxu0
        %v1715 = vadd.f32 %v735, %v1714
        %v1716 = vpop.f32.mrb[0].mxu0
        %v1717 = vadd.f32 %v731, %v1716
        %v1718 = vpop.f32.mrb[0].mxu0
        %v1719 = vadd.f32 %v735, %v1718
        %1720 = vmatprep.mubr.bf16.mxu0 %v581
        %1721 = vmatmul.mubr.bf16.gmra.mrb[0].mxu0 %v580
        %v1722 = vpop.f32.mrb[0].mxu0
        %v1723 = vadd.f32 %v731, %v1722
        %v1724 = vpop.f32.mrb[0].mxu0
        %v1725 = vadd.f32 %v735, %v1724
        %v1726 = vpop.f32.mrb[0].mxu0
        %v1727 = vadd.f32 %v731, %v1726
        %v1728 = vpop.f32.mrb[0].mxu0
        %v1729 = vadd.f32 %v735, %v1728
        %1730 = vdwg.mxu0
        %1731 = vmatprep.subr.bf16.mxu0 %v1143
        %1732 = vmatpush1.bf16.msra.mxu0 %v1142
        %1733 = vmatprep.subr.bf16.mxu0 %v1151
        %1734 = vmatpush1.bf16.msra.mxu0 %v1150
        %1735 = vmatprep.subr.bf16.mxu0 %v1159
        %1736 = vmatpush1.bf16.msra.mxu0 %v1158
        %1737 = vmatprep.subr.bf16.mxu0 %v1167
        %1738 = vmatpush1.bf16.msra.mxu0 %v1166
        %1739 = vmatprep.subr.bf16.mxu0 %v1175
        %1740 = vmatpush1.bf16.msra.mxu0 %v1174
        %1741 = vmatprep.subr.bf16.mxu0 %v1183
        %1742 = vmatpush1.bf16.msra.mxu0 %v1182
        %1743 = vmatprep.subr.bf16.mxu0 %v1191
        %1744 = vmatpush1.bf16.msra.mxu0 %v1190
        %1745 = vmatprep.subr.bf16.mxu0 %v1199
        %1746 = vmatpush1.bf16.msra.mxu0 %v1198
        %1747 = vmatprep.subr.bf16.mxu0 %v1207
        %1748 = vmatpush1.bf16.msra.mxu0 %v1206
        %1749 = vmatprep.subr.bf16.mxu0 %v1215
        %1750 = vmatpush1.bf16.msra.mxu0 %v1214
        %1751 = vmatprep.subr.bf16.mxu0 %v1223
        %1752 = vmatpush1.bf16.msra.mxu0 %v1222
        %1753 = vmatprep.subr.bf16.mxu0 %v1231
        %1754 = vmatpush1.bf16.msra.mxu0 %v1230
        %1755 = vmatprep.subr.bf16.mxu0 %v1239
        %1756 = vmatpush1.bf16.msra.mxu0 %v1238
        %1757 = vmatprep.subr.bf16.mxu0 %v1247
        %1758 = vmatpush1.bf16.msra.mxu0 %v1246
        %1759 = vmatprep.subr.bf16.mxu0 %v1255
        %1760 = vmatpush1.bf16.msra.mxu0 %v1254
        %1761 = vmatprep.subr.bf16.mxu0 %v1263
        %1762 = vmatpush1.bf16.msra.mxu0 %v1262
        %1763 = vmatprep.mubr.bf16.mxu0 %v567
        %1764 = vmatmul.mubr.bf16.gmra.mrb[0].mxu0 %v566
        %v1765 = vpop.f32.mrb[0].mxu0
        %v1766 = vadd.f32 %v739, %v1765
        %v1767 = vpop.f32.mrb[0].mxu0
        %v1768 = vadd.f32 %v743, %v1767
        %v1769 = vpop.f32.mrb[0].mxu0
        %v1770 = vadd.f32 %v739, %v1769
        %v1771 = vpop.f32.mrb[0].mxu0
        %v1772 = vadd.f32 %v743, %v1771
        %1773 = vmatprep.mubr.bf16.mxu0 %v569
        %1774 = vmatmul.mubr.bf16.gmra.mrb[0].mxu0 %v568
        %v1775 = vpop.f32.mrb[0].mxu0
        %v1776 = vadd.f32 %v739, %v1775
        %v1777 = vpop.f32.mrb[0].mxu0
        %v1778 = vadd.f32 %v743, %v1777
        %v1779 = vpop.f32.mrb[0].mxu0
        %v1780 = vadd.f32 %v739, %v1779
        %v1781 = vpop.f32.mrb[0].mxu0
        %v1782 = vadd.f32 %v743, %v1781
        %1783 = vmatprep.mubr.bf16.mxu0 %v571
        %1784 = vmatmul.mubr.bf16.gmra.mrb[0].mxu0 %v570
        %v1785 = vpop.f32.mrb[0].mxu0
        %v1786 = vadd.f32 %v739, %v1785
        %v1787 = vpop.f32.mrb[0].mxu0
        %v1788 = vadd.f32 %v743, %v1787
        %v1789 = vpop.f32.mrb[0].mxu0
        %v1790 = vadd.f32 %v739, %v1789
        %v1791 = vpop.f32.mrb[0].mxu0
        %v1792 = vadd.f32 %v743, %v1791
        %1793 = vmatprep.mubr.bf16.mxu0 %v573
        %1794 = vmatmul.mubr.bf16.gmra.mrb[0].mxu0 %v572
        %v1795 = vpop.f32.mrb[0].mxu0
        %v1796 = vadd.f32 %v739, %v1795
        %v1797 = vpop.f32.mrb[0].mxu0
        %v1798 = vadd.f32 %v743, %v1797
        %v1799 = vpop.f32.mrb[0].mxu0
        %v1800 = vadd.f32 %v739, %v1799
        %v1801 = vpop.f32.mrb[0].mxu0
        %v1802 = vadd.f32 %v743, %v1801
        %1803 = vmatprep.mubr.bf16.mxu0 %v575
        %1804 = vmatmul.mubr.bf16.gmra.mrb[0].mxu0 %v574
        %v1805 = vpop.f32.mrb[0].mxu0
        %v1806 = vadd.f32 %v739, %v1805
        %v1807 = vpop.f32.mrb[0].mxu0
        %v1808 = vadd.f32 %v743, %v1807
        %v1809 = vpop.f32.mrb[0].mxu0
        %v1810 = vadd.f32 %v739, %v1809
        %v1811 = vpop.f32.mrb[0].mxu0
        %v1812 = vadd.f32 %v743, %v1811
        %1813 = vmatprep.mubr.bf16.mxu0 %v577
        %1814 = vmatmul.mubr.bf16.gmra.mrb[0].mxu0 %v576
        %v1815 = vpop.f32.mrb[0].mxu0
        %v1816 = vadd.f32 %v739, %v1815
        %v1817 = vpop.f32.mrb[0].mxu0
        %v1818 = vadd.f32 %v743, %v1817
        %v1819 = vpop.f32.mrb[0].mxu0
        %v1820 = vadd.f32 %v739, %v1819
        %v1821 = vpop.f32.mrb[0].mxu0
        %v1822 = vadd.f32 %v743, %v1821
        %1823 = vmatprep.mubr.bf16.mxu0 %v579
        %1824 = vmatmul.mubr.bf16.gmra.mrb[0].mxu0 %v578
        %v1825 = vpop.f32.mrb[0].mxu0
        %v1826 = vadd.f32 %v739, %v1825
        %v1827 = vpop.f32.mrb[0].mxu0
        %v1828 = vadd.f32 %v743, %v1827
        %v1829 = vpop.f32.mrb[0].mxu0
        %v1830 = vadd.f32 %v739, %v1829
        %v1831 = vpop.f32.mrb[0].mxu0
        %v1832 = vadd.f32 %v743, %v1831
        %1833 = vmatprep.mubr.bf16.mxu0 %v581
        %1834 = vmatmul.mubr.bf16.gmra.mrb[0].mxu0 %v580
        %v1835 = vpop.f32.mrb[0].mxu0
        %v1836 = vadd.f32 %v739, %v1835
        %v1837 = vpop.f32.mrb[0].mxu0
        %v1838 = vadd.f32 %v743, %v1837
        %v1839 = vpop.f32.mrb[0].mxu0
        %v1840 = vadd.f32 %v739, %v1839
        %v1841 = vpop.f32.mrb[0].mxu0
        %v1842 = vadd.f32 %v743, %v1841
        %1843 = vdwg.mxu0
        %v1844 = vpack.c.bf16 %v1431, %v1427
        %v1845 = vpack.c.bf16 %v1441, %v1437
        %v1846 = vpack.c.bf16 %v1451, %v1447
        %v1847 = vpack.c.bf16 %v1461, %v1457
        %v1848 = vpack.c.bf16 %v1471, %v1467
        %v1849 = vpack.c.bf16 %v1481, %v1477
        %v1850 = vpack.c.bf16 %v1491, %v1487
        %v1851 = vpack.c.bf16 %v1501, %v1497
        %v1852 = vpack.c.bf16 %v1544, %v1540
        %v1853 = vpack.c.bf16 %v1554, %v1550
        %v1854 = vpack.c.bf16 %v1564, %v1560
        %v1855 = vpack.c.bf16 %v1574, %v1570
        %v1856 = vpack.c.bf16 %v1584, %v1580
        %v1857 = vpack.c.bf16 %v1594, %v1590
        %v1858 = vpack.c.bf16 %v1604, %v1600
        %v1859 = vpack.c.bf16 %v1614, %v1610
        %v1860 = vpack.c.bf16 %v1657, %v1653
        %v1861 = vpack.c.bf16 %v1667, %v1663
        %v1862 = vpack.c.bf16 %v1677, %v1673
        %v1863 = vpack.c.bf16 %v1687, %v1683
        %v1864 = vpack.c.bf16 %v1697, %v1693
        %v1865 = vpack.c.bf16 %v1707, %v1703
        %v1866 = vpack.c.bf16 %v1717, %v1713
        %v1867 = vpack.c.bf16 %v1727, %v1723
        %v1868 = vpack.c.bf16 %v1770, %v1766
        %v1869 = vpack.c.bf16 %v1780, %v1776
        %v1870 = vpack.c.bf16 %v1790, %v1786
        %v1871 = vpack.c.bf16 %v1800, %v1796
        %v1872 = vpack.c.bf16 %v1810, %v1806
        %v1873 = vpack.c.bf16 %v1820, %v1816
        %v1874 = vpack.c.bf16 %v1830, %v1826
        %v1875 = vpack.c.bf16 %v1840, %v1836
        %1876 = vmatprep.subr.bf16.mxu0 0
        %1877 = vmatpush1.bf16.xpose.msra.mxu0 %v1852
        %1878 = vmatprep.subr.bf16.mxu0 0
        %1879 = vmatpush1.bf16.xpose.msra.mxu0 %v1853
        %1880 = vmatprep.subr.bf16.mxu0 0
        %1881 = vmatpush1.bf16.xpose.msra.mxu0 0
        %1882 = vmatprep.subr.bf16.mxu0 0
        %1883 = vmatpush1.bf16.xpose.msra.mxu0 0
        %1884 = vmatprep.subr.bf16.mxu0 0
        %1885 = vmatpush1.bf16.xpose.msra.mxu0 0
        %1886 = vmatprep.subr.bf16.mxu0 0
        %1887 = vmatpush1.bf16.xpose.msra.mxu0 0
        %1888 = vmatprep.subr.bf16.mxu0 0
        %1889 = vmatpush1.bf16.xpose.msra.mxu0 0
        %1890 = vmatprep.subr.bf16.mxu0 0
        %1891 = vmatpush1.bf16.xpose.msra.mxu0 0
        %1892 = vmatprep.subr.bf16.mxu0 0
        %1893 = vmatpush1.bf16.xpose.msra.mxu0 0
        %1894 = vmatprep.subr.bf16.mxu0 0
        %1895 = vmatpush1.bf16.xpose.msra.mxu0 0
        %1896 = vmatprep.subr.bf16.mxu0 0
        %1897 = vmatpush1.bf16.xpose.msra.mxu0 0
        %1898 = vmatprep.subr.bf16.mxu0 0
        %1899 = vmatpush1.bf16.xpose.msra.mxu0 0
        %1900 = vmatprep.subr.bf16.mxu0 0
        %1901 = vmatpush1.bf16.xpose.msra.mxu0 0
        %1902 = vmatprep.subr.bf16.mxu0 0
        %1903 = vmatpush1.bf16.xpose.msra.mxu0 0
        %1904 = vmatprep.subr.bf16.mxu0 0
        %1905 = vmatpush1.bf16.xpose.msra.mxu0 0
        %1906 = vmatprep.subr.bf16.mxu0 0
        %1907 = vmatpush1.bf16.xpose.msra.mxu0 0
        %1908 = vmatprep.mubr.bf16.mxu0 0
        %1909 = vmatmul.mubr.bf16.gmra.mrb[0].mxu0 %v1844
        %v1910 = vpop.f32.mrb[0].mxu0
        %v1911 = vadd.f32 0.0, %v1910
        %v1912 = vpop.f32.mrb[0].mxu0
        %v1913 = vpop.f32.mrb[0].mxu0
        %v1914 = vadd.f32 0.0, %v1913
        %v1915 = vpop.f32.mrb[0].mxu0
        %1916 = vmatprep.mubr.bf16.mxu0 0
        %1917 = vmatmul.mubr.bf16.gmra.mrb[0].mxu0 %v1845
        %v1918 = vpop.f32.mrb[0].mxu0
        %v1919 = vadd.f32 0.0, %v1918
        %v1920 = vpop.f32.mrb[0].mxu0
        %v1921 = vpop.f32.mrb[0].mxu0
        %v1922 = vadd.f32 0.0, %v1921
        %v1923 = vpop.f32.mrb[0].mxu0
        %1924 = vdwg.mxu0
        %1925 = vmatprep.subr.bf16.mxu0 0
        %1926 = vmatpush1.bf16.xpose.msra.mxu0 %v1854
        %1927 = vmatprep.subr.bf16.mxu0 0
        %1928 = vmatpush1.bf16.xpose.msra.mxu0 %v1855
        %1929 = vmatprep.subr.bf16.mxu0 0
        %1930 = vmatpush1.bf16.xpose.msra.mxu0 0
        %1931 = vmatprep.subr.bf16.mxu0 0
        %1932 = vmatpush1.bf16.xpose.msra.mxu0 0
        %1933 = vmatprep.subr.bf16.mxu0 0
        %1934 = vmatpush1.bf16.xpose.msra.mxu0 0
        %1935 = vmatprep.subr.bf16.mxu0 0
        %1936 = vmatpush1.bf16.xpose.msra.mxu0 0
        %1937 = vmatprep.subr.bf16.mxu0 0
        %1938 = vmatpush1.bf16.xpose.msra.mxu0 0
        %1939 = vmatprep.subr.bf16.mxu0 0
        %1940 = vmatpush1.bf16.xpose.msra.mxu0 0
        %1941 = vmatprep.subr.bf16.mxu0 0
        %1942 = vmatpush1.bf16.xpose.msra.mxu0 0
        %1943 = vmatprep.subr.bf16.mxu0 0
        %1944 = vmatpush1.bf16.xpose.msra.mxu0 0
        %1945 = vmatprep.subr.bf16.mxu0 0
        %1946 = vmatpush1.bf16.xpose.msra.mxu0 0
        %1947 = vmatprep.subr.bf16.mxu0 0
        %1948 = vmatpush1.bf16.xpose.msra.mxu0 0
        %1949 = vmatprep.subr.bf16.mxu0 0
        %1950 = vmatpush1.bf16.xpose.msra.mxu0 0
        %1951 = vmatprep.subr.bf16.mxu0 0
        %1952 = vmatpush1.bf16.xpose.msra.mxu0 0
        %1953 = vmatprep.subr.bf16.mxu0 0
        %1954 = vmatpush1.bf16.xpose.msra.mxu0 0
        %1955 = vmatprep.subr.bf16.mxu0 0
        %1956 = vmatpush1.bf16.xpose.msra.mxu0 0
        %1957 = vmatprep.mubr.bf16.mxu0 0
        %1958 = vmatmul.mubr.bf16.gmra.mrb[0].mxu0 %v1846
        %v1959 = vpop.f32.mrb[0].mxu0
        %v1960 = vadd.f32 0.0, %v1959
        %v1961 = vpop.f32.mrb[0].mxu0
        %v1962 = vpop.f32.mrb[0].mxu0
        %v1963 = vadd.f32 0.0, %v1962
        %v1964 = vpop.f32.mrb[0].mxu0
        %1965 = vmatprep.mubr.bf16.mxu0 0
        %1966 = vmatmul.mubr.bf16.gmra.mrb[0].mxu0 %v1847
        %v1967 = vpop.f32.mrb[0].mxu0
        %v1968 = vadd.f32 0.0, %v1967
        %v1969 = vpop.f32.mrb[0].mxu0
        %v1970 = vpop.f32.mrb[0].mxu0
        %v1971 = vadd.f32 0.0, %v1970
        %v1972 = vpop.f32.mrb[0].mxu0
        %1973 = vdwg.mxu0
        %1974 = vmatprep.subr.bf16.mxu0 0
        %1975 = vmatpush1.bf16.xpose.msra.mxu0 %v1856
        %1976 = vmatprep.subr.bf16.mxu0 0
        %1977 = vmatpush1.bf16.xpose.msra.mxu0 %v1857
        %1978 = vmatprep.subr.bf16.mxu0 0
        %1979 = vmatpush1.bf16.xpose.msra.mxu0 0
        %1980 = vmatprep.subr.bf16.mxu0 0
        %1981 = vmatpush1.bf16.xpose.msra.mxu0 0
        %1982 = vmatprep.subr.bf16.mxu0 0
        %1983 = vmatpush1.bf16.xpose.msra.mxu0 0
        %1984 = vmatprep.subr.bf16.mxu0 0
        %1985 = vmatpush1.bf16.xpose.msra.mxu0 0
        %1986 = vmatprep.subr.bf16.mxu0 0
        %1987 = vmatpush1.bf16.xpose.msra.mxu0 0
        %1988 = vmatprep.subr.bf16.mxu0 0
        %1989 = vmatpush1.bf16.xpose.msra.mxu0 0
        %1990 = vmatprep.subr.bf16.mxu0 0
        %1991 = vmatpush1.bf16.xpose.msra.mxu0 0
        %1992 = vmatprep.subr.bf16.mxu0 0
        %1993 = vmatpush1.bf16.xpose.msra.mxu0 0
        %1994 = vmatprep.subr.bf16.mxu0 0
        %1995 = vmatpush1.bf16.xpose.msra.mxu0 0
        %1996 = vmatprep.subr.bf16.mxu0 0
        %1997 = vmatpush1.bf16.xpose.msra.mxu0 0
        %1998 = vmatprep.subr.bf16.mxu0 0
        %1999 = vmatpush1.bf16.xpose.msra.mxu0 0
        %2000 = vmatprep.subr.bf16.mxu0 0
        %2001 = vmatpush1.bf16.xpose.msra.mxu0 0
        %2002 = vmatprep.subr.bf16.mxu0 0
        %2003 = vmatpush1.bf16.xpose.msra.mxu0 0
        %2004 = vmatprep.subr.bf16.mxu0 0
        %2005 = vmatpush1.bf16.xpose.msra.mxu0 0
        %2006 = vmatprep.mubr.bf16.mxu0 0
        %2007 = vmatmul.mubr.bf16.gmra.mrb[0].mxu0 %v1848
        %v2008 = vpop.f32.mrb[0].mxu0
        %v2009 = vadd.f32 0.0, %v2008
        %v2010 = vpop.f32.mrb[0].mxu0
        %v2011 = vpop.f32.mrb[0].mxu0
        %v2012 = vadd.f32 0.0, %v2011
        %v2013 = vpop.f32.mrb[0].mxu0
        %2014 = vmatprep.mubr.bf16.mxu0 0
        %2015 = vmatmul.mubr.bf16.gmra.mrb[0].mxu0 %v1849
        %v2016 = vpop.f32.mrb[0].mxu0
        %v2017 = vadd.f32 0.0, %v2016
        %v2018 = vpop.f32.mrb[0].mxu0
        %v2019 = vpop.f32.mrb[0].mxu0
        %v2020 = vadd.f32 0.0, %v2019
        %v2021 = vpop.f32.mrb[0].mxu0
        %2022 = vdwg.mxu0
        %2023 = vmatprep.subr.bf16.mxu0 0
        %2024 = vmatpush1.bf16.xpose.msra.mxu0 %v1858
        %2025 = vmatprep.subr.bf16.mxu0 0
        %2026 = vmatpush1.bf16.xpose.msra.mxu0 %v1859
        %2027 = vmatprep.subr.bf16.mxu0 0
        %2028 = vmatpush1.bf16.xpose.msra.mxu0 0
        %2029 = vmatprep.subr.bf16.mxu0 0
        %2030 = vmatpush1.bf16.xpose.msra.mxu0 0
        %2031 = vmatprep.subr.bf16.mxu0 0
        %2032 = vmatpush1.bf16.xpose.msra.mxu0 0
        %2033 = vmatprep.subr.bf16.mxu0 0
        %2034 = vmatpush1.bf16.xpose.msra.mxu0 0
        %2035 = vmatprep.subr.bf16.mxu0 0
        %2036 = vmatpush1.bf16.xpose.msra.mxu0 0
        %2037 = vmatprep.subr.bf16.mxu0 0
        %2038 = vmatpush1.bf16.xpose.msra.mxu0 0
        %2039 = vmatprep.subr.bf16.mxu0 0
        %2040 = vmatpush1.bf16.xpose.msra.mxu0 0
        %2041 = vmatprep.subr.bf16.mxu0 0
        %2042 = vmatpush1.bf16.xpose.msra.mxu0 0
        %2043 = vmatprep.subr.bf16.mxu0 0
        %2044 = vmatpush1.bf16.xpose.msra.mxu0 0
        %2045 = vmatprep.subr.bf16.mxu0 0
        %2046 = vmatpush1.bf16.xpose.msra.mxu0 0
        %2047 = vmatprep.subr.bf16.mxu0 0
        %2048 = vmatpush1.bf16.xpose.msra.mxu0 0
        %2049 = vmatprep.subr.bf16.mxu0 0
        %2050 = vmatpush1.bf16.xpose.msra.mxu0 0
        %2051 = vmatprep.subr.bf16.mxu0 0
        %2052 = vmatpush1.bf16.xpose.msra.mxu0 0
        %2053 = vmatprep.subr.bf16.mxu0 0
        %2054 = vmatpush1.bf16.xpose.msra.mxu0 0
        %2055 = vmatprep.mubr.bf16.mxu0 0
        %2056 = vmatmul.mubr.bf16.gmra.mrb[0].mxu0 %v1850
        %v2057 = vpop.f32.mrb[0].mxu0
        %v2058 = vadd.f32 0.0, %v2057
        %v2059 = vpop.f32.mrb[0].mxu0
        %v2060 = vpop.f32.mrb[0].mxu0
        %v2061 = vadd.f32 0.0, %v2060
        %v2062 = vpop.f32.mrb[0].mxu0
        %2063 = vmatprep.mubr.bf16.mxu0 0
        %2064 = vmatmul.mubr.bf16.gmra.mrb[0].mxu0 %v1851
        %v2065 = vpop.f32.mrb[0].mxu0
        %v2066 = vadd.f32 0.0, %v2065
        %v2067 = vpop.f32.mrb[0].mxu0
        %v2068 = vpop.f32.mrb[0].mxu0
        %v2069 = vadd.f32 0.0, %v2068
        %v2070 = vpop.f32.mrb[0].mxu0
        %2071 = vdwg.mxu0
        %2072 = vmatprep.subr.bf16.mxu0 0
        %2073 = vmatpush1.bf16.xpose.msra.mxu0 %v1860
        %2074 = vmatprep.subr.bf16.mxu0 0
        %2075 = vmatpush1.bf16.xpose.msra.mxu0 %v1861
        %2076 = vmatprep.subr.bf16.mxu0 0
        %2077 = vmatpush1.bf16.xpose.msra.mxu0 0
        %2078 = vmatprep.subr.bf16.mxu0 0
        %2079 = vmatpush1.bf16.xpose.msra.mxu0 0
        %2080 = vmatprep.subr.bf16.mxu0 0
        %2081 = vmatpush1.bf16.xpose.msra.mxu0 0
        %2082 = vmatprep.subr.bf16.mxu0 0
        %2083 = vmatpush1.bf16.xpose.msra.mxu0 0
        %2084 = vmatprep.subr.bf16.mxu0 0
        %2085 = vmatpush1.bf16.xpose.msra.mxu0 0
        %2086 = vmatprep.subr.bf16.mxu0 0
        %2087 = vmatpush1.bf16.xpose.msra.mxu0 0
        %2088 = vmatprep.subr.bf16.mxu0 0
        %2089 = vmatpush1.bf16.xpose.msra.mxu0 0
        %2090 = vmatprep.subr.bf16.mxu0 0
        %2091 = vmatpush1.bf16.xpose.msra.mxu0 0
        %2092 = vmatprep.subr.bf16.mxu0 0
        %2093 = vmatpush1.bf16.xpose.msra.mxu0 0
        %2094 = vmatprep.subr.bf16.mxu0 0
        %2095 = vmatpush1.bf16.xpose.msra.mxu0 0
        %2096 = vmatprep.subr.bf16.mxu0 0
        %2097 = vmatpush1.bf16.xpose.msra.mxu0 0
        %2098 = vmatprep.subr.bf16.mxu0 0
        %2099 = vmatpush1.bf16.xpose.msra.mxu0 0
        %2100 = vmatprep.subr.bf16.mxu0 0
        %2101 = vmatpush1.bf16.xpose.msra.mxu0 0
        %2102 = vmatprep.subr.bf16.mxu0 0
        %2103 = vmatpush1.bf16.xpose.msra.mxu0 0
        %2104 = vmatprep.mubr.bf16.mxu0 0
        %2105 = vmatmul.mubr.bf16.gmra.mrb[0].mxu0 %v1844
        %v2106 = vpop.f32.mrb[0].mxu0
        %v2107 = vadd.f32 0.0, %v2106
        %v2108 = vpop.f32.mrb[0].mxu0
        %v2109 = vpop.f32.mrb[0].mxu0
        %v2110 = vadd.f32 0.0, %v2109
        %v2111 = vpop.f32.mrb[0].mxu0
        %2112 = vmatprep.mubr.bf16.mxu0 0
        %2113 = vmatmul.mubr.bf16.gmra.mrb[0].mxu0 %v1845
        %v2114 = vpop.f32.mrb[0].mxu0
        %v2115 = vadd.f32 0.0, %v2114
        %v2116 = vpop.f32.mrb[0].mxu0
        %v2117 = vpop.f32.mrb[0].mxu0
        %v2118 = vadd.f32 0.0, %v2117
        %v2119 = vpop.f32.mrb[0].mxu0
        %2120 = vdwg.mxu0
        %2121 = vmatprep.subr.bf16.mxu0 0
        %2122 = vmatpush1.bf16.xpose.msra.mxu0 %v1862
        %2123 = vmatprep.subr.bf16.mxu0 0
        %2124 = vmatpush1.bf16.xpose.msra.mxu0 %v1863
        %2125 = vmatprep.subr.bf16.mxu0 0
        %2126 = vmatpush1.bf16.xpose.msra.mxu0 0
        %2127 = vmatprep.subr.bf16.mxu0 0
        %2128 = vmatpush1.bf16.xpose.msra.mxu0 0
        %2129 = vmatprep.subr.bf16.mxu0 0
        %2130 = vmatpush1.bf16.xpose.msra.mxu0 0
        %2131 = vmatprep.subr.bf16.mxu0 0
        %2132 = vmatpush1.bf16.xpose.msra.mxu0 0
        %2133 = vmatprep.subr.bf16.mxu0 0
        %2134 = vmatpush1.bf16.xpose.msra.mxu0 0
        %2135 = vmatprep.subr.bf16.mxu0 0
        %2136 = vmatpush1.bf16.xpose.msra.mxu0 0
        %2137 = vmatprep.subr.bf16.mxu0 0
        %2138 = vmatpush1.bf16.xpose.msra.mxu0 0
        %2139 = vmatprep.subr.bf16.mxu0 0
        %2140 = vmatpush1.bf16.xpose.msra.mxu0 0
        %2141 = vmatprep.subr.bf16.mxu0 0
        %2142 = vmatpush1.bf16.xpose.msra.mxu0 0
        %2143 = vmatprep.subr.bf16.mxu0 0
        %2144 = vmatpush1.bf16.xpose.msra.mxu0 0
        %2145 = vmatprep.subr.bf16.mxu0 0
        %2146 = vmatpush1.bf16.xpose.msra.mxu0 0
        %2147 = vmatprep.subr.bf16.mxu0 0
        %2148 = vmatpush1.bf16.xpose.msra.mxu0 0
        %2149 = vmatprep.subr.bf16.mxu0 0
        %2150 = vmatpush1.bf16.xpose.msra.mxu0 0
        %2151 = vmatprep.subr.bf16.mxu0 0
        %2152 = vmatpush1.bf16.xpose.msra.mxu0 0
        %2153 = vmatprep.mubr.bf16.mxu0 0
        %2154 = vmatmul.mubr.bf16.gmra.mrb[0].mxu0 %v1846
        %v2155 = vpop.f32.mrb[0].mxu0
        %v2156 = vadd.f32 0.0, %v2155
        %v2157 = vpop.f32.mrb[0].mxu0
        %v2158 = vpop.f32.mrb[0].mxu0
        %v2159 = vadd.f32 0.0, %v2158
        %v2160 = vpop.f32.mrb[0].mxu0
        %2161 = vmatprep.mubr.bf16.mxu0 0
        %2162 = vmatmul.mubr.bf16.gmra.mrb[0].mxu0 %v1847
        %v2163 = vpop.f32.mrb[0].mxu0
        %v2164 = vadd.f32 0.0, %v2163
        %v2165 = vpop.f32.mrb[0].mxu0
        %v2166 = vpop.f32.mrb[0].mxu0
        %v2167 = vadd.f32 0.0, %v2166
        %v2168 = vpop.f32.mrb[0].mxu0
        %2169 = vdwg.mxu0
        %2170 = vmatprep.subr.bf16.mxu0 0
        %2171 = vmatpush1.bf16.xpose.msra.mxu0 %v1864
        %2172 = vmatprep.subr.bf16.mxu0 0
        %2173 = vmatpush1.bf16.xpose.msra.mxu0 %v1865
        %2174 = vmatprep.subr.bf16.mxu0 0
        %2175 = vmatpush1.bf16.xpose.msra.mxu0 0
        %2176 = vmatprep.subr.bf16.mxu0 0
        %2177 = vmatpush1.bf16.xpose.msra.mxu0 0
        %2178 = vmatprep.subr.bf16.mxu0 0
        %2179 = vmatpush1.bf16.xpose.msra.mxu0 0
        %2180 = vmatprep.subr.bf16.mxu0 0
        %2181 = vmatpush1.bf16.xpose.msra.mxu0 0
        %2182 = vmatprep.subr.bf16.mxu0 0
        %2183 = vmatpush1.bf16.xpose.msra.mxu0 0
        %2184 = vmatprep.subr.bf16.mxu0 0
        %2185 = vmatpush1.bf16.xpose.msra.mxu0 0
        %2186 = vmatprep.subr.bf16.mxu0 0
        %2187 = vmatpush1.bf16.xpose.msra.mxu0 0
        %2188 = vmatprep.subr.bf16.mxu0 0
        %2189 = vmatpush1.bf16.xpose.msra.mxu0 0
        %2190 = vmatprep.subr.bf16.mxu0 0
        %2191 = vmatpush1.bf16.xpose.msra.mxu0 0
        %2192 = vmatprep.subr.bf16.mxu0 0
        %2193 = vmatpush1.bf16.xpose.msra.mxu0 0
        %2194 = vmatprep.subr.bf16.mxu0 0
        %2195 = vmatpush1.bf16.xpose.msra.mxu0 0
        %2196 = vmatprep.subr.bf16.mxu0 0
        %2197 = vmatpush1.bf16.xpose.msra.mxu0 0
        %2198 = vmatprep.subr.bf16.mxu0 0
        %2199 = vmatpush1.bf16.xpose.msra.mxu0 0
        %2200 = vmatprep.subr.bf16.mxu0 0
        %2201 = vmatpush1.bf16.xpose.msra.mxu0 0
        %2202 = vmatprep.mubr.bf16.mxu0 0
        %2203 = vmatmul.mubr.bf16.gmra.mrb[0].mxu0 %v1848
        %v2204 = vpop.f32.mrb[0].mxu0
        %v2205 = vadd.f32 0.0, %v2204
        %v2206 = vpop.f32.mrb[0].mxu0
        %v2207 = vpop.f32.mrb[0].mxu0
        %v2208 = vadd.f32 0.0, %v2207
        %v2209 = vpop.f32.mrb[0].mxu0
        %2210 = vmatprep.mubr.bf16.mxu0 0
        %2211 = vmatmul.mubr.bf16.gmra.mrb[0].mxu0 %v1849
        %v2212 = vpop.f32.mrb[0].mxu0
        %v2213 = vadd.f32 0.0, %v2212
        %v2214 = vpop.f32.mrb[0].mxu0
        %v2215 = vpop.f32.mrb[0].mxu0
        %v2216 = vadd.f32 0.0, %v2215
        %v2217 = vpop.f32.mrb[0].mxu0
        %2218 = vdwg.mxu0
        %2219 = vmatprep.subr.bf16.mxu0 0
        %2220 = vmatpush1.bf16.xpose.msra.mxu0 %v1866
        %2221 = vmatprep.subr.bf16.mxu0 0
        %2222 = vmatpush1.bf16.xpose.msra.mxu0 %v1867
        %2223 = vmatprep.subr.bf16.mxu0 0
        %2224 = vmatpush1.bf16.xpose.msra.mxu0 0
        %2225 = vmatprep.subr.bf16.mxu0 0
        %2226 = vmatpush1.bf16.xpose.msra.mxu0 0
        %2227 = vmatprep.subr.bf16.mxu0 0
        %2228 = vmatpush1.bf16.xpose.msra.mxu0 0
        %2229 = vmatprep.subr.bf16.mxu0 0
        %2230 = vmatpush1.bf16.xpose.msra.mxu0 0
        %2231 = vmatprep.subr.bf16.mxu0 0
        %2232 = vmatpush1.bf16.xpose.msra.mxu0 0
        %2233 = vmatprep.subr.bf16.mxu0 0
        %2234 = vmatpush1.bf16.xpose.msra.mxu0 0
        %2235 = vmatprep.subr.bf16.mxu0 0
        %2236 = vmatpush1.bf16.xpose.msra.mxu0 0
        %2237 = vmatprep.subr.bf16.mxu0 0
        %2238 = vmatpush1.bf16.xpose.msra.mxu0 0
        %2239 = vmatprep.subr.bf16.mxu0 0
        %2240 = vmatpush1.bf16.xpose.msra.mxu0 0
        %2241 = vmatprep.subr.bf16.mxu0 0
        %2242 = vmatpush1.bf16.xpose.msra.mxu0 0
        %2243 = vmatprep.subr.bf16.mxu0 0
        %2244 = vmatpush1.bf16.xpose.msra.mxu0 0
        %2245 = vmatprep.subr.bf16.mxu0 0
        %2246 = vmatpush1.bf16.xpose.msra.mxu0 0
        %2247 = vmatprep.subr.bf16.mxu0 0
        %2248 = vmatpush1.bf16.xpose.msra.mxu0 0
        %2249 = vmatprep.subr.bf16.mxu0 0
        %2250 = vmatpush1.bf16.xpose.msra.mxu0 0
        %2251 = vmatprep.mubr.bf16.mxu0 0
        %2252 = vmatmul.mubr.bf16.gmra.mrb[0].mxu0 %v1850
        %v2253 = vpop.f32.mrb[0].mxu0
        %v2254 = vadd.f32 0.0, %v2253
        %v2255 = vpop.f32.mrb[0].mxu0
        %v2256 = vpop.f32.mrb[0].mxu0
        %v2257 = vadd.f32 0.0, %v2256
        %v2258 = vpop.f32.mrb[0].mxu0
        %2259 = vmatprep.mubr.bf16.mxu0 0
        %2260 = vmatmul.mubr.bf16.gmra.mrb[0].mxu0 %v1851
        %v2261 = vpop.f32.mrb[0].mxu0
        %v2262 = vadd.f32 0.0, %v2261
        %v2263 = vpop.f32.mrb[0].mxu0
        %v2264 = vpop.f32.mrb[0].mxu0
        %v2265 = vadd.f32 0.0, %v2264
        %v2266 = vpop.f32.mrb[0].mxu0
        %2267 = vdwg.mxu0
        %v2268 = vmul.f32 %v1911, %v1911
        %v2269 = vmul.f32 %v1914, %v1914
        %v2270 = vmul.f32 %v1919, %v1919
        %v2271 = vmul.f32 %v1922, %v1922
        %v2272 = vmul.f32 %v1960, %v1960
        %v2273 = vmul.f32 %v1963, %v1963
        %v2274 = vmul.f32 %v1968, %v1968
        %v2275 = vmul.f32 %v1971, %v1971
        %v2276 = vmul.f32 %v2009, %v2009
        %v2277 = vmul.f32 %v2012, %v2012
        %v2278 = vmul.f32 %v2017, %v2017
        %v2279 = vmul.f32 %v2020, %v2020
        %v2280 = vmul.f32 %v2058, %v2058
        %v2281 = vmul.f32 %v2061, %v2061
        %v2282 = vmul.f32 %v2066, %v2066
        %v2283 = vmul.f32 %v2069, %v2069
        %v2284 = vmul.f32 %v2107, %v2107
        %v2285 = vmul.f32 %v2110, %v2110
        %v2286 = vmul.f32 %v2115, %v2115
        %v2287 = vmul.f32 %v2118, %v2118
        %v2288 = vmul.f32 %v2156, %v2156
        %v2289 = vmul.f32 %v2159, %v2159
        %v2290 = vmul.f32 %v2164, %v2164
        %v2291 = vmul.f32 %v2167, %v2167
        %v2292 = vmul.f32 %v2205, %v2205
        %v2293 = vmul.f32 %v2208, %v2208
        %v2294 = vmul.f32 %v2213, %v2213
        %v2295 = vmul.f32 %v2216, %v2216
        %v2296 = vmul.f32 %v2254, %v2254
        %v2297 = vmul.f32 %v2257, %v2257
        %v2298 = vmul.f32 %v2262, %v2262
        %v2299 = vmul.f32 %v2265, %v2265
        %v2300 = vadd.f32 %v2268, %v2284
        %v2301 = vadd.f32 %v2269, %v2285
        %v2302 = vadd.f32 %v2270, %v2286
        %v2303 = vadd.f32 %v2271, %v2287
        %v2304 = vadd.f32 %v2272, %v2288
        %v2305 = vadd.f32 %v2273, %v2289
        %v2306 = vadd.f32 %v2274, %v2290
        %v2307 = vadd.f32 %v2275, %v2291
        %v2308 = vadd.f32 %v2276, %v2292
        %v2309 = vadd.f32 %v2277, %v2293
        %v2310 = vadd.f32 %v2278, %v2294
        %v2311 = vadd.f32 %v2279, %v2295
        %v2312 = vadd.f32 %v2280, %v2296
        %v2313 = vadd.f32 %v2281, %v2297
        %v2314 = vadd.f32 %v2282, %v2298
        %v2315 = vadd.f32 %v2283, %v2299
        %v2316 = vrsqrt.pop %v2300
        %v2317 = vmul.f32 %v2300, %v2316
        %vm2318 = vcmp.eq.f32.partialorder %v2300, inf
        %v2319 = vsel %vm2318, %v2300, %v2317
        %vm2320 = vcmp.eq.f32.partialorder %v2300, 0.0
        %v2321 = vand.u32 %v2300, 2147483648
        %v2322 = vsel %vm2320, %v2321, %v2319
        %v2323 = vrsqrt.pop %v2301
        %v2324 = vmul.f32 %v2301, %v2323
        %vm2325 = vcmp.eq.f32.partialorder %v2301, inf
        %v2326 = vsel %vm2325, %v2301, %v2324
        %vm2327 = vcmp.eq.f32.partialorder %v2301, 0.0
        %v2328 = vand.u32 %v2301, 2147483648
        %v2329 = vsel %vm2327, %v2328, %v2326
        %v2330 = vrsqrt.pop %v2302
        %v2331 = vmul.f32 %v2302, %v2330
        %vm2332 = vcmp.eq.f32.partialorder %v2302, inf
        %v2333 = vsel %vm2332, %v2302, %v2331
        %vm2334 = vcmp.eq.f32.partialorder %v2302, 0.0
        %v2335 = vand.u32 %v2302, 2147483648
        %v2336 = vsel %vm2334, %v2335, %v2333
        %v2337 = vrsqrt.pop %v2303
        %v2338 = vmul.f32 %v2303, %v2337
        %vm2339 = vcmp.eq.f32.partialorder %v2303, inf
        %v2340 = vsel %vm2339, %v2303, %v2338
        %vm2341 = vcmp.eq.f32.partialorder %v2303, 0.0
        %v2342 = vand.u32 %v2303, 2147483648
        %v2343 = vsel %vm2341, %v2342, %v2340
        %v2344 = vrsqrt.pop %v2304
        %v2345 = vmul.f32 %v2304, %v2344
        %vm2346 = vcmp.eq.f32.partialorder %v2304, inf
        %v2347 = vsel %vm2346, %v2304, %v2345
        %vm2348 = vcmp.eq.f32.partialorder %v2304, 0.0
        %v2349 = vand.u32 %v2304, 2147483648
        %v2350 = vsel %vm2348, %v2349, %v2347
        %v2351 = vrsqrt.pop %v2305
        %v2352 = vmul.f32 %v2305, %v2351
        %vm2353 = vcmp.eq.f32.partialorder %v2305, inf
        %v2354 = vsel %vm2353, %v2305, %v2352
        %vm2355 = vcmp.eq.f32.partialorder %v2305, 0.0
        %v2356 = vand.u32 %v2305, 2147483648
        %v2357 = vsel %vm2355, %v2356, %v2354
        %v2358 = vrsqrt.pop %v2306
        %v2359 = vmul.f32 %v2306, %v2358
        %vm2360 = vcmp.eq.f32.partialorder %v2306, inf
        %v2361 = vsel %vm2360, %v2306, %v2359
        %vm2362 = vcmp.eq.f32.partialorder %v2306, 0.0
        %v2363 = vand.u32 %v2306, 2147483648
        %v2364 = vsel %vm2362, %v2363, %v2361
        %v2365 = vrsqrt.pop %v2307
        %v2366 = vmul.f32 %v2307, %v2365
        %vm2367 = vcmp.eq.f32.partialorder %v2307, inf
        %v2368 = vsel %vm2367, %v2307, %v2366
        %vm2369 = vcmp.eq.f32.partialorder %v2307, 0.0
        %v2370 = vand.u32 %v2307, 2147483648
        %v2371 = vsel %vm2369, %v2370, %v2368
        %v2372 = vrsqrt.pop %v2308
        %v2373 = vmul.f32 %v2308, %v2372
        %vm2374 = vcmp.eq.f32.partialorder %v2308, inf
        %v2375 = vsel %vm2374, %v2308, %v2373
        %vm2376 = vcmp.eq.f32.partialorder %v2308, 0.0
        %v2377 = vand.u32 %v2308, 2147483648
        %v2378 = vsel %vm2376, %v2377, %v2375
        %v2379 = vrsqrt.pop %v2309
        %v2380 = vmul.f32 %v2309, %v2379
        %vm2381 = vcmp.eq.f32.partialorder %v2309, inf
        %v2382 = vsel %vm2381, %v2309, %v2380
        %vm2383 = vcmp.eq.f32.partialorder %v2309, 0.0
        %v2384 = vand.u32 %v2309, 2147483648
        %v2385 = vsel %vm2383, %v2384, %v2382
        %v2386 = vrsqrt.pop %v2310
        %v2387 = vmul.f32 %v2310, %v2386
        %vm2388 = vcmp.eq.f32.partialorder %v2310, inf
        %v2389 = vsel %vm2388, %v2310, %v2387
        %vm2390 = vcmp.eq.f32.partialorder %v2310, 0.0
        %v2391 = vand.u32 %v2310, 2147483648
        %v2392 = vsel %vm2390, %v2391, %v2389
        %v2393 = vrsqrt.pop %v2311
        %v2394 = vmul.f32 %v2311, %v2393
        %vm2395 = vcmp.eq.f32.partialorder %v2311, inf
        %v2396 = vsel %vm2395, %v2311, %v2394
        %vm2397 = vcmp.eq.f32.partialorder %v2311, 0.0
        %v2398 = vand.u32 %v2311, 2147483648
        %v2399 = vsel %vm2397, %v2398, %v2396
        %v2400 = vrsqrt.pop %v2312
        %v2401 = vmul.f32 %v2312, %v2400
        %vm2402 = vcmp.eq.f32.partialorder %v2312, inf
        %v2403 = vsel %vm2402, %v2312, %v2401
        %vm2404 = vcmp.eq.f32.partialorder %v2312, 0.0
        %v2405 = vand.u32 %v2312, 2147483648
        %v2406 = vsel %vm2404, %v2405, %v2403
        %v2407 = vrsqrt.pop %v2313
        %v2408 = vmul.f32 %v2313, %v2407
        %vm2409 = vcmp.eq.f32.partialorder %v2313, inf
        %v2410 = vsel %vm2409, %v2313, %v2408
        %vm2411 = vcmp.eq.f32.partialorder %v2313, 0.0
        %v2412 = vand.u32 %v2313, 2147483648
        %v2413 = vsel %vm2411, %v2412, %v2410
        %v2414 = vrsqrt.pop %v2314
        %v2415 = vmul.f32 %v2314, %v2414
        %vm2416 = vcmp.eq.f32.partialorder %v2314, inf
        %v2417 = vsel %vm2416, %v2314, %v2415
        %vm2418 = vcmp.eq.f32.partialorder %v2314, 0.0
        %v2419 = vand.u32 %v2314, 2147483648
        %v2420 = vsel %vm2418, %v2419, %v2417
        %v2421 = vrsqrt.pop %v2315
        %v2422 = vmul.f32 %v2315, %v2421
        %vm2423 = vcmp.eq.f32.partialorder %v2315, inf
        %v2424 = vsel %vm2423, %v2315, %v2422
        %vm2425 = vcmp.eq.f32.partialorder %v2315, 0.0
        %v2426 = vand.u32 %v2315, 2147483648
        %v2427 = vsel %vm2425, %v2426, %v2424
        %vm2428 = vcmask 261120
        %v2429 = vsel %vm2428, %v2322, -inf
        %2430 = vmax.xlane.f32.xlu0 %v2429
        %v2431 = vpop.xlane.xlu0 %2430
        %v2432 = vsel %vm2428, %v2329, -inf
        %2433 = vmax.xlane.f32.xlu0 %v2432
        %v2434 = vpop.xlane.xlu0 %2433
        %v2435 = vsel %vm2428, %v2336, -inf
        %2436 = vmax.xlane.f32.xlu0 %v2435
        %v2437 = vpop.xlane.xlu0 %2436
        %v2438 = vsel %vm2428, %v2343, -inf
        %2439 = vmax.xlane.f32.xlu0 %v2438
        %v2440 = vpop.xlane.xlu0 %2439
        %v2441 = vsel %vm2428, %v2350, -inf
        %2442 = vmax.xlane.f32.xlu0 %v2441
        %v2443 = vpop.xlane.xlu0 %2442
        %v2444 = vsel %vm2428, %v2357, -inf
        %2445 = vmax.xlane.f32.xlu0 %v2444
        %v2446 = vpop.xlane.xlu0 %2445
        %v2447 = vsel %vm2428, %v2364, -inf
        %2448 = vmax.xlane.f32.xlu0 %v2447
        %v2449 = vpop.xlane.xlu0 %2448
        %v2450 = vsel %vm2428, %v2371, -inf
        %2451 = vmax.xlane.f32.xlu0 %v2450
        %v2452 = vpop.xlane.xlu0 %2451
        %v2453 = vsel %vm2428, %v2378, -inf
        %2454 = vmax.xlane.f32.xlu0 %v2453
        %v2455 = vpop.xlane.xlu0 %2454
        %v2456 = vsel %vm2428, %v2385, -inf
        %2457 = vmax.xlane.f32.xlu0 %v2456
        %v2458 = vpop.xlane.xlu0 %2457
        %v2459 = vsel %vm2428, %v2392, -inf
        %2460 = vmax.xlane.f32.xlu0 %v2459
        %v2461 = vpop.xlane.xlu0 %2460
        %v2462 = vsel %vm2428, %v2399, -inf
        %2463 = vmax.xlane.f32.xlu0 %v2462
        %v2464 = vpop.xlane.xlu0 %2463
        %v2465 = vsel %vm2428, %v2406, -inf
        %2466 = vmax.xlane.f32.xlu0 %v2465
        %v2467 = vpop.xlane.xlu0 %2466
        %v2468 = vsel %vm2428, %v2413, -inf
        %2469 = vmax.xlane.f32.xlu0 %v2468
        %v2470 = vpop.xlane.xlu0 %2469
        %v2471 = vsel %vm2428, %v2420, -inf
        %2472 = vmax.xlane.f32.xlu0 %v2471
        %v2473 = vpop.xlane.xlu0 %2472
        %v2474 = vsel %vm2428, %v2427, -inf
        %2475 = vmax.xlane.f32.xlu0 %v2474
        %v2476 = vpop.xlane.xlu0 %2475
        %v2477 = vsub.f32 %v2322, %v2431
        %v2478 = vsub.f32 %v2329, %v2434
        %v2479 = vsub.f32 %v2336, %v2437
        %v2480 = vsub.f32 %v2343, %v2440
        %v2481 = vsub.f32 %v2350, %v2443
        %v2482 = vsub.f32 %v2357, %v2446
        %v2483 = vsub.f32 %v2364, %v2449
        %v2484 = vsub.f32 %v2371, %v2452
        %v2485 = vsub.f32 %v2378, %v2455
        %v2486 = vsub.f32 %v2385, %v2458
        %v2487 = vsub.f32 %v2392, %v2461
        %v2488 = vsub.f32 %v2399, %v2464
        %v2489 = vsub.f32 %v2406, %v2467
        %v2490 = vsub.f32 %v2413, %v2470
        %v2491 = vsub.f32 %v2420, %v2473
        %v2492 = vsub.f32 %v2427, %v2476
        %v2493 = vmul.f32 %v2477, 1.442695
        %v2494 = vpow.pop %v2493
        %v2495 = vmul.f32 %v2478, 1.442695
        %v2496 = vpow.pop %v2495
        %v2497 = vmul.f32 %v2479, 1.442695
        %v2498 = vpow.pop %v2497
        %v2499 = vmul.f32 %v2480, 1.442695
        %v2500 = vpow.pop %v2499
        %v2501 = vmul.f32 %v2481, 1.442695
        %v2502 = vpow.pop %v2501
        %v2503 = vmul.f32 %v2482, 1.442695
        %v2504 = vpow.pop %v2503
        %v2505 = vmul.f32 %v2483, 1.442695
        %v2506 = vpow.pop %v2505
        %v2507 = vmul.f32 %v2484, 1.442695
        %v2508 = vpow.pop %v2507
        %v2509 = vmul.f32 %v2485, 1.442695
        %v2510 = vpow.pop %v2509
        %v2511 = vmul.f32 %v2486, 1.442695
        %v2512 = vpow.pop %v2511
        %v2513 = vmul.f32 %v2487, 1.442695
        %v2514 = vpow.pop %v2513
        %v2515 = vmul.f32 %v2488, 1.442695
        %v2516 = vpow.pop %v2515
        %v2517 = vmul.f32 %v2489, 1.442695
        %v2518 = vpow.pop %v2517
        %v2519 = vmul.f32 %v2490, 1.442695
        %v2520 = vpow.pop %v2519
        %v2521 = vmul.f32 %v2491, 1.442695
        %v2522 = vpow.pop %v2521
        %v2523 = vmul.f32 %v2492, 1.442695
        %v2524 = vpow.pop %v2523
        %v2525 = vsel %vm2428, %v2494, 0.0
        %2526 = vadd.xlane.f32.xlu0 %v2525
        %v2527 = vpop.xlane.xlu0 %2526
        %v2528 = vsel %vm2428, %v2496, 0.0
        %2529 = vadd.xlane.f32.xlu0 %v2528
        %v2530 = vpop.xlane.xlu0 %2529
        %v2531 = vsel %vm2428, %v2498, 0.0
        %2532 = vadd.xlane.f32.xlu0 %v2531
        %v2533 = vpop.xlane.xlu0 %2532
        %v2534 = vsel %vm2428, %v2500, 0.0
        %2535 = vadd.xlane.f32.xlu0 %v2534
        %v2536 = vpop.xlane.xlu0 %2535
        %v2537 = vsel %vm2428, %v2502, 0.0
        %2538 = vadd.xlane.f32.xlu0 %v2537
        %v2539 = vpop.xlane.xlu0 %2538
        %v2540 = vsel %vm2428, %v2504, 0.0
        %2541 = vadd.xlane.f32.xlu0 %v2540
        %v2542 = vpop.xlane.xlu0 %2541
        %v2543 = vsel %vm2428, %v2506, 0.0
        %2544 = vadd.xlane.f32.xlu0 %v2543
        %v2545 = vpop.xlane.xlu0 %2544
        %v2546 = vsel %vm2428, %v2508, 0.0
        %2547 = vadd.xlane.f32.xlu0 %v2546
        %v2548 = vpop.xlane.xlu0 %2547
        %v2549 = vsel %vm2428, %v2510, 0.0
        %2550 = vadd.xlane.f32.xlu0 %v2549
        %v2551 = vpop.xlane.xlu0 %2550
        %v2552 = vsel %vm2428, %v2512, 0.0
        %2553 = vadd.xlane.f32.xlu0 %v2552
        %v2554 = vpop.xlane.xlu0 %2553
        %v2555 = vsel %vm2428, %v2514, 0.0
        %2556 = vadd.xlane.f32.xlu0 %v2555
        %v2557 = vpop.xlane.xlu0 %2556
        %v2558 = vsel %vm2428, %v2516, 0.0
        %2559 = vadd.xlane.f32.xlu0 %v2558
        %v2560 = vpop.xlane.xlu0 %2559
        %v2561 = vsel %vm2428, %v2518, 0.0
        %2562 = vadd.xlane.f32.xlu0 %v2561
        %v2563 = vpop.xlane.xlu0 %2562
        %v2564 = vsel %vm2428, %v2520, 0.0
        %2565 = vadd.xlane.f32.xlu0 %v2564
        %v2566 = vpop.xlane.xlu0 %2565
        %v2567 = vsel %vm2428, %v2522, 0.0
        %2568 = vadd.xlane.f32.xlu0 %v2567
        %v2569 = vpop.xlane.xlu0 %2568
        %v2570 = vsel %vm2428, %v2524, 0.0
        %2571 = vadd.xlane.f32.xlu0 %v2570
        %v2572 = vpop.xlane.xlu0 %2571
        %v2573 = vrcp.pop %v2527
        %v2574 = vrcp.pop %v2530
        %v2575 = vrcp.pop %v2533
        %v2576 = vrcp.pop %v2536
        %v2577 = vrcp.pop %v2539
        %v2578 = vrcp.pop %v2542
        %v2579 = vrcp.pop %v2545
        %v2580 = vrcp.pop %v2548
        %v2581 = vrcp.pop %v2551
        %v2582 = vrcp.pop %v2554
        %v2583 = vrcp.pop %v2557
        %v2584 = vrcp.pop %v2560
        %v2585 = vrcp.pop %v2563
        %v2586 = vrcp.pop %v2566
        %v2587 = vrcp.pop %v2569
        %v2588 = vrcp.pop %v2572
        %v2589 = vmul.f32 %v2494, %v2573
        %v2590 = vmul.f32 %v2496, %v2574
        %v2591 = vmul.f32 %v2498, %v2575
        %v2592 = vmul.f32 %v2500, %v2576
        %v2593 = vmul.f32 %v2502, %v2577
        %v2594 = vmul.f32 %v2504, %v2578
        %v2595 = vmul.f32 %v2506, %v2579
        %v2596 = vmul.f32 %v2508, %v2580
        %v2597 = vmul.f32 %v2510, %v2581
        %v2598 = vmul.f32 %v2512, %v2582
        %v2599 = vmul.f32 %v2514, %v2583
        %v2600 = vmul.f32 %v2516, %v2584
        %v2601 = vmul.f32 %v2518, %v2585
        %v2602 = vmul.f32 %v2520, %v2586
        %v2603 = vmul.f32 %v2522, %v2587
        %v2604 = vmul.f32 %v2524, %v2588
        %v2605 = vpack.c.bf16 %v2590, %v2589
        %v2606 = vpack.c.bf16 %v2592, %v2591
        %v2607 = vpack.c.bf16 %v2594, %v2593
        %v2608 = vpack.c.bf16 %v2596, %v2595
        %v2609 = vpack.c.bf16 %v2598, %v2597
        %v2610 = vpack.c.bf16 %v2600, %v2599
        %v2611 = vpack.c.bf16 %v2602, %v2601
        %v2612 = vpack.c.bf16 %v2604, %v2603
        %v2614 = vsel %vm2428, %v2605, 0
        %v2617 = vsel %vm2428, %v2606, 0
        %2619 = vmatprep.subr.bf16.mxu0 0
        %2620 = vmatpush1.bf16.msra.mxu0 %v1868
        %2621 = vmatprep.subr.bf16.mxu0 0
        %2622 = vmatpush1.bf16.msra.mxu0 %v1869
        %2623 = vmatprep.subr.bf16.mxu0 0
        %2624 = vmatpush1.bf16.msra.mxu0 0
        %2625 = vmatprep.subr.bf16.mxu0 0
        %2626 = vmatpush1.bf16.msra.mxu0 0
        %2627 = vmatprep.subr.bf16.mxu0 0
        %2628 = vmatpush1.bf16.msra.mxu0 0
        %2629 = vmatprep.subr.bf16.mxu0 0
        %2630 = vmatpush1.bf16.msra.mxu0 0
        %2631 = vmatprep.subr.bf16.mxu0 0
        %2632 = vmatpush1.bf16.msra.mxu0 0
        %2633 = vmatprep.subr.bf16.mxu0 0
        %2634 = vmatpush1.bf16.msra.mxu0 0
        %2635 = vmatprep.subr.bf16.mxu0 0
        %2636 = vmatpush1.bf16.msra.mxu0 0
        %2637 = vmatprep.subr.bf16.mxu0 0
        %2638 = vmatpush1.bf16.msra.mxu0 0
        %2639 = vmatprep.subr.bf16.mxu0 0
        %2640 = vmatpush1.bf16.msra.mxu0 0
        %2641 = vmatprep.subr.bf16.mxu0 0
        %2642 = vmatpush1.bf16.msra.mxu0 0
        %2643 = vmatprep.subr.bf16.mxu0 0
        %2644 = vmatpush1.bf16.msra.mxu0 0
        %2645 = vmatprep.subr.bf16.mxu0 0
        %2646 = vmatpush1.bf16.msra.mxu0 0
        %2647 = vmatprep.subr.bf16.mxu0 0
        %2648 = vmatpush1.bf16.msra.mxu0 0
        %2649 = vmatprep.subr.bf16.mxu0 0
        %2650 = vmatpush1.bf16.msra.mxu0 0
        %2651 = vmatprep.mubr.bf16.mxu0 0
        %2652 = vmatmul.mubr.bf16.gmra.mrb[0].mxu0 %v2614
        %v2653 = vpop.f32.mrb[0].mxu0
        %v2654 = vadd.f32 0.0, %v2653
        %v2655 = vpop.f32.mrb[0].mxu0
        %v2656 = vpop.f32.mrb[0].mxu0
        %v2657 = vadd.f32 0.0, %v2656
        %v2658 = vpop.f32.mrb[0].mxu0
        %2659 = vmatprep.mubr.bf16.mxu0 0
        %2660 = vmatmul.mubr.bf16.gmra.mrb[0].mxu0 %v2617
        %v2661 = vpop.f32.mrb[0].mxu0
        %v2662 = vadd.f32 0.0, %v2661
        %v2663 = vpop.f32.mrb[0].mxu0
        %v2664 = vpop.f32.mrb[0].mxu0
        %v2665 = vadd.f32 0.0, %v2664
        %v2666 = vpop.f32.mrb[0].mxu0
        %2667 = vdwg.mxu0
        %v2669 = vsel %vm2428, %v2607, 0
        %v2672 = vsel %vm2428, %v2608, 0
        %2674 = vmatprep.subr.bf16.mxu0 0
        %2675 = vmatpush1.bf16.msra.mxu0 %v1870
        %2676 = vmatprep.subr.bf16.mxu0 0
        %2677 = vmatpush1.bf16.msra.mxu0 %v1871
        %2678 = vmatprep.subr.bf16.mxu0 0
        %2679 = vmatpush1.bf16.msra.mxu0 0
        %2680 = vmatprep.subr.bf16.mxu0 0
        %2681 = vmatpush1.bf16.msra.mxu0 0
        %2682 = vmatprep.subr.bf16.mxu0 0
        %2683 = vmatpush1.bf16.msra.mxu0 0
        %2684 = vmatprep.subr.bf16.mxu0 0
        %2685 = vmatpush1.bf16.msra.mxu0 0
        %2686 = vmatprep.subr.bf16.mxu0 0
        %2687 = vmatpush1.bf16.msra.mxu0 0
        %2688 = vmatprep.subr.bf16.mxu0 0
        %2689 = vmatpush1.bf16.msra.mxu0 0
        %2690 = vmatprep.subr.bf16.mxu0 0
        %2691 = vmatpush1.bf16.msra.mxu0 0
        %2692 = vmatprep.subr.bf16.mxu0 0
        %2693 = vmatpush1.bf16.msra.mxu0 0
        %2694 = vmatprep.subr.bf16.mxu0 0
        %2695 = vmatpush1.bf16.msra.mxu0 0
        %2696 = vmatprep.subr.bf16.mxu0 0
        %2697 = vmatpush1.bf16.msra.mxu0 0
        %2698 = vmatprep.subr.bf16.mxu0 0
        %2699 = vmatpush1.bf16.msra.mxu0 0
        %2700 = vmatprep.subr.bf16.mxu0 0
        %2701 = vmatpush1.bf16.msra.mxu0 0
        %2702 = vmatprep.subr.bf16.mxu0 0
        %2703 = vmatpush1.bf16.msra.mxu0 0
        %2704 = vmatprep.subr.bf16.mxu0 0
        %2705 = vmatpush1.bf16.msra.mxu0 0
        %2706 = vmatprep.mubr.bf16.mxu0 0
        %2707 = vmatmul.mubr.bf16.gmra.mrb[0].mxu0 %v2669
        %v2708 = vpop.f32.mrb[0].mxu0
        %v2709 = vadd.f32 0.0, %v2708
        %v2710 = vpop.f32.mrb[0].mxu0
        %v2711 = vpop.f32.mrb[0].mxu0
        %v2712 = vadd.f32 0.0, %v2711
        %v2713 = vpop.f32.mrb[0].mxu0
        %2714 = vmatprep.mubr.bf16.mxu0 0
        %2715 = vmatmul.mubr.bf16.gmra.mrb[0].mxu0 %v2672
        %v2716 = vpop.f32.mrb[0].mxu0
        %v2717 = vadd.f32 0.0, %v2716
        %v2718 = vpop.f32.mrb[0].mxu0
        %v2719 = vpop.f32.mrb[0].mxu0
        %v2720 = vadd.f32 0.0, %v2719
        %v2721 = vpop.f32.mrb[0].mxu0
        %2722 = vdwg.mxu0
        %v2724 = vsel %vm2428, %v2609, 0
        %v2727 = vsel %vm2428, %v2610, 0
        %2729 = vmatprep.subr.bf16.mxu0 0
        %2730 = vmatpush1.bf16.msra.mxu0 %v1872
        %2731 = vmatprep.subr.bf16.mxu0 0
        %2732 = vmatpush1.bf16.msra.mxu0 %v1873
        %2733 = vmatprep.subr.bf16.mxu0 0
        %2734 = vmatpush1.bf16.msra.mxu0 0
        %2735 = vmatprep.subr.bf16.mxu0 0
        %2736 = vmatpush1.bf16.msra.mxu0 0
        %2737 = vmatprep.subr.bf16.mxu0 0
        %2738 = vmatpush1.bf16.msra.mxu0 0
        %2739 = vmatprep.subr.bf16.mxu0 0
        %2740 = vmatpush1.bf16.msra.mxu0 0
        %2741 = vmatprep.subr.bf16.mxu0 0
        %2742 = vmatpush1.bf16.msra.mxu0 0
        %2743 = vmatprep.subr.bf16.mxu0 0
        %2744 = vmatpush1.bf16.msra.mxu0 0
        %2745 = vmatprep.subr.bf16.mxu0 0
        %2746 = vmatpush1.bf16.msra.mxu0 0
        %2747 = vmatprep.subr.bf16.mxu0 0
        %2748 = vmatpush1.bf16.msra.mxu0 0
        %2749 = vmatprep.subr.bf16.mxu0 0
        %2750 = vmatpush1.bf16.msra.mxu0 0
        %2751 = vmatprep.subr.bf16.mxu0 0
        %2752 = vmatpush1.bf16.msra.mxu0 0
        %2753 = vmatprep.subr.bf16.mxu0 0
        %2754 = vmatpush1.bf16.msra.mxu0 0
        %2755 = vmatprep.subr.bf16.mxu0 0
        %2756 = vmatpush1.bf16.msra.mxu0 0
        %2757 = vmatprep.subr.bf16.mxu0 0
        %2758 = vmatpush1.bf16.msra.mxu0 0
        %2759 = vmatprep.subr.bf16.mxu0 0
        %2760 = vmatpush1.bf16.msra.mxu0 0
        %2761 = vmatprep.mubr.bf16.mxu0 0
        %2762 = vmatmul.mubr.bf16.gmra.mrb[0].mxu0 %v2724
        %v2763 = vpop.f32.mrb[0].mxu0
        %v2764 = vadd.f32 0.0, %v2763
        %v2765 = vpop.f32.mrb[0].mxu0
        %v2766 = vpop.f32.mrb[0].mxu0
        %v2767 = vadd.f32 0.0, %v2766
        %v2768 = vpop.f32.mrb[0].mxu0
        %2769 = vmatprep.mubr.bf16.mxu0 0
        %2770 = vmatmul.mubr.bf16.gmra.mrb[0].mxu0 %v2727
        %v2771 = vpop.f32.mrb[0].mxu0
        %v2772 = vadd.f32 0.0, %v2771
        %v2773 = vpop.f32.mrb[0].mxu0
        %v2774 = vpop.f32.mrb[0].mxu0
        %v2775 = vadd.f32 0.0, %v2774
        %v2776 = vpop.f32.mrb[0].mxu0
        %2777 = vdwg.mxu0
        %v2779 = vsel %vm2428, %v2611, 0
        %v2782 = vsel %vm2428, %v2612, 0
        %2784 = vmatprep.subr.bf16.mxu0 0
        %2785 = vmatpush1.bf16.msra.mxu0 %v1874
        %2786 = vmatprep.subr.bf16.mxu0 0
        %2787 = vmatpush1.bf16.msra.mxu0 %v1875
        %2788 = vmatprep.subr.bf16.mxu0 0
        %2789 = vmatpush1.bf16.msra.mxu0 0
        %2790 = vmatprep.subr.bf16.mxu0 0
        %2791 = vmatpush1.bf16.msra.mxu0 0
        %2792 = vmatprep.subr.bf16.mxu0 0
        %2793 = vmatpush1.bf16.msra.mxu0 0
        %2794 = vmatprep.subr.bf16.mxu0 0
        %2795 = vmatpush1.bf16.msra.mxu0 0
        %2796 = vmatprep.subr.bf16.mxu0 0
        %2797 = vmatpush1.bf16.msra.mxu0 0
        %2798 = vmatprep.subr.bf16.mxu0 0
        %2799 = vmatpush1.bf16.msra.mxu0 0
        %2800 = vmatprep.subr.bf16.mxu0 0
        %2801 = vmatpush1.bf16.msra.mxu0 0
        %2802 = vmatprep.subr.bf16.mxu0 0
        %2803 = vmatpush1.bf16.msra.mxu0 0
        %2804 = vmatprep.subr.bf16.mxu0 0
        %2805 = vmatpush1.bf16.msra.mxu0 0
        %2806 = vmatprep.subr.bf16.mxu0 0
        %2807 = vmatpush1.bf16.msra.mxu0 0
        %2808 = vmatprep.subr.bf16.mxu0 0
        %2809 = vmatpush1.bf16.msra.mxu0 0
        %2810 = vmatprep.subr.bf16.mxu0 0
        %2811 = vmatpush1.bf16.msra.mxu0 0
        %2812 = vmatprep.subr.bf16.mxu0 0
        %2813 = vmatpush1.bf16.msra.mxu0 0
        %2814 = vmatprep.subr.bf16.mxu0 0
        %2815 = vmatpush1.bf16.msra.mxu0 0
        %2816 = vmatprep.mubr.bf16.mxu0 0
        %2817 = vmatmul.mubr.bf16.gmra.mrb[0].mxu0 %v2779
        %v2818 = vpop.f32.mrb[0].mxu0
        %v2819 = vadd.f32 0.0, %v2818
        %v2820 = vpop.f32.mrb[0].mxu0
        %v2821 = vpop.f32.mrb[0].mxu0
        %v2822 = vadd.f32 0.0, %v2821
        %v2823 = vpop.f32.mrb[0].mxu0
        %2824 = vmatprep.mubr.bf16.mxu0 0
        %2825 = vmatmul.mubr.bf16.gmra.mrb[0].mxu0 %v2782
        %v2826 = vpop.f32.mrb[0].mxu0
        %v2827 = vadd.f32 0.0, %v2826
        %v2828 = vpop.f32.mrb[0].mxu0
        %v2829 = vpop.f32.mrb[0].mxu0
        %v2830 = vadd.f32 0.0, %v2829
        %v2831 = vpop.f32.mrb[0].mxu0
        %2832 = vdwg.mxu0
        %v2833 = vpack.c.bf16 %v1433, %v1429
        %v2834 = vpack.c.bf16 %v1443, %v1439
        %v2835 = vpack.c.bf16 %v1453, %v1449
        %v2836 = vpack.c.bf16 %v1463, %v1459
        %v2837 = vpack.c.bf16 %v1473, %v1469
        %v2838 = vpack.c.bf16 %v1483, %v1479
        %v2839 = vpack.c.bf16 %v1493, %v1489
        %v2840 = vpack.c.bf16 %v1503, %v1499
        %v2841 = vpack.c.bf16 %v1546, %v1542
        %v2842 = vpack.c.bf16 %v1556, %v1552
        %v2843 = vpack.c.bf16 %v1566, %v1562
        %v2844 = vpack.c.bf16 %v1576, %v1572
        %v2845 = vpack.c.bf16 %v1586, %v1582
        %v2846 = vpack.c.bf16 %v1596, %v1592
        %v2847 = vpack.c.bf16 %v1606, %v1602
        %v2848 = vpack.c.bf16 %v1616, %v1612
        %v2849 = vpack.c.bf16 %v1659, %v1655
        %v2850 = vpack.c.bf16 %v1669, %v1665
        %v2851 = vpack.c.bf16 %v1679, %v1675
        %v2852 = vpack.c.bf16 %v1689, %v1685
        %v2853 = vpack.c.bf16 %v1699, %v1695
        %v2854 = vpack.c.bf16 %v1709, %v1705
        %v2855 = vpack.c.bf16 %v1719, %v1715
        %v2856 = vpack.c.bf16 %v1729, %v1725
        %v2857 = vpack.c.bf16 %v1772, %v1768
        %v2858 = vpack.c.bf16 %v1782, %v1778
        %v2859 = vpack.c.bf16 %v1792, %v1788
        %v2860 = vpack.c.bf16 %v1802, %v1798
        %v2861 = vpack.c.bf16 %v1812, %v1808
        %v2862 = vpack.c.bf16 %v1822, %v1818
        %v2863 = vpack.c.bf16 %v1832, %v1828
        %v2864 = vpack.c.bf16 %v1842, %v1838
        %2865 = vmatprep.subr.bf16.mxu0 0
        %2866 = vmatpush1.bf16.xpose.msra.mxu0 %v2841
        %2867 = vmatprep.subr.bf16.mxu0 0
        %2868 = vmatpush1.bf16.xpose.msra.mxu0 %v2842
        %2869 = vmatprep.subr.bf16.mxu0 0
        %2870 = vmatpush1.bf16.xpose.msra.mxu0 0
        %2871 = vmatprep.subr.bf16.mxu0 0
        %2872 = vmatpush1.bf16.xpose.msra.mxu0 0
        %2873 = vmatprep.subr.bf16.mxu0 0
        %2874 = vmatpush1.bf16.xpose.msra.mxu0 0
        %2875 = vmatprep.subr.bf16.mxu0 0
        %2876 = vmatpush1.bf16.xpose.msra.mxu0 0
        %2877 = vmatprep.subr.bf16.mxu0 0
        %2878 = vmatpush1.bf16.xpose.msra.mxu0 0
        %2879 = vmatprep.subr.bf16.mxu0 0
        %2880 = vmatpush1.bf16.xpose.msra.mxu0 0
        %2881 = vmatprep.subr.bf16.mxu0 0
        %2882 = vmatpush1.bf16.xpose.msra.mxu0 0
        %2883 = vmatprep.subr.bf16.mxu0 0
        %2884 = vmatpush1.bf16.xpose.msra.mxu0 0
        %2885 = vmatprep.subr.bf16.mxu0 0
        %2886 = vmatpush1.bf16.xpose.msra.mxu0 0
        %2887 = vmatprep.subr.bf16.mxu0 0
        %2888 = vmatpush1.bf16.xpose.msra.mxu0 0
        %2889 = vmatprep.subr.bf16.mxu0 0
        %2890 = vmatpush1.bf16.xpose.msra.mxu0 0
        %2891 = vmatprep.subr.bf16.mxu0 0
        %2892 = vmatpush1.bf16.xpose.msra.mxu0 0
        %2893 = vmatprep.subr.bf16.mxu0 0
        %2894 = vmatpush1.bf16.xpose.msra.mxu0 0
        %2895 = vmatprep.subr.bf16.mxu0 0
        %2896 = vmatpush1.bf16.xpose.msra.mxu0 0
        %2897 = vmatprep.mubr.bf16.mxu0 0
        %2898 = vmatmul.mubr.bf16.gmra.mrb[0].mxu0 %v2833
        %v2899 = vpop.f32.mrb[0].mxu0
        %v2900 = vadd.f32 0.0, %v2899
        %v2901 = vpop.f32.mrb[0].mxu0
        %v2902 = vpop.f32.mrb[0].mxu0
        %v2903 = vadd.f32 0.0, %v2902
        %v2904 = vpop.f32.mrb[0].mxu0
        %2905 = vmatprep.mubr.bf16.mxu0 0
        %2906 = vmatmul.mubr.bf16.gmra.mrb[0].mxu0 %v2834
        %v2907 = vpop.f32.mrb[0].mxu0
        %v2908 = vadd.f32 0.0, %v2907
        %v2909 = vpop.f32.mrb[0].mxu0
        %v2910 = vpop.f32.mrb[0].mxu0
        %v2911 = vadd.f32 0.0, %v2910
        %v2912 = vpop.f32.mrb[0].mxu0
        %2913 = vdwg.mxu0
        %2914 = vmatprep.subr.bf16.mxu0 0
        %2915 = vmatpush1.bf16.xpose.msra.mxu0 %v2843
        %2916 = vmatprep.subr.bf16.mxu0 0
        %2917 = vmatpush1.bf16.xpose.msra.mxu0 %v2844
        %2918 = vmatprep.subr.bf16.mxu0 0
        %2919 = vmatpush1.bf16.xpose.msra.mxu0 0
        %2920 = vmatprep.subr.bf16.mxu0 0
        %2921 = vmatpush1.bf16.xpose.msra.mxu0 0
        %2922 = vmatprep.subr.bf16.mxu0 0
        %2923 = vmatpush1.bf16.xpose.msra.mxu0 0
        %2924 = vmatprep.subr.bf16.mxu0 0
        %2925 = vmatpush1.bf16.xpose.msra.mxu0 0
        %2926 = vmatprep.subr.bf16.mxu0 0
        %2927 = vmatpush1.bf16.xpose.msra.mxu0 0
        %2928 = vmatprep.subr.bf16.mxu0 0
        %2929 = vmatpush1.bf16.xpose.msra.mxu0 0
        %2930 = vmatprep.subr.bf16.mxu0 0
        %2931 = vmatpush1.bf16.xpose.msra.mxu0 0
        %2932 = vmatprep.subr.bf16.mxu0 0
        %2933 = vmatpush1.bf16.xpose.msra.mxu0 0
        %2934 = vmatprep.subr.bf16.mxu0 0
        %2935 = vmatpush1.bf16.xpose.msra.mxu0 0
        %2936 = vmatprep.subr.bf16.mxu0 0
        %2937 = vmatpush1.bf16.xpose.msra.mxu0 0
        %2938 = vmatprep.subr.bf16.mxu0 0
        %2939 = vmatpush1.bf16.xpose.msra.mxu0 0
        %2940 = vmatprep.subr.bf16.mxu0 0
        %2941 = vmatpush1.bf16.xpose.msra.mxu0 0
        %2942 = vmatprep.subr.bf16.mxu0 0
        %2943 = vmatpush1.bf16.xpose.msra.mxu0 0
        %2944 = vmatprep.subr.bf16.mxu0 0
        %2945 = vmatpush1.bf16.xpose.msra.mxu0 0
        %2946 = vmatprep.mubr.bf16.mxu0 0
        %2947 = vmatmul.mubr.bf16.gmra.mrb[0].mxu0 %v2835
        %v2948 = vpop.f32.mrb[0].mxu0
        %v2949 = vadd.f32 0.0, %v2948
        %v2950 = vpop.f32.mrb[0].mxu0
        %v2951 = vpop.f32.mrb[0].mxu0
        %v2952 = vadd.f32 0.0, %v2951
        %v2953 = vpop.f32.mrb[0].mxu0
        %2954 = vmatprep.mubr.bf16.mxu0 0
        %2955 = vmatmul.mubr.bf16.gmra.mrb[0].mxu0 %v2836
        %v2956 = vpop.f32.mrb[0].mxu0
        %v2957 = vadd.f32 0.0, %v2956
        %v2958 = vpop.f32.mrb[0].mxu0
        %v2959 = vpop.f32.mrb[0].mxu0
        %v2960 = vadd.f32 0.0, %v2959
        %v2961 = vpop.f32.mrb[0].mxu0
        %2962 = vdwg.mxu0
        %2963 = vmatprep.subr.bf16.mxu0 0
        %2964 = vmatpush1.bf16.xpose.msra.mxu0 %v2845
        %2965 = vmatprep.subr.bf16.mxu0 0
        %2966 = vmatpush1.bf16.xpose.msra.mxu0 %v2846
        %2967 = vmatprep.subr.bf16.mxu0 0
        %2968 = vmatpush1.bf16.xpose.msra.mxu0 0
        %2969 = vmatprep.subr.bf16.mxu0 0
        %2970 = vmatpush1.bf16.xpose.msra.mxu0 0
        %2971 = vmatprep.subr.bf16.mxu0 0
        %2972 = vmatpush1.bf16.xpose.msra.mxu0 0
        %2973 = vmatprep.subr.bf16.mxu0 0
        %2974 = vmatpush1.bf16.xpose.msra.mxu0 0
        %2975 = vmatprep.subr.bf16.mxu0 0
        %2976 = vmatpush1.bf16.xpose.msra.mxu0 0
        %2977 = vmatprep.subr.bf16.mxu0 0
        %2978 = vmatpush1.bf16.xpose.msra.mxu0 0
        %2979 = vmatprep.subr.bf16.mxu0 0
        %2980 = vmatpush1.bf16.xpose.msra.mxu0 0
        %2981 = vmatprep.subr.bf16.mxu0 0
        %2982 = vmatpush1.bf16.xpose.msra.mxu0 0
        %2983 = vmatprep.subr.bf16.mxu0 0
        %2984 = vmatpush1.bf16.xpose.msra.mxu0 0
        %2985 = vmatprep.subr.bf16.mxu0 0
        %2986 = vmatpush1.bf16.xpose.msra.mxu0 0
        %2987 = vmatprep.subr.bf16.mxu0 0
        %2988 = vmatpush1.bf16.xpose.msra.mxu0 0
        %2989 = vmatprep.subr.bf16.mxu0 0
        %2990 = vmatpush1.bf16.xpose.msra.mxu0 0
        %2991 = vmatprep.subr.bf16.mxu0 0
        %2992 = vmatpush1.bf16.xpose.msra.mxu0 0
        %2993 = vmatprep.subr.bf16.mxu0 0
        %2994 = vmatpush1.bf16.xpose.msra.mxu0 0
        %2995 = vmatprep.mubr.bf16.mxu0 0
        %2996 = vmatmul.mubr.bf16.gmra.mrb[0].mxu0 %v2837
        %v2997 = vpop.f32.mrb[0].mxu0
        %v2998 = vadd.f32 0.0, %v2997
        %v2999 = vpop.f32.mrb[0].mxu0
        %v3000 = vpop.f32.mrb[0].mxu0
        %v3001 = vadd.f32 0.0, %v3000
        %v3002 = vpop.f32.mrb[0].mxu0
        %3003 = vmatprep.mubr.bf16.mxu0 0
        %3004 = vmatmul.mubr.bf16.gmra.mrb[0].mxu0 %v2838
        %v3005 = vpop.f32.mrb[0].mxu0
        %v3006 = vadd.f32 0.0, %v3005
        %v3007 = vpop.f32.mrb[0].mxu0
        %v3008 = vpop.f32.mrb[0].mxu0
        %v3009 = vadd.f32 0.0, %v3008
        %v3010 = vpop.f32.mrb[0].mxu0
        %3011 = vdwg.mxu0
        %3012 = vmatprep.subr.bf16.mxu0 0
        %3013 = vmatpush1.bf16.xpose.msra.mxu0 %v2847
        %3014 = vmatprep.subr.bf16.mxu0 0
        %3015 = vmatpush1.bf16.xpose.msra.mxu0 %v2848
        %3016 = vmatprep.subr.bf16.mxu0 0
        %3017 = vmatpush1.bf16.xpose.msra.mxu0 0
        %3018 = vmatprep.subr.bf16.mxu0 0
        %3019 = vmatpush1.bf16.xpose.msra.mxu0 0
        %3020 = vmatprep.subr.bf16.mxu0 0
        %3021 = vmatpush1.bf16.xpose.msra.mxu0 0
        %3022 = vmatprep.subr.bf16.mxu0 0
        %3023 = vmatpush1.bf16.xpose.msra.mxu0 0
        %3024 = vmatprep.subr.bf16.mxu0 0
        %3025 = vmatpush1.bf16.xpose.msra.mxu0 0
        %3026 = vmatprep.subr.bf16.mxu0 0
        %3027 = vmatpush1.bf16.xpose.msra.mxu0 0
        %3028 = vmatprep.subr.bf16.mxu0 0
        %3029 = vmatpush1.bf16.xpose.msra.mxu0 0
        %3030 = vmatprep.subr.bf16.mxu0 0
        %3031 = vmatpush1.bf16.xpose.msra.mxu0 0
        %3032 = vmatprep.subr.bf16.mxu0 0
        %3033 = vmatpush1.bf16.xpose.msra.mxu0 0
        %3034 = vmatprep.subr.bf16.mxu0 0
        %3035 = vmatpush1.bf16.xpose.msra.mxu0 0
        %3036 = vmatprep.subr.bf16.mxu0 0
        %3037 = vmatpush1.bf16.xpose.msra.mxu0 0
        %3038 = vmatprep.subr.bf16.mxu0 0
        %3039 = vmatpush1.bf16.xpose.msra.mxu0 0
        %3040 = vmatprep.subr.bf16.mxu0 0
        %3041 = vmatpush1.bf16.xpose.msra.mxu0 0
        %3042 = vmatprep.subr.bf16.mxu0 0
        %3043 = vmatpush1.bf16.xpose.msra.mxu0 0
        %3044 = vmatprep.mubr.bf16.mxu0 0
        %3045 = vmatmul.mubr.bf16.gmra.mrb[0].mxu0 %v2839
        %v3046 = vpop.f32.mrb[0].mxu0
        %v3047 = vadd.f32 0.0, %v3046
        %v3048 = vpop.f32.mrb[0].mxu0
        %v3049 = vpop.f32.mrb[0].mxu0
        %v3050 = vadd.f32 0.0, %v3049
        %v3051 = vpop.f32.mrb[0].mxu0
        %3052 = vmatprep.mubr.bf16.mxu0 0
        %3053 = vmatmul.mubr.bf16.gmra.mrb[0].mxu0 %v2840
        %v3054 = vpop.f32.mrb[0].mxu0
        %v3055 = vadd.f32 0.0, %v3054
        %v3056 = vpop.f32.mrb[0].mxu0
        %v3057 = vpop.f32.mrb[0].mxu0
        %v3058 = vadd.f32 0.0, %v3057
        %v3059 = vpop.f32.mrb[0].mxu0
        %3060 = vdwg.mxu0
        %3061 = vmatprep.subr.bf16.mxu0 0
        %3062 = vmatpush1.bf16.xpose.msra.mxu0 %v2849
        %3063 = vmatprep.subr.bf16.mxu0 0
        %3064 = vmatpush1.bf16.xpose.msra.mxu0 %v2850
        %3065 = vmatprep.subr.bf16.mxu0 0
        %3066 = vmatpush1.bf16.xpose.msra.mxu0 0
        %3067 = vmatprep.subr.bf16.mxu0 0
        %3068 = vmatpush1.bf16.xpose.msra.mxu0 0
        %3069 = vmatprep.subr.bf16.mxu0 0
        %3070 = vmatpush1.bf16.xpose.msra.mxu0 0
        %3071 = vmatprep.subr.bf16.mxu0 0
        %3072 = vmatpush1.bf16.xpose.msra.mxu0 0
        %3073 = vmatprep.subr.bf16.mxu0 0
        %3074 = vmatpush1.bf16.xpose.msra.mxu0 0
        %3075 = vmatprep.subr.bf16.mxu0 0
        %3076 = vmatpush1.bf16.xpose.msra.mxu0 0
        %3077 = vmatprep.subr.bf16.mxu0 0
        %3078 = vmatpush1.bf16.xpose.msra.mxu0 0
        %3079 = vmatprep.subr.bf16.mxu0 0
        %3080 = vmatpush1.bf16.xpose.msra.mxu0 0
        %3081 = vmatprep.subr.bf16.mxu0 0
        %3082 = vmatpush1.bf16.xpose.msra.mxu0 0
        %3083 = vmatprep.subr.bf16.mxu0 0
        %3084 = vmatpush1.bf16.xpose.msra.mxu0 0
        %3085 = vmatprep.subr.bf16.mxu0 0
        %3086 = vmatpush1.bf16.xpose.msra.mxu0 0
        %3087 = vmatprep.subr.bf16.mxu0 0
        %3088 = vmatpush1.bf16.xpose.msra.mxu0 0
        %3089 = vmatprep.subr.bf16.mxu0 0
        %3090 = vmatpush1.bf16.xpose.msra.mxu0 0
        %3091 = vmatprep.subr.bf16.mxu0 0
        %3092 = vmatpush1.bf16.xpose.msra.mxu0 0
        %3093 = vmatprep.mubr.bf16.mxu0 0
        %3094 = vmatmul.mubr.bf16.gmra.mrb[0].mxu0 %v2833
        %v3095 = vpop.f32.mrb[0].mxu0
        %v3096 = vadd.f32 0.0, %v3095
        %v3097 = vpop.f32.mrb[0].mxu0
        %v3098 = vpop.f32.mrb[0].mxu0
        %v3099 = vadd.f32 0.0, %v3098
        %v3100 = vpop.f32.mrb[0].mxu0
        %3101 = vmatprep.mubr.bf16.mxu0 0
        %3102 = vmatmul.mubr.bf16.gmra.mrb[0].mxu0 %v2834
        %v3103 = vpop.f32.mrb[0].mxu0
        %v3104 = vadd.f32 0.0, %v3103
        %v3105 = vpop.f32.mrb[0].mxu0
        %v3106 = vpop.f32.mrb[0].mxu0
        %v3107 = vadd.f32 0.0, %v3106
        %v3108 = vpop.f32.mrb[0].mxu0
        %3109 = vdwg.mxu0
        %3110 = vmatprep.subr.bf16.mxu0 0
        %3111 = vmatpush1.bf16.xpose.msra.mxu0 %v2851
        %3112 = vmatprep.subr.bf16.mxu0 0
        %3113 = vmatpush1.bf16.xpose.msra.mxu0 %v2852
        %3114 = vmatprep.subr.bf16.mxu0 0
        %3115 = vmatpush1.bf16.xpose.msra.mxu0 0
        %3116 = vmatprep.subr.bf16.mxu0 0
        %3117 = vmatpush1.bf16.xpose.msra.mxu0 0
        %3118 = vmatprep.subr.bf16.mxu0 0
        %3119 = vmatpush1.bf16.xpose.msra.mxu0 0
        %3120 = vmatprep.subr.bf16.mxu0 0
        %3121 = vmatpush1.bf16.xpose.msra.mxu0 0
        %3122 = vmatprep.subr.bf16.mxu0 0
        %3123 = vmatpush1.bf16.xpose.msra.mxu0 0
        %3124 = vmatprep.subr.bf16.mxu0 0
        %3125 = vmatpush1.bf16.xpose.msra.mxu0 0
        %3126 = vmatprep.subr.bf16.mxu0 0
        %3127 = vmatpush1.bf16.xpose.msra.mxu0 0
        %3128 = vmatprep.subr.bf16.mxu0 0
        %3129 = vmatpush1.bf16.xpose.msra.mxu0 0
        %3130 = vmatprep.subr.bf16.mxu0 0
        %3131 = vmatpush1.bf16.xpose.msra.mxu0 0
        %3132 = vmatprep.subr.bf16.mxu0 0
        %3133 = vmatpush1.bf16.xpose.msra.mxu0 0
        %3134 = vmatprep.subr.bf16.mxu0 0
        %3135 = vmatpush1.bf16.xpose.msra.mxu0 0
        %3136 = vmatprep.subr.bf16.mxu0 0
        %3137 = vmatpush1.bf16.xpose.msra.mxu0 0
        %3138 = vmatprep.subr.bf16.mxu0 0
        %3139 = vmatpush1.bf16.xpose.msra.mxu0 0
        %3140 = vmatprep.subr.bf16.mxu0 0
        %3141 = vmatpush1.bf16.xpose.msra.mxu0 0
        %3142 = vmatprep.mubr.bf16.mxu0 0
        %3143 = vmatmul.mubr.bf16.gmra.mrb[0].mxu0 %v2835
        %v3144 = vpop.f32.mrb[0].mxu0
        %v3145 = vadd.f32 0.0, %v3144
        %v3146 = vpop.f32.mrb[0].mxu0
        %v3147 = vpop.f32.mrb[0].mxu0
        %v3148 = vadd.f32 0.0, %v3147
        %v3149 = vpop.f32.mrb[0].mxu0
        %3150 = vmatprep.mubr.bf16.mxu0 0
        %3151 = vmatmul.mubr.bf16.gmra.mrb[0].mxu0 %v2836
        %v3152 = vpop.f32.mrb[0].mxu0
        %v3153 = vadd.f32 0.0, %v3152
        %v3154 = vpop.f32.mrb[0].mxu0
        %v3155 = vpop.f32.mrb[0].mxu0
        %v3156 = vadd.f32 0.0, %v3155
        %v3157 = vpop.f32.mrb[0].mxu0
        %3158 = vdwg.mxu0
        %3159 = vmatprep.subr.bf16.mxu0 0
        %3160 = vmatpush1.bf16.xpose.msra.mxu0 %v2853
        %3161 = vmatprep.subr.bf16.mxu0 0
        %3162 = vmatpush1.bf16.xpose.msra.mxu0 %v2854
        %3163 = vmatprep.subr.bf16.mxu0 0
        %3164 = vmatpush1.bf16.xpose.msra.mxu0 0
        %3165 = vmatprep.subr.bf16.mxu0 0
        %3166 = vmatpush1.bf16.xpose.msra.mxu0 0
        %3167 = vmatprep.subr.bf16.mxu0 0
        %3168 = vmatpush1.bf16.xpose.msra.mxu0 0
        %3169 = vmatprep.subr.bf16.mxu0 0
        %3170 = vmatpush1.bf16.xpose.msra.mxu0 0
        %3171 = vmatprep.subr.bf16.mxu0 0
        %3172 = vmatpush1.bf16.xpose.msra.mxu0 0
        %3173 = vmatprep.subr.bf16.mxu0 0
        %3174 = vmatpush1.bf16.xpose.msra.mxu0 0
        %3175 = vmatprep.subr.bf16.mxu0 0
        %3176 = vmatpush1.bf16.xpose.msra.mxu0 0
        %3177 = vmatprep.subr.bf16.mxu0 0
        %3178 = vmatpush1.bf16.xpose.msra.mxu0 0
        %3179 = vmatprep.subr.bf16.mxu0 0
        %3180 = vmatpush1.bf16.xpose.msra.mxu0 0
        %3181 = vmatprep.subr.bf16.mxu0 0
        %3182 = vmatpush1.bf16.xpose.msra.mxu0 0
        %3183 = vmatprep.subr.bf16.mxu0 0
        %3184 = vmatpush1.bf16.xpose.msra.mxu0 0
        %3185 = vmatprep.subr.bf16.mxu0 0
        %3186 = vmatpush1.bf16.xpose.msra.mxu0 0
        %3187 = vmatprep.subr.bf16.mxu0 0
        %3188 = vmatpush1.bf16.xpose.msra.mxu0 0
        %3189 = vmatprep.subr.bf16.mxu0 0
        %3190 = vmatpush1.bf16.xpose.msra.mxu0 0
        %3191 = vmatprep.mubr.bf16.mxu0 0
        %3192 = vmatmul.mubr.bf16.gmra.mrb[0].mxu0 %v2837
        %v3193 = vpop.f32.mrb[0].mxu0
        %v3194 = vadd.f32 0.0, %v3193
        %v3195 = vpop.f32.mrb[0].mxu0
        %v3196 = vpop.f32.mrb[0].mxu0
        %v3197 = vadd.f32 0.0, %v3196
        %v3198 = vpop.f32.mrb[0].mxu0
        %3199 = vmatprep.mubr.bf16.mxu0 0
        %3200 = vmatmul.mubr.bf16.gmra.mrb[0].mxu0 %v2838
        %v3201 = vpop.f32.mrb[0].mxu0
        %v3202 = vadd.f32 0.0, %v3201
        %v3203 = vpop.f32.mrb[0].mxu0
        %v3204 = vpop.f32.mrb[0].mxu0
        %v3205 = vadd.f32 0.0, %v3204
        %v3206 = vpop.f32.mrb[0].mxu0
        %3207 = vdwg.mxu0
        %3208 = vmatprep.subr.bf16.mxu0 0
        %3209 = vmatpush1.bf16.xpose.msra.mxu0 %v2855
        %3210 = vmatprep.subr.bf16.mxu0 0
        %3211 = vmatpush1.bf16.xpose.msra.mxu0 %v2856
        %3212 = vmatprep.subr.bf16.mxu0 0
        %3213 = vmatpush1.bf16.xpose.msra.mxu0 0
        %3214 = vmatprep.subr.bf16.mxu0 0
        %3215 = vmatpush1.bf16.xpose.msra.mxu0 0
        %3216 = vmatprep.subr.bf16.mxu0 0
        %3217 = vmatpush1.bf16.xpose.msra.mxu0 0
        %3218 = vmatprep.subr.bf16.mxu0 0
        %3219 = vmatpush1.bf16.xpose.msra.mxu0 0
        %3220 = vmatprep.subr.bf16.mxu0 0
        %3221 = vmatpush1.bf16.xpose.msra.mxu0 0
        %3222 = vmatprep.subr.bf16.mxu0 0
        %3223 = vmatpush1.bf16.xpose.msra.mxu0 0
        %3224 = vmatprep.subr.bf16.mxu0 0
        %3225 = vmatpush1.bf16.xpose.msra.mxu0 0
        %3226 = vmatprep.subr.bf16.mxu0 0
        %3227 = vmatpush1.bf16.xpose.msra.mxu0 0
        %3228 = vmatprep.subr.bf16.mxu0 0
        %3229 = vmatpush1.bf16.xpose.msra.mxu0 0
        %3230 = vmatprep.subr.bf16.mxu0 0
        %3231 = vmatpush1.bf16.xpose.msra.mxu0 0
        %3232 = vmatprep.subr.bf16.mxu0 0
        %3233 = vmatpush1.bf16.xpose.msra.mxu0 0
        %3234 = vmatprep.subr.bf16.mxu0 0
        %3235 = vmatpush1.bf16.xpose.msra.mxu0 0
        %3236 = vmatprep.subr.bf16.mxu0 0
        %3237 = vmatpush1.bf16.xpose.msra.mxu0 0
        %3238 = vmatprep.subr.bf16.mxu0 0
        %3239 = vmatpush1.bf16.xpose.msra.mxu0 0
        %3240 = vmatprep.mubr.bf16.mxu0 0
        %3241 = vmatmul.mubr.bf16.gmra.mrb[0].mxu0 %v2839
        %v3242 = vpop.f32.mrb[0].mxu0
        %v3243 = vadd.f32 0.0, %v3242
        %v3244 = vpop.f32.mrb[0].mxu0
        %v3245 = vpop.f32.mrb[0].mxu0
        %v3246 = vadd.f32 0.0, %v3245
        %v3247 = vpop.f32.mrb[0].mxu0
        %3248 = vmatprep.mubr.bf16.mxu0 0
        %3249 = vmatmul.mubr.bf16.gmra.mrb[0].mxu0 %v2840
        %v3250 = vpop.f32.mrb[0].mxu0
        %v3251 = vadd.f32 0.0, %v3250
        %v3252 = vpop.f32.mrb[0].mxu0
        %v3253 = vpop.f32.mrb[0].mxu0
        %v3254 = vadd.f32 0.0, %v3253
        %v3255 = vpop.f32.mrb[0].mxu0
        %3256 = vdwg.mxu0
        %v3257 = vmul.f32 %v2900, %v2900
        %v3258 = vmul.f32 %v2903, %v2903
        %v3259 = vmul.f32 %v2908, %v2908
        %v3260 = vmul.f32 %v2911, %v2911
        %v3261 = vmul.f32 %v2949, %v2949
        %v3262 = vmul.f32 %v2952, %v2952
        %v3263 = vmul.f32 %v2957, %v2957
        %v3264 = vmul.f32 %v2960, %v2960
        %v3265 = vmul.f32 %v2998, %v2998
        %v3266 = vmul.f32 %v3001, %v3001
        %v3267 = vmul.f32 %v3006, %v3006
        %v3268 = vmul.f32 %v3009, %v3009
        %v3269 = vmul.f32 %v3047, %v3047
        %v3270 = vmul.f32 %v3050, %v3050
        %v3271 = vmul.f32 %v3055, %v3055
        %v3272 = vmul.f32 %v3058, %v3058
        %v3273 = vmul.f32 %v3096, %v3096
        %v3274 = vmul.f32 %v3099, %v3099
        %v3275 = vmul.f32 %v3104, %v3104
        %v3276 = vmul.f32 %v3107, %v3107
        %v3277 = vmul.f32 %v3145, %v3145
        %v3278 = vmul.f32 %v3148, %v3148
        %v3279 = vmul.f32 %v3153, %v3153
        %v3280 = vmul.f32 %v3156, %v3156
        %v3281 = vmul.f32 %v3194, %v3194
        %v3282 = vmul.f32 %v3197, %v3197
        %v3283 = vmul.f32 %v3202, %v3202
        %v3284 = vmul.f32 %v3205, %v3205
        %v3285 = vmul.f32 %v3243, %v3243
        %v3286 = vmul.f32 %v3246, %v3246
        %v3287 = vmul.f32 %v3251, %v3251
        %v3288 = vmul.f32 %v3254, %v3254
        %v3289 = vadd.f32 %v3257, %v3273
        %v3290 = vadd.f32 %v3258, %v3274
        %v3291 = vadd.f32 %v3259, %v3275
        %v3292 = vadd.f32 %v3260, %v3276
        %v3293 = vadd.f32 %v3261, %v3277
        %v3294 = vadd.f32 %v3262, %v3278
        %v3295 = vadd.f32 %v3263, %v3279
        %v3296 = vadd.f32 %v3264, %v3280
        %v3297 = vadd.f32 %v3265, %v3281
        %v3298 = vadd.f32 %v3266, %v3282
        %v3299 = vadd.f32 %v3267, %v3283
        %v3300 = vadd.f32 %v3268, %v3284
        %v3301 = vadd.f32 %v3269, %v3285
        %v3302 = vadd.f32 %v3270, %v3286
        %v3303 = vadd.f32 %v3271, %v3287
        %v3304 = vadd.f32 %v3272, %v3288
        %v3305 = vrsqrt.pop %v3289
        %v3306 = vmul.f32 %v3289, %v3305
        %vm3307 = vcmp.eq.f32.partialorder %v3289, inf
        %v3308 = vsel %vm3307, %v3289, %v3306
        %vm3309 = vcmp.eq.f32.partialorder %v3289, 0.0
        %v3310 = vand.u32 %v3289, 2147483648
        %v3311 = vsel %vm3309, %v3310, %v3308
        %v3312 = vrsqrt.pop %v3290
        %v3313 = vmul.f32 %v3290, %v3312
        %vm3314 = vcmp.eq.f32.partialorder %v3290, inf
        %v3315 = vsel %vm3314, %v3290, %v3313
        %vm3316 = vcmp.eq.f32.partialorder %v3290, 0.0
        %v3317 = vand.u32 %v3290, 2147483648
        %v3318 = vsel %vm3316, %v3317, %v3315
        %v3319 = vrsqrt.pop %v3291
        %v3320 = vmul.f32 %v3291, %v3319
        %vm3321 = vcmp.eq.f32.partialorder %v3291, inf
        %v3322 = vsel %vm3321, %v3291, %v3320
        %vm3323 = vcmp.eq.f32.partialorder %v3291, 0.0
        %v3324 = vand.u32 %v3291, 2147483648
        %v3325 = vsel %vm3323, %v3324, %v3322
        %v3326 = vrsqrt.pop %v3292
        %v3327 = vmul.f32 %v3292, %v3326
        %vm3328 = vcmp.eq.f32.partialorder %v3292, inf
        %v3329 = vsel %vm3328, %v3292, %v3327
        %vm3330 = vcmp.eq.f32.partialorder %v3292, 0.0
        %v3331 = vand.u32 %v3292, 2147483648
        %v3332 = vsel %vm3330, %v3331, %v3329
        %v3333 = vrsqrt.pop %v3293
        %v3334 = vmul.f32 %v3293, %v3333
        %vm3335 = vcmp.eq.f32.partialorder %v3293, inf
        %v3336 = vsel %vm3335, %v3293, %v3334
        %vm3337 = vcmp.eq.f32.partialorder %v3293, 0.0
        %v3338 = vand.u32 %v3293, 2147483648
        %v3339 = vsel %vm3337, %v3338, %v3336
        %v3340 = vrsqrt.pop %v3294
        %v3341 = vmul.f32 %v3294, %v3340
        %vm3342 = vcmp.eq.f32.partialorder %v3294, inf
        %v3343 = vsel %vm3342, %v3294, %v3341
        %vm3344 = vcmp.eq.f32.partialorder %v3294, 0.0
        %v3345 = vand.u32 %v3294, 2147483648
        %v3346 = vsel %vm3344, %v3345, %v3343
        %v3347 = vrsqrt.pop %v3295
        %v3348 = vmul.f32 %v3295, %v3347
        %vm3349 = vcmp.eq.f32.partialorder %v3295, inf
        %v3350 = vsel %vm3349, %v3295, %v3348
        %vm3351 = vcmp.eq.f32.partialorder %v3295, 0.0
        %v3352 = vand.u32 %v3295, 2147483648
        %v3353 = vsel %vm3351, %v3352, %v3350
        %v3354 = vrsqrt.pop %v3296
        %v3355 = vmul.f32 %v3296, %v3354
        %vm3356 = vcmp.eq.f32.partialorder %v3296, inf
        %v3357 = vsel %vm3356, %v3296, %v3355
        %vm3358 = vcmp.eq.f32.partialorder %v3296, 0.0
        %v3359 = vand.u32 %v3296, 2147483648
        %v3360 = vsel %vm3358, %v3359, %v3357
        %v3361 = vrsqrt.pop %v3297
        %v3362 = vmul.f32 %v3297, %v3361
        %vm3363 = vcmp.eq.f32.partialorder %v3297, inf
        %v3364 = vsel %vm3363, %v3297, %v3362
        %vm3365 = vcmp.eq.f32.partialorder %v3297, 0.0
        %v3366 = vand.u32 %v3297, 2147483648
        %v3367 = vsel %vm3365, %v3366, %v3364
        %v3368 = vrsqrt.pop %v3298
        %v3369 = vmul.f32 %v3298, %v3368
        %vm3370 = vcmp.eq.f32.partialorder %v3298, inf
        %v3371 = vsel %vm3370, %v3298, %v3369
        %vm3372 = vcmp.eq.f32.partialorder %v3298, 0.0
        %v3373 = vand.u32 %v3298, 2147483648
        %v3374 = vsel %vm3372, %v3373, %v3371
        %v3375 = vrsqrt.pop %v3299
        %v3376 = vmul.f32 %v3299, %v3375
        %vm3377 = vcmp.eq.f32.partialorder %v3299, inf
        %v3378 = vsel %vm3377, %v3299, %v3376
        %vm3379 = vcmp.eq.f32.partialorder %v3299, 0.0
        %v3380 = vand.u32 %v3299, 2147483648
        %v3381 = vsel %vm3379, %v3380, %v3378
        %v3382 = vrsqrt.pop %v3300
        %v3383 = vmul.f32 %v3300, %v3382
        %vm3384 = vcmp.eq.f32.partialorder %v3300, inf
        %v3385 = vsel %vm3384, %v3300, %v3383
        %vm3386 = vcmp.eq.f32.partialorder %v3300, 0.0
        %v3387 = vand.u32 %v3300, 2147483648
        %v3388 = vsel %vm3386, %v3387, %v3385
        %v3389 = vrsqrt.pop %v3301
        %v3390 = vmul.f32 %v3301, %v3389
        %vm3391 = vcmp.eq.f32.partialorder %v3301, inf
        %v3392 = vsel %vm3391, %v3301, %v3390
        %vm3393 = vcmp.eq.f32.partialorder %v3301, 0.0
        %v3394 = vand.u32 %v3301, 2147483648
        %v3395 = vsel %vm3393, %v3394, %v3392
        %v3396 = vrsqrt.pop %v3302
        %v3397 = vmul.f32 %v3302, %v3396
        %vm3398 = vcmp.eq.f32.partialorder %v3302, inf
        %v3399 = vsel %vm3398, %v3302, %v3397
        %vm3400 = vcmp.eq.f32.partialorder %v3302, 0.0
        %v3401 = vand.u32 %v3302, 2147483648
        %v3402 = vsel %vm3400, %v3401, %v3399
        %v3403 = vrsqrt.pop %v3303
        %v3404 = vmul.f32 %v3303, %v3403
        %vm3405 = vcmp.eq.f32.partialorder %v3303, inf
        %v3406 = vsel %vm3405, %v3303, %v3404
        %vm3407 = vcmp.eq.f32.partialorder %v3303, 0.0
        %v3408 = vand.u32 %v3303, 2147483648
        %v3409 = vsel %vm3407, %v3408, %v3406
        %v3410 = vrsqrt.pop %v3304
        %v3411 = vmul.f32 %v3304, %v3410
        %vm3412 = vcmp.eq.f32.partialorder %v3304, inf
        %v3413 = vsel %vm3412, %v3304, %v3411
        %vm3414 = vcmp.eq.f32.partialorder %v3304, 0.0
        %v3415 = vand.u32 %v3304, 2147483648
        %v3416 = vsel %vm3414, %v3415, %v3413
        %v3417 = vsel %vm2428, %v3311, -inf
        %3418 = vmax.xlane.f32.xlu0 %v3417
        %v3419 = vpop.xlane.xlu0 %3418
        %v3420 = vsel %vm2428, %v3318, -inf
        %3421 = vmax.xlane.f32.xlu0 %v3420
        %v3422 = vpop.xlane.xlu0 %3421
        %v3423 = vsel %vm2428, %v3325, -inf
        %3424 = vmax.xlane.f32.xlu0 %v3423
        %v3425 = vpop.xlane.xlu0 %3424
        %v3426 = vsel %vm2428, %v3332, -inf
        %3427 = vmax.xlane.f32.xlu0 %v3426
        %v3428 = vpop.xlane.xlu0 %3427
        %v3429 = vsel %vm2428, %v3339, -inf
        %3430 = vmax.xlane.f32.xlu0 %v3429
        %v3431 = vpop.xlane.xlu0 %3430
        %v3432 = vsel %vm2428, %v3346, -inf
        %3433 = vmax.xlane.f32.xlu0 %v3432
        %v3434 = vpop.xlane.xlu0 %3433
        %v3435 = vsel %vm2428, %v3353, -inf
        %3436 = vmax.xlane.f32.xlu0 %v3435
        %v3437 = vpop.xlane.xlu0 %3436
        %v3438 = vsel %vm2428, %v3360, -inf
        %3439 = vmax.xlane.f32.xlu0 %v3438
        %v3440 = vpop.xlane.xlu0 %3439
        %v3441 = vsel %vm2428, %v3367, -inf
        %3442 = vmax.xlane.f32.xlu0 %v3441
        %v3443 = vpop.xlane.xlu0 %3442
        %v3444 = vsel %vm2428, %v3374, -inf
        %3445 = vmax.xlane.f32.xlu0 %v3444
        %v3446 = vpop.xlane.xlu0 %3445
        %v3447 = vsel %vm2428, %v3381, -inf
        %3448 = vmax.xlane.f32.xlu0 %v3447
        %v3449 = vpop.xlane.xlu0 %3448
        %v3450 = vsel %vm2428, %v3388, -inf
        %3451 = vmax.xlane.f32.xlu0 %v3450
        %v3452 = vpop.xlane.xlu0 %3451
        %v3453 = vsel %vm2428, %v3395, -inf
        %3454 = vmax.xlane.f32.xlu0 %v3453
        %v3455 = vpop.xlane.xlu0 %3454
        %v3456 = vsel %vm2428, %v3402, -inf
        %3457 = vmax.xlane.f32.xlu0 %v3456
        %v3458 = vpop.xlane.xlu0 %3457
        %v3459 = vsel %vm2428, %v3409, -inf
        %3460 = vmax.xlane.f32.xlu0 %v3459
        %v3461 = vpop.xlane.xlu0 %3460
        %v3462 = vsel %vm2428, %v3416, -inf
        %3463 = vmax.xlane.f32.xlu0 %v3462
        %v3464 = vpop.xlane.xlu0 %3463
        %v3465 = vsub.f32 %v3311, %v3419
        %v3466 = vsub.f32 %v3318, %v3422
        %v3467 = vsub.f32 %v3325, %v3425
        %v3468 = vsub.f32 %v3332, %v3428
        %v3469 = vsub.f32 %v3339, %v3431
        %v3470 = vsub.f32 %v3346, %v3434
        %v3471 = vsub.f32 %v3353, %v3437
        %v3472 = vsub.f32 %v3360, %v3440
        %v3473 = vsub.f32 %v3367, %v3443
        %v3474 = vsub.f32 %v3374, %v3446
        %v3475 = vsub.f32 %v3381, %v3449
        %v3476 = vsub.f32 %v3388, %v3452
        %v3477 = vsub.f32 %v3395, %v3455
        %v3478 = vsub.f32 %v3402, %v3458
        %v3479 = vsub.f32 %v3409, %v3461
        %v3480 = vsub.f32 %v3416, %v3464
        %v3481 = vmul.f32 %v3465, 1.442695
        %v3482 = vpow.pop %v3481
        %v3483 = vmul.f32 %v3466, 1.442695
        %v3484 = vpow.pop %v3483
        %v3485 = vmul.f32 %v3467, 1.442695
        %v3486 = vpow.pop %v3485
        %v3487 = vmul.f32 %v3468, 1.442695
        %v3488 = vpow.pop %v3487
        %v3489 = vmul.f32 %v3469, 1.442695
        %v3490 = vpow.pop %v3489
        %v3491 = vmul.f32 %v3470, 1.442695
        %v3492 = vpow.pop %v3491
        %v3493 = vmul.f32 %v3471, 1.442695
        %v3494 = vpow.pop %v3493
        %v3495 = vmul.f32 %v3472, 1.442695
        %v3496 = vpow.pop %v3495
        %v3497 = vmul.f32 %v3473, 1.442695
        %v3498 = vpow.pop %v3497
        %v3499 = vmul.f32 %v3474, 1.442695
        %v3500 = vpow.pop %v3499
        %v3501 = vmul.f32 %v3475, 1.442695
        %v3502 = vpow.pop %v3501
        %v3503 = vmul.f32 %v3476, 1.442695
        %v3504 = vpow.pop %v3503
        %v3505 = vmul.f32 %v3477, 1.442695
        %v3506 = vpow.pop %v3505
        %v3507 = vmul.f32 %v3478, 1.442695
        %v3508 = vpow.pop %v3507
        %v3509 = vmul.f32 %v3479, 1.442695
        %v3510 = vpow.pop %v3509
        %v3511 = vmul.f32 %v3480, 1.442695
        %v3512 = vpow.pop %v3511
        %v3513 = vsel %vm2428, %v3482, 0.0
        %3514 = vadd.xlane.f32.xlu0 %v3513
        %v3515 = vpop.xlane.xlu0 %3514
        %v3516 = vsel %vm2428, %v3484, 0.0
        %3517 = vadd.xlane.f32.xlu0 %v3516
        %v3518 = vpop.xlane.xlu0 %3517
        %v3519 = vsel %vm2428, %v3486, 0.0
        %3520 = vadd.xlane.f32.xlu0 %v3519
        %v3521 = vpop.xlane.xlu0 %3520
        %v3522 = vsel %vm2428, %v3488, 0.0
        %3523 = vadd.xlane.f32.xlu0 %v3522
        %v3524 = vpop.xlane.xlu0 %3523
        %v3525 = vsel %vm2428, %v3490, 0.0
        %3526 = vadd.xlane.f32.xlu0 %v3525
        %v3527 = vpop.xlane.xlu0 %3526
        %v3528 = vsel %vm2428, %v3492, 0.0
        %3529 = vadd.xlane.f32.xlu0 %v3528
        %v3530 = vpop.xlane.xlu0 %3529
        %v3531 = vsel %vm2428, %v3494, 0.0
        %3532 = vadd.xlane.f32.xlu0 %v3531
        %v3533 = vpop.xlane.xlu0 %3532
        %v3534 = vsel %vm2428, %v3496, 0.0
        %3535 = vadd.xlane.f32.xlu0 %v3534
        %v3536 = vpop.xlane.xlu0 %3535
        %v3537 = vsel %vm2428, %v3498, 0.0
        %3538 = vadd.xlane.f32.xlu0 %v3537
        %v3539 = vpop.xlane.xlu0 %3538
        %v3540 = vsel %vm2428, %v3500, 0.0
        %3541 = vadd.xlane.f32.xlu0 %v3540
        %v3542 = vpop.xlane.xlu0 %3541
        %v3543 = vsel %vm2428, %v3502, 0.0
        %3544 = vadd.xlane.f32.xlu0 %v3543
        %v3545 = vpop.xlane.xlu0 %3544
        %v3546 = vsel %vm2428, %v3504, 0.0
        %3547 = vadd.xlane.f32.xlu0 %v3546
        %v3548 = vpop.xlane.xlu0 %3547
        %v3549 = vsel %vm2428, %v3506, 0.0
        %3550 = vadd.xlane.f32.xlu0 %v3549
        %v3551 = vpop.xlane.xlu0 %3550
        %v3552 = vsel %vm2428, %v3508, 0.0
        %3553 = vadd.xlane.f32.xlu0 %v3552
        %v3554 = vpop.xlane.xlu0 %3553
        %v3555 = vsel %vm2428, %v3510, 0.0
        %3556 = vadd.xlane.f32.xlu0 %v3555
        %v3557 = vpop.xlane.xlu0 %3556
        %v3558 = vsel %vm2428, %v3512, 0.0
        %3559 = vadd.xlane.f32.xlu0 %v3558
        %v3560 = vpop.xlane.xlu0 %3559
        %v3561 = vrcp.pop %v3515
        %v3562 = vrcp.pop %v3518
        %v3563 = vrcp.pop %v3521
        %v3564 = vrcp.pop %v3524
        %v3565 = vrcp.pop %v3527
        %v3566 = vrcp.pop %v3530
        %v3567 = vrcp.pop %v3533
        %v3568 = vrcp.pop %v3536
        %v3569 = vrcp.pop %v3539
        %v3570 = vrcp.pop %v3542
        %v3571 = vrcp.pop %v3545
        %v3572 = vrcp.pop %v3548
        %v3573 = vrcp.pop %v3551
        %v3574 = vrcp.pop %v3554
        %v3575 = vrcp.pop %v3557
        %v3576 = vrcp.pop %v3560
        %v3577 = vmul.f32 %v3482, %v3561
        %v3578 = vmul.f32 %v3484, %v3562
        %v3579 = vmul.f32 %v3486, %v3563
        %v3580 = vmul.f32 %v3488, %v3564
        %v3581 = vmul.f32 %v3490, %v3565
        %v3582 = vmul.f32 %v3492, %v3566
        %v3583 = vmul.f32 %v3494, %v3567
        %v3584 = vmul.f32 %v3496, %v3568
        %v3585 = vmul.f32 %v3498, %v3569
        %v3586 = vmul.f32 %v3500, %v3570
        %v3587 = vmul.f32 %v3502, %v3571
        %v3588 = vmul.f32 %v3504, %v3572
        %v3589 = vmul.f32 %v3506, %v3573
        %v3590 = vmul.f32 %v3508, %v3574
        %v3591 = vmul.f32 %v3510, %v3575
        %v3592 = vmul.f32 %v3512, %v3576
        %v3593 = vpack.c.bf16 %v3578, %v3577
        %v3594 = vpack.c.bf16 %v3580, %v3579
        %v3595 = vpack.c.bf16 %v3582, %v3581
        %v3596 = vpack.c.bf16 %v3584, %v3583
        %v3597 = vpack.c.bf16 %v3586, %v3585
        %v3598 = vpack.c.bf16 %v3588, %v3587
        %v3599 = vpack.c.bf16 %v3590, %v3589
        %v3600 = vpack.c.bf16 %v3592, %v3591
        %v3602 = vsel %vm2428, %v3593, 0
        %v3605 = vsel %vm2428, %v3594, 0
        %3607 = vmatprep.subr.bf16.mxu0 0
        %3608 = vmatpush1.bf16.msra.mxu0 %v2857
        %3609 = vmatprep.subr.bf16.mxu0 0
        %3610 = vmatpush1.bf16.msra.mxu0 %v2858
        %3611 = vmatprep.subr.bf16.mxu0 0
        %3612 = vmatpush1.bf16.msra.mxu0 0
        %3613 = vmatprep.subr.bf16.mxu0 0
        %3614 = vmatpush1.bf16.msra.mxu0 0
        %3615 = vmatprep.subr.bf16.mxu0 0
        %3616 = vmatpush1.bf16.msra.mxu0 0
        %3617 = vmatprep.subr.bf16.mxu0 0
        %3618 = vmatpush1.bf16.msra.mxu0 0
        %3619 = vmatprep.subr.bf16.mxu0 0
        %3620 = vmatpush1.bf16.msra.mxu0 0
        %3621 = vmatprep.subr.bf16.mxu0 0
        %3622 = vmatpush1.bf16.msra.mxu0 0
        %3623 = vmatprep.subr.bf16.mxu0 0
        %3624 = vmatpush1.bf16.msra.mxu0 0
        %3625 = vmatprep.subr.bf16.mxu0 0
        %3626 = vmatpush1.bf16.msra.mxu0 0
        %3627 = vmatprep.subr.bf16.mxu0 0
        %3628 = vmatpush1.bf16.msra.mxu0 0
        %3629 = vmatprep.subr.bf16.mxu0 0
        %3630 = vmatpush1.bf16.msra.mxu0 0
        %3631 = vmatprep.subr.bf16.mxu0 0
        %3632 = vmatpush1.bf16.msra.mxu0 0
        %3633 = vmatprep.subr.bf16.mxu0 0
        %3634 = vmatpush1.bf16.msra.mxu0 0
        %3635 = vmatprep.subr.bf16.mxu0 0
        %3636 = vmatpush1.bf16.msra.mxu0 0
        %3637 = vmatprep.subr.bf16.mxu0 0
        %3638 = vmatpush1.bf16.msra.mxu0 0
        %3639 = vmatprep.mubr.bf16.mxu0 0
        %3640 = vmatmul.mubr.bf16.gmra.mrb[0].mxu0 %v3602
        %v3641 = vpop.f32.mrb[0].mxu0
        %v3642 = vadd.f32 0.0, %v3641
        %v3643 = vpop.f32.mrb[0].mxu0
        %v3644 = vpop.f32.mrb[0].mxu0
        %v3645 = vadd.f32 0.0, %v3644
        %v3646 = vpop.f32.mrb[0].mxu0
        %3647 = vmatprep.mubr.bf16.mxu0 0
        %3648 = vmatmul.mubr.bf16.gmra.mrb[0].mxu0 %v3605
        %v3649 = vpop.f32.mrb[0].mxu0
        %v3650 = vadd.f32 0.0, %v3649
        %v3651 = vpop.f32.mrb[0].mxu0
        %v3652 = vpop.f32.mrb[0].mxu0
        %v3653 = vadd.f32 0.0, %v3652
        %v3654 = vpop.f32.mrb[0].mxu0
        %3655 = vdwg.mxu0
        %v3657 = vsel %vm2428, %v3595, 0
        %v3660 = vsel %vm2428, %v3596, 0
        %3662 = vmatprep.subr.bf16.mxu0 0
        %3663 = vmatpush1.bf16.msra.mxu0 %v2859
        %3664 = vmatprep.subr.bf16.mxu0 0
        %3665 = vmatpush1.bf16.msra.mxu0 %v2860
        %3666 = vmatprep.subr.bf16.mxu0 0
        %3667 = vmatpush1.bf16.msra.mxu0 0
        %3668 = vmatprep.subr.bf16.mxu0 0
        %3669 = vmatpush1.bf16.msra.mxu0 0
        %3670 = vmatprep.subr.bf16.mxu0 0
        %3671 = vmatpush1.bf16.msra.mxu0 0
        %3672 = vmatprep.subr.bf16.mxu0 0
        %3673 = vmatpush1.bf16.msra.mxu0 0
        %3674 = vmatprep.subr.bf16.mxu0 0
        %3675 = vmatpush1.bf16.msra.mxu0 0
        %3676 = vmatprep.subr.bf16.mxu0 0
        %3677 = vmatpush1.bf16.msra.mxu0 0
        %3678 = vmatprep.subr.bf16.mxu0 0
        %3679 = vmatpush1.bf16.msra.mxu0 0
        %3680 = vmatprep.subr.bf16.mxu0 0
        %3681 = vmatpush1.bf16.msra.mxu0 0
        %3682 = vmatprep.subr.bf16.mxu0 0
        %3683 = vmatpush1.bf16.msra.mxu0 0
        %3684 = vmatprep.subr.bf16.mxu0 0
        %3685 = vmatpush1.bf16.msra.mxu0 0
        %3686 = vmatprep.subr.bf16.mxu0 0
        %3687 = vmatpush1.bf16.msra.mxu0 0
        %3688 = vmatprep.subr.bf16.mxu0 0
        %3689 = vmatpush1.bf16.msra.mxu0 0
        %3690 = vmatprep.subr.bf16.mxu0 0
        %3691 = vmatpush1.bf16.msra.mxu0 0
        %3692 = vmatprep.subr.bf16.mxu0 0
        %3693 = vmatpush1.bf16.msra.mxu0 0
        %3694 = vmatprep.mubr.bf16.mxu0 0
        %3695 = vmatmul.mubr.bf16.gmra.mrb[0].mxu0 %v3657
        %v3696 = vpop.f32.mrb[0].mxu0
        %v3697 = vadd.f32 0.0, %v3696
        %v3698 = vpop.f32.mrb[0].mxu0
        %v3699 = vpop.f32.mrb[0].mxu0
        %v3700 = vadd.f32 0.0, %v3699
        %v3701 = vpop.f32.mrb[0].mxu0
        %3702 = vmatprep.mubr.bf16.mxu0 0
        %3703 = vmatmul.mubr.bf16.gmra.mrb[0].mxu0 %v3660
        %v3704 = vpop.f32.mrb[0].mxu0
        %v3705 = vadd.f32 0.0, %v3704
        %v3706 = vpop.f32.mrb[0].mxu0
        %v3707 = vpop.f32.mrb[0].mxu0
        %v3708 = vadd.f32 0.0, %v3707
        %v3709 = vpop.f32.mrb[0].mxu0
        %3710 = vdwg.mxu0
        %v3712 = vsel %vm2428, %v3597, 0
        %v3715 = vsel %vm2428, %v3598, 0
        %3717 = vmatprep.subr.bf16.mxu0 0
        %3718 = vmatpush1.bf16.msra.mxu0 %v2861
        %3719 = vmatprep.subr.bf16.mxu0 0
        %3720 = vmatpush1.bf16.msra.mxu0 %v2862
        %3721 = vmatprep.subr.bf16.mxu0 0
        %3722 = vmatpush1.bf16.msra.mxu0 0
        %3723 = vmatprep.subr.bf16.mxu0 0
        %3724 = vmatpush1.bf16.msra.mxu0 0
        %3725 = vmatprep.subr.bf16.mxu0 0
        %3726 = vmatpush1.bf16.msra.mxu0 0
        %3727 = vmatprep.subr.bf16.mxu0 0
        %3728 = vmatpush1.bf16.msra.mxu0 0
        %3729 = vmatprep.subr.bf16.mxu0 0
        %3730 = vmatpush1.bf16.msra.mxu0 0
        %3731 = vmatprep.subr.bf16.mxu0 0
        %3732 = vmatpush1.bf16.msra.mxu0 0
        %3733 = vmatprep.subr.bf16.mxu0 0
        %3734 = vmatpush1.bf16.msra.mxu0 0
        %3735 = vmatprep.subr.bf16.mxu0 0
        %3736 = vmatpush1.bf16.msra.mxu0 0
        %3737 = vmatprep.subr.bf16.mxu0 0
        %3738 = vmatpush1.bf16.msra.mxu0 0
        %3739 = vmatprep.subr.bf16.mxu0 0
        %3740 = vmatpush1.bf16.msra.mxu0 0
        %3741 = vmatprep.subr.bf16.mxu0 0
        %3742 = vmatpush1.bf16.msra.mxu0 0
        %3743 = vmatprep.subr.bf16.mxu0 0
        %3744 = vmatpush1.bf16.msra.mxu0 0
        %3745 = vmatprep.subr.bf16.mxu0 0
        %3746 = vmatpush1.bf16.msra.mxu0 0
        %3747 = vmatprep.subr.bf16.mxu0 0
        %3748 = vmatpush1.bf16.msra.mxu0 0
        %3749 = vmatprep.mubr.bf16.mxu0 0
        %3750 = vmatmul.mubr.bf16.gmra.mrb[0].mxu0 %v3712
        %v3751 = vpop.f32.mrb[0].mxu0
        %v3752 = vadd.f32 0.0, %v3751
        %v3753 = vpop.f32.mrb[0].mxu0
        %v3754 = vpop.f32.mrb[0].mxu0
        %v3755 = vadd.f32 0.0, %v3754
        %v3756 = vpop.f32.mrb[0].mxu0
        %3757 = vmatprep.mubr.bf16.mxu0 0
        %3758 = vmatmul.mubr.bf16.gmra.mrb[0].mxu0 %v3715
        %v3759 = vpop.f32.mrb[0].mxu0
        %v3760 = vadd.f32 0.0, %v3759
        %v3761 = vpop.f32.mrb[0].mxu0
        %v3762 = vpop.f32.mrb[0].mxu0
        %v3763 = vadd.f32 0.0, %v3762
        %v3764 = vpop.f32.mrb[0].mxu0
        %3765 = vdwg.mxu0
        %v3767 = vsel %vm2428, %v3599, 0
        %v3770 = vsel %vm2428, %v3600, 0
        %3772 = vmatprep.subr.bf16.mxu0 0
        %3773 = vmatpush1.bf16.msra.mxu0 %v2863
        %3774 = vmatprep.subr.bf16.mxu0 0
        %3775 = vmatpush1.bf16.msra.mxu0 %v2864
        %3776 = vmatprep.subr.bf16.mxu0 0
        %3777 = vmatpush1.bf16.msra.mxu0 0
        %3778 = vmatprep.subr.bf16.mxu0 0
        %3779 = vmatpush1.bf16.msra.mxu0 0
        %3780 = vmatprep.subr.bf16.mxu0 0
        %3781 = vmatpush1.bf16.msra.mxu0 0
        %3782 = vmatprep.subr.bf16.mxu0 0
        %3783 = vmatpush1.bf16.msra.mxu0 0
        %3784 = vmatprep.subr.bf16.mxu0 0
        %3785 = vmatpush1.bf16.msra.mxu0 0
        %3786 = vmatprep.subr.bf16.mxu0 0
        %3787 = vmatpush1.bf16.msra.mxu0 0
        %3788 = vmatprep.subr.bf16.mxu0 0
        %3789 = vmatpush1.bf16.msra.mxu0 0
        %3790 = vmatprep.subr.bf16.mxu0 0
        %3791 = vmatpush1.bf16.msra.mxu0 0
        %3792 = vmatprep.subr.bf16.mxu0 0
        %3793 = vmatpush1.bf16.msra.mxu0 0
        %3794 = vmatprep.subr.bf16.mxu0 0
        %3795 = vmatpush1.bf16.msra.mxu0 0
        %3796 = vmatprep.subr.bf16.mxu0 0
        %3797 = vmatpush1.bf16.msra.mxu0 0
        %3798 = vmatprep.subr.bf16.mxu0 0
        %3799 = vmatpush1.bf16.msra.mxu0 0
        %3800 = vmatprep.subr.bf16.mxu0 0
        %3801 = vmatpush1.bf16.msra.mxu0 0
        %3802 = vmatprep.subr.bf16.mxu0 0
        %3803 = vmatpush1.bf16.msra.mxu0 0
        %3804 = vmatprep.mubr.bf16.mxu0 0
        %3805 = vmatmul.mubr.bf16.gmra.mrb[0].mxu0 %v3767
        %v3806 = vpop.f32.mrb[0].mxu0
        %v3807 = vadd.f32 0.0, %v3806
        %v3808 = vpop.f32.mrb[0].mxu0
        %v3809 = vpop.f32.mrb[0].mxu0
        %v3810 = vadd.f32 0.0, %v3809
        %v3811 = vpop.f32.mrb[0].mxu0
        %3812 = vmatprep.mubr.bf16.mxu0 0
        %3813 = vmatmul.mubr.bf16.gmra.mrb[0].mxu0 %v3770
        %v3814 = vpop.f32.mrb[0].mxu0
        %v3815 = vadd.f32 0.0, %v3814
        %v3816 = vpop.f32.mrb[0].mxu0
        %v3817 = vpop.f32.mrb[0].mxu0
        %v3818 = vadd.f32 0.0, %v3817
        %v3819 = vpop.f32.mrb[0].mxu0
        %3820 = vdwg.mxu0
        %v3821 = vpack.c.bf16 %v2657, %v2654
        %v3822 = vpack.c.bf16 %v3645, %v3642
        %v3823 = vpack.c.bf16 %v2665, %v2662
        %v3824 = vpack.c.bf16 %v3653, %v3650
        %v3825 = vpack.c.bf16 %v2712, %v2709
        %v3826 = vpack.c.bf16 %v3700, %v3697
        %v3827 = vpack.c.bf16 %v2720, %v2717
        %v3828 = vpack.c.bf16 %v3708, %v3705
        %v3829 = vpack.c.bf16 %v2767, %v2764
        %v3830 = vpack.c.bf16 %v3755, %v3752
        %v3831 = vpack.c.bf16 %v2775, %v2772
        %v3832 = vpack.c.bf16 %v3763, %v3760
        %v3833 = vpack.c.bf16 %v2822, %v2819
        %v3834 = vpack.c.bf16 %v3810, %v3807
        %v3835 = vpack.c.bf16 %v2830, %v2827
        %v3836 = vpack.c.bf16 %v3818, %v3815
        %v3837 = vld [vmem:[#allocation8] sm:$0xff]
        %v3838 = vld [vmem:[#allocation8 + $0x8] sm:$0xff]
        %v3839 = vld [vmem:[#allocation8 + $0x10] sm:$0xff]
        %v3840 = vld [vmem:[#allocation8 + $0x18] sm:$0xff]
        %v3841 = vld [vmem:[#allocation8 + $0x20] sm:$0xff]
        %v3842 = vld [vmem:[#allocation8 + $0x28] sm:$0xff]
        %v3843 = vld [vmem:[#allocation8 + $0x30] sm:$0xff]
        %v3844 = vld [vmem:[#allocation8 + $0x38] sm:$0xff]
        %v3845 = vld [vmem:[#allocation8 + $0x40] sm:$0xff]
        %v3846 = vld [vmem:[#allocation8 + $0x48] sm:$0xff]
        %v3847 = vld [vmem:[#allocation8 + $0x50] sm:$0xff]
        %v3848 = vld [vmem:[#allocation8 + $0x58] sm:$0xff]
        %v3849 = vld [vmem:[#allocation8 + $0x60] sm:$0xff]
        %v3850 = vld [vmem:[#allocation8 + $0x68] sm:$0xff]
        %v3851 = vld [vmem:[#allocation8 + $0x70] sm:$0xff]
        %v3852 = vld [vmem:[#allocation8 + $0x78] sm:$0xff]
        %v3853 = vld [vmem:[#allocation8 + $0x80] sm:$0xff]
        %v3854 = vld [vmem:[#allocation8 + $0x88] sm:$0xff]
        %v3855 = vld [vmem:[#allocation8 + $0x90] sm:$0xff]
        %v3856 = vld [vmem:[#allocation8 + $0x98] sm:$0xff]
        %v3857 = vld [vmem:[#allocation8 + $0xa0] sm:$0xff]
        %v3858 = vld [vmem:[#allocation8 + $0xa8] sm:$0xff]
        %v3859 = vld [vmem:[#allocation8 + $0xb0] sm:$0xff]
        %v3860 = vld [vmem:[#allocation8 + $0xb8] sm:$0xff]
        %v3861 = vld [vmem:[#allocation8 + $0xc0] sm:$0xff]
        %v3862 = vld [vmem:[#allocation8 + $0xc8] sm:$0xff]
        %v3863 = vld [vmem:[#allocation8 + $0xd0] sm:$0xff]
        %v3864 = vld [vmem:[#allocation8 + $0xd8] sm:$0xff]
        %v3865 = vld [vmem:[#allocation8 + $0xe0] sm:$0xff]
        %v3866 = vld [vmem:[#allocation8 + $0xe8] sm:$0xff]
        %v3867 = vld [vmem:[#allocation8 + $0xf0] sm:$0xff]
        %v3868 = vld [vmem:[#allocation8 + $0xf8] sm:$0xff]
        %v3869 = vld [vmem:[%s4] sm:$0x3]
        %v3871 = vlaneseq
        %v3872 = vshrl.u32 %v3871, 7
        %v3873 = vsub.s32 0, %v3872
        %v3874 = vrot.slane %v3869, %v3873
        %v3875 = vlaneseq
        %v3876 = vshrl.u32 %v3875, 7
        %v3877 = vsub.s32 1, %v3876
        %v3878 = vrot.slane %v3869, %v3877
        %v3913 = vunpack.c.l.b16 %v3837
        %v3914 = vunpack.c.h.b16 %v3837
        %v3915 = vunpack.c.l.b16 %v3838
        %v3916 = vunpack.c.h.b16 %v3838
        %v3917 = vunpack.c.l.b16 %v3839
        %v3918 = vunpack.c.h.b16 %v3839
        %v3919 = vunpack.c.l.b16 %v3840
        %v3920 = vunpack.c.h.b16 %v3840
        %v3921 = vunpack.c.l.b16 %v3841
        %v3922 = vunpack.c.h.b16 %v3841
        %v3923 = vunpack.c.l.b16 %v3842
        %v3924 = vunpack.c.h.b16 %v3842
        %v3925 = vunpack.c.l.b16 %v3843
        %v3926 = vunpack.c.h.b16 %v3843
        %v3927 = vunpack.c.l.b16 %v3844
        %v3928 = vunpack.c.h.b16 %v3844
        %v3929 = vunpack.c.l.b16 %v3845
        %v3930 = vunpack.c.h.b16 %v3845
        %v3931 = vunpack.c.l.b16 %v3846
        %v3932 = vunpack.c.h.b16 %v3846
        %v3933 = vunpack.c.l.b16 %v3847
        %v3934 = vunpack.c.h.b16 %v3847
        %v3935 = vunpack.c.l.b16 %v3848
        %v3936 = vunpack.c.h.b16 %v3848
        %v3937 = vunpack.c.l.b16 %v3849
        %v3938 = vunpack.c.h.b16 %v3849
        %v3939 = vunpack.c.l.b16 %v3850
        %v3940 = vunpack.c.h.b16 %v3850
        %v3941 = vunpack.c.l.b16 %v3851
        %v3942 = vunpack.c.h.b16 %v3851
        %v3943 = vunpack.c.l.b16 %v3852
        %v3944 = vunpack.c.h.b16 %v3852
        %v3945 = vunpack.c.l.b16 %v3853
        %v3946 = vunpack.c.h.b16 %v3853
        %v3947 = vunpack.c.l.b16 %v3854
        %v3948 = vunpack.c.h.b16 %v3854
        %v3949 = vunpack.c.l.b16 %v3855
        %v3950 = vunpack.c.h.b16 %v3855
        %v3951 = vunpack.c.l.b16 %v3856
        %v3952 = vunpack.c.h.b16 %v3856
        %v3953 = vunpack.c.l.b16 %v3857
        %v3954 = vunpack.c.h.b16 %v3857
        %v3955 = vunpack.c.l.b16 %v3858
        %v3956 = vunpack.c.h.b16 %v3858
        %v3957 = vunpack.c.l.b16 %v3859
        %v3958 = vunpack.c.h.b16 %v3859
        %v3959 = vunpack.c.l.b16 %v3860
        %v3960 = vunpack.c.h.b16 %v3860
        %v3961 = vunpack.c.l.b16 %v3861
        %v3962 = vunpack.c.h.b16 %v3861
        %v3963 = vunpack.c.l.b16 %v3862
        %v3964 = vunpack.c.h.b16 %v3862
        %v3965 = vunpack.c.l.b16 %v3863
        %v3966 = vunpack.c.h.b16 %v3863
        %v3967 = vunpack.c.l.b16 %v3864
        %v3968 = vunpack.c.h.b16 %v3864
        %v3969 = vunpack.c.l.b16 %v3865
        %v3970 = vunpack.c.h.b16 %v3865
        %v3971 = vunpack.c.l.b16 %v3866
        %v3972 = vunpack.c.h.b16 %v3866
        %v3973 = vunpack.c.l.b16 %v3867
        %v3974 = vunpack.c.h.b16 %v3867
        %v3975 = vunpack.c.l.b16 %v3868
        %v3976 = vunpack.c.h.b16 %v3868
        %v3977 = vpack.c.b16 %v3915, %v3913
        %v3978 = vpack.c.b16 %v3916, %v3914
        %v3979 = vpack.c.b16 %v3919, %v3917
        %v3980 = vpack.c.b16 %v3920, %v3918
        %v3981 = vpack.c.b16 %v3923, %v3921
        %v3982 = vpack.c.b16 %v3924, %v3922
        %v3983 = vpack.c.b16 %v3927, %v3925
        %v3984 = vpack.c.b16 %v3928, %v3926
        %v3985 = vpack.c.b16 %v3931, %v3929
        %v3986 = vpack.c.b16 %v3932, %v3930
        %v3987 = vpack.c.b16 %v3935, %v3933
        %v3988 = vpack.c.b16 %v3936, %v3934
        %v3989 = vpack.c.b16 %v3939, %v3937
        %v3990 = vpack.c.b16 %v3940, %v3938
        %v3991 = vpack.c.b16 %v3943, %v3941
        %v3992 = vpack.c.b16 %v3944, %v3942
        %v3993 = vpack.c.b16 %v3947, %v3945
        %v3994 = vpack.c.b16 %v3948, %v3946
        %v3995 = vpack.c.b16 %v3951, %v3949
        %v3996 = vpack.c.b16 %v3952, %v3950
        %v3997 = vpack.c.b16 %v3955, %v3953
        %v3998 = vpack.c.b16 %v3956, %v3954
        %v3999 = vpack.c.b16 %v3959, %v3957
        %v4000 = vpack.c.b16 %v3960, %v3958
        %v4001 = vpack.c.b16 %v3963, %v3961
        %v4002 = vpack.c.b16 %v3964, %v3962
        %v4003 = vpack.c.b16 %v3967, %v3965
        %v4004 = vpack.c.b16 %v3968, %v3966
        %v4005 = vpack.c.b16 %v3971, %v3969
        %v4006 = vpack.c.b16 %v3972, %v3970
        %v4007 = vpack.c.b16 %v3975, %v3973
        %v4008 = vpack.c.b16 %v3976, %v3974
        %4041 = vmatprep.subr.bf16.mxu0 %v3978
        %4042 = vmatpush1.bf16.msra.mxu0 %v3977
        %4043 = vmatprep.subr.bf16.mxu0 %v3980
        %4044 = vmatpush1.bf16.msra.mxu0 %v3979
        %4045 = vmatprep.subr.bf16.mxu0 %v3982
        %4046 = vmatpush1.bf16.msra.mxu0 %v3981
        %4047 = vmatprep.subr.bf16.mxu0 %v3984
        %4048 = vmatpush1.bf16.msra.mxu0 %v3983
        %4049 = vmatprep.subr.bf16.mxu0 %v3986
        %4050 = vmatpush1.bf16.msra.mxu0 %v3985
        %4051 = vmatprep.subr.bf16.mxu0 %v3988
        %4052 = vmatpush1.bf16.msra.mxu0 %v3987
        %4053 = vmatprep.subr.bf16.mxu0 %v3990
        %4054 = vmatpush1.bf16.msra.mxu0 %v3989
        %4055 = vmatprep.subr.bf16.mxu0 %v3992
        %4056 = vmatpush1.bf16.msra.mxu0 %v3991
        %4057 = vmatprep.subr.bf16.mxu0 %v3994
        %4058 = vmatpush1.bf16.msra.mxu0 %v3993
        %4059 = vmatprep.subr.bf16.mxu0 %v3996
        %4060 = vmatpush1.bf16.msra.mxu0 %v3995
        %4061 = vmatprep.subr.bf16.mxu0 %v3998
        %4062 = vmatpush1.bf16.msra.mxu0 %v3997
        %4063 = vmatprep.subr.bf16.mxu0 %v4000
        %4064 = vmatpush1.bf16.msra.mxu0 %v3999
        %4065 = vmatprep.subr.bf16.mxu0 %v4002
        %4066 = vmatpush1.bf16.msra.mxu0 %v4001
        %4067 = vmatprep.subr.bf16.mxu0 %v4004
        %4068 = vmatpush1.bf16.msra.mxu0 %v4003
        %4069 = vmatprep.subr.bf16.mxu0 %v4006
        %4070 = vmatpush1.bf16.msra.mxu0 %v4005
        %4071 = vmatprep.subr.bf16.mxu0 %v4008
        %4072 = vmatpush1.bf16.msra.mxu0 %v4007
        %4073 = vmatprep.mubr.bf16.mxu0 %v3822
        %4074 = vmatmul.mubr.bf16.gmra.mrb[0].mxu0 %v3821
        %v4075 = vpop.f32.mrb[0].mxu0
        %v4076 = vadd.f32 %v3874, %v4075
        %v4077 = vpop.f32.mrb[0].mxu0
        %v4078 = vadd.f32 %v3878, %v4077
        %v4079 = vpop.f32.mrb[0].mxu0
        %v4080 = vadd.f32 %v3874, %v4079
        %v4081 = vpop.f32.mrb[0].mxu0
        %v4082 = vadd.f32 %v3878, %v4081
        %4083 = vmatprep.mubr.bf16.mxu0 %v3824
        %4084 = vmatmul.mubr.bf16.gmra.mrb[0].mxu0 %v3823
        %v4085 = vpop.f32.mrb[0].mxu0
        %v4086 = vadd.f32 %v3874, %v4085
        %v4087 = vpop.f32.mrb[0].mxu0
        %v4088 = vadd.f32 %v3878, %v4087
        %v4089 = vpop.f32.mrb[0].mxu0
        %v4090 = vadd.f32 %v3874, %v4089
        %v4091 = vpop.f32.mrb[0].mxu0
        %v4092 = vadd.f32 %v3878, %v4091
        %4093 = vmatprep.mubr.bf16.mxu0 %v3826
        %4094 = vmatmul.mubr.bf16.gmra.mrb[0].mxu0 %v3825
        %v4095 = vpop.f32.mrb[0].mxu0
        %v4096 = vadd.f32 %v3874, %v4095
        %v4097 = vpop.f32.mrb[0].mxu0
        %v4098 = vadd.f32 %v3878, %v4097
        %v4099 = vpop.f32.mrb[0].mxu0
        %v4100 = vadd.f32 %v3874, %v4099
        %v4101 = vpop.f32.mrb[0].mxu0
        %v4102 = vadd.f32 %v3878, %v4101
        %4103 = vmatprep.mubr.bf16.mxu0 %v3828
        %4104 = vmatmul.mubr.bf16.gmra.mrb[0].mxu0 %v3827
        %v4105 = vpop.f32.mrb[0].mxu0
        %v4106 = vadd.f32 %v3874, %v4105
        %v4107 = vpop.f32.mrb[0].mxu0
        %v4108 = vadd.f32 %v3878, %v4107
        %v4109 = vpop.f32.mrb[0].mxu0
        %v4110 = vadd.f32 %v3874, %v4109
        %v4111 = vpop.f32.mrb[0].mxu0
        %v4112 = vadd.f32 %v3878, %v4111
        %4113 = vmatprep.mubr.bf16.mxu0 %v3830
        %4114 = vmatmul.mubr.bf16.gmra.mrb[0].mxu0 %v3829
        %v4115 = vpop.f32.mrb[0].mxu0
        %v4116 = vadd.f32 %v3874, %v4115
        %v4117 = vpop.f32.mrb[0].mxu0
        %v4118 = vadd.f32 %v3878, %v4117
        %v4119 = vpop.f32.mrb[0].mxu0
        %v4120 = vadd.f32 %v3874, %v4119
        %v4121 = vpop.f32.mrb[0].mxu0
        %v4122 = vadd.f32 %v3878, %v4121
        %4123 = vmatprep.mubr.bf16.mxu0 %v3832
        %4124 = vmatmul.mubr.bf16.gmra.mrb[0].mxu0 %v3831
        %v4125 = vpop.f32.mrb[0].mxu0
        %v4126 = vadd.f32 %v3874, %v4125
        %v4127 = vpop.f32.mrb[0].mxu0
        %v4128 = vadd.f32 %v3878, %v4127
        %v4129 = vpop.f32.mrb[0].mxu0
        %v4130 = vadd.f32 %v3874, %v4129
        %v4131 = vpop.f32.mrb[0].mxu0
        %v4132 = vadd.f32 %v3878, %v4131
        %4133 = vmatprep.mubr.bf16.mxu0 %v3834
        %4134 = vmatmul.mubr.bf16.gmra.mrb[0].mxu0 %v3833
        %v4135 = vpop.f32.mrb[0].mxu0
        %v4136 = vadd.f32 %v3874, %v4135
        %v4137 = vpop.f32.mrb[0].mxu0
        %v4138 = vadd.f32 %v3878, %v4137
        %v4139 = vpop.f32.mrb[0].mxu0
        %v4140 = vadd.f32 %v3874, %v4139
        %v4141 = vpop.f32.mrb[0].mxu0
        %v4142 = vadd.f32 %v3878, %v4141
        %4143 = vmatprep.mubr.bf16.mxu0 %v3836
        %4144 = vmatmul.mubr.bf16.gmra.mrb[0].mxu0 %v3835
        %v4145 = vpop.f32.mrb[0].mxu0
        %v4146 = vadd.f32 %v3874, %v4145
        %v4147 = vpop.f32.mrb[0].mxu0
        %v4148 = vadd.f32 %v3878, %v4147
        %v4149 = vpop.f32.mrb[0].mxu0
        %v4150 = vadd.f32 %v3874, %v4149
        %v4151 = vpop.f32.mrb[0].mxu0
        %v4152 = vadd.f32 %v3878, %v4151
        %4153 = vdwg.mxu0
        %v4154 = vadd.f32 %v534, %v4076
        %v4155 = vadd.f32 %v535, %v4078
        %v4156 = vadd.f32 %v536, %v4080
        %v4157 = vadd.f32 %v537, %v4082
        %v4158 = vadd.f32 %v538, %v4086
        %v4159 = vadd.f32 %v539, %v4088
        %v4160 = vadd.f32 %v540, %v4090
        %v4161 = vadd.f32 %v541, %v4092
        %v4162 = vadd.f32 %v542, %v4096
        %v4163 = vadd.f32 %v543, %v4098
        %v4164 = vadd.f32 %v544, %v4100
        %v4165 = vadd.f32 %v545, %v4102
        %v4166 = vadd.f32 %v546, %v4106
        %v4167 = vadd.f32 %v547, %v4108
        %v4168 = vadd.f32 %v548, %v4110
        %v4169 = vadd.f32 %v549, %v4112
        %v4170 = vadd.f32 %v550, %v4116
        %v4171 = vadd.f32 %v551, %v4118
        %v4172 = vadd.f32 %v552, %v4120
        %v4173 = vadd.f32 %v553, %v4122
        %v4174 = vadd.f32 %v554, %v4126
        %v4175 = vadd.f32 %v555, %v4128
        %v4176 = vadd.f32 %v556, %v4130
        %v4177 = vadd.f32 %v557, %v4132
        %v4178 = vadd.f32 %v558, %v4136
        %v4179 = vadd.f32 %v559, %v4138
        %v4180 = vadd.f32 %v560, %v4140
        %v4181 = vadd.f32 %v561, %v4142
        %v4182 = vadd.f32 %v562, %v4146
        %v4183 = vadd.f32 %v563, %v4148
        %v4184 = vadd.f32 %v564, %v4150
        %v4185 = vadd.f32 %v565, %v4152
        %v4186 = vld [vmem:[%s9] sm:$0xf]
        %v4187 = vld [vmem:[%s10] sm:$0x3]
        %4188 = vadd.xlane.f32.xlu0 %v4154
        %v4189 = vpop.xlane.xlu0 %4188
        %4190 = vadd.xlane.f32.xlu0 %v4156
        %v4191 = vpop.xlane.xlu0 %4190
        %4192 = vadd.xlane.f32.xlu0 %v4158
        %v4193 = vpop.xlane.xlu0 %4192
        %4194 = vadd.xlane.f32.xlu0 %v4160
        %v4195 = vpop.xlane.xlu0 %4194
        %4196 = vadd.xlane.f32.xlu0 %v4162
        %v4197 = vpop.xlane.xlu0 %4196
        %4198 = vadd.xlane.f32.xlu0 %v4164
        %v4199 = vpop.xlane.xlu0 %4198
        %4200 = vadd.xlane.f32.xlu0 %v4166
        %v4201 = vpop.xlane.xlu0 %4200
        %4202 = vadd.xlane.f32.xlu0 %v4168
        %v4203 = vpop.xlane.xlu0 %4202
        %4204 = vadd.xlane.f32.xlu0 %v4170
        %v4205 = vpop.xlane.xlu0 %4204
        %4206 = vadd.xlane.f32.xlu0 %v4172
        %v4207 = vpop.xlane.xlu0 %4206
        %4208 = vadd.xlane.f32.xlu0 %v4174
        %v4209 = vpop.xlane.xlu0 %4208
        %4210 = vadd.xlane.f32.xlu0 %v4176
        %v4211 = vpop.xlane.xlu0 %4210
        %4212 = vadd.xlane.f32.xlu0 %v4178
        %v4213 = vpop.xlane.xlu0 %4212
        %4214 = vadd.xlane.f32.xlu0 %v4180
        %v4215 = vpop.xlane.xlu0 %4214
        %4216 = vadd.xlane.f32.xlu0 %v4182
        %v4217 = vpop.xlane.xlu0 %4216
        %4218 = vadd.xlane.f32.xlu0 %v4184
        %v4219 = vpop.xlane.xlu0 %4218
        %v4220 = vrcp.pop 128.0
        %v4221 = vmul.f32 %v4189, %v4220
        %v4222 = vmul.f32 %v4191, %v4220
        %v4223 = vmul.f32 %v4193, %v4220
        %v4224 = vmul.f32 %v4195, %v4220
        %v4225 = vmul.f32 %v4197, %v4220
        %v4226 = vmul.f32 %v4199, %v4220
        %v4227 = vmul.f32 %v4201, %v4220
        %v4228 = vmul.f32 %v4203, %v4220
        %v4229 = vmul.f32 %v4205, %v4220
        %v4230 = vmul.f32 %v4207, %v4220
        %v4231 = vmul.f32 %v4209, %v4220
        %v4232 = vmul.f32 %v4211, %v4220
        %v4233 = vmul.f32 %v4213, %v4220
        %v4234 = vmul.f32 %v4215, %v4220
        %v4235 = vmul.f32 %v4217, %v4220
        %v4236 = vmul.f32 %v4219, %v4220
        %4237 = vadd.xlane.f32.xlu0 %v4155
        %v4238 = vpop.xlane.xlu0 %4237
        %4239 = vadd.xlane.f32.xlu0 %v4157
        %v4240 = vpop.xlane.xlu0 %4239
        %4241 = vadd.xlane.f32.xlu0 %v4159
        %v4242 = vpop.xlane.xlu0 %4241
        %4243 = vadd.xlane.f32.xlu0 %v4161
        %v4244 = vpop.xlane.xlu0 %4243
        %4245 = vadd.xlane.f32.xlu0 %v4163
        %v4246 = vpop.xlane.xlu0 %4245
        %4247 = vadd.xlane.f32.xlu0 %v4165
        %v4248 = vpop.xlane.xlu0 %4247
        %4249 = vadd.xlane.f32.xlu0 %v4167
        %v4250 = vpop.xlane.xlu0 %4249
        %4251 = vadd.xlane.f32.xlu0 %v4169
        %v4252 = vpop.xlane.xlu0 %4251
        %4253 = vadd.xlane.f32.xlu0 %v4171
        %v4254 = vpop.xlane.xlu0 %4253
        %4255 = vadd.xlane.f32.xlu0 %v4173
        %v4256 = vpop.xlane.xlu0 %4255
        %4257 = vadd.xlane.f32.xlu0 %v4175
        %v4258 = vpop.xlane.xlu0 %4257
        %4259 = vadd.xlane.f32.xlu0 %v4177
        %v4260 = vpop.xlane.xlu0 %4259
        %4261 = vadd.xlane.f32.xlu0 %v4179
        %v4262 = vpop.xlane.xlu0 %4261
        %4263 = vadd.xlane.f32.xlu0 %v4181
        %v4264 = vpop.xlane.xlu0 %4263
        %4265 = vadd.xlane.f32.xlu0 %v4183
        %v4266 = vpop.xlane.xlu0 %4265
        %4267 = vadd.xlane.f32.xlu0 %v4185
        %v4268 = vpop.xlane.xlu0 %4267
        %v4269 = vmul.f32 %v4238, %v4220
        %v4270 = vmul.f32 %v4240, %v4220
        %v4271 = vmul.f32 %v4242, %v4220
        %v4272 = vmul.f32 %v4244, %v4220
        %v4273 = vmul.f32 %v4246, %v4220
        %v4274 = vmul.f32 %v4248, %v4220
        %v4275 = vmul.f32 %v4250, %v4220
        %v4276 = vmul.f32 %v4252, %v4220
        %v4277 = vmul.f32 %v4254, %v4220
        %v4278 = vmul.f32 %v4256, %v4220
        %v4279 = vmul.f32 %v4258, %v4220
        %v4280 = vmul.f32 %v4260, %v4220
        %v4281 = vmul.f32 %v4262, %v4220
        %v4282 = vmul.f32 %v4264, %v4220
        %v4283 = vmul.f32 %v4266, %v4220
        %v4284 = vmul.f32 %v4268, %v4220
        %v4285 = vsub.f32 %v4154, %v4221
        %v4286 = vsub.f32 %v4156, %v4222
        %v4287 = vsub.f32 %v4158, %v4223
        %v4288 = vsub.f32 %v4160, %v4224
        %v4289 = vsub.f32 %v4162, %v4225
        %v4290 = vsub.f32 %v4164, %v4226
        %v4291 = vsub.f32 %v4166, %v4227
        %v4292 = vsub.f32 %v4168, %v4228
        %v4293 = vsub.f32 %v4170, %v4229
        %v4294 = vsub.f32 %v4172, %v4230
        %v4295 = vsub.f32 %v4174, %v4231
        %v4296 = vsub.f32 %v4176, %v4232
        %v4297 = vsub.f32 %v4178, %v4233
        %v4298 = vsub.f32 %v4180, %v4234
        %v4299 = vsub.f32 %v4182, %v4235
        %v4300 = vsub.f32 %v4184, %v4236
        %v4301 = vsub.f32 %v4155, %v4269
        %v4302 = vsub.f32 %v4157, %v4270
        %v4303 = vsub.f32 %v4159, %v4271
        %v4304 = vsub.f32 %v4161, %v4272
        %v4305 = vsub.f32 %v4163, %v4273
        %v4306 = vsub.f32 %v4165, %v4274
        %v4307 = vsub.f32 %v4167, %v4275
        %v4308 = vsub.f32 %v4169, %v4276
        %v4309 = vsub.f32 %v4171, %v4277
        %v4310 = vsub.f32 %v4173, %v4278
        %v4311 = vsub.f32 %v4175, %v4279
        %v4312 = vsub.f32 %v4177, %v4280
        %v4313 = vsub.f32 %v4179, %v4281
        %v4314 = vsub.f32 %v4181, %v4282
        %v4315 = vsub.f32 %v4183, %v4283
        %v4316 = vsub.f32 %v4185, %v4284
        %v4317 = vmul.f32 %v4285, %v4285
        %v4318 = vmul.f32 %v4286, %v4286
        %v4319 = vmul.f32 %v4287, %v4287
        %v4320 = vmul.f32 %v4288, %v4288
        %v4321 = vmul.f32 %v4289, %v4289
        %v4322 = vmul.f32 %v4290, %v4290
        %v4323 = vmul.f32 %v4291, %v4291
        %v4324 = vmul.f32 %v4292, %v4292
        %v4325 = vmul.f32 %v4293, %v4293
        %v4326 = vmul.f32 %v4294, %v4294
        %v4327 = vmul.f32 %v4295, %v4295
        %v4328 = vmul.f32 %v4296, %v4296
        %v4329 = vmul.f32 %v4297, %v4297
        %v4330 = vmul.f32 %v4298, %v4298
        %v4331 = vmul.f32 %v4299, %v4299
        %v4332 = vmul.f32 %v4300, %v4300
        %4333 = vadd.xlane.f32.xlu0 %v4317
        %v4334 = vpop.xlane.xlu0 %4333
        %4335 = vadd.xlane.f32.xlu0 %v4318
        %v4336 = vpop.xlane.xlu0 %4335
        %4337 = vadd.xlane.f32.xlu0 %v4319
        %v4338 = vpop.xlane.xlu0 %4337
        %4339 = vadd.xlane.f32.xlu0 %v4320
        %v4340 = vpop.xlane.xlu0 %4339
        %4341 = vadd.xlane.f32.xlu0 %v4321
        %v4342 = vpop.xlane.xlu0 %4341
        %4343 = vadd.xlane.f32.xlu0 %v4322
        %v4344 = vpop.xlane.xlu0 %4343
        %4345 = vadd.xlane.f32.xlu0 %v4323
        %v4346 = vpop.xlane.xlu0 %4345
        %4347 = vadd.xlane.f32.xlu0 %v4324
        %v4348 = vpop.xlane.xlu0 %4347
        %4349 = vadd.xlane.f32.xlu0 %v4325
        %v4350 = vpop.xlane.xlu0 %4349
        %4351 = vadd.xlane.f32.xlu0 %v4326
        %v4352 = vpop.xlane.xlu0 %4351
        %4353 = vadd.xlane.f32.xlu0 %v4327
        %v4354 = vpop.xlane.xlu0 %4353
        %4355 = vadd.xlane.f32.xlu0 %v4328
        %v4356 = vpop.xlane.xlu0 %4355
        %4357 = vadd.xlane.f32.xlu0 %v4329
        %v4358 = vpop.xlane.xlu0 %4357
        %4359 = vadd.xlane.f32.xlu0 %v4330
        %v4360 = vpop.xlane.xlu0 %4359
        %4361 = vadd.xlane.f32.xlu0 %v4331
        %v4362 = vpop.xlane.xlu0 %4361
        %4363 = vadd.xlane.f32.xlu0 %v4332
        %v4364 = vpop.xlane.xlu0 %4363
        %v4365 = vmul.f32 %v4334, %v4220
        %v4366 = vmul.f32 %v4336, %v4220
        %v4367 = vmul.f32 %v4338, %v4220
        %v4368 = vmul.f32 %v4340, %v4220
        %v4369 = vmul.f32 %v4342, %v4220
        %v4370 = vmul.f32 %v4344, %v4220
        %v4371 = vmul.f32 %v4346, %v4220
        %v4372 = vmul.f32 %v4348, %v4220
        %v4373 = vmul.f32 %v4350, %v4220
        %v4374 = vmul.f32 %v4352, %v4220
        %v4375 = vmul.f32 %v4354, %v4220
        %v4376 = vmul.f32 %v4356, %v4220
        %v4377 = vmul.f32 %v4358, %v4220
        %v4378 = vmul.f32 %v4360, %v4220
        %v4379 = vmul.f32 %v4362, %v4220
        %v4380 = vmul.f32 %v4364, %v4220
        %v4381 = vadd.f32 %v4365, 1e-05
        %v4382 = vadd.f32 %v4366, 1e-05
        %v4383 = vadd.f32 %v4367, 1e-05
        %v4384 = vadd.f32 %v4368, 1e-05
        %v4385 = vadd.f32 %v4369, 1e-05
        %v4386 = vadd.f32 %v4370, 1e-05
        %v4387 = vadd.f32 %v4371, 1e-05
        %v4388 = vadd.f32 %v4372, 1e-05
        %v4389 = vadd.f32 %v4373, 1e-05
        %v4390 = vadd.f32 %v4374, 1e-05
        %v4391 = vadd.f32 %v4375, 1e-05
        %v4392 = vadd.f32 %v4376, 1e-05
        %v4393 = vadd.f32 %v4377, 1e-05
        %v4394 = vadd.f32 %v4378, 1e-05
        %v4395 = vadd.f32 %v4379, 1e-05
        %v4396 = vadd.f32 %v4380, 1e-05
        %v4397 = vmul.f32 %v4301, %v4301
        %v4398 = vmul.f32 %v4302, %v4302
        %v4399 = vmul.f32 %v4303, %v4303
        %v4400 = vmul.f32 %v4304, %v4304
        %v4401 = vmul.f32 %v4305, %v4305
        %v4402 = vmul.f32 %v4306, %v4306
        %v4403 = vmul.f32 %v4307, %v4307
        %v4404 = vmul.f32 %v4308, %v4308
        %v4405 = vmul.f32 %v4309, %v4309
        %v4406 = vmul.f32 %v4310, %v4310
        %v4407 = vmul.f32 %v4311, %v4311
        %v4408 = vmul.f32 %v4312, %v4312
        %v4409 = vmul.f32 %v4313, %v4313
        %v4410 = vmul.f32 %v4314, %v4314
        %v4411 = vmul.f32 %v4315, %v4315
        %v4412 = vmul.f32 %v4316, %v4316
        %4413 = vadd.xlane.f32.xlu0 %v4397
        %v4414 = vpop.xlane.xlu0 %4413
        %4415 = vadd.xlane.f32.xlu0 %v4398
        %v4416 = vpop.xlane.xlu0 %4415
        %4417 = vadd.xlane.f32.xlu0 %v4399
        %v4418 = vpop.xlane.xlu0 %4417
        %4419 = vadd.xlane.f32.xlu0 %v4400
        %v4420 = vpop.xlane.xlu0 %4419
        %4421 = vadd.xlane.f32.xlu0 %v4401
        %v4422 = vpop.xlane.xlu0 %4421
        %4423 = vadd.xlane.f32.xlu0 %v4402
        %v4424 = vpop.xlane.xlu0 %4423
        %4425 = vadd.xlane.f32.xlu0 %v4403
        %v4426 = vpop.xlane.xlu0 %4425
        %4427 = vadd.xlane.f32.xlu0 %v4404
        %v4428 = vpop.xlane.xlu0 %4427
        %4429 = vadd.xlane.f32.xlu0 %v4405
        %v4430 = vpop.xlane.xlu0 %4429
        %4431 = vadd.xlane.f32.xlu0 %v4406
        %v4432 = vpop.xlane.xlu0 %4431
        %4433 = vadd.xlane.f32.xlu0 %v4407
        %v4434 = vpop.xlane.xlu0 %4433
        %4435 = vadd.xlane.f32.xlu0 %v4408
        %v4436 = vpop.xlane.xlu0 %4435
        %4437 = vadd.xlane.f32.xlu0 %v4409
        %v4438 = vpop.xlane.xlu0 %4437
        %4439 = vadd.xlane.f32.xlu0 %v4410
        %v4440 = vpop.xlane.xlu0 %4439
        %4441 = vadd.xlane.f32.xlu0 %v4411
        %v4442 = vpop.xlane.xlu0 %4441
        %4443 = vadd.xlane.f32.xlu0 %v4412
        %v4444 = vpop.xlane.xlu0 %4443
        %v4445 = vmul.f32 %v4414, %v4220
        %v4446 = vmul.f32 %v4416, %v4220
        %v4447 = vmul.f32 %v4418, %v4220
        %v4448 = vmul.f32 %v4420, %v4220
        %v4449 = vmul.f32 %v4422, %v4220
        %v4450 = vmul.f32 %v4424, %v4220
        %v4451 = vmul.f32 %v4426, %v4220
        %v4452 = vmul.f32 %v4428, %v4220
        %v4453 = vmul.f32 %v4430, %v4220
        %v4454 = vmul.f32 %v4432, %v4220
        %v4455 = vmul.f32 %v4434, %v4220
        %v4456 = vmul.f32 %v4436, %v4220
        %v4457 = vmul.f32 %v4438, %v4220
        %v4458 = vmul.f32 %v4440, %v4220
        %v4459 = vmul.f32 %v4442, %v4220
        %v4460 = vmul.f32 %v4444, %v4220
        %v4461 = vadd.f32 %v4445, 1e-05
        %v4462 = vadd.f32 %v4446, 1e-05
        %v4463 = vadd.f32 %v4447, 1e-05
        %v4464 = vadd.f32 %v4448, 1e-05
        %v4465 = vadd.f32 %v4449, 1e-05
        %v4466 = vadd.f32 %v4450, 1e-05
        %v4467 = vadd.f32 %v4451, 1e-05
        %v4468 = vadd.f32 %v4452, 1e-05
        %v4469 = vadd.f32 %v4453, 1e-05
        %v4470 = vadd.f32 %v4454, 1e-05
        %v4471 = vadd.f32 %v4455, 1e-05
        %v4472 = vadd.f32 %v4456, 1e-05
        %v4473 = vadd.f32 %v4457, 1e-05
        %v4474 = vadd.f32 %v4458, 1e-05
        %v4475 = vadd.f32 %v4459, 1e-05
        %v4476 = vadd.f32 %v4460, 1e-05
        %v4477 = vmul.f32 %v4285, %v4301
        %v4478 = vmul.f32 %v4286, %v4302
        %v4479 = vmul.f32 %v4287, %v4303
        %v4480 = vmul.f32 %v4288, %v4304
        %v4481 = vmul.f32 %v4289, %v4305
        %v4482 = vmul.f32 %v4290, %v4306
        %v4483 = vmul.f32 %v4291, %v4307
        %v4484 = vmul.f32 %v4292, %v4308
        %v4485 = vmul.f32 %v4293, %v4309
        %v4486 = vmul.f32 %v4294, %v4310
        %v4487 = vmul.f32 %v4295, %v4311
        %v4488 = vmul.f32 %v4296, %v4312
        %v4489 = vmul.f32 %v4297, %v4313
        %v4490 = vmul.f32 %v4298, %v4314
        %v4491 = vmul.f32 %v4299, %v4315
        %v4492 = vmul.f32 %v4300, %v4316
        %4493 = vadd.xlane.f32.xlu0 %v4477
        %v4494 = vpop.xlane.xlu0 %4493
        %4495 = vadd.xlane.f32.xlu0 %v4478
        %v4496 = vpop.xlane.xlu0 %4495
        %4497 = vadd.xlane.f32.xlu0 %v4479
        %v4498 = vpop.xlane.xlu0 %4497
        %4499 = vadd.xlane.f32.xlu0 %v4480
        %v4500 = vpop.xlane.xlu0 %4499
        %4501 = vadd.xlane.f32.xlu0 %v4481
        %v4502 = vpop.xlane.xlu0 %4501
        %4503 = vadd.xlane.f32.xlu0 %v4482
        %v4504 = vpop.xlane.xlu0 %4503
        %4505 = vadd.xlane.f32.xlu0 %v4483
        %v4506 = vpop.xlane.xlu0 %4505
        %4507 = vadd.xlane.f32.xlu0 %v4484
        %v4508 = vpop.xlane.xlu0 %4507
        %4509 = vadd.xlane.f32.xlu0 %v4485
        %v4510 = vpop.xlane.xlu0 %4509
        %4511 = vadd.xlane.f32.xlu0 %v4486
        %v4512 = vpop.xlane.xlu0 %4511
        %4513 = vadd.xlane.f32.xlu0 %v4487
        %v4514 = vpop.xlane.xlu0 %4513
        %4515 = vadd.xlane.f32.xlu0 %v4488
        %v4516 = vpop.xlane.xlu0 %4515
        %4517 = vadd.xlane.f32.xlu0 %v4489
        %v4518 = vpop.xlane.xlu0 %4517
        %4519 = vadd.xlane.f32.xlu0 %v4490
        %v4520 = vpop.xlane.xlu0 %4519
        %4521 = vadd.xlane.f32.xlu0 %v4491
        %v4522 = vpop.xlane.xlu0 %4521
        %4523 = vadd.xlane.f32.xlu0 %v4492
        %v4524 = vpop.xlane.xlu0 %4523
        %v4525 = vmul.f32 %v4494, %v4220
        %v4526 = vmul.f32 %v4496, %v4220
        %v4527 = vmul.f32 %v4498, %v4220
        %v4528 = vmul.f32 %v4500, %v4220
        %v4529 = vmul.f32 %v4502, %v4220
        %v4530 = vmul.f32 %v4504, %v4220
        %v4531 = vmul.f32 %v4506, %v4220
        %v4532 = vmul.f32 %v4508, %v4220
        %v4533 = vmul.f32 %v4510, %v4220
        %v4534 = vmul.f32 %v4512, %v4220
        %v4535 = vmul.f32 %v4514, %v4220
        %v4536 = vmul.f32 %v4516, %v4220
        %v4537 = vmul.f32 %v4518, %v4220
        %v4538 = vmul.f32 %v4520, %v4220
        %v4539 = vmul.f32 %v4522, %v4220
        %v4540 = vmul.f32 %v4524, %v4220
        %v4541 = vmul.f32 %v4381, %v4461
        %v4542 = vmul.f32 %v4382, %v4462
        %v4543 = vmul.f32 %v4383, %v4463
        %v4544 = vmul.f32 %v4384, %v4464
        %v4545 = vmul.f32 %v4385, %v4465
        %v4546 = vmul.f32 %v4386, %v4466
        %v4547 = vmul.f32 %v4387, %v4467
        %v4548 = vmul.f32 %v4388, %v4468
        %v4549 = vmul.f32 %v4389, %v4469
        %v4550 = vmul.f32 %v4390, %v4470
        %v4551 = vmul.f32 %v4391, %v4471
        %v4552 = vmul.f32 %v4392, %v4472
        %v4553 = vmul.f32 %v4393, %v4473
        %v4554 = vmul.f32 %v4394, %v4474
        %v4555 = vmul.f32 %v4395, %v4475
        %v4556 = vmul.f32 %v4396, %v4476
        %v4557 = vmul.f32 %v4525, %v4525
        %v4558 = vmul.f32 %v4526, %v4526
        %v4559 = vmul.f32 %v4527, %v4527
        %v4560 = vmul.f32 %v4528, %v4528
        %v4561 = vmul.f32 %v4529, %v4529
        %v4562 = vmul.f32 %v4530, %v4530
        %v4563 = vmul.f32 %v4531, %v4531
        %v4564 = vmul.f32 %v4532, %v4532
        %v4565 = vmul.f32 %v4533, %v4533
        %v4566 = vmul.f32 %v4534, %v4534
        %v4567 = vmul.f32 %v4535, %v4535
        %v4568 = vmul.f32 %v4536, %v4536
        %v4569 = vmul.f32 %v4537, %v4537
        %v4570 = vmul.f32 %v4538, %v4538
        %v4571 = vmul.f32 %v4539, %v4539
        %v4572 = vmul.f32 %v4540, %v4540
        %v4573 = vsub.f32 %v4541, %v4557
        %v4574 = vsub.f32 %v4542, %v4558
        %v4575 = vsub.f32 %v4543, %v4559
        %v4576 = vsub.f32 %v4544, %v4560
        %v4577 = vsub.f32 %v4545, %v4561
        %v4578 = vsub.f32 %v4546, %v4562
        %v4579 = vsub.f32 %v4547, %v4563
        %v4580 = vsub.f32 %v4548, %v4564
        %v4581 = vsub.f32 %v4549, %v4565
        %v4582 = vsub.f32 %v4550, %v4566
        %v4583 = vsub.f32 %v4551, %v4567
        %v4584 = vsub.f32 %v4552, %v4568
        %v4585 = vsub.f32 %v4553, %v4569
        %v4586 = vsub.f32 %v4554, %v4570
        %v4587 = vsub.f32 %v4555, %v4571
        %v4588 = vsub.f32 %v4556, %v4572
        %v4589 = vmax.f32 %v4573, 1e-10
        %v4590 = vmax.f32 %v4574, 1e-10
        %v4591 = vmax.f32 %v4575, 1e-10
        %v4592 = vmax.f32 %v4576, 1e-10
        %v4593 = vmax.f32 %v4577, 1e-10
        %v4594 = vmax.f32 %v4578, 1e-10
        %v4595 = vmax.f32 %v4579, 1e-10
        %v4596 = vmax.f32 %v4580, 1e-10
        %v4597 = vmax.f32 %v4581, 1e-10
        %v4598 = vmax.f32 %v4582, 1e-10
        %v4599 = vmax.f32 %v4583, 1e-10
        %v4600 = vmax.f32 %v4584, 1e-10
        %v4601 = vmax.f32 %v4585, 1e-10
        %v4602 = vmax.f32 %v4586, 1e-10
        %v4603 = vmax.f32 %v4587, 1e-10
        %v4604 = vmax.f32 %v4588, 1e-10
        %v4605 = vrsqrt.pop %v4589
        %v4606 = vmul.f32 %v4589, %v4605
        %vm4607 = vcmp.eq.f32.partialorder %v4589, inf
        %v4608 = vsel %vm4607, %v4589, %v4606
        %vm4609 = vcmp.eq.f32.partialorder %v4589, 0.0
        %v4610 = vand.u32 %v4589, 2147483648
        %v4611 = vsel %vm4609, %v4610, %v4608
        %v4612 = vrsqrt.pop %v4590
        %v4613 = vmul.f32 %v4590, %v4612
        %vm4614 = vcmp.eq.f32.partialorder %v4590, inf
        %v4615 = vsel %vm4614, %v4590, %v4613
        %vm4616 = vcmp.eq.f32.partialorder %v4590, 0.0
        %v4617 = vand.u32 %v4590, 2147483648
        %v4618 = vsel %vm4616, %v4617, %v4615
        %v4619 = vrsqrt.pop %v4591
        %v4620 = vmul.f32 %v4591, %v4619
        %vm4621 = vcmp.eq.f32.partialorder %v4591, inf
        %v4622 = vsel %vm4621, %v4591, %v4620
        %vm4623 = vcmp.eq.f32.partialorder %v4591, 0.0
        %v4624 = vand.u32 %v4591, 2147483648
        %v4625 = vsel %vm4623, %v4624, %v4622
        %v4626 = vrsqrt.pop %v4592
        %v4627 = vmul.f32 %v4592, %v4626
        %vm4628 = vcmp.eq.f32.partialorder %v4592, inf
        %v4629 = vsel %vm4628, %v4592, %v4627
        %vm4630 = vcmp.eq.f32.partialorder %v4592, 0.0
        %v4631 = vand.u32 %v4592, 2147483648
        %v4632 = vsel %vm4630, %v4631, %v4629
        %v4633 = vrsqrt.pop %v4593
        %v4634 = vmul.f32 %v4593, %v4633
        %vm4635 = vcmp.eq.f32.partialorder %v4593, inf
        %v4636 = vsel %vm4635, %v4593, %v4634
        %vm4637 = vcmp.eq.f32.partialorder %v4593, 0.0
        %v4638 = vand.u32 %v4593, 2147483648
        %v4639 = vsel %vm4637, %v4638, %v4636
        %v4640 = vrsqrt.pop %v4594
        %v4641 = vmul.f32 %v4594, %v4640
        %vm4642 = vcmp.eq.f32.partialorder %v4594, inf
        %v4643 = vsel %vm4642, %v4594, %v4641
        %vm4644 = vcmp.eq.f32.partialorder %v4594, 0.0
        %v4645 = vand.u32 %v4594, 2147483648
        %v4646 = vsel %vm4644, %v4645, %v4643
        %v4647 = vrsqrt.pop %v4595
        %v4648 = vmul.f32 %v4595, %v4647
        %vm4649 = vcmp.eq.f32.partialorder %v4595, inf
        %v4650 = vsel %vm4649, %v4595, %v4648
        %vm4651 = vcmp.eq.f32.partialorder %v4595, 0.0
        %v4652 = vand.u32 %v4595, 2147483648
        %v4653 = vsel %vm4651, %v4652, %v4650
        %v4654 = vrsqrt.pop %v4596
        %v4655 = vmul.f32 %v4596, %v4654
        %vm4656 = vcmp.eq.f32.partialorder %v4596, inf
        %v4657 = vsel %vm4656, %v4596, %v4655
        %vm4658 = vcmp.eq.f32.partialorder %v4596, 0.0
        %v4659 = vand.u32 %v4596, 2147483648
        %v4660 = vsel %vm4658, %v4659, %v4657
        %v4661 = vrsqrt.pop %v4597
        %v4662 = vmul.f32 %v4597, %v4661
        %vm4663 = vcmp.eq.f32.partialorder %v4597, inf
        %v4664 = vsel %vm4663, %v4597, %v4662
        %vm4665 = vcmp.eq.f32.partialorder %v4597, 0.0
        %v4666 = vand.u32 %v4597, 2147483648
        %v4667 = vsel %vm4665, %v4666, %v4664
        %v4668 = vrsqrt.pop %v4598
        %v4669 = vmul.f32 %v4598, %v4668
        %vm4670 = vcmp.eq.f32.partialorder %v4598, inf
        %v4671 = vsel %vm4670, %v4598, %v4669
        %vm4672 = vcmp.eq.f32.partialorder %v4598, 0.0
        %v4673 = vand.u32 %v4598, 2147483648
        %v4674 = vsel %vm4672, %v4673, %v4671
        %v4675 = vrsqrt.pop %v4599
        %v4676 = vmul.f32 %v4599, %v4675
        %vm4677 = vcmp.eq.f32.partialorder %v4599, inf
        %v4678 = vsel %vm4677, %v4599, %v4676
        %vm4679 = vcmp.eq.f32.partialorder %v4599, 0.0
        %v4680 = vand.u32 %v4599, 2147483648
        %v4681 = vsel %vm4679, %v4680, %v4678
        %v4682 = vrsqrt.pop %v4600
        %v4683 = vmul.f32 %v4600, %v4682
        %vm4684 = vcmp.eq.f32.partialorder %v4600, inf
        %v4685 = vsel %vm4684, %v4600, %v4683
        %vm4686 = vcmp.eq.f32.partialorder %v4600, 0.0
        %v4687 = vand.u32 %v4600, 2147483648
        %v4688 = vsel %vm4686, %v4687, %v4685
        %v4689 = vrsqrt.pop %v4601
        %v4690 = vmul.f32 %v4601, %v4689
        %vm4691 = vcmp.eq.f32.partialorder %v4601, inf
        %v4692 = vsel %vm4691, %v4601, %v4690
        %vm4693 = vcmp.eq.f32.partialorder %v4601, 0.0
        %v4694 = vand.u32 %v4601, 2147483648
        %v4695 = vsel %vm4693, %v4694, %v4692
        %v4696 = vrsqrt.pop %v4602
        %v4697 = vmul.f32 %v4602, %v4696
        %vm4698 = vcmp.eq.f32.partialorder %v4602, inf
        %v4699 = vsel %vm4698, %v4602, %v4697
        %vm4700 = vcmp.eq.f32.partialorder %v4602, 0.0
        %v4701 = vand.u32 %v4602, 2147483648
        %v4702 = vsel %vm4700, %v4701, %v4699
        %v4703 = vrsqrt.pop %v4603
        %v4704 = vmul.f32 %v4603, %v4703
        %vm4705 = vcmp.eq.f32.partialorder %v4603, inf
        %v4706 = vsel %vm4705, %v4603, %v4704
        %vm4707 = vcmp.eq.f32.partialorder %v4603, 0.0
        %v4708 = vand.u32 %v4603, 2147483648
        %v4709 = vsel %vm4707, %v4708, %v4706
        %v4710 = vrsqrt.pop %v4604
        %v4711 = vmul.f32 %v4604, %v4710
        %vm4712 = vcmp.eq.f32.partialorder %v4604, inf
        %v4713 = vsel %vm4712, %v4604, %v4711
        %vm4714 = vcmp.eq.f32.partialorder %v4604, 0.0
        %v4715 = vand.u32 %v4604, 2147483648
        %v4716 = vsel %vm4714, %v4715, %v4713
        %v4717 = vadd.f32 %v4381, %v4461
        %v4718 = vadd.f32 %v4382, %v4462
        %v4719 = vadd.f32 %v4383, %v4463
        %v4720 = vadd.f32 %v4384, %v4464
        %v4721 = vadd.f32 %v4385, %v4465
        %v4722 = vadd.f32 %v4386, %v4466
        %v4723 = vadd.f32 %v4387, %v4467
        %v4724 = vadd.f32 %v4388, %v4468
        %v4725 = vadd.f32 %v4389, %v4469
        %v4726 = vadd.f32 %v4390, %v4470
        %v4727 = vadd.f32 %v4391, %v4471
        %v4728 = vadd.f32 %v4392, %v4472
        %v4729 = vadd.f32 %v4393, %v4473
        %v4730 = vadd.f32 %v4394, %v4474
        %v4731 = vadd.f32 %v4395, %v4475
        %v4732 = vadd.f32 %v4396, %v4476
        %v4733 = vmul.f32 %v4611, 2.0
        %v4734 = vmul.f32 %v4618, 2.0
        %v4735 = vmul.f32 %v4625, 2.0
        %v4736 = vmul.f32 %v4632, 2.0
        %v4737 = vmul.f32 %v4639, 2.0
        %v4738 = vmul.f32 %v4646, 2.0
        %v4739 = vmul.f32 %v4653, 2.0
        %v4740 = vmul.f32 %v4660, 2.0
        %v4741 = vmul.f32 %v4667, 2.0
        %v4742 = vmul.f32 %v4674, 2.0
        %v4743 = vmul.f32 %v4681, 2.0
        %v4744 = vmul.f32 %v4688, 2.0
        %v4745 = vmul.f32 %v4695, 2.0
        %v4746 = vmul.f32 %v4702, 2.0
        %v4747 = vmul.f32 %v4709, 2.0
        %v4748 = vmul.f32 %v4716, 2.0
        %v4749 = vadd.f32 %v4717, %v4733
        %v4750 = vadd.f32 %v4718, %v4734
        %v4751 = vadd.f32 %v4719, %v4735
        %v4752 = vadd.f32 %v4720, %v4736
        %v4753 = vadd.f32 %v4721, %v4737
        %v4754 = vadd.f32 %v4722, %v4738
        %v4755 = vadd.f32 %v4723, %v4739
        %v4756 = vadd.f32 %v4724, %v4740
        %v4757 = vadd.f32 %v4725, %v4741
        %v4758 = vadd.f32 %v4726, %v4742
        %v4759 = vadd.f32 %v4727, %v4743
        %v4760 = vadd.f32 %v4728, %v4744
        %v4761 = vadd.f32 %v4729, %v4745
        %v4762 = vadd.f32 %v4730, %v4746
        %v4763 = vadd.f32 %v4731, %v4747
        %v4764 = vadd.f32 %v4732, %v4748
        %v4765 = vrsqrt.pop %v4749
        %v4766 = vmul.f32 %v4749, %v4765
        %vm4767 = vcmp.eq.f32.partialorder %v4749, inf
        %v4768 = vsel %vm4767, %v4749, %v4766
        %vm4769 = vcmp.eq.f32.partialorder %v4749, 0.0
        %v4770 = vand.u32 %v4749, 2147483648
        %v4771 = vsel %vm4769, %v4770, %v4768
        %v4772 = vrsqrt.pop %v4750
        %v4773 = vmul.f32 %v4750, %v4772
        %vm4774 = vcmp.eq.f32.partialorder %v4750, inf
        %v4775 = vsel %vm4774, %v4750, %v4773
        %vm4776 = vcmp.eq.f32.partialorder %v4750, 0.0
        %v4777 = vand.u32 %v4750, 2147483648
        %v4778 = vsel %vm4776, %v4777, %v4775
        %v4779 = vrsqrt.pop %v4751
        %v4780 = vmul.f32 %v4751, %v4779
        %vm4781 = vcmp.eq.f32.partialorder %v4751, inf
        %v4782 = vsel %vm4781, %v4751, %v4780
        %vm4783 = vcmp.eq.f32.partialorder %v4751, 0.0
        %v4784 = vand.u32 %v4751, 2147483648
        %v4785 = vsel %vm4783, %v4784, %v4782
        %v4786 = vrsqrt.pop %v4752
        %v4787 = vmul.f32 %v4752, %v4786
        %vm4788 = vcmp.eq.f32.partialorder %v4752, inf
        %v4789 = vsel %vm4788, %v4752, %v4787
        %vm4790 = vcmp.eq.f32.partialorder %v4752, 0.0
        %v4791 = vand.u32 %v4752, 2147483648
        %v4792 = vsel %vm4790, %v4791, %v4789
        %v4793 = vrsqrt.pop %v4753
        %v4794 = vmul.f32 %v4753, %v4793
        %vm4795 = vcmp.eq.f32.partialorder %v4753, inf
        %v4796 = vsel %vm4795, %v4753, %v4794
        %vm4797 = vcmp.eq.f32.partialorder %v4753, 0.0
        %v4798 = vand.u32 %v4753, 2147483648
        %v4799 = vsel %vm4797, %v4798, %v4796
        %v4800 = vrsqrt.pop %v4754
        %v4801 = vmul.f32 %v4754, %v4800
        %vm4802 = vcmp.eq.f32.partialorder %v4754, inf
        %v4803 = vsel %vm4802, %v4754, %v4801
        %vm4804 = vcmp.eq.f32.partialorder %v4754, 0.0
        %v4805 = vand.u32 %v4754, 2147483648
        %v4806 = vsel %vm4804, %v4805, %v4803
        %v4807 = vrsqrt.pop %v4755
        %v4808 = vmul.f32 %v4755, %v4807
        %vm4809 = vcmp.eq.f32.partialorder %v4755, inf
        %v4810 = vsel %vm4809, %v4755, %v4808
        %vm4811 = vcmp.eq.f32.partialorder %v4755, 0.0
        %v4812 = vand.u32 %v4755, 2147483648
        %v4813 = vsel %vm4811, %v4812, %v4810
        %v4814 = vrsqrt.pop %v4756
        %v4815 = vmul.f32 %v4756, %v4814
        %vm4816 = vcmp.eq.f32.partialorder %v4756, inf
        %v4817 = vsel %vm4816, %v4756, %v4815
        %vm4818 = vcmp.eq.f32.partialorder %v4756, 0.0
        %v4819 = vand.u32 %v4756, 2147483648
        %v4820 = vsel %vm4818, %v4819, %v4817
        %v4821 = vrsqrt.pop %v4757
        %v4822 = vmul.f32 %v4757, %v4821
        %vm4823 = vcmp.eq.f32.partialorder %v4757, inf
        %v4824 = vsel %vm4823, %v4757, %v4822
        %vm4825 = vcmp.eq.f32.partialorder %v4757, 0.0
        %v4826 = vand.u32 %v4757, 2147483648
        %v4827 = vsel %vm4825, %v4826, %v4824
        %v4828 = vrsqrt.pop %v4758
        %v4829 = vmul.f32 %v4758, %v4828
        %vm4830 = vcmp.eq.f32.partialorder %v4758, inf
        %v4831 = vsel %vm4830, %v4758, %v4829
        %vm4832 = vcmp.eq.f32.partialorder %v4758, 0.0
        %v4833 = vand.u32 %v4758, 2147483648
        %v4834 = vsel %vm4832, %v4833, %v4831
        %v4835 = vrsqrt.pop %v4759
        %v4836 = vmul.f32 %v4759, %v4835
        %vm4837 = vcmp.eq.f32.partialorder %v4759, inf
        %v4838 = vsel %vm4837, %v4759, %v4836
        %vm4839 = vcmp.eq.f32.partialorder %v4759, 0.0
        %v4840 = vand.u32 %v4759, 2147483648
        %v4841 = vsel %vm4839, %v4840, %v4838
        %v4842 = vrsqrt.pop %v4760
        %v4843 = vmul.f32 %v4760, %v4842
        %vm4844 = vcmp.eq.f32.partialorder %v4760, inf
        %v4845 = vsel %vm4844, %v4760, %v4843
        %vm4846 = vcmp.eq.f32.partialorder %v4760, 0.0
        %v4847 = vand.u32 %v4760, 2147483648
        %v4848 = vsel %vm4846, %v4847, %v4845
        %v4849 = vrsqrt.pop %v4761
        %v4850 = vmul.f32 %v4761, %v4849
        %vm4851 = vcmp.eq.f32.partialorder %v4761, inf
        %v4852 = vsel %vm4851, %v4761, %v4850
        %vm4853 = vcmp.eq.f32.partialorder %v4761, 0.0
        %v4854 = vand.u32 %v4761, 2147483648
        %v4855 = vsel %vm4853, %v4854, %v4852
        %v4856 = vrsqrt.pop %v4762
        %v4857 = vmul.f32 %v4762, %v4856
        %vm4858 = vcmp.eq.f32.partialorder %v4762, inf
        %v4859 = vsel %vm4858, %v4762, %v4857
        %vm4860 = vcmp.eq.f32.partialorder %v4762, 0.0
        %v4861 = vand.u32 %v4762, 2147483648
        %v4862 = vsel %vm4860, %v4861, %v4859
        %v4863 = vrsqrt.pop %v4763
        %v4864 = vmul.f32 %v4763, %v4863
        %vm4865 = vcmp.eq.f32.partialorder %v4763, inf
        %v4866 = vsel %vm4865, %v4763, %v4864
        %vm4867 = vcmp.eq.f32.partialorder %v4763, 0.0
        %v4868 = vand.u32 %v4763, 2147483648
        %v4869 = vsel %vm4867, %v4868, %v4866
        %v4870 = vrsqrt.pop %v4764
        %v4871 = vmul.f32 %v4764, %v4870
        %vm4872 = vcmp.eq.f32.partialorder %v4764, inf
        %v4873 = vsel %vm4872, %v4764, %v4871
        %vm4874 = vcmp.eq.f32.partialorder %v4764, 0.0
        %v4875 = vand.u32 %v4764, 2147483648
        %v4876 = vsel %vm4874, %v4875, %v4873
        %v4877 = vmul.f32 %v4611, %v4771
        %v4878 = vmul.f32 %v4618, %v4778
        %v4879 = vmul.f32 %v4625, %v4785
        %v4880 = vmul.f32 %v4632, %v4792
        %v4881 = vmul.f32 %v4639, %v4799
        %v4882 = vmul.f32 %v4646, %v4806
        %v4883 = vmul.f32 %v4653, %v4813
        %v4884 = vmul.f32 %v4660, %v4820
        %v4885 = vmul.f32 %v4667, %v4827
        %v4886 = vmul.f32 %v4674, %v4834
        %v4887 = vmul.f32 %v4681, %v4841
        %v4888 = vmul.f32 %v4688, %v4848
        %v4889 = vmul.f32 %v4695, %v4855
        %v4890 = vmul.f32 %v4702, %v4862
        %v4891 = vmul.f32 %v4709, %v4869
        %v4892 = vmul.f32 %v4716, %v4876
        %v4893 = vrcp.pop %v4877
        %v4894 = vrcp.pop %v4878
        %v4895 = vrcp.pop %v4879
        %v4896 = vrcp.pop %v4880
        %v4897 = vrcp.pop %v4881
        %v4898 = vrcp.pop %v4882
        %v4899 = vrcp.pop %v4883
        %v4900 = vrcp.pop %v4884
        %v4901 = vrcp.pop %v4885
        %v4902 = vrcp.pop %v4886
        %v4903 = vrcp.pop %v4887
        %v4904 = vrcp.pop %v4888
        %v4905 = vrcp.pop %v4889
        %v4906 = vrcp.pop %v4890
        %v4907 = vrcp.pop %v4891
        %v4908 = vrcp.pop %v4892
        %v4909 = vadd.f32 %v4461, %v4611
        %v4910 = vadd.f32 %v4462, %v4618
        %v4911 = vadd.f32 %v4463, %v4625
        %v4912 = vadd.f32 %v4464, %v4632
        %v4913 = vadd.f32 %v4465, %v4639
        %v4914 = vadd.f32 %v4466, %v4646
        %v4915 = vadd.f32 %v4467, %v4653
        %v4916 = vadd.f32 %v4468, %v4660
        %v4917 = vadd.f32 %v4469, %v4667
        %v4918 = vadd.f32 %v4470, %v4674
        %v4919 = vadd.f32 %v4471, %v4681
        %v4920 = vadd.f32 %v4472, %v4688
        %v4921 = vadd.f32 %v4473, %v4695
        %v4922 = vadd.f32 %v4474, %v4702
        %v4923 = vadd.f32 %v4475, %v4709
        %v4924 = vadd.f32 %v4476, %v4716
        %v4925 = vmul.f32 %v4909, %v4893
        %v4926 = vmul.f32 %v4910, %v4894
        %v4927 = vmul.f32 %v4911, %v4895
        %v4928 = vmul.f32 %v4912, %v4896
        %v4929 = vmul.f32 %v4913, %v4897
        %v4930 = vmul.f32 %v4914, %v4898
        %v4931 = vmul.f32 %v4915, %v4899
        %v4932 = vmul.f32 %v4916, %v4900
        %v4933 = vmul.f32 %v4917, %v4901
        %v4934 = vmul.f32 %v4918, %v4902
        %v4935 = vmul.f32 %v4919, %v4903
        %v4936 = vmul.f32 %v4920, %v4904
        %v4937 = vmul.f32 %v4921, %v4905
        %v4938 = vmul.f32 %v4922, %v4906
        %v4939 = vmul.f32 %v4923, %v4907
        %v4940 = vmul.f32 %v4924, %v4908
        %v4941 = vadd.f32 %v4381, %v4611
        %v4942 = vadd.f32 %v4382, %v4618
        %v4943 = vadd.f32 %v4383, %v4625
        %v4944 = vadd.f32 %v4384, %v4632
        %v4945 = vadd.f32 %v4385, %v4639
        %v4946 = vadd.f32 %v4386, %v4646
        %v4947 = vadd.f32 %v4387, %v4653
        %v4948 = vadd.f32 %v4388, %v4660
        %v4949 = vadd.f32 %v4389, %v4667
        %v4950 = vadd.f32 %v4390, %v4674
        %v4951 = vadd.f32 %v4391, %v4681
        %v4952 = vadd.f32 %v4392, %v4688
        %v4953 = vadd.f32 %v4393, %v4695
        %v4954 = vadd.f32 %v4394, %v4702
        %v4955 = vadd.f32 %v4395, %v4709
        %v4956 = vadd.f32 %v4396, %v4716
        %v4957 = vmul.f32 %v4941, %v4893
        %v4958 = vmul.f32 %v4942, %v4894
        %v4959 = vmul.f32 %v4943, %v4895
        %v4960 = vmul.f32 %v4944, %v4896
        %v4961 = vmul.f32 %v4945, %v4897
        %v4962 = vmul.f32 %v4946, %v4898
        %v4963 = vmul.f32 %v4947, %v4899
        %v4964 = vmul.f32 %v4948, %v4900
        %v4965 = vmul.f32 %v4949, %v4901
        %v4966 = vmul.f32 %v4950, %v4902
        %v4967 = vmul.f32 %v4951, %v4903
        %v4968 = vmul.f32 %v4952, %v4904
        %v4969 = vmul.f32 %v4953, %v4905
        %v4970 = vmul.f32 %v4954, %v4906
        %v4971 = vmul.f32 %v4955, %v4907
        %v4972 = vmul.f32 %v4956, %v4908
        %v4973 = vsub.f32 0.0, %v4525
        %v4974 = vsub.f32 0.0, %v4526
        %v4975 = vsub.f32 0.0, %v4527
        %v4976 = vsub.f32 0.0, %v4528
        %v4977 = vsub.f32 0.0, %v4529
        %v4978 = vsub.f32 0.0, %v4530
        %v4979 = vsub.f32 0.0, %v4531
        %v4980 = vsub.f32 0.0, %v4532
        %v4981 = vsub.f32 0.0, %v4533
        %v4982 = vsub.f32 0.0, %v4534
        %v4983 = vsub.f32 0.0, %v4535
        %v4984 = vsub.f32 0.0, %v4536
        %v4985 = vsub.f32 0.0, %v4537
        %v4986 = vsub.f32 0.0, %v4538
        %v4987 = vsub.f32 0.0, %v4539
        %v4988 = vsub.f32 0.0, %v4540
        %v4989 = vmul.f32 %v4973, %v4893
        %v4990 = vmul.f32 %v4974, %v4894
        %v4991 = vmul.f32 %v4975, %v4895
        %v4992 = vmul.f32 %v4976, %v4896
        %v4993 = vmul.f32 %v4977, %v4897
        %v4994 = vmul.f32 %v4978, %v4898
        %v4995 = vmul.f32 %v4979, %v4899
        %v4996 = vmul.f32 %v4980, %v4900
        %v4997 = vmul.f32 %v4981, %v4901
        %v4998 = vmul.f32 %v4982, %v4902
        %v4999 = vmul.f32 %v4983, %v4903
        %v5000 = vmul.f32 %v4984, %v4904
        %v5001 = vmul.f32 %v4985, %v4905
        %v5002 = vmul.f32 %v4986, %v4906
        %v5003 = vmul.f32 %v4987, %v4907
        %v5004 = vmul.f32 %v4988, %v4908
        %v5005 = vmul.f32 %v4925, %v4285
        %v5006 = vmul.f32 %v4926, %v4286
        %v5007 = vmul.f32 %v4927, %v4287
        %v5008 = vmul.f32 %v4928, %v4288
        %v5009 = vmul.f32 %v4929, %v4289
        %v5010 = vmul.f32 %v4930, %v4290
        %v5011 = vmul.f32 %v4931, %v4291
        %v5012 = vmul.f32 %v4932, %v4292
        %v5013 = vmul.f32 %v4933, %v4293
        %v5014 = vmul.f32 %v4934, %v4294
        %v5015 = vmul.f32 %v4935, %v4295
        %v5016 = vmul.f32 %v4936, %v4296
        %v5017 = vmul.f32 %v4937, %v4297
        %v5018 = vmul.f32 %v4938, %v4298
        %v5019 = vmul.f32 %v4939, %v4299
        %v5020 = vmul.f32 %v4940, %v4300
        %v5021 = vmul.f32 %v4989, %v4301
        %v5022 = vmul.f32 %v4990, %v4302
        %v5023 = vmul.f32 %v4991, %v4303
        %v5024 = vmul.f32 %v4992, %v4304
        %v5025 = vmul.f32 %v4993, %v4305
        %v5026 = vmul.f32 %v4994, %v4306
        %v5027 = vmul.f32 %v4995, %v4307
        %v5028 = vmul.f32 %v4996, %v4308
        %v5029 = vmul.f32 %v4997, %v4309
        %v5030 = vmul.f32 %v4998, %v4310
        %v5031 = vmul.f32 %v4999, %v4311
        %v5032 = vmul.f32 %v5000, %v4312
        %v5033 = vmul.f32 %v5001, %v4313
        %v5034 = vmul.f32 %v5002, %v4314
        %v5035 = vmul.f32 %v5003, %v4315
        %v5036 = vmul.f32 %v5004, %v4316
        %v5037 = vadd.f32 %v5005, %v5021
        %v5038 = vadd.f32 %v5006, %v5022
        %v5039 = vadd.f32 %v5007, %v5023
        %v5040 = vadd.f32 %v5008, %v5024
        %v5041 = vadd.f32 %v5009, %v5025
        %v5042 = vadd.f32 %v5010, %v5026
        %v5043 = vadd.f32 %v5011, %v5027
        %v5044 = vadd.f32 %v5012, %v5028
        %v5045 = vadd.f32 %v5013, %v5029
        %v5046 = vadd.f32 %v5014, %v5030
        %v5047 = vadd.f32 %v5015, %v5031
        %v5048 = vadd.f32 %v5016, %v5032
        %v5049 = vadd.f32 %v5017, %v5033
        %v5050 = vadd.f32 %v5018, %v5034
        %v5051 = vadd.f32 %v5019, %v5035
        %v5052 = vadd.f32 %v5020, %v5036
        %v5053 = vmul.f32 %v4989, %v4285
        %v5054 = vmul.f32 %v4990, %v4286
        %v5055 = vmul.f32 %v4991, %v4287
        %v5056 = vmul.f32 %v4992, %v4288
        %v5057 = vmul.f32 %v4993, %v4289
        %v5058 = vmul.f32 %v4994, %v4290
        %v5059 = vmul.f32 %v4995, %v4291
        %v5060 = vmul.f32 %v4996, %v4292
        %v5061 = vmul.f32 %v4997, %v4293
        %v5062 = vmul.f32 %v4998, %v4294
        %v5063 = vmul.f32 %v4999, %v4295
        %v5064 = vmul.f32 %v5000, %v4296
        %v5065 = vmul.f32 %v5001, %v4297
        %v5066 = vmul.f32 %v5002, %v4298
        %v5067 = vmul.f32 %v5003, %v4299
        %v5068 = vmul.f32 %v5004, %v4300
        %v5069 = vmul.f32 %v4957, %v4301
        %v5070 = vmul.f32 %v4958, %v4302
        %v5071 = vmul.f32 %v4959, %v4303
        %v5072 = vmul.f32 %v4960, %v4304
        %v5073 = vmul.f32 %v4961, %v4305
        %v5074 = vmul.f32 %v4962, %v4306
        %v5075 = vmul.f32 %v4963, %v4307
        %v5076 = vmul.f32 %v4964, %v4308
        %v5077 = vmul.f32 %v4965, %v4309
        %v5078 = vmul.f32 %v4966, %v4310
        %v5079 = vmul.f32 %v4967, %v4311
        %v5080 = vmul.f32 %v4968, %v4312
        %v5081 = vmul.f32 %v4969, %v4313
        %v5082 = vmul.f32 %v4970, %v4314
        %v5083 = vmul.f32 %v4971, %v4315
        %v5084 = vmul.f32 %v4972, %v4316
        %v5085 = vadd.f32 %v5053, %v5069
        %v5086 = vadd.f32 %v5054, %v5070
        %v5087 = vadd.f32 %v5055, %v5071
        %v5088 = vadd.f32 %v5056, %v5072
        %v5089 = vadd.f32 %v5057, %v5073
        %v5090 = vadd.f32 %v5058, %v5074
        %v5091 = vadd.f32 %v5059, %v5075
        %v5092 = vadd.f32 %v5060, %v5076
        %v5093 = vadd.f32 %v5061, %v5077
        %v5094 = vadd.f32 %v5062, %v5078
        %v5095 = vadd.f32 %v5063, %v5079
        %v5096 = vadd.f32 %v5064, %v5080
        %v5097 = vadd.f32 %v5065, %v5081
        %v5098 = vadd.f32 %v5066, %v5082
        %v5099 = vadd.f32 %v5067, %v5083
        %v5100 = vadd.f32 %v5068, %v5084
        %v5101 = vlaneseq
        %v5102 = vshrl.u32 %v5101, 7
        %v5103 = vsub.s32 0, %v5102
        %v5104 = vrot.slane %v4186, %v5103
        %v5105 = vmul.f32 %v5104, %v5037
        %v5106 = vmul.f32 %v5104, %v5038
        %v5107 = vmul.f32 %v5104, %v5039
        %v5108 = vmul.f32 %v5104, %v5040
        %v5109 = vmul.f32 %v5104, %v5041
        %v5110 = vmul.f32 %v5104, %v5042
        %v5111 = vmul.f32 %v5104, %v5043
        %v5112 = vmul.f32 %v5104, %v5044
        %v5113 = vmul.f32 %v5104, %v5045
        %v5114 = vmul.f32 %v5104, %v5046
        %v5115 = vmul.f32 %v5104, %v5047
        %v5116 = vmul.f32 %v5104, %v5048
        %v5117 = vmul.f32 %v5104, %v5049
        %v5118 = vmul.f32 %v5104, %v5050
        %v5119 = vmul.f32 %v5104, %v5051
        %v5120 = vmul.f32 %v5104, %v5052
        %v5121 = vlaneseq
        %v5122 = vshrl.u32 %v5121, 7
        %v5123 = vsub.s32 1, %v5122
        %v5124 = vrot.slane %v4186, %v5123
        %v5125 = vmul.f32 %v5124, %v5085
        %v5126 = vmul.f32 %v5124, %v5086
        %v5127 = vmul.f32 %v5124, %v5087
        %v5128 = vmul.f32 %v5124, %v5088
        %v5129 = vmul.f32 %v5124, %v5089
        %v5130 = vmul.f32 %v5124, %v5090
        %v5131 = vmul.f32 %v5124, %v5091
        %v5132 = vmul.f32 %v5124, %v5092
        %v5133 = vmul.f32 %v5124, %v5093
        %v5134 = vmul.f32 %v5124, %v5094
        %v5135 = vmul.f32 %v5124, %v5095
        %v5136 = vmul.f32 %v5124, %v5096
        %v5137 = vmul.f32 %v5124, %v5097
        %v5138 = vmul.f32 %v5124, %v5098
        %v5139 = vmul.f32 %v5124, %v5099
        %v5140 = vmul.f32 %v5124, %v5100
        %v5141 = vadd.f32 %v5105, %v5125
        %v5142 = vadd.f32 %v5106, %v5126
        %v5143 = vadd.f32 %v5107, %v5127
        %v5144 = vadd.f32 %v5108, %v5128
        %v5145 = vadd.f32 %v5109, %v5129
        %v5146 = vadd.f32 %v5110, %v5130
        %v5147 = vadd.f32 %v5111, %v5131
        %v5148 = vadd.f32 %v5112, %v5132
        %v5149 = vadd.f32 %v5113, %v5133
        %v5150 = vadd.f32 %v5114, %v5134
        %v5151 = vadd.f32 %v5115, %v5135
        %v5152 = vadd.f32 %v5116, %v5136
        %v5153 = vadd.f32 %v5117, %v5137
        %v5154 = vadd.f32 %v5118, %v5138
        %v5155 = vadd.f32 %v5119, %v5139
        %v5156 = vadd.f32 %v5120, %v5140
        %v5157 = vlaneseq
        %v5158 = vshrl.u32 %v5157, 7
        %v5159 = vsub.s32 2, %v5158
        %v5160 = vrot.slane %v4186, %v5159
        %v5161 = vmul.f32 %v5160, %v5037
        %v5162 = vmul.f32 %v5160, %v5038
        %v5163 = vmul.f32 %v5160, %v5039
        %v5164 = vmul.f32 %v5160, %v5040
        %v5165 = vmul.f32 %v5160, %v5041
        %v5166 = vmul.f32 %v5160, %v5042
        %v5167 = vmul.f32 %v5160, %v5043
        %v5168 = vmul.f32 %v5160, %v5044
        %v5169 = vmul.f32 %v5160, %v5045
        %v5170 = vmul.f32 %v5160, %v5046
        %v5171 = vmul.f32 %v5160, %v5047
        %v5172 = vmul.f32 %v5160, %v5048
        %v5173 = vmul.f32 %v5160, %v5049
        %v5174 = vmul.f32 %v5160, %v5050
        %v5175 = vmul.f32 %v5160, %v5051
        %v5176 = vmul.f32 %v5160, %v5052
        %v5177 = vlaneseq
        %v5178 = vshrl.u32 %v5177, 7
        %v5179 = vsub.s32 3, %v5178
        %v5180 = vrot.slane %v4186, %v5179
        %v5181 = vmul.f32 %v5180, %v5085
        %v5182 = vmul.f32 %v5180, %v5086
        %v5183 = vmul.f32 %v5180, %v5087
        %v5184 = vmul.f32 %v5180, %v5088
        %v5185 = vmul.f32 %v5180, %v5089
        %v5186 = vmul.f32 %v5180, %v5090
        %v5187 = vmul.f32 %v5180, %v5091
        %v5188 = vmul.f32 %v5180, %v5092
        %v5189 = vmul.f32 %v5180, %v5093
        %v5190 = vmul.f32 %v5180, %v5094
        %v5191 = vmul.f32 %v5180, %v5095
        %v5192 = vmul.f32 %v5180, %v5096
        %v5193 = vmul.f32 %v5180, %v5097
        %v5194 = vmul.f32 %v5180, %v5098
        %v5195 = vmul.f32 %v5180, %v5099
        %v5196 = vmul.f32 %v5180, %v5100
        %v5197 = vadd.f32 %v5161, %v5181
        %v5198 = vadd.f32 %v5162, %v5182
        %v5199 = vadd.f32 %v5163, %v5183
        %v5200 = vadd.f32 %v5164, %v5184
        %v5201 = vadd.f32 %v5165, %v5185
        %v5202 = vadd.f32 %v5166, %v5186
        %v5203 = vadd.f32 %v5167, %v5187
        %v5204 = vadd.f32 %v5168, %v5188
        %v5205 = vadd.f32 %v5169, %v5189
        %v5206 = vadd.f32 %v5170, %v5190
        %v5207 = vadd.f32 %v5171, %v5191
        %v5208 = vadd.f32 %v5172, %v5192
        %v5209 = vadd.f32 %v5173, %v5193
        %v5210 = vadd.f32 %v5174, %v5194
        %v5211 = vadd.f32 %v5175, %v5195
        %v5212 = vadd.f32 %v5176, %v5196
        %v5214 = vlaneseq
        %v5215 = vshrl.u32 %v5214, 7
        %v5216 = vsub.s32 0, %v5215
        %v5217 = vrot.slane %v4187, %v5216
        %v5218 = vlaneseq
        %v5219 = vshrl.u32 %v5218, 7
        %v5220 = vsub.s32 1, %v5219
        %v5221 = vrot.slane %v4187, %v5220
        %v5224 = vadd.f32 %v5141, %v5217
        %v5225 = vadd.f32 %v5197, %v5221
        %v5226 = vadd.f32 %v5142, %v5217
        %v5227 = vadd.f32 %v5198, %v5221
        %v5228 = vadd.f32 %v5143, %v5217
        %v5229 = vadd.f32 %v5199, %v5221
        %v5230 = vadd.f32 %v5144, %v5217
        %v5231 = vadd.f32 %v5200, %v5221
        %v5232 = vadd.f32 %v5145, %v5217
        %v5233 = vadd.f32 %v5201, %v5221
        %v5234 = vadd.f32 %v5146, %v5217
        %v5235 = vadd.f32 %v5202, %v5221
        %v5236 = vadd.f32 %v5147, %v5217
        %v5237 = vadd.f32 %v5203, %v5221
        %v5238 = vadd.f32 %v5148, %v5217
        %v5239 = vadd.f32 %v5204, %v5221
        %v5240 = vadd.f32 %v5149, %v5217
        %v5241 = vadd.f32 %v5205, %v5221
        %v5242 = vadd.f32 %v5150, %v5217
        %v5243 = vadd.f32 %v5206, %v5221
        %v5244 = vadd.f32 %v5151, %v5217
        %v5245 = vadd.f32 %v5207, %v5221
        %v5246 = vadd.f32 %v5152, %v5217
        %v5247 = vadd.f32 %v5208, %v5221
        %v5248 = vadd.f32 %v5153, %v5217
        %v5249 = vadd.f32 %v5209, %v5221
        %v5250 = vadd.f32 %v5154, %v5217
        %v5251 = vadd.f32 %v5210, %v5221
        %v5252 = vadd.f32 %v5155, %v5217
        %v5253 = vadd.f32 %v5211, %v5221
        %v5254 = vadd.f32 %v5156, %v5217
        %v5255 = vadd.f32 %v5212, %v5221
        %v5256 = vpack.c.bf16 %v5226, %v5224
        %v5257 = vpack.c.bf16 %v5227, %v5225
        %v5258 = vpack.c.bf16 %v5230, %v5228
        %v5259 = vpack.c.bf16 %v5231, %v5229
        %v5260 = vpack.c.bf16 %v5234, %v5232
        %v5261 = vpack.c.bf16 %v5235, %v5233
        %v5262 = vpack.c.bf16 %v5238, %v5236
        %v5263 = vpack.c.bf16 %v5239, %v5237
        %v5264 = vpack.c.bf16 %v5242, %v5240
        %v5265 = vpack.c.bf16 %v5243, %v5241
        %v5266 = vpack.c.bf16 %v5246, %v5244
        %v5267 = vpack.c.bf16 %v5247, %v5245
        %v5268 = vpack.c.bf16 %v5250, %v5248
        %v5269 = vpack.c.bf16 %v5251, %v5249
        %v5270 = vpack.c.bf16 %v5254, %v5252
        %v5271 = vpack.c.bf16 %v5255, %v5253
        %v5272 = vld [vmem:[#allocation10] sm:$0xff]
        %v5273 = vld [vmem:[#allocation10 + $0x8] sm:$0xff]
        %v5274 = vld [vmem:[#allocation10 + $0x10] sm:$0xff]
        %v5275 = vld [vmem:[#allocation10 + $0x18] sm:$0xff]
        %v5276 = vld [vmem:[#allocation10 + $0x20] sm:$0xff]
        %v5277 = vld [vmem:[#allocation10 + $0x28] sm:$0xff]
        %v5278 = vld [vmem:[#allocation10 + $0x30] sm:$0xff]
        %v5279 = vld [vmem:[#allocation10 + $0x38] sm:$0xff]
        %v5280 = vld [vmem:[#allocation10 + $0x40] sm:$0xff]
        %v5281 = vld [vmem:[#allocation10 + $0x48] sm:$0xff]
        %v5282 = vld [vmem:[#allocation10 + $0x50] sm:$0xff]
        %v5283 = vld [vmem:[#allocation10 + $0x58] sm:$0xff]
        %v5284 = vld [vmem:[#allocation10 + $0x60] sm:$0xff]
        %v5285 = vld [vmem:[#allocation10 + $0x68] sm:$0xff]
        %v5286 = vld [vmem:[#allocation10 + $0x70] sm:$0xff]
        %v5287 = vld [vmem:[#allocation10 + $0x78] sm:$0xff]
        %v5288 = vld [vmem:[#allocation10 + $0x80] sm:$0xff]
        %v5289 = vld [vmem:[#allocation10 + $0x88] sm:$0xff]
        %v5290 = vld [vmem:[#allocation10 + $0x90] sm:$0xff]
        %v5291 = vld [vmem:[#allocation10 + $0x98] sm:$0xff]
        %v5292 = vld [vmem:[#allocation10 + $0xa0] sm:$0xff]
        %v5293 = vld [vmem:[#allocation10 + $0xa8] sm:$0xff]
        %v5294 = vld [vmem:[#allocation10 + $0xb0] sm:$0xff]
        %v5295 = vld [vmem:[#allocation10 + $0xb8] sm:$0xff]
        %v5296 = vld [vmem:[#allocation10 + $0xc0] sm:$0xff]
        %v5297 = vld [vmem:[#allocation10 + $0xc8] sm:$0xff]
        %v5298 = vld [vmem:[#allocation10 + $0xd0] sm:$0xff]
        %v5299 = vld [vmem:[#allocation10 + $0xd8] sm:$0xff]
        %v5300 = vld [vmem:[#allocation10 + $0xe0] sm:$0xff]
        %v5301 = vld [vmem:[#allocation10 + $0xe8] sm:$0xff]
        %v5302 = vld [vmem:[#allocation10 + $0xf0] sm:$0xff]
        %v5303 = vld [vmem:[#allocation10 + $0xf8] sm:$0xff]
        %v5304 = vld [vmem:[#allocation10 + $0x100] sm:$0xff]
        %v5305 = vld [vmem:[#allocation10 + $0x108] sm:$0xff]
        %v5306 = vld [vmem:[#allocation10 + $0x110] sm:$0xff]
        %v5307 = vld [vmem:[#allocation10 + $0x118] sm:$0xff]
        %v5308 = vld [vmem:[#allocation10 + $0x120] sm:$0xff]
        %v5309 = vld [vmem:[#allocation10 + $0x128] sm:$0xff]
        %v5310 = vld [vmem:[#allocation10 + $0x130] sm:$0xff]
        %v5311 = vld [vmem:[#allocation10 + $0x138] sm:$0xff]
        %v5312 = vld [vmem:[#allocation10 + $0x140] sm:$0xff]
        %v5313 = vld [vmem:[#allocation10 + $0x148] sm:$0xff]
        %v5314 = vld [vmem:[#allocation10 + $0x150] sm:$0xff]
        %v5315 = vld [vmem:[#allocation10 + $0x158] sm:$0xff]
        %v5316 = vld [vmem:[#allocation10 + $0x160] sm:$0xff]
        %v5317 = vld [vmem:[#allocation10 + $0x168] sm:$0xff]
        %v5318 = vld [vmem:[#allocation10 + $0x170] sm:$0xff]
        %v5319 = vld [vmem:[#allocation10 + $0x178] sm:$0xff]
        %v5320 = vld [vmem:[#allocation10 + $0x180] sm:$0xff]
        %v5321 = vld [vmem:[#allocation10 + $0x188] sm:$0xff]
        %v5322 = vld [vmem:[#allocation10 + $0x190] sm:$0xff]
        %v5323 = vld [vmem:[#allocation10 + $0x198] sm:$0xff]
        %v5324 = vld [vmem:[#allocation10 + $0x1a0] sm:$0xff]
        %v5325 = vld [vmem:[#allocation10 + $0x1a8] sm:$0xff]
        %v5326 = vld [vmem:[#allocation10 + $0x1b0] sm:$0xff]
        %v5327 = vld [vmem:[#allocation10 + $0x1b8] sm:$0xff]
        %v5328 = vld [vmem:[#allocation10 + $0x1c0] sm:$0xff]
        %v5329 = vld [vmem:[#allocation10 + $0x1c8] sm:$0xff]
        %v5330 = vld [vmem:[#allocation10 + $0x1d0] sm:$0xff]
        %v5331 = vld [vmem:[#allocation10 + $0x1d8] sm:$0xff]
        %v5332 = vld [vmem:[#allocation10 + $0x1e0] sm:$0xff]
        %v5333 = vld [vmem:[#allocation10 + $0x1e8] sm:$0xff]
        %v5334 = vld [vmem:[#allocation10 + $0x1f0] sm:$0xff]
        %v5335 = vld [vmem:[#allocation10 + $0x1f8] sm:$0xff]
        %v5336 = vld [vmem:[%s6] sm:$0xf]
        %v5338 = vlaneseq
        %v5339 = vshrl.u32 %v5338, 7
        %v5340 = vsub.s32 0, %v5339
        %v5341 = vrot.slane %v5336, %v5340
        %v5342 = vlaneseq
        %v5343 = vshrl.u32 %v5342, 7
        %v5344 = vsub.s32 1, %v5343
        %v5345 = vrot.slane %v5336, %v5344
        %v5346 = vlaneseq
        %v5347 = vshrl.u32 %v5346, 7
        %v5348 = vsub.s32 2, %v5347
        %v5349 = vrot.slane %v5336, %v5348
        %v5350 = vlaneseq
        %v5351 = vshrl.u32 %v5350, 7
        %v5352 = vsub.s32 3, %v5351
        %v5353 = vrot.slane %v5336, %v5352
        %v5422 = vunpack.c.l.b16 %v5272
        %v5423 = vunpack.c.h.b16 %v5272
        %v5424 = vunpack.c.l.b16 %v5273
        %v5425 = vunpack.c.h.b16 %v5273
        %v5426 = vunpack.c.l.b16 %v5274
        %v5427 = vunpack.c.h.b16 %v5274
        %v5428 = vunpack.c.l.b16 %v5275
        %v5429 = vunpack.c.h.b16 %v5275
        %v5430 = vunpack.c.l.b16 %v5276
        %v5431 = vunpack.c.h.b16 %v5276
        %v5432 = vunpack.c.l.b16 %v5277
        %v5433 = vunpack.c.h.b16 %v5277
        %v5434 = vunpack.c.l.b16 %v5278
        %v5435 = vunpack.c.h.b16 %v5278
        %v5436 = vunpack.c.l.b16 %v5279
        %v5437 = vunpack.c.h.b16 %v5279
        %v5438 = vunpack.c.l.b16 %v5280
        %v5439 = vunpack.c.h.b16 %v5280
        %v5440 = vunpack.c.l.b16 %v5281
        %v5441 = vunpack.c.h.b16 %v5281
        %v5442 = vunpack.c.l.b16 %v5282
        %v5443 = vunpack.c.h.b16 %v5282
        %v5444 = vunpack.c.l.b16 %v5283
        %v5445 = vunpack.c.h.b16 %v5283
        %v5446 = vunpack.c.l.b16 %v5284
        %v5447 = vunpack.c.h.b16 %v5284
        %v5448 = vunpack.c.l.b16 %v5285
        %v5449 = vunpack.c.h.b16 %v5285
        %v5450 = vunpack.c.l.b16 %v5286
        %v5451 = vunpack.c.h.b16 %v5286
        %v5452 = vunpack.c.l.b16 %v5287
        %v5453 = vunpack.c.h.b16 %v5287
        %v5454 = vunpack.c.l.b16 %v5288
        %v5455 = vunpack.c.h.b16 %v5288
        %v5456 = vunpack.c.l.b16 %v5289
        %v5457 = vunpack.c.h.b16 %v5289
        %v5458 = vunpack.c.l.b16 %v5290
        %v5459 = vunpack.c.h.b16 %v5290
        %v5460 = vunpack.c.l.b16 %v5291
        %v5461 = vunpack.c.h.b16 %v5291
        %v5462 = vunpack.c.l.b16 %v5292
        %v5463 = vunpack.c.h.b16 %v5292
        %v5464 = vunpack.c.l.b16 %v5293
        %v5465 = vunpack.c.h.b16 %v5293
        %v5466 = vunpack.c.l.b16 %v5294
        %v5467 = vunpack.c.h.b16 %v5294
        %v5468 = vunpack.c.l.b16 %v5295
        %v5469 = vunpack.c.h.b16 %v5295
        %v5470 = vunpack.c.l.b16 %v5296
        %v5471 = vunpack.c.h.b16 %v5296
        %v5472 = vunpack.c.l.b16 %v5297
        %v5473 = vunpack.c.h.b16 %v5297
        %v5474 = vunpack.c.l.b16 %v5298
        %v5475 = vunpack.c.h.b16 %v5298
        %v5476 = vunpack.c.l.b16 %v5299
        %v5477 = vunpack.c.h.b16 %v5299
        %v5478 = vunpack.c.l.b16 %v5300
        %v5479 = vunpack.c.h.b16 %v5300
        %v5480 = vunpack.c.l.b16 %v5301
        %v5481 = vunpack.c.h.b16 %v5301
        %v5482 = vunpack.c.l.b16 %v5302
        %v5483 = vunpack.c.h.b16 %v5302
        %v5484 = vunpack.c.l.b16 %v5303
        %v5485 = vunpack.c.h.b16 %v5303
        %v5486 = vunpack.c.l.b16 %v5304
        %v5487 = vunpack.c.h.b16 %v5304
        %v5488 = vunpack.c.l.b16 %v5305
        %v5489 = vunpack.c.h.b16 %v5305
        %v5490 = vunpack.c.l.b16 %v5306
        %v5491 = vunpack.c.h.b16 %v5306
        %v5492 = vunpack.c.l.b16 %v5307
        %v5493 = vunpack.c.h.b16 %v5307
        %v5494 = vunpack.c.l.b16 %v5308
        %v5495 = vunpack.c.h.b16 %v5308
        %v5496 = vunpack.c.l.b16 %v5309
        %v5497 = vunpack.c.h.b16 %v5309
        %v5498 = vunpack.c.l.b16 %v5310
        %v5499 = vunpack.c.h.b16 %v5310
        %v5500 = vunpack.c.l.b16 %v5311
        %v5501 = vunpack.c.h.b16 %v5311
        %v5502 = vunpack.c.l.b16 %v5312
        %v5503 = vunpack.c.h.b16 %v5312
        %v5504 = vunpack.c.l.b16 %v5313
        %v5505 = vunpack.c.h.b16 %v5313
        %v5506 = vunpack.c.l.b16 %v5314
        %v5507 = vunpack.c.h.b16 %v5314
        %v5508 = vunpack.c.l.b16 %v5315
        %v5509 = vunpack.c.h.b16 %v5315
        %v5510 = vunpack.c.l.b16 %v5316
        %v5511 = vunpack.c.h.b16 %v5316
        %v5512 = vunpack.c.l.b16 %v5317
        %v5513 = vunpack.c.h.b16 %v5317
        %v5514 = vunpack.c.l.b16 %v5318
        %v5515 = vunpack.c.h.b16 %v5318
        %v5516 = vunpack.c.l.b16 %v5319
        %v5517 = vunpack.c.h.b16 %v5319
        %v5518 = vunpack.c.l.b16 %v5320
        %v5519 = vunpack.c.h.b16 %v5320
        %v5520 = vunpack.c.l.b16 %v5321
        %v5521 = vunpack.c.h.b16 %v5321
        %v5522 = vunpack.c.l.b16 %v5322
        %v5523 = vunpack.c.h.b16 %v5322
        %v5524 = vunpack.c.l.b16 %v5323
        %v5525 = vunpack.c.h.b16 %v5323
        %v5526 = vunpack.c.l.b16 %v5324
        %v5527 = vunpack.c.h.b16 %v5324
        %v5528 = vunpack.c.l.b16 %v5325
        %v5529 = vunpack.c.h.b16 %v5325
        %v5530 = vunpack.c.l.b16 %v5326
        %v5531 = vunpack.c.h.b16 %v5326
        %v5532 = vunpack.c.l.b16 %v5327
        %v5533 = vunpack.c.h.b16 %v5327
        %v5534 = vunpack.c.l.b16 %v5328
        %v5535 = vunpack.c.h.b16 %v5328
        %v5536 = vunpack.c.l.b16 %v5329
        %v5537 = vunpack.c.h.b16 %v5329
        %v5538 = vunpack.c.l.b16 %v5330
        %v5539 = vunpack.c.h.b16 %v5330
        %v5540 = vunpack.c.l.b16 %v5331
        %v5541 = vunpack.c.h.b16 %v5331
        %v5542 = vunpack.c.l.b16 %v5332
        %v5543 = vunpack.c.h.b16 %v5332
        %v5544 = vunpack.c.l.b16 %v5333
        %v5545 = vunpack.c.h.b16 %v5333
        %v5546 = vunpack.c.l.b16 %v5334
        %v5547 = vunpack.c.h.b16 %v5334
        %v5548 = vunpack.c.l.b16 %v5335
        %v5549 = vunpack.c.h.b16 %v5335
        %v5550 = vpack.c.b16 %v5426, %v5422
        %v5551 = vpack.c.b16 %v5427, %v5423
        %v5552 = vpack.c.b16 %v5428, %v5424
        %v5553 = vpack.c.b16 %v5429, %v5425
        %v5554 = vpack.c.b16 %v5434, %v5430
        %v5555 = vpack.c.b16 %v5435, %v5431
        %v5556 = vpack.c.b16 %v5436, %v5432
        %v5557 = vpack.c.b16 %v5437, %v5433
        %v5558 = vpack.c.b16 %v5442, %v5438
        %v5559 = vpack.c.b16 %v5443, %v5439
        %v5560 = vpack.c.b16 %v5444, %v5440
        %v5561 = vpack.c.b16 %v5445, %v5441
        %v5562 = vpack.c.b16 %v5450, %v5446
        %v5563 = vpack.c.b16 %v5451, %v5447
        %v5564 = vpack.c.b16 %v5452, %v5448
        %v5565 = vpack.c.b16 %v5453, %v5449
        %v5566 = vpack.c.b16 %v5458, %v5454
        %v5567 = vpack.c.b16 %v5459, %v5455
        %v5568 = vpack.c.b16 %v5460, %v5456
        %v5569 = vpack.c.b16 %v5461, %v5457
        %v5570 = vpack.c.b16 %v5466, %v5462
        %v5571 = vpack.c.b16 %v5467, %v5463
        %v5572 = vpack.c.b16 %v5468, %v5464
        %v5573 = vpack.c.b16 %v5469, %v5465
        %v5574 = vpack.c.b16 %v5474, %v5470
        %v5575 = vpack.c.b16 %v5475, %v5471
        %v5576 = vpack.c.b16 %v5476, %v5472
        %v5577 = vpack.c.b16 %v5477, %v5473
        %v5578 = vpack.c.b16 %v5482, %v5478
        %v5579 = vpack.c.b16 %v5483, %v5479
        %v5580 = vpack.c.b16 %v5484, %v5480
        %v5581 = vpack.c.b16 %v5485, %v5481
        %v5582 = vpack.c.b16 %v5490, %v5486
        %v5583 = vpack.c.b16 %v5491, %v5487
        %v5584 = vpack.c.b16 %v5492, %v5488
        %v5585 = vpack.c.b16 %v5493, %v5489
        %v5586 = vpack.c.b16 %v5498, %v5494
        %v5587 = vpack.c.b16 %v5499, %v5495
        %v5588 = vpack.c.b16 %v5500, %v5496
        %v5589 = vpack.c.b16 %v5501, %v5497
        %v5590 = vpack.c.b16 %v5506, %v5502
        %v5591 = vpack.c.b16 %v5507, %v5503
        %v5592 = vpack.c.b16 %v5508, %v5504
        %v5593 = vpack.c.b16 %v5509, %v5505
        %v5594 = vpack.c.b16 %v5514, %v5510
        %v5595 = vpack.c.b16 %v5515, %v5511
        %v5596 = vpack.c.b16 %v5516, %v5512
        %v5597 = vpack.c.b16 %v5517, %v5513
        %v5598 = vpack.c.b16 %v5522, %v5518
        %v5599 = vpack.c.b16 %v5523, %v5519
        %v5600 = vpack.c.b16 %v5524, %v5520
        %v5601 = vpack.c.b16 %v5525, %v5521
        %v5602 = vpack.c.b16 %v5530, %v5526
        %v5603 = vpack.c.b16 %v5531, %v5527
        %v5604 = vpack.c.b16 %v5532, %v5528
        %v5605 = vpack.c.b16 %v5533, %v5529
        %v5606 = vpack.c.b16 %v5538, %v5534
        %v5607 = vpack.c.b16 %v5539, %v5535
        %v5608 = vpack.c.b16 %v5540, %v5536
        %v5609 = vpack.c.b16 %v5541, %v5537
        %v5610 = vpack.c.b16 %v5546, %v5542
        %v5611 = vpack.c.b16 %v5547, %v5543
        %v5612 = vpack.c.b16 %v5548, %v5544
        %v5613 = vpack.c.b16 %v5549, %v5545
        %5678 = vmatprep.subr.bf16.mxu0 %v5551
        %5679 = vmatpush1.bf16.msra.mxu0 %v5550
        %5680 = vmatprep.subr.bf16.mxu0 %v5555
        %5681 = vmatpush1.bf16.msra.mxu0 %v5554
        %5682 = vmatprep.subr.bf16.mxu0 %v5559
        %5683 = vmatpush1.bf16.msra.mxu0 %v5558
        %5684 = vmatprep.subr.bf16.mxu0 %v5563
        %5685 = vmatpush1.bf16.msra.mxu0 %v5562
        %5686 = vmatprep.subr.bf16.mxu0 %v5567
        %5687 = vmatpush1.bf16.msra.mxu0 %v5566
        %5688 = vmatprep.subr.bf16.mxu0 %v5571
        %5689 = vmatpush1.bf16.msra.mxu0 %v5570
        %5690 = vmatprep.subr.bf16.mxu0 %v5575
        %5691 = vmatpush1.bf16.msra.mxu0 %v5574
        %5692 = vmatprep.subr.bf16.mxu0 %v5579
        %5693 = vmatpush1.bf16.msra.mxu0 %v5578
        %5694 = vmatprep.subr.bf16.mxu0 %v5583
        %5695 = vmatpush1.bf16.msra.mxu0 %v5582
        %5696 = vmatprep.subr.bf16.mxu0 %v5587
        %5697 = vmatpush1.bf16.msra.mxu0 %v5586
        %5698 = vmatprep.subr.bf16.mxu0 %v5591
        %5699 = vmatpush1.bf16.msra.mxu0 %v5590
        %5700 = vmatprep.subr.bf16.mxu0 %v5595
        %5701 = vmatpush1.bf16.msra.mxu0 %v5594
        %5702 = vmatprep.subr.bf16.mxu0 %v5599
        %5703 = vmatpush1.bf16.msra.mxu0 %v5598
        %5704 = vmatprep.subr.bf16.mxu0 %v5603
        %5705 = vmatpush1.bf16.msra.mxu0 %v5602
        %5706 = vmatprep.subr.bf16.mxu0 %v5607
        %5707 = vmatpush1.bf16.msra.mxu0 %v5606
        %5708 = vmatprep.subr.bf16.mxu0 %v5611
        %5709 = vmatpush1.bf16.msra.mxu0 %v5610
        %5710 = vmatprep.mubr.bf16.mxu0 %v5257
        %5711 = vmatmul.mubr.bf16.gmra.mrb[0].mxu0 %v5256
        %v5712 = vpop.f32.mrb[0].mxu0
        %v5713 = vadd.f32 %v5341, %v5712
        %v5714 = vpop.f32.mrb[0].mxu0
        %v5715 = vadd.f32 %v5345, %v5714
        %v5716 = vpop.f32.mrb[0].mxu0
        %v5717 = vadd.f32 %v5341, %v5716
        %v5718 = vpop.f32.mrb[0].mxu0
        %v5719 = vadd.f32 %v5345, %v5718
        %5720 = vmatprep.mubr.bf16.mxu0 %v5259
        %5721 = vmatmul.mubr.bf16.gmra.mrb[0].mxu0 %v5258
        %v5722 = vpop.f32.mrb[0].mxu0
        %v5723 = vadd.f32 %v5341, %v5722
        %v5724 = vpop.f32.mrb[0].mxu0
        %v5725 = vadd.f32 %v5345, %v5724
        %v5726 = vpop.f32.mrb[0].mxu0
        %v5727 = vadd.f32 %v5341, %v5726
        %v5728 = vpop.f32.mrb[0].mxu0
        %v5729 = vadd.f32 %v5345, %v5728
        %5730 = vmatprep.mubr.bf16.mxu0 %v5261
        %5731 = vmatmul.mubr.bf16.gmra.mrb[0].mxu0 %v5260
        %v5732 = vpop.f32.mrb[0].mxu0
        %v5733 = vadd.f32 %v5341, %v5732
        %v5734 = vpop.f32.mrb[0].mxu0
        %v5735 = vadd.f32 %v5345, %v5734
        %v5736 = vpop.f32.mrb[0].mxu0
        %v5737 = vadd.f32 %v5341, %v5736
        %v5738 = vpop.f32.mrb[0].mxu0
        %v5739 = vadd.f32 %v5345, %v5738
        %5740 = vmatprep.mubr.bf16.mxu0 %v5263
        %5741 = vmatmul.mubr.bf16.gmra.mrb[0].mxu0 %v5262
        %v5742 = vpop.f32.mrb[0].mxu0
        %v5743 = vadd.f32 %v5341, %v5742
        %v5744 = vpop.f32.mrb[0].mxu0
        %v5745 = vadd.f32 %v5345, %v5744
        %v5746 = vpop.f32.mrb[0].mxu0
        %v5747 = vadd.f32 %v5341, %v5746
        %v5748 = vpop.f32.mrb[0].mxu0
        %v5749 = vadd.f32 %v5345, %v5748
        %5750 = vmatprep.mubr.bf16.mxu0 %v5265
        %5751 = vmatmul.mubr.bf16.gmra.mrb[0].mxu0 %v5264
        %v5752 = vpop.f32.mrb[0].mxu0
        %v5753 = vadd.f32 %v5341, %v5752
        %v5754 = vpop.f32.mrb[0].mxu0
        %v5755 = vadd.f32 %v5345, %v5754
        %v5756 = vpop.f32.mrb[0].mxu0
        %v5757 = vadd.f32 %v5341, %v5756
        %v5758 = vpop.f32.mrb[0].mxu0
        %v5759 = vadd.f32 %v5345, %v5758
        %5760 = vmatprep.mubr.bf16.mxu0 %v5267
        %5761 = vmatmul.mubr.bf16.gmra.mrb[0].mxu0 %v5266
        %v5762 = vpop.f32.mrb[0].mxu0
        %v5763 = vadd.f32 %v5341, %v5762
        %v5764 = vpop.f32.mrb[0].mxu0
        %v5765 = vadd.f32 %v5345, %v5764
        %v5766 = vpop.f32.mrb[0].mxu0
        %v5767 = vadd.f32 %v5341, %v5766
        %v5768 = vpop.f32.mrb[0].mxu0
        %v5769 = vadd.f32 %v5345, %v5768
        %5770 = vmatprep.mubr.bf16.mxu0 %v5269
        %5771 = vmatmul.mubr.bf16.gmra.mrb[0].mxu0 %v5268
        %v5772 = vpop.f32.mrb[0].mxu0
        %v5773 = vadd.f32 %v5341, %v5772
        %v5774 = vpop.f32.mrb[0].mxu0
        %v5775 = vadd.f32 %v5345, %v5774
        %v5776 = vpop.f32.mrb[0].mxu0
        %v5777 = vadd.f32 %v5341, %v5776
        %v5778 = vpop.f32.mrb[0].mxu0
        %v5779 = vadd.f32 %v5345, %v5778
        %5780 = vmatprep.mubr.bf16.mxu0 %v5271
        %5781 = vmatmul.mubr.bf16.gmra.mrb[0].mxu0 %v5270
        %v5782 = vpop.f32.mrb[0].mxu0
        %v5783 = vadd.f32 %v5341, %v5782
        %v5784 = vpop.f32.mrb[0].mxu0
        %v5785 = vadd.f32 %v5345, %v5784
        %v5786 = vpop.f32.mrb[0].mxu0
        %v5787 = vadd.f32 %v5341, %v5786
        %v5788 = vpop.f32.mrb[0].mxu0
        %v5789 = vadd.f32 %v5345, %v5788
        %5790 = vdwg.mxu0
        %5791 = vmatprep.subr.bf16.mxu0 %v5553
        %5792 = vmatpush1.bf16.msra.mxu0 %v5552
        %5793 = vmatprep.subr.bf16.mxu0 %v5557
        %5794 = vmatpush1.bf16.msra.mxu0 %v5556
        %5795 = vmatprep.subr.bf16.mxu0 %v5561
        %5796 = vmatpush1.bf16.msra.mxu0 %v5560
        %5797 = vmatprep.subr.bf16.mxu0 %v5565
        %5798 = vmatpush1.bf16.msra.mxu0 %v5564
        %5799 = vmatprep.subr.bf16.mxu0 %v5569
        %5800 = vmatpush1.bf16.msra.mxu0 %v5568
        %5801 = vmatprep.subr.bf16.mxu0 %v5573
        %5802 = vmatpush1.bf16.msra.mxu0 %v5572
        %5803 = vmatprep.subr.bf16.mxu0 %v5577
        %5804 = vmatpush1.bf16.msra.mxu0 %v5576
        %5805 = vmatprep.subr.bf16.mxu0 %v5581
        %5806 = vmatpush1.bf16.msra.mxu0 %v5580
        %5807 = vmatprep.subr.bf16.mxu0 %v5585
        %5808 = vmatpush1.bf16.msra.mxu0 %v5584
        %5809 = vmatprep.subr.bf16.mxu0 %v5589
        %5810 = vmatpush1.bf16.msra.mxu0 %v5588
        %5811 = vmatprep.subr.bf16.mxu0 %v5593
        %5812 = vmatpush1.bf16.msra.mxu0 %v5592
        %5813 = vmatprep.subr.bf16.mxu0 %v5597
        %5814 = vmatpush1.bf16.msra.mxu0 %v5596
        %5815 = vmatprep.subr.bf16.mxu0 %v5601
        %5816 = vmatpush1.bf16.msra.mxu0 %v5600
        %5817 = vmatprep.subr.bf16.mxu0 %v5605
        %5818 = vmatpush1.bf16.msra.mxu0 %v5604
        %5819 = vmatprep.subr.bf16.mxu0 %v5609
        %5820 = vmatpush1.bf16.msra.mxu0 %v5608
        %5821 = vmatprep.subr.bf16.mxu0 %v5613
        %5822 = vmatpush1.bf16.msra.mxu0 %v5612
        %5823 = vmatprep.mubr.bf16.mxu0 %v5257
        %5824 = vmatmul.mubr.bf16.gmra.mrb[0].mxu0 %v5256
        %v5825 = vpop.f32.mrb[0].mxu0
        %v5826 = vadd.f32 %v5349, %v5825
        %v5827 = vpop.f32.mrb[0].mxu0
        %v5828 = vadd.f32 %v5353, %v5827
        %v5829 = vpop.f32.mrb[0].mxu0
        %v5830 = vadd.f32 %v5349, %v5829
        %v5831 = vpop.f32.mrb[0].mxu0
        %v5832 = vadd.f32 %v5353, %v5831
        %5833 = vmatprep.mubr.bf16.mxu0 %v5259
        %5834 = vmatmul.mubr.bf16.gmra.mrb[0].mxu0 %v5258
        %v5835 = vpop.f32.mrb[0].mxu0
        %v5836 = vadd.f32 %v5349, %v5835
        %v5837 = vpop.f32.mrb[0].mxu0
        %v5838 = vadd.f32 %v5353, %v5837
        %v5839 = vpop.f32.mrb[0].mxu0
        %v5840 = vadd.f32 %v5349, %v5839
        %v5841 = vpop.f32.mrb[0].mxu0
        %v5842 = vadd.f32 %v5353, %v5841
        %5843 = vmatprep.mubr.bf16.mxu0 %v5261
        %5844 = vmatmul.mubr.bf16.gmra.mrb[0].mxu0 %v5260
        %v5845 = vpop.f32.mrb[0].mxu0
        %v5846 = vadd.f32 %v5349, %v5845
        %v5847 = vpop.f32.mrb[0].mxu0
        %v5848 = vadd.f32 %v5353, %v5847
        %v5849 = vpop.f32.mrb[0].mxu0
        %v5850 = vadd.f32 %v5349, %v5849
        %v5851 = vpop.f32.mrb[0].mxu0
        %v5852 = vadd.f32 %v5353, %v5851
        %5853 = vmatprep.mubr.bf16.mxu0 %v5263
        %5854 = vmatmul.mubr.bf16.gmra.mrb[0].mxu0 %v5262
        %v5855 = vpop.f32.mrb[0].mxu0
        %v5856 = vadd.f32 %v5349, %v5855
        %v5857 = vpop.f32.mrb[0].mxu0
        %v5858 = vadd.f32 %v5353, %v5857
        %v5859 = vpop.f32.mrb[0].mxu0
        %v5860 = vadd.f32 %v5349, %v5859
        %v5861 = vpop.f32.mrb[0].mxu0
        %v5862 = vadd.f32 %v5353, %v5861
        %5863 = vmatprep.mubr.bf16.mxu0 %v5265
        %5864 = vmatmul.mubr.bf16.gmra.mrb[0].mxu0 %v5264
        %v5865 = vpop.f32.mrb[0].mxu0
        %v5866 = vadd.f32 %v5349, %v5865
        %v5867 = vpop.f32.mrb[0].mxu0
        %v5868 = vadd.f32 %v5353, %v5867
        %v5869 = vpop.f32.mrb[0].mxu0
        %v5870 = vadd.f32 %v5349, %v5869
        %v5871 = vpop.f32.mrb[0].mxu0
        %v5872 = vadd.f32 %v5353, %v5871
        %5873 = vmatprep.mubr.bf16.mxu0 %v5267
        %5874 = vmatmul.mubr.bf16.gmra.mrb[0].mxu0 %v5266
        %v5875 = vpop.f32.mrb[0].mxu0
        %v5876 = vadd.f32 %v5349, %v5875
        %v5877 = vpop.f32.mrb[0].mxu0
        %v5878 = vadd.f32 %v5353, %v5877
        %v5879 = vpop.f32.mrb[0].mxu0
        %v5880 = vadd.f32 %v5349, %v5879
        %v5881 = vpop.f32.mrb[0].mxu0
        %v5882 = vadd.f32 %v5353, %v5881
        %5883 = vmatprep.mubr.bf16.mxu0 %v5269
        %5884 = vmatmul.mubr.bf16.gmra.mrb[0].mxu0 %v5268
        %v5885 = vpop.f32.mrb[0].mxu0
        %v5886 = vadd.f32 %v5349, %v5885
        %v5887 = vpop.f32.mrb[0].mxu0
        %v5888 = vadd.f32 %v5353, %v5887
        %v5889 = vpop.f32.mrb[0].mxu0
        %v5890 = vadd.f32 %v5349, %v5889
        %v5891 = vpop.f32.mrb[0].mxu0
        %v5892 = vadd.f32 %v5353, %v5891
        %5893 = vmatprep.mubr.bf16.mxu0 %v5271
        %5894 = vmatmul.mubr.bf16.gmra.mrb[0].mxu0 %v5270
        %v5895 = vpop.f32.mrb[0].mxu0
        %v5896 = vadd.f32 %v5349, %v5895
        %v5897 = vpop.f32.mrb[0].mxu0
        %v5898 = vadd.f32 %v5353, %v5897
        %v5899 = vpop.f32.mrb[0].mxu0
        %v5900 = vadd.f32 %v5349, %v5899
        %v5901 = vpop.f32.mrb[0].mxu0
        %v5902 = vadd.f32 %v5353, %v5901
        %5903 = vdwg.mxu0
        %v5904 = vmax.f32 %v5713, 0.0
        %v5905 = vmax.f32 %v5715, 0.0
        %v5906 = vmax.f32 %v5826, 0.0
        %v5907 = vmax.f32 %v5828, 0.0
        %v5908 = vmax.f32 %v5717, 0.0
        %v5909 = vmax.f32 %v5719, 0.0
        %v5910 = vmax.f32 %v5830, 0.0
        %v5911 = vmax.f32 %v5832, 0.0
        %v5912 = vmax.f32 %v5723, 0.0
        %v5913 = vmax.f32 %v5725, 0.0
        %v5914 = vmax.f32 %v5836, 0.0
        %v5915 = vmax.f32 %v5838, 0.0
        %v5916 = vmax.f32 %v5727, 0.0
        %v5917 = vmax.f32 %v5729, 0.0
        %v5918 = vmax.f32 %v5840, 0.0
        %v5919 = vmax.f32 %v5842, 0.0
        %v5920 = vmax.f32 %v5733, 0.0
        %v5921 = vmax.f32 %v5735, 0.0
        %v5922 = vmax.f32 %v5846, 0.0
        %v5923 = vmax.f32 %v5848, 0.0
        %v5924 = vmax.f32 %v5737, 0.0
        %v5925 = vmax.f32 %v5739, 0.0
        %v5926 = vmax.f32 %v5850, 0.0
        %v5927 = vmax.f32 %v5852, 0.0
        %v5928 = vmax.f32 %v5743, 0.0
        %v5929 = vmax.f32 %v5745, 0.0
        %v5930 = vmax.f32 %v5856, 0.0
        %v5931 = vmax.f32 %v5858, 0.0
        %v5932 = vmax.f32 %v5747, 0.0
        %v5933 = vmax.f32 %v5749, 0.0
        %v5934 = vmax.f32 %v5860, 0.0
        %v5935 = vmax.f32 %v5862, 0.0
        %v5936 = vmax.f32 %v5753, 0.0
        %v5937 = vmax.f32 %v5755, 0.0
        %v5938 = vmax.f32 %v5866, 0.0
        %v5939 = vmax.f32 %v5868, 0.0
        %v5940 = vmax.f32 %v5757, 0.0
        %v5941 = vmax.f32 %v5759, 0.0
        %v5942 = vmax.f32 %v5870, 0.0
        %v5943 = vmax.f32 %v5872, 0.0
        %v5944 = vmax.f32 %v5763, 0.0
        %v5945 = vmax.f32 %v5765, 0.0
        %v5946 = vmax.f32 %v5876, 0.0
        %v5947 = vmax.f32 %v5878, 0.0
        %v5948 = vmax.f32 %v5767, 0.0
        %v5949 = vmax.f32 %v5769, 0.0
        %v5950 = vmax.f32 %v5880, 0.0
        %v5951 = vmax.f32 %v5882, 0.0
        %v5952 = vmax.f32 %v5773, 0.0
        %v5953 = vmax.f32 %v5775, 0.0
        %v5954 = vmax.f32 %v5886, 0.0
        %v5955 = vmax.f32 %v5888, 0.0
        %v5956 = vmax.f32 %v5777, 0.0
        %v5957 = vmax.f32 %v5779, 0.0
        %v5958 = vmax.f32 %v5890, 0.0
        %v5959 = vmax.f32 %v5892, 0.0
        %v5960 = vmax.f32 %v5783, 0.0
        %v5961 = vmax.f32 %v5785, 0.0
        %v5962 = vmax.f32 %v5896, 0.0
        %v5963 = vmax.f32 %v5898, 0.0
        %v5964 = vmax.f32 %v5787, 0.0
        %v5965 = vmax.f32 %v5789, 0.0
        %v5966 = vmax.f32 %v5900, 0.0
        %v5967 = vmax.f32 %v5902, 0.0
        %v5968 = vpack.c.bf16 %v5908, %v5904
        %v5969 = vpack.c.bf16 %v5909, %v5905
        %v5970 = vpack.c.bf16 %v5910, %v5906
        %v5971 = vpack.c.bf16 %v5911, %v5907
        %v5972 = vpack.c.bf16 %v5916, %v5912
        %v5973 = vpack.c.bf16 %v5917, %v5913
        %v5974 = vpack.c.bf16 %v5918, %v5914
        %v5975 = vpack.c.bf16 %v5919, %v5915
        %v5976 = vpack.c.bf16 %v5924, %v5920
        %v5977 = vpack.c.bf16 %v5925, %v5921
        %v5978 = vpack.c.bf16 %v5926, %v5922
        %v5979 = vpack.c.bf16 %v5927, %v5923
        %v5980 = vpack.c.bf16 %v5932, %v5928
        %v5981 = vpack.c.bf16 %v5933, %v5929
        %v5982 = vpack.c.bf16 %v5934, %v5930
        %v5983 = vpack.c.bf16 %v5935, %v5931
        %v5984 = vpack.c.bf16 %v5940, %v5936
        %v5985 = vpack.c.bf16 %v5941, %v5937
        %v5986 = vpack.c.bf16 %v5942, %v5938
        %v5987 = vpack.c.bf16 %v5943, %v5939
        %v5988 = vpack.c.bf16 %v5948, %v5944
        %v5989 = vpack.c.bf16 %v5949, %v5945
        %v5990 = vpack.c.bf16 %v5950, %v5946
        %v5991 = vpack.c.bf16 %v5951, %v5947
        %v5992 = vpack.c.bf16 %v5956, %v5952
        %v5993 = vpack.c.bf16 %v5957, %v5953
        %v5994 = vpack.c.bf16 %v5958, %v5954
        %v5995 = vpack.c.bf16 %v5959, %v5955
        %v5996 = vpack.c.bf16 %v5964, %v5960
        %v5997 = vpack.c.bf16 %v5965, %v5961
        %v5998 = vpack.c.bf16 %v5966, %v5962
        %v5999 = vpack.c.bf16 %v5967, %v5963
        %v6000 = vld [vmem:[#allocation11] sm:$0xff]
        %v6001 = vld [vmem:[#allocation11 + $0x8] sm:$0xff]
        %v6002 = vld [vmem:[#allocation11 + $0x10] sm:$0xff]
        %v6003 = vld [vmem:[#allocation11 + $0x18] sm:$0xff]
        %v6004 = vld [vmem:[#allocation11 + $0x20] sm:$0xff]
        %v6005 = vld [vmem:[#allocation11 + $0x28] sm:$0xff]
        %v6006 = vld [vmem:[#allocation11 + $0x30] sm:$0xff]
        %v6007 = vld [vmem:[#allocation11 + $0x38] sm:$0xff]
        %v6008 = vld [vmem:[#allocation11 + $0x40] sm:$0xff]
        %v6009 = vld [vmem:[#allocation11 + $0x48] sm:$0xff]
        %v6010 = vld [vmem:[#allocation11 + $0x50] sm:$0xff]
        %v6011 = vld [vmem:[#allocation11 + $0x58] sm:$0xff]
        %v6012 = vld [vmem:[#allocation11 + $0x60] sm:$0xff]
        %v6013 = vld [vmem:[#allocation11 + $0x68] sm:$0xff]
        %v6014 = vld [vmem:[#allocation11 + $0x70] sm:$0xff]
        %v6015 = vld [vmem:[#allocation11 + $0x78] sm:$0xff]
        %v6016 = vld [vmem:[#allocation11 + $0x80] sm:$0xff]
        %v6017 = vld [vmem:[#allocation11 + $0x88] sm:$0xff]
        %v6018 = vld [vmem:[#allocation11 + $0x90] sm:$0xff]
        %v6019 = vld [vmem:[#allocation11 + $0x98] sm:$0xff]
        %v6020 = vld [vmem:[#allocation11 + $0xa0] sm:$0xff]
        %v6021 = vld [vmem:[#allocation11 + $0xa8] sm:$0xff]
        %v6022 = vld [vmem:[#allocation11 + $0xb0] sm:$0xff]
        %v6023 = vld [vmem:[#allocation11 + $0xb8] sm:$0xff]
        %v6024 = vld [vmem:[#allocation11 + $0xc0] sm:$0xff]
        %v6025 = vld [vmem:[#allocation11 + $0xc8] sm:$0xff]
        %v6026 = vld [vmem:[#allocation11 + $0xd0] sm:$0xff]
        %v6027 = vld [vmem:[#allocation11 + $0xd8] sm:$0xff]
        %v6028 = vld [vmem:[#allocation11 + $0xe0] sm:$0xff]
        %v6029 = vld [vmem:[#allocation11 + $0xe8] sm:$0xff]
        %v6030 = vld [vmem:[#allocation11 + $0xf0] sm:$0xff]
        %v6031 = vld [vmem:[#allocation11 + $0xf8] sm:$0xff]
        %v6032 = vld [vmem:[#allocation11 + $0x100] sm:$0xff]
        %v6033 = vld [vmem:[#allocation11 + $0x108] sm:$0xff]
        %v6034 = vld [vmem:[#allocation11 + $0x110] sm:$0xff]
        %v6035 = vld [vmem:[#allocation11 + $0x118] sm:$0xff]
        %v6036 = vld [vmem:[#allocation11 + $0x120] sm:$0xff]
        %v6037 = vld [vmem:[#allocation11 + $0x128] sm:$0xff]
        %v6038 = vld [vmem:[#allocation11 + $0x130] sm:$0xff]
        %v6039 = vld [vmem:[#allocation11 + $0x138] sm:$0xff]
        %v6040 = vld [vmem:[#allocation11 + $0x140] sm:$0xff]
        %v6041 = vld [vmem:[#allocation11 + $0x148] sm:$0xff]
        %v6042 = vld [vmem:[#allocation11 + $0x150] sm:$0xff]
        %v6043 = vld [vmem:[#allocation11 + $0x158] sm:$0xff]
        %v6044 = vld [vmem:[#allocation11 + $0x160] sm:$0xff]
        %v6045 = vld [vmem:[#allocation11 + $0x168] sm:$0xff]
        %v6046 = vld [vmem:[#allocation11 + $0x170] sm:$0xff]
        %v6047 = vld [vmem:[#allocation11 + $0x178] sm:$0xff]
        %v6048 = vld [vmem:[#allocation11 + $0x180] sm:$0xff]
        %v6049 = vld [vmem:[#allocation11 + $0x188] sm:$0xff]
        %v6050 = vld [vmem:[#allocation11 + $0x190] sm:$0xff]
        %v6051 = vld [vmem:[#allocation11 + $0x198] sm:$0xff]
        %v6052 = vld [vmem:[#allocation11 + $0x1a0] sm:$0xff]
        %v6053 = vld [vmem:[#allocation11 + $0x1a8] sm:$0xff]
        %v6054 = vld [vmem:[#allocation11 + $0x1b0] sm:$0xff]
        %v6055 = vld [vmem:[#allocation11 + $0x1b8] sm:$0xff]
        %v6056 = vld [vmem:[#allocation11 + $0x1c0] sm:$0xff]
        %v6057 = vld [vmem:[#allocation11 + $0x1c8] sm:$0xff]
        %v6058 = vld [vmem:[#allocation11 + $0x1d0] sm:$0xff]
        %v6059 = vld [vmem:[#allocation11 + $0x1d8] sm:$0xff]
        %v6060 = vld [vmem:[#allocation11 + $0x1e0] sm:$0xff]
        %v6061 = vld [vmem:[#allocation11 + $0x1e8] sm:$0xff]
        %v6062 = vld [vmem:[#allocation11 + $0x1f0] sm:$0xff]
        %v6063 = vld [vmem:[#allocation11 + $0x1f8] sm:$0xff]
        %v6064 = vld [vmem:[%s8] sm:$0x3]
        %v6066 = vlaneseq
        %v6067 = vshrl.u32 %v6066, 7
        %v6068 = vsub.s32 0, %v6067
        %v6069 = vrot.slane %v6064, %v6068
        %v6070 = vlaneseq
        %v6071 = vshrl.u32 %v6070, 7
        %v6072 = vsub.s32 1, %v6071
        %v6073 = vrot.slane %v6064, %v6072
        %v6140 = vunpack.c.l.b16 %v6000
        %v6141 = vunpack.c.h.b16 %v6000
        %v6142 = vunpack.c.l.b16 %v6001
        %v6143 = vunpack.c.h.b16 %v6001
        %v6144 = vunpack.c.l.b16 %v6002
        %v6145 = vunpack.c.h.b16 %v6002
        %v6146 = vunpack.c.l.b16 %v6003
        %v6147 = vunpack.c.h.b16 %v6003
        %v6148 = vunpack.c.l.b16 %v6004
        %v6149 = vunpack.c.h.b16 %v6004
        %v6150 = vunpack.c.l.b16 %v6005
        %v6151 = vunpack.c.h.b16 %v6005
        %v6152 = vunpack.c.l.b16 %v6006
        %v6153 = vunpack.c.h.b16 %v6006
        %v6154 = vunpack.c.l.b16 %v6007
        %v6155 = vunpack.c.h.b16 %v6007
        %v6156 = vunpack.c.l.b16 %v6008
        %v6157 = vunpack.c.h.b16 %v6008
        %v6158 = vunpack.c.l.b16 %v6009
        %v6159 = vunpack.c.h.b16 %v6009
        %v6160 = vunpack.c.l.b16 %v6010
        %v6161 = vunpack.c.h.b16 %v6010
        %v6162 = vunpack.c.l.b16 %v6011
        %v6163 = vunpack.c.h.b16 %v6011
        %v6164 = vunpack.c.l.b16 %v6012
        %v6165 = vunpack.c.h.b16 %v6012
        %v6166 = vunpack.c.l.b16 %v6013
        %v6167 = vunpack.c.h.b16 %v6013
        %v6168 = vunpack.c.l.b16 %v6014
        %v6169 = vunpack.c.h.b16 %v6014
        %v6170 = vunpack.c.l.b16 %v6015
        %v6171 = vunpack.c.h.b16 %v6015
        %v6172 = vunpack.c.l.b16 %v6016
        %v6173 = vunpack.c.h.b16 %v6016
        %v6174 = vunpack.c.l.b16 %v6017
        %v6175 = vunpack.c.h.b16 %v6017
        %v6176 = vunpack.c.l.b16 %v6018
        %v6177 = vunpack.c.h.b16 %v6018
        %v6178 = vunpack.c.l.b16 %v6019
        %v6179 = vunpack.c.h.b16 %v6019
        %v6180 = vunpack.c.l.b16 %v6020
        %v6181 = vunpack.c.h.b16 %v6020
        %v6182 = vunpack.c.l.b16 %v6021
        %v6183 = vunpack.c.h.b16 %v6021
        %v6184 = vunpack.c.l.b16 %v6022
        %v6185 = vunpack.c.h.b16 %v6022
        %v6186 = vunpack.c.l.b16 %v6023
        %v6187 = vunpack.c.h.b16 %v6023
        %v6188 = vunpack.c.l.b16 %v6024
        %v6189 = vunpack.c.h.b16 %v6024
        %v6190 = vunpack.c.l.b16 %v6025
        %v6191 = vunpack.c.h.b16 %v6025
        %v6192 = vunpack.c.l.b16 %v6026
        %v6193 = vunpack.c.h.b16 %v6026
        %v6194 = vunpack.c.l.b16 %v6027
        %v6195 = vunpack.c.h.b16 %v6027
        %v6196 = vunpack.c.l.b16 %v6028
        %v6197 = vunpack.c.h.b16 %v6028
        %v6198 = vunpack.c.l.b16 %v6029
        %v6199 = vunpack.c.h.b16 %v6029
        %v6200 = vunpack.c.l.b16 %v6030
        %v6201 = vunpack.c.h.b16 %v6030
        %v6202 = vunpack.c.l.b16 %v6031
        %v6203 = vunpack.c.h.b16 %v6031
        %v6204 = vunpack.c.l.b16 %v6032
        %v6205 = vunpack.c.h.b16 %v6032
        %v6206 = vunpack.c.l.b16 %v6033
        %v6207 = vunpack.c.h.b16 %v6033
        %v6208 = vunpack.c.l.b16 %v6034
        %v6209 = vunpack.c.h.b16 %v6034
        %v6210 = vunpack.c.l.b16 %v6035
        %v6211 = vunpack.c.h.b16 %v6035
        %v6212 = vunpack.c.l.b16 %v6036
        %v6213 = vunpack.c.h.b16 %v6036
        %v6214 = vunpack.c.l.b16 %v6037
        %v6215 = vunpack.c.h.b16 %v6037
        %v6216 = vunpack.c.l.b16 %v6038
        %v6217 = vunpack.c.h.b16 %v6038
        %v6218 = vunpack.c.l.b16 %v6039
        %v6219 = vunpack.c.h.b16 %v6039
        %v6220 = vunpack.c.l.b16 %v6040
        %v6221 = vunpack.c.h.b16 %v6040
        %v6222 = vunpack.c.l.b16 %v6041
        %v6223 = vunpack.c.h.b16 %v6041
        %v6224 = vunpack.c.l.b16 %v6042
        %v6225 = vunpack.c.h.b16 %v6042
        %v6226 = vunpack.c.l.b16 %v6043
        %v6227 = vunpack.c.h.b16 %v6043
        %v6228 = vunpack.c.l.b16 %v6044
        %v6229 = vunpack.c.h.b16 %v6044
        %v6230 = vunpack.c.l.b16 %v6045
        %v6231 = vunpack.c.h.b16 %v6045
        %v6232 = vunpack.c.l.b16 %v6046
        %v6233 = vunpack.c.h.b16 %v6046
        %v6234 = vunpack.c.l.b16 %v6047
        %v6235 = vunpack.c.h.b16 %v6047
        %v6236 = vunpack.c.l.b16 %v6048
        %v6237 = vunpack.c.h.b16 %v6048
        %v6238 = vunpack.c.l.b16 %v6049
        %v6239 = vunpack.c.h.b16 %v6049
        %v6240 = vunpack.c.l.b16 %v6050
        %v6241 = vunpack.c.h.b16 %v6050
        %v6242 = vunpack.c.l.b16 %v6051
        %v6243 = vunpack.c.h.b16 %v6051
        %v6244 = vunpack.c.l.b16 %v6052
        %v6245 = vunpack.c.h.b16 %v6052
        %v6246 = vunpack.c.l.b16 %v6053
        %v6247 = vunpack.c.h.b16 %v6053
        %v6248 = vunpack.c.l.b16 %v6054
        %v6249 = vunpack.c.h.b16 %v6054
        %v6250 = vunpack.c.l.b16 %v6055
        %v6251 = vunpack.c.h.b16 %v6055
        %v6252 = vunpack.c.l.b16 %v6056
        %v6253 = vunpack.c.h.b16 %v6056
        %v6254 = vunpack.c.l.b16 %v6057
        %v6255 = vunpack.c.h.b16 %v6057
        %v6256 = vunpack.c.l.b16 %v6058
        %v6257 = vunpack.c.h.b16 %v6058
        %v6258 = vunpack.c.l.b16 %v6059
        %v6259 = vunpack.c.h.b16 %v6059
        %v6260 = vunpack.c.l.b16 %v6060
        %v6261 = vunpack.c.h.b16 %v6060
        %v6262 = vunpack.c.l.b16 %v6061
        %v6263 = vunpack.c.h.b16 %v6061
        %v6264 = vunpack.c.l.b16 %v6062
        %v6265 = vunpack.c.h.b16 %v6062
        %v6266 = vunpack.c.l.b16 %v6063
        %v6267 = vunpack.c.h.b16 %v6063
        %v6268 = vpack.c.b16 %v6142, %v6140
        %v6269 = vpack.c.b16 %v6143, %v6141
        %v6270 = vpack.c.b16 %v6146, %v6144
        %v6271 = vpack.c.b16 %v6147, %v6145
        %v6272 = vpack.c.b16 %v6150, %v6148
        %v6273 = vpack.c.b16 %v6151, %v6149
        %v6274 = vpack.c.b16 %v6154, %v6152
        %v6275 = vpack.c.b16 %v6155, %v6153
        %v6276 = vpack.c.b16 %v6158, %v6156
        %v6277 = vpack.c.b16 %v6159, %v6157
        %v6278 = vpack.c.b16 %v6162, %v6160
        %v6279 = vpack.c.b16 %v6163, %v6161
        %v6280 = vpack.c.b16 %v6166, %v6164
        %v6281 = vpack.c.b16 %v6167, %v6165
        %v6282 = vpack.c.b16 %v6170, %v6168
        %v6283 = vpack.c.b16 %v6171, %v6169
        %v6284 = vpack.c.b16 %v6174, %v6172
        %v6285 = vpack.c.b16 %v6175, %v6173
        %v6286 = vpack.c.b16 %v6178, %v6176
        %v6287 = vpack.c.b16 %v6179, %v6177
        %v6288 = vpack.c.b16 %v6182, %v6180
        %v6289 = vpack.c.b16 %v6183, %v6181
        %v6290 = vpack.c.b16 %v6186, %v6184
        %v6291 = vpack.c.b16 %v6187, %v6185
        %v6292 = vpack.c.b16 %v6190, %v6188
        %v6293 = vpack.c.b16 %v6191, %v6189
        %v6294 = vpack.c.b16 %v6194, %v6192
        %v6295 = vpack.c.b16 %v6195, %v6193
        %v6296 = vpack.c.b16 %v6198, %v6196
        %v6297 = vpack.c.b16 %v6199, %v6197
        %v6298 = vpack.c.b16 %v6202, %v6200
        %v6299 = vpack.c.b16 %v6203, %v6201
        %v6300 = vpack.c.b16 %v6206, %v6204
        %v6301 = vpack.c.b16 %v6207, %v6205
        %v6302 = vpack.c.b16 %v6210, %v6208
        %v6303 = vpack.c.b16 %v6211, %v6209
        %v6304 = vpack.c.b16 %v6214, %v6212
        %v6305 = vpack.c.b16 %v6215, %v6213
        %v6306 = vpack.c.b16 %v6218, %v6216
        %v6307 = vpack.c.b16 %v6219, %v6217
        %v6308 = vpack.c.b16 %v6222, %v6220
        %v6309 = vpack.c.b16 %v6223, %v6221
        %v6310 = vpack.c.b16 %v6226, %v6224
        %v6311 = vpack.c.b16 %v6227, %v6225
        %v6312 = vpack.c.b16 %v6230, %v6228
        %v6313 = vpack.c.b16 %v6231, %v6229
        %v6314 = vpack.c.b16 %v6234, %v6232
        %v6315 = vpack.c.b16 %v6235, %v6233
        %v6316 = vpack.c.b16 %v6238, %v6236
        %v6317 = vpack.c.b16 %v6239, %v6237
        %v6318 = vpack.c.b16 %v6242, %v6240
        %v6319 = vpack.c.b16 %v6243, %v6241
        %v6320 = vpack.c.b16 %v6246, %v6244
        %v6321 = vpack.c.b16 %v6247, %v6245
        %v6322 = vpack.c.b16 %v6250, %v6248
        %v6323 = vpack.c.b16 %v6251, %v6249
        %v6324 = vpack.c.b16 %v6254, %v6252
        %v6325 = vpack.c.b16 %v6255, %v6253
        %v6326 = vpack.c.b16 %v6258, %v6256
        %v6327 = vpack.c.b16 %v6259, %v6257
        %v6328 = vpack.c.b16 %v6262, %v6260
        %v6329 = vpack.c.b16 %v6263, %v6261
        %v6330 = vpack.c.b16 %v6266, %v6264
        %v6331 = vpack.c.b16 %v6267, %v6265
        %6396 = vmatprep.subr.bf16.mxu0 %v6269
        %6397 = vmatpush1.bf16.msra.mxu0 %v6268
        %6398 = vmatprep.subr.bf16.mxu0 %v6271
        %6399 = vmatpush1.bf16.msra.mxu0 %v6270
        %6400 = vmatprep.subr.bf16.mxu0 %v6273
        %6401 = vmatpush1.bf16.msra.mxu0 %v6272
        %6402 = vmatprep.subr.bf16.mxu0 %v6275
        %6403 = vmatpush1.bf16.msra.mxu0 %v6274
        %6404 = vmatprep.subr.bf16.mxu0 %v6277
        %6405 = vmatpush1.bf16.msra.mxu0 %v6276
        %6406 = vmatprep.subr.bf16.mxu0 %v6279
        %6407 = vmatpush1.bf16.msra.mxu0 %v6278
        %6408 = vmatprep.subr.bf16.mxu0 %v6281
        %6409 = vmatpush1.bf16.msra.mxu0 %v6280
        %6410 = vmatprep.subr.bf16.mxu0 %v6283
        %6411 = vmatpush1.bf16.msra.mxu0 %v6282
        %6412 = vmatprep.subr.bf16.mxu0 %v6285
        %6413 = vmatpush1.bf16.msra.mxu0 %v6284
        %6414 = vmatprep.subr.bf16.mxu0 %v6287
        %6415 = vmatpush1.bf16.msra.mxu0 %v6286
        %6416 = vmatprep.subr.bf16.mxu0 %v6289
        %6417 = vmatpush1.bf16.msra.mxu0 %v6288
        %6418 = vmatprep.subr.bf16.mxu0 %v6291
        %6419 = vmatpush1.bf16.msra.mxu0 %v6290
        %6420 = vmatprep.subr.bf16.mxu0 %v6293
        %6421 = vmatpush1.bf16.msra.mxu0 %v6292
        %6422 = vmatprep.subr.bf16.mxu0 %v6295
        %6423 = vmatpush1.bf16.msra.mxu0 %v6294
        %6424 = vmatprep.subr.bf16.mxu0 %v6297
        %6425 = vmatpush1.bf16.msra.mxu0 %v6296
        %6426 = vmatprep.subr.bf16.mxu0 %v6299
        %6427 = vmatpush1.bf16.msra.mxu0 %v6298
        %6428 = vmatprep.mubr.bf16.mxu0 %v5969
        %6429 = vmatmul.mubr.bf16.gmra.mrb[0].mxu0 %v5968
        %v6430 = vpop.f32.mrb[0].mxu0
        %v6431 = vadd.f32 %v6069, %v6430
        %v6432 = vpop.f32.mrb[0].mxu0
        %v6433 = vadd.f32 %v6073, %v6432
        %v6434 = vpop.f32.mrb[0].mxu0
        %v6435 = vadd.f32 %v6069, %v6434
        %v6436 = vpop.f32.mrb[0].mxu0
        %v6437 = vadd.f32 %v6073, %v6436
        %6438 = vmatprep.mubr.bf16.mxu0 %v5973
        %6439 = vmatmul.mubr.bf16.gmra.mrb[0].mxu0 %v5972
        %v6440 = vpop.f32.mrb[0].mxu0
        %v6441 = vadd.f32 %v6069, %v6440
        %v6442 = vpop.f32.mrb[0].mxu0
        %v6443 = vadd.f32 %v6073, %v6442
        %v6444 = vpop.f32.mrb[0].mxu0
        %v6445 = vadd.f32 %v6069, %v6444
        %v6446 = vpop.f32.mrb[0].mxu0
        %v6447 = vadd.f32 %v6073, %v6446
        %6448 = vmatprep.mubr.bf16.mxu0 %v5977
        %6449 = vmatmul.mubr.bf16.gmra.mrb[0].mxu0 %v5976
        %v6450 = vpop.f32.mrb[0].mxu0
        %v6451 = vadd.f32 %v6069, %v6450
        %v6452 = vpop.f32.mrb[0].mxu0
        %v6453 = vadd.f32 %v6073, %v6452
        %v6454 = vpop.f32.mrb[0].mxu0
        %v6455 = vadd.f32 %v6069, %v6454
        %v6456 = vpop.f32.mrb[0].mxu0
        %v6457 = vadd.f32 %v6073, %v6456
        %6458 = vmatprep.mubr.bf16.mxu0 %v5981
        %6459 = vmatmul.mubr.bf16.gmra.mrb[0].mxu0 %v5980
        %v6460 = vpop.f32.mrb[0].mxu0
        %v6461 = vadd.f32 %v6069, %v6460
        %v6462 = vpop.f32.mrb[0].mxu0
        %v6463 = vadd.f32 %v6073, %v6462
        %v6464 = vpop.f32.mrb[0].mxu0
        %v6465 = vadd.f32 %v6069, %v6464
        %v6466 = vpop.f32.mrb[0].mxu0
        %v6467 = vadd.f32 %v6073, %v6466
        %6468 = vmatprep.mubr.bf16.mxu0 %v5985
        %6469 = vmatmul.mubr.bf16.gmra.mrb[0].mxu0 %v5984
        %v6470 = vpop.f32.mrb[0].mxu0
        %v6471 = vadd.f32 %v6069, %v6470
        %v6472 = vpop.f32.mrb[0].mxu0
        %v6473 = vadd.f32 %v6073, %v6472
        %v6474 = vpop.f32.mrb[0].mxu0
        %v6475 = vadd.f32 %v6069, %v6474
        %v6476 = vpop.f32.mrb[0].mxu0
        %v6477 = vadd.f32 %v6073, %v6476
        %6478 = vmatprep.mubr.bf16.mxu0 %v5989
        %6479 = vmatmul.mubr.bf16.gmra.mrb[0].mxu0 %v5988
        %v6480 = vpop.f32.mrb[0].mxu0
        %v6481 = vadd.f32 %v6069, %v6480
        %v6482 = vpop.f32.mrb[0].mxu0
        %v6483 = vadd.f32 %v6073, %v6482
        %v6484 = vpop.f32.mrb[0].mxu0
        %v6485 = vadd.f32 %v6069, %v6484
        %v6486 = vpop.f32.mrb[0].mxu0
        %v6487 = vadd.f32 %v6073, %v6486
        %6488 = vmatprep.mubr.bf16.mxu0 %v5993
        %6489 = vmatmul.mubr.bf16.gmra.mrb[0].mxu0 %v5992
        %v6490 = vpop.f32.mrb[0].mxu0
        %v6491 = vadd.f32 %v6069, %v6490
        %v6492 = vpop.f32.mrb[0].mxu0
        %v6493 = vadd.f32 %v6073, %v6492
        %v6494 = vpop.f32.mrb[0].mxu0
        %v6495 = vadd.f32 %v6069, %v6494
        %v6496 = vpop.f32.mrb[0].mxu0
        %v6497 = vadd.f32 %v6073, %v6496
        %6498 = vmatprep.mubr.bf16.mxu0 %v5997
        %6499 = vmatmul.mubr.bf16.gmra.mrb[0].mxu0 %v5996
        %v6500 = vpop.f32.mrb[0].mxu0
        %v6501 = vadd.f32 %v6069, %v6500
        %v6502 = vpop.f32.mrb[0].mxu0
        %v6503 = vadd.f32 %v6073, %v6502
        %v6504 = vpop.f32.mrb[0].mxu0
        %v6505 = vadd.f32 %v6069, %v6504
        %v6506 = vpop.f32.mrb[0].mxu0
        %v6507 = vadd.f32 %v6073, %v6506
        %6508 = vdwg.mxu0
        %6509 = vmatprep.subr.bf16.mxu0 %v6301
        %6510 = vmatpush1.bf16.msra.mxu0 %v6300
        %6511 = vmatprep.subr.bf16.mxu0 %v6303
        %6512 = vmatpush1.bf16.msra.mxu0 %v6302
        %6513 = vmatprep.subr.bf16.mxu0 %v6305
        %6514 = vmatpush1.bf16.msra.mxu0 %v6304
        %6515 = vmatprep.subr.bf16.mxu0 %v6307
        %6516 = vmatpush1.bf16.msra.mxu0 %v6306
        %6517 = vmatprep.subr.bf16.mxu0 %v6309
        %6518 = vmatpush1.bf16.msra.mxu0 %v6308
        %6519 = vmatprep.subr.bf16.mxu0 %v6311
        %6520 = vmatpush1.bf16.msra.mxu0 %v6310
        %6521 = vmatprep.subr.bf16.mxu0 %v6313
        %6522 = vmatpush1.bf16.msra.mxu0 %v6312
        %6523 = vmatprep.subr.bf16.mxu0 %v6315
        %6524 = vmatpush1.bf16.msra.mxu0 %v6314
        %6525 = vmatprep.subr.bf16.mxu0 %v6317
        %6526 = vmatpush1.bf16.msra.mxu0 %v6316
        %6527 = vmatprep.subr.bf16.mxu0 %v6319
        %6528 = vmatpush1.bf16.msra.mxu0 %v6318
        %6529 = vmatprep.subr.bf16.mxu0 %v6321
        %6530 = vmatpush1.bf16.msra.mxu0 %v6320
        %6531 = vmatprep.subr.bf16.mxu0 %v6323
        %6532 = vmatpush1.bf16.msra.mxu0 %v6322
        %6533 = vmatprep.subr.bf16.mxu0 %v6325
        %6534 = vmatpush1.bf16.msra.mxu0 %v6324
        %6535 = vmatprep.subr.bf16.mxu0 %v6327
        %6536 = vmatpush1.bf16.msra.mxu0 %v6326
        %6537 = vmatprep.subr.bf16.mxu0 %v6329
        %6538 = vmatpush1.bf16.msra.mxu0 %v6328
        %6539 = vmatprep.subr.bf16.mxu0 %v6331
        %6540 = vmatpush1.bf16.msra.mxu0 %v6330
        %6541 = vmatprep.mubr.bf16.mxu0 %v5971
        %6542 = vmatmul.mubr.bf16.gmra.mrb[0].mxu0 %v5970
        %v6543 = vpop.f32.mrb[0].mxu0
        %v6544 = vadd.f32 %v6431, %v6543
        %v6545 = vpop.f32.mrb[0].mxu0
        %v6546 = vadd.f32 %v6433, %v6545
        %v6547 = vpop.f32.mrb[0].mxu0
        %v6548 = vadd.f32 %v6435, %v6547
        %v6549 = vpop.f32.mrb[0].mxu0
        %v6550 = vadd.f32 %v6437, %v6549
        %6551 = vmatprep.mubr.bf16.mxu0 %v5975
        %6552 = vmatmul.mubr.bf16.gmra.mrb[0].mxu0 %v5974
        %v6553 = vpop.f32.mrb[0].mxu0
        %v6554 = vadd.f32 %v6441, %v6553
        %v6555 = vpop.f32.mrb[0].mxu0
        %v6556 = vadd.f32 %v6443, %v6555
        %v6557 = vpop.f32.mrb[0].mxu0
        %v6558 = vadd.f32 %v6445, %v6557
        %v6559 = vpop.f32.mrb[0].mxu0
        %v6560 = vadd.f32 %v6447, %v6559
        %6561 = vmatprep.mubr.bf16.mxu0 %v5979
        %6562 = vmatmul.mubr.bf16.gmra.mrb[0].mxu0 %v5978
        %v6563 = vpop.f32.mrb[0].mxu0
        %v6564 = vadd.f32 %v6451, %v6563
        %v6565 = vpop.f32.mrb[0].mxu0
        %v6566 = vadd.f32 %v6453, %v6565
        %v6567 = vpop.f32.mrb[0].mxu0
        %v6568 = vadd.f32 %v6455, %v6567
        %v6569 = vpop.f32.mrb[0].mxu0
        %v6570 = vadd.f32 %v6457, %v6569
        %6571 = vmatprep.mubr.bf16.mxu0 %v5983
        %6572 = vmatmul.mubr.bf16.gmra.mrb[0].mxu0 %v5982
        %v6573 = vpop.f32.mrb[0].mxu0
        %v6574 = vadd.f32 %v6461, %v6573
        %v6575 = vpop.f32.mrb[0].mxu0
        %v6576 = vadd.f32 %v6463, %v6575
        %v6577 = vpop.f32.mrb[0].mxu0
        %v6578 = vadd.f32 %v6465, %v6577
        %v6579 = vpop.f32.mrb[0].mxu0
        %v6580 = vadd.f32 %v6467, %v6579
        %6581 = vmatprep.mubr.bf16.mxu0 %v5987
        %6582 = vmatmul.mubr.bf16.gmra.mrb[0].mxu0 %v5986
        %v6583 = vpop.f32.mrb[0].mxu0
        %v6584 = vadd.f32 %v6471, %v6583
        %v6585 = vpop.f32.mrb[0].mxu0
        %v6586 = vadd.f32 %v6473, %v6585
        %v6587 = vpop.f32.mrb[0].mxu0
        %v6588 = vadd.f32 %v6475, %v6587
        %v6589 = vpop.f32.mrb[0].mxu0
        %v6590 = vadd.f32 %v6477, %v6589
        %6591 = vmatprep.mubr.bf16.mxu0 %v5991
        %6592 = vmatmul.mubr.bf16.gmra.mrb[0].mxu0 %v5990
        %v6593 = vpop.f32.mrb[0].mxu0
        %v6594 = vadd.f32 %v6481, %v6593
        %v6595 = vpop.f32.mrb[0].mxu0
        %v6596 = vadd.f32 %v6483, %v6595
        %v6597 = vpop.f32.mrb[0].mxu0
        %v6598 = vadd.f32 %v6485, %v6597
        %v6599 = vpop.f32.mrb[0].mxu0
        %v6600 = vadd.f32 %v6487, %v6599
        %6601 = vmatprep.mubr.bf16.mxu0 %v5995
        %6602 = vmatmul.mubr.bf16.gmra.mrb[0].mxu0 %v5994
        %v6603 = vpop.f32.mrb[0].mxu0
        %v6604 = vadd.f32 %v6491, %v6603
        %v6605 = vpop.f32.mrb[0].mxu0
        %v6606 = vadd.f32 %v6493, %v6605
        %v6607 = vpop.f32.mrb[0].mxu0
        %v6608 = vadd.f32 %v6495, %v6607
        %v6609 = vpop.f32.mrb[0].mxu0
        %v6610 = vadd.f32 %v6497, %v6609
        %6611 = vmatprep.mubr.bf16.mxu0 %v5999
        %6612 = vmatmul.mubr.bf16.gmra.mrb[0].mxu0 %v5998
        %v6613 = vpop.f32.mrb[0].mxu0
        %v6614 = vadd.f32 %v6501, %v6613
        %v6615 = vpop.f32.mrb[0].mxu0
        %v6616 = vadd.f32 %v6503, %v6615
        %v6617 = vpop.f32.mrb[0].mxu0
        %v6618 = vadd.f32 %v6505, %v6617
        %v6619 = vpop.f32.mrb[0].mxu0
        %v6620 = vadd.f32 %v6507, %v6619
        %6621 = vdwg.mxu0
        %v6622 = vadd.f32 %v5224, %v6544
        %v6623 = vadd.f32 %v5225, %v6546
        %v6624 = vadd.f32 %v5226, %v6548
        %v6625 = vadd.f32 %v5227, %v6550
        %v6626 = vadd.f32 %v5228, %v6554
        %v6627 = vadd.f32 %v5229, %v6556
        %v6628 = vadd.f32 %v5230, %v6558
        %v6629 = vadd.f32 %v5231, %v6560
        %v6630 = vadd.f32 %v5232, %v6564
        %v6631 = vadd.f32 %v5233, %v6566
        %v6632 = vadd.f32 %v5234, %v6568
        %v6633 = vadd.f32 %v5235, %v6570
        %v6634 = vadd.f32 %v5236, %v6574
        %v6635 = vadd.f32 %v5237, %v6576
        %v6636 = vadd.f32 %v5238, %v6578
        %v6637 = vadd.f32 %v5239, %v6580
        %v6638 = vadd.f32 %v5240, %v6584
        %v6639 = vadd.f32 %v5241, %v6586
        %v6640 = vadd.f32 %v5242, %v6588
        %v6641 = vadd.f32 %v5243, %v6590
        %v6642 = vadd.f32 %v5244, %v6594
        %v6643 = vadd.f32 %v5245, %v6596
        %v6644 = vadd.f32 %v5246, %v6598
        %v6645 = vadd.f32 %v5247, %v6600
        %v6646 = vadd.f32 %v5248, %v6604
        %v6647 = vadd.f32 %v5249, %v6606
        %v6648 = vadd.f32 %v5250, %v6608
        %v6649 = vadd.f32 %v5251, %v6610
        %v6650 = vadd.f32 %v5252, %v6614
        %v6651 = vadd.f32 %v5253, %v6616
        %v6652 = vadd.f32 %v5254, %v6618
        %v6653 = vadd.f32 %v5255, %v6620
        %v6654 = vld [vmem:[%s11] sm:$0xf]
        %v6655 = vld [vmem:[%s12] sm:$0x3]
        %6656 = vadd.xlane.f32.xlu0 %v6622
        %v6657 = vpop.xlane.xlu0 %6656
        %6658 = vadd.xlane.f32.xlu0 %v6624
        %v6659 = vpop.xlane.xlu0 %6658
        %6660 = vadd.xlane.f32.xlu0 %v6626
        %v6661 = vpop.xlane.xlu0 %6660
        %6662 = vadd.xlane.f32.xlu0 %v6628
        %v6663 = vpop.xlane.xlu0 %6662
        %6664 = vadd.xlane.f32.xlu0 %v6630
        %v6665 = vpop.xlane.xlu0 %6664
        %6666 = vadd.xlane.f32.xlu0 %v6632
        %v6667 = vpop.xlane.xlu0 %6666
        %6668 = vadd.xlane.f32.xlu0 %v6634
        %v6669 = vpop.xlane.xlu0 %6668
        %6670 = vadd.xlane.f32.xlu0 %v6636
        %v6671 = vpop.xlane.xlu0 %6670
        %6672 = vadd.xlane.f32.xlu0 %v6638
        %v6673 = vpop.xlane.xlu0 %6672
        %6674 = vadd.xlane.f32.xlu0 %v6640
        %v6675 = vpop.xlane.xlu0 %6674
        %6676 = vadd.xlane.f32.xlu0 %v6642
        %v6677 = vpop.xlane.xlu0 %6676
        %6678 = vadd.xlane.f32.xlu0 %v6644
        %v6679 = vpop.xlane.xlu0 %6678
        %6680 = vadd.xlane.f32.xlu0 %v6646
        %v6681 = vpop.xlane.xlu0 %6680
        %6682 = vadd.xlane.f32.xlu0 %v6648
        %v6683 = vpop.xlane.xlu0 %6682
        %6684 = vadd.xlane.f32.xlu0 %v6650
        %v6685 = vpop.xlane.xlu0 %6684
        %6686 = vadd.xlane.f32.xlu0 %v6652
        %v6687 = vpop.xlane.xlu0 %6686
        %v6688 = vmul.f32 %v6657, %v4220
        %v6689 = vmul.f32 %v6659, %v4220
        %v6690 = vmul.f32 %v6661, %v4220
        %v6691 = vmul.f32 %v6663, %v4220
        %v6692 = vmul.f32 %v6665, %v4220
        %v6693 = vmul.f32 %v6667, %v4220
        %v6694 = vmul.f32 %v6669, %v4220
        %v6695 = vmul.f32 %v6671, %v4220
        %v6696 = vmul.f32 %v6673, %v4220
        %v6697 = vmul.f32 %v6675, %v4220
        %v6698 = vmul.f32 %v6677, %v4220
        %v6699 = vmul.f32 %v6679, %v4220
        %v6700 = vmul.f32 %v6681, %v4220
        %v6701 = vmul.f32 %v6683, %v4220
        %v6702 = vmul.f32 %v6685, %v4220
        %v6703 = vmul.f32 %v6687, %v4220
        %6704 = vadd.xlane.f32.xlu0 %v6623
        %v6705 = vpop.xlane.xlu0 %6704
        %6706 = vadd.xlane.f32.xlu0 %v6625
        %v6707 = vpop.xlane.xlu0 %6706
        %6708 = vadd.xlane.f32.xlu0 %v6627
        %v6709 = vpop.xlane.xlu0 %6708
        %6710 = vadd.xlane.f32.xlu0 %v6629
        %v6711 = vpop.xlane.xlu0 %6710
        %6712 = vadd.xlane.f32.xlu0 %v6631
        %v6713 = vpop.xlane.xlu0 %6712
        %6714 = vadd.xlane.f32.xlu0 %v6633
        %v6715 = vpop.xlane.xlu0 %6714
        %6716 = vadd.xlane.f32.xlu0 %v6635
        %v6717 = vpop.xlane.xlu0 %6716
        %6718 = vadd.xlane.f32.xlu0 %v6637
        %v6719 = vpop.xlane.xlu0 %6718
        %6720 = vadd.xlane.f32.xlu0 %v6639
        %v6721 = vpop.xlane.xlu0 %6720
        %6722 = vadd.xlane.f32.xlu0 %v6641
        %v6723 = vpop.xlane.xlu0 %6722
        %6724 = vadd.xlane.f32.xlu0 %v6643
        %v6725 = vpop.xlane.xlu0 %6724
        %6726 = vadd.xlane.f32.xlu0 %v6645
        %v6727 = vpop.xlane.xlu0 %6726
        %6728 = vadd.xlane.f32.xlu0 %v6647
        %v6729 = vpop.xlane.xlu0 %6728
        %6730 = vadd.xlane.f32.xlu0 %v6649
        %v6731 = vpop.xlane.xlu0 %6730
        %6732 = vadd.xlane.f32.xlu0 %v6651
        %v6733 = vpop.xlane.xlu0 %6732
        %6734 = vadd.xlane.f32.xlu0 %v6653
        %v6735 = vpop.xlane.xlu0 %6734
        %v6736 = vmul.f32 %v6705, %v4220
        %v6737 = vmul.f32 %v6707, %v4220
        %v6738 = vmul.f32 %v6709, %v4220
        %v6739 = vmul.f32 %v6711, %v4220
        %v6740 = vmul.f32 %v6713, %v4220
        %v6741 = vmul.f32 %v6715, %v4220
        %v6742 = vmul.f32 %v6717, %v4220
        %v6743 = vmul.f32 %v6719, %v4220
        %v6744 = vmul.f32 %v6721, %v4220
        %v6745 = vmul.f32 %v6723, %v4220
        %v6746 = vmul.f32 %v6725, %v4220
        %v6747 = vmul.f32 %v6727, %v4220
        %v6748 = vmul.f32 %v6729, %v4220
        %v6749 = vmul.f32 %v6731, %v4220
        %v6750 = vmul.f32 %v6733, %v4220
        %v6751 = vmul.f32 %v6735, %v4220
        %v6752 = vsub.f32 %v6622, %v6688
        %v6753 = vsub.f32 %v6624, %v6689
        %v6754 = vsub.f32 %v6626, %v6690
        %v6755 = vsub.f32 %v6628, %v6691
        %v6756 = vsub.f32 %v6630, %v6692
        %v6757 = vsub.f32 %v6632, %v6693
        %v6758 = vsub.f32 %v6634, %v6694
        %v6759 = vsub.f32 %v6636, %v6695
        %v6760 = vsub.f32 %v6638, %v6696
        %v6761 = vsub.f32 %v6640, %v6697
        %v6762 = vsub.f32 %v6642, %v6698
        %v6763 = vsub.f32 %v6644, %v6699
        %v6764 = vsub.f32 %v6646, %v6700
        %v6765 = vsub.f32 %v6648, %v6701
        %v6766 = vsub.f32 %v6650, %v6702
        %v6767 = vsub.f32 %v6652, %v6703
        %v6768 = vsub.f32 %v6623, %v6736
        %v6769 = vsub.f32 %v6625, %v6737
        %v6770 = vsub.f32 %v6627, %v6738
        %v6771 = vsub.f32 %v6629, %v6739
        %v6772 = vsub.f32 %v6631, %v6740
        %v6773 = vsub.f32 %v6633, %v6741
        %v6774 = vsub.f32 %v6635, %v6742
        %v6775 = vsub.f32 %v6637, %v6743
        %v6776 = vsub.f32 %v6639, %v6744
        %v6777 = vsub.f32 %v6641, %v6745
        %v6778 = vsub.f32 %v6643, %v6746
        %v6779 = vsub.f32 %v6645, %v6747
        %v6780 = vsub.f32 %v6647, %v6748
        %v6781 = vsub.f32 %v6649, %v6749
        %v6782 = vsub.f32 %v6651, %v6750
        %v6783 = vsub.f32 %v6653, %v6751
        %v6784 = vmul.f32 %v6752, %v6752
        %v6785 = vmul.f32 %v6753, %v6753
        %v6786 = vmul.f32 %v6754, %v6754
        %v6787 = vmul.f32 %v6755, %v6755
        %v6788 = vmul.f32 %v6756, %v6756
        %v6789 = vmul.f32 %v6757, %v6757
        %v6790 = vmul.f32 %v6758, %v6758
        %v6791 = vmul.f32 %v6759, %v6759
        %v6792 = vmul.f32 %v6760, %v6760
        %v6793 = vmul.f32 %v6761, %v6761
        %v6794 = vmul.f32 %v6762, %v6762
        %v6795 = vmul.f32 %v6763, %v6763
        %v6796 = vmul.f32 %v6764, %v6764
        %v6797 = vmul.f32 %v6765, %v6765
        %v6798 = vmul.f32 %v6766, %v6766
        %v6799 = vmul.f32 %v6767, %v6767
        %6800 = vadd.xlane.f32.xlu0 %v6784
        %v6801 = vpop.xlane.xlu0 %6800
        %6802 = vadd.xlane.f32.xlu0 %v6785
        %v6803 = vpop.xlane.xlu0 %6802
        %6804 = vadd.xlane.f32.xlu0 %v6786
        %v6805 = vpop.xlane.xlu0 %6804
        %6806 = vadd.xlane.f32.xlu0 %v6787
        %v6807 = vpop.xlane.xlu0 %6806
        %6808 = vadd.xlane.f32.xlu0 %v6788
        %v6809 = vpop.xlane.xlu0 %6808
        %6810 = vadd.xlane.f32.xlu0 %v6789
        %v6811 = vpop.xlane.xlu0 %6810
        %6812 = vadd.xlane.f32.xlu0 %v6790
        %v6813 = vpop.xlane.xlu0 %6812
        %6814 = vadd.xlane.f32.xlu0 %v6791
        %v6815 = vpop.xlane.xlu0 %6814
        %6816 = vadd.xlane.f32.xlu0 %v6792
        %v6817 = vpop.xlane.xlu0 %6816
        %6818 = vadd.xlane.f32.xlu0 %v6793
        %v6819 = vpop.xlane.xlu0 %6818
        %6820 = vadd.xlane.f32.xlu0 %v6794
        %v6821 = vpop.xlane.xlu0 %6820
        %6822 = vadd.xlane.f32.xlu0 %v6795
        %v6823 = vpop.xlane.xlu0 %6822
        %6824 = vadd.xlane.f32.xlu0 %v6796
        %v6825 = vpop.xlane.xlu0 %6824
        %6826 = vadd.xlane.f32.xlu0 %v6797
        %v6827 = vpop.xlane.xlu0 %6826
        %6828 = vadd.xlane.f32.xlu0 %v6798
        %v6829 = vpop.xlane.xlu0 %6828
        %6830 = vadd.xlane.f32.xlu0 %v6799
        %v6831 = vpop.xlane.xlu0 %6830
        %v6832 = vmul.f32 %v6801, %v4220
        %v6833 = vmul.f32 %v6803, %v4220
        %v6834 = vmul.f32 %v6805, %v4220
        %v6835 = vmul.f32 %v6807, %v4220
        %v6836 = vmul.f32 %v6809, %v4220
        %v6837 = vmul.f32 %v6811, %v4220
        %v6838 = vmul.f32 %v6813, %v4220
        %v6839 = vmul.f32 %v6815, %v4220
        %v6840 = vmul.f32 %v6817, %v4220
        %v6841 = vmul.f32 %v6819, %v4220
        %v6842 = vmul.f32 %v6821, %v4220
        %v6843 = vmul.f32 %v6823, %v4220
        %v6844 = vmul.f32 %v6825, %v4220
        %v6845 = vmul.f32 %v6827, %v4220
        %v6846 = vmul.f32 %v6829, %v4220
        %v6847 = vmul.f32 %v6831, %v4220
        %v6848 = vadd.f32 %v6832, 1e-05
        %v6849 = vadd.f32 %v6833, 1e-05
        %v6850 = vadd.f32 %v6834, 1e-05
        %v6851 = vadd.f32 %v6835, 1e-05
        %v6852 = vadd.f32 %v6836, 1e-05
        %v6853 = vadd.f32 %v6837, 1e-05
        %v6854 = vadd.f32 %v6838, 1e-05
        %v6855 = vadd.f32 %v6839, 1e-05
        %v6856 = vadd.f32 %v6840, 1e-05
        %v6857 = vadd.f32 %v6841, 1e-05
        %v6858 = vadd.f32 %v6842, 1e-05
        %v6859 = vadd.f32 %v6843, 1e-05
        %v6860 = vadd.f32 %v6844, 1e-05
        %v6861 = vadd.f32 %v6845, 1e-05
        %v6862 = vadd.f32 %v6846, 1e-05
        %v6863 = vadd.f32 %v6847, 1e-05
        %v6864 = vmul.f32 %v6768, %v6768
        %v6865 = vmul.f32 %v6769, %v6769
        %v6866 = vmul.f32 %v6770, %v6770
        %v6867 = vmul.f32 %v6771, %v6771
        %v6868 = vmul.f32 %v6772, %v6772
        %v6869 = vmul.f32 %v6773, %v6773
        %v6870 = vmul.f32 %v6774, %v6774
        %v6871 = vmul.f32 %v6775, %v6775
        %v6872 = vmul.f32 %v6776, %v6776
        %v6873 = vmul.f32 %v6777, %v6777
        %v6874 = vmul.f32 %v6778, %v6778
        %v6875 = vmul.f32 %v6779, %v6779
        %v6876 = vmul.f32 %v6780, %v6780
        %v6877 = vmul.f32 %v6781, %v6781
        %v6878 = vmul.f32 %v6782, %v6782
        %v6879 = vmul.f32 %v6783, %v6783
        %6880 = vadd.xlane.f32.xlu0 %v6864
        %v6881 = vpop.xlane.xlu0 %6880
        %6882 = vadd.xlane.f32.xlu0 %v6865
        %v6883 = vpop.xlane.xlu0 %6882
        %6884 = vadd.xlane.f32.xlu0 %v6866
        %v6885 = vpop.xlane.xlu0 %6884
        %6886 = vadd.xlane.f32.xlu0 %v6867
        %v6887 = vpop.xlane.xlu0 %6886
        %6888 = vadd.xlane.f32.xlu0 %v6868
        %v6889 = vpop.xlane.xlu0 %6888
        %6890 = vadd.xlane.f32.xlu0 %v6869
        %v6891 = vpop.xlane.xlu0 %6890
        %6892 = vadd.xlane.f32.xlu0 %v6870
        %v6893 = vpop.xlane.xlu0 %6892
        %6894 = vadd.xlane.f32.xlu0 %v6871
        %v6895 = vpop.xlane.xlu0 %6894
        %6896 = vadd.xlane.f32.xlu0 %v6872
        %v6897 = vpop.xlane.xlu0 %6896
        %6898 = vadd.xlane.f32.xlu0 %v6873
        %v6899 = vpop.xlane.xlu0 %6898
        %6900 = vadd.xlane.f32.xlu0 %v6874
        %v6901 = vpop.xlane.xlu0 %6900
        %6902 = vadd.xlane.f32.xlu0 %v6875
        %v6903 = vpop.xlane.xlu0 %6902
        %6904 = vadd.xlane.f32.xlu0 %v6876
        %v6905 = vpop.xlane.xlu0 %6904
        %6906 = vadd.xlane.f32.xlu0 %v6877
        %v6907 = vpop.xlane.xlu0 %6906
        %6908 = vadd.xlane.f32.xlu0 %v6878
        %v6909 = vpop.xlane.xlu0 %6908
        %6910 = vadd.xlane.f32.xlu0 %v6879
        %v6911 = vpop.xlane.xlu0 %6910
        %v6912 = vmul.f32 %v6881, %v4220
        %v6913 = vmul.f32 %v6883, %v4220
        %v6914 = vmul.f32 %v6885, %v4220
        %v6915 = vmul.f32 %v6887, %v4220
        %v6916 = vmul.f32 %v6889, %v4220
        %v6917 = vmul.f32 %v6891, %v4220
        %v6918 = vmul.f32 %v6893, %v4220
        %v6919 = vmul.f32 %v6895, %v4220
        %v6920 = vmul.f32 %v6897, %v4220
        %v6921 = vmul.f32 %v6899, %v4220
        %v6922 = vmul.f32 %v6901, %v4220
        %v6923 = vmul.f32 %v6903, %v4220
        %v6924 = vmul.f32 %v6905, %v4220
        %v6925 = vmul.f32 %v6907, %v4220
        %v6926 = vmul.f32 %v6909, %v4220
        %v6927 = vmul.f32 %v6911, %v4220
        %v6928 = vadd.f32 %v6912, 1e-05
        %v6929 = vadd.f32 %v6913, 1e-05
        %v6930 = vadd.f32 %v6914, 1e-05
        %v6931 = vadd.f32 %v6915, 1e-05
        %v6932 = vadd.f32 %v6916, 1e-05
        %v6933 = vadd.f32 %v6917, 1e-05
        %v6934 = vadd.f32 %v6918, 1e-05
        %v6935 = vadd.f32 %v6919, 1e-05
        %v6936 = vadd.f32 %v6920, 1e-05
        %v6937 = vadd.f32 %v6921, 1e-05
        %v6938 = vadd.f32 %v6922, 1e-05
        %v6939 = vadd.f32 %v6923, 1e-05
        %v6940 = vadd.f32 %v6924, 1e-05
        %v6941 = vadd.f32 %v6925, 1e-05
        %v6942 = vadd.f32 %v6926, 1e-05
        %v6943 = vadd.f32 %v6927, 1e-05
        %v6944 = vmul.f32 %v6752, %v6768
        %v6945 = vmul.f32 %v6753, %v6769
        %v6946 = vmul.f32 %v6754, %v6770
        %v6947 = vmul.f32 %v6755, %v6771
        %v6948 = vmul.f32 %v6756, %v6772
        %v6949 = vmul.f32 %v6757, %v6773
        %v6950 = vmul.f32 %v6758, %v6774
        %v6951 = vmul.f32 %v6759, %v6775
        %v6952 = vmul.f32 %v6760, %v6776
        %v6953 = vmul.f32 %v6761, %v6777
        %v6954 = vmul.f32 %v6762, %v6778
        %v6955 = vmul.f32 %v6763, %v6779
        %v6956 = vmul.f32 %v6764, %v6780
        %v6957 = vmul.f32 %v6765, %v6781
        %v6958 = vmul.f32 %v6766, %v6782
        %v6959 = vmul.f32 %v6767, %v6783
        %6960 = vadd.xlane.f32.xlu0 %v6944
        %v6961 = vpop.xlane.xlu0 %6960
        %6962 = vadd.xlane.f32.xlu0 %v6945
        %v6963 = vpop.xlane.xlu0 %6962
        %6964 = vadd.xlane.f32.xlu0 %v6946
        %v6965 = vpop.xlane.xlu0 %6964
        %6966 = vadd.xlane.f32.xlu0 %v6947
        %v6967 = vpop.xlane.xlu0 %6966
        %6968 = vadd.xlane.f32.xlu0 %v6948
        %v6969 = vpop.xlane.xlu0 %6968
        %6970 = vadd.xlane.f32.xlu0 %v6949
        %v6971 = vpop.xlane.xlu0 %6970
        %6972 = vadd.xlane.f32.xlu0 %v6950
        %v6973 = vpop.xlane.xlu0 %6972
        %6974 = vadd.xlane.f32.xlu0 %v6951
        %v6975 = vpop.xlane.xlu0 %6974
        %6976 = vadd.xlane.f32.xlu0 %v6952
        %v6977 = vpop.xlane.xlu0 %6976
        %6978 = vadd.xlane.f32.xlu0 %v6953
        %v6979 = vpop.xlane.xlu0 %6978
        %6980 = vadd.xlane.f32.xlu0 %v6954
        %v6981 = vpop.xlane.xlu0 %6980
        %6982 = vadd.xlane.f32.xlu0 %v6955
        %v6983 = vpop.xlane.xlu0 %6982
        %6984 = vadd.xlane.f32.xlu0 %v6956
        %v6985 = vpop.xlane.xlu0 %6984
        %6986 = vadd.xlane.f32.xlu0 %v6957
        %v6987 = vpop.xlane.xlu0 %6986
        %6988 = vadd.xlane.f32.xlu0 %v6958
        %v6989 = vpop.xlane.xlu0 %6988
        %6990 = vadd.xlane.f32.xlu0 %v6959
        %v6991 = vpop.xlane.xlu0 %6990
        %v6992 = vmul.f32 %v6961, %v4220
        %v6993 = vmul.f32 %v6963, %v4220
        %v6994 = vmul.f32 %v6965, %v4220
        %v6995 = vmul.f32 %v6967, %v4220
        %v6996 = vmul.f32 %v6969, %v4220
        %v6997 = vmul.f32 %v6971, %v4220
        %v6998 = vmul.f32 %v6973, %v4220
        %v6999 = vmul.f32 %v6975, %v4220
        %v7000 = vmul.f32 %v6977, %v4220
        %v7001 = vmul.f32 %v6979, %v4220
        %v7002 = vmul.f32 %v6981, %v4220
        %v7003 = vmul.f32 %v6983, %v4220
        %v7004 = vmul.f32 %v6985, %v4220
        %v7005 = vmul.f32 %v6987, %v4220
        %v7006 = vmul.f32 %v6989, %v4220
        %v7007 = vmul.f32 %v6991, %v4220
        %v7008 = vmul.f32 %v6848, %v6928
        %v7009 = vmul.f32 %v6849, %v6929
        %v7010 = vmul.f32 %v6850, %v6930
        %v7011 = vmul.f32 %v6851, %v6931
        %v7012 = vmul.f32 %v6852, %v6932
        %v7013 = vmul.f32 %v6853, %v6933
        %v7014 = vmul.f32 %v6854, %v6934
        %v7015 = vmul.f32 %v6855, %v6935
        %v7016 = vmul.f32 %v6856, %v6936
        %v7017 = vmul.f32 %v6857, %v6937
        %v7018 = vmul.f32 %v6858, %v6938
        %v7019 = vmul.f32 %v6859, %v6939
        %v7020 = vmul.f32 %v6860, %v6940
        %v7021 = vmul.f32 %v6861, %v6941
        %v7022 = vmul.f32 %v6862, %v6942
        %v7023 = vmul.f32 %v6863, %v6943
        %v7024 = vmul.f32 %v6992, %v6992
        %v7025 = vmul.f32 %v6993, %v6993
        %v7026 = vmul.f32 %v6994, %v6994
        %v7027 = vmul.f32 %v6995, %v6995
        %v7028 = vmul.f32 %v6996, %v6996
        %v7029 = vmul.f32 %v6997, %v6997
        %v7030 = vmul.f32 %v6998, %v6998
        %v7031 = vmul.f32 %v6999, %v6999
        %v7032 = vmul.f32 %v7000, %v7000
        %v7033 = vmul.f32 %v7001, %v7001
        %v7034 = vmul.f32 %v7002, %v7002
        %v7035 = vmul.f32 %v7003, %v7003
        %v7036 = vmul.f32 %v7004, %v7004
        %v7037 = vmul.f32 %v7005, %v7005
        %v7038 = vmul.f32 %v7006, %v7006
        %v7039 = vmul.f32 %v7007, %v7007
        %v7040 = vsub.f32 %v7008, %v7024
        %v7041 = vsub.f32 %v7009, %v7025
        %v7042 = vsub.f32 %v7010, %v7026
        %v7043 = vsub.f32 %v7011, %v7027
        %v7044 = vsub.f32 %v7012, %v7028
        %v7045 = vsub.f32 %v7013, %v7029
        %v7046 = vsub.f32 %v7014, %v7030
        %v7047 = vsub.f32 %v7015, %v7031
        %v7048 = vsub.f32 %v7016, %v7032
        %v7049 = vsub.f32 %v7017, %v7033
        %v7050 = vsub.f32 %v7018, %v7034
        %v7051 = vsub.f32 %v7019, %v7035
        %v7052 = vsub.f32 %v7020, %v7036
        %v7053 = vsub.f32 %v7021, %v7037
        %v7054 = vsub.f32 %v7022, %v7038
        %v7055 = vsub.f32 %v7023, %v7039
        %v7056 = vmax.f32 %v7040, 1e-10
        %v7057 = vmax.f32 %v7041, 1e-10
        %v7058 = vmax.f32 %v7042, 1e-10
        %v7059 = vmax.f32 %v7043, 1e-10
        %v7060 = vmax.f32 %v7044, 1e-10
        %v7061 = vmax.f32 %v7045, 1e-10
        %v7062 = vmax.f32 %v7046, 1e-10
        %v7063 = vmax.f32 %v7047, 1e-10
        %v7064 = vmax.f32 %v7048, 1e-10
        %v7065 = vmax.f32 %v7049, 1e-10
        %v7066 = vmax.f32 %v7050, 1e-10
        %v7067 = vmax.f32 %v7051, 1e-10
        %v7068 = vmax.f32 %v7052, 1e-10
        %v7069 = vmax.f32 %v7053, 1e-10
        %v7070 = vmax.f32 %v7054, 1e-10
        %v7071 = vmax.f32 %v7055, 1e-10
        %v7072 = vrsqrt.pop %v7056
        %v7073 = vmul.f32 %v7056, %v7072
        %vm7074 = vcmp.eq.f32.partialorder %v7056, inf
        %v7075 = vsel %vm7074, %v7056, %v7073
        %vm7076 = vcmp.eq.f32.partialorder %v7056, 0.0
        %v7077 = vand.u32 %v7056, 2147483648
        %v7078 = vsel %vm7076, %v7077, %v7075
        %v7079 = vrsqrt.pop %v7057
        %v7080 = vmul.f32 %v7057, %v7079
        %vm7081 = vcmp.eq.f32.partialorder %v7057, inf
        %v7082 = vsel %vm7081, %v7057, %v7080
        %vm7083 = vcmp.eq.f32.partialorder %v7057, 0.0
        %v7084 = vand.u32 %v7057, 2147483648
        %v7085 = vsel %vm7083, %v7084, %v7082
        %v7086 = vrsqrt.pop %v7058
        %v7087 = vmul.f32 %v7058, %v7086
        %vm7088 = vcmp.eq.f32.partialorder %v7058, inf
        %v7089 = vsel %vm7088, %v7058, %v7087
        %vm7090 = vcmp.eq.f32.partialorder %v7058, 0.0
        %v7091 = vand.u32 %v7058, 2147483648
        %v7092 = vsel %vm7090, %v7091, %v7089
        %v7093 = vrsqrt.pop %v7059
        %v7094 = vmul.f32 %v7059, %v7093
        %vm7095 = vcmp.eq.f32.partialorder %v7059, inf
        %v7096 = vsel %vm7095, %v7059, %v7094
        %vm7097 = vcmp.eq.f32.partialorder %v7059, 0.0
        %v7098 = vand.u32 %v7059, 2147483648
        %v7099 = vsel %vm7097, %v7098, %v7096
        %v7100 = vrsqrt.pop %v7060
        %v7101 = vmul.f32 %v7060, %v7100
        %vm7102 = vcmp.eq.f32.partialorder %v7060, inf
        %v7103 = vsel %vm7102, %v7060, %v7101
        %vm7104 = vcmp.eq.f32.partialorder %v7060, 0.0
        %v7105 = vand.u32 %v7060, 2147483648
        %v7106 = vsel %vm7104, %v7105, %v7103
        %v7107 = vrsqrt.pop %v7061
        %v7108 = vmul.f32 %v7061, %v7107
        %vm7109 = vcmp.eq.f32.partialorder %v7061, inf
        %v7110 = vsel %vm7109, %v7061, %v7108
        %vm7111 = vcmp.eq.f32.partialorder %v7061, 0.0
        %v7112 = vand.u32 %v7061, 2147483648
        %v7113 = vsel %vm7111, %v7112, %v7110
        %v7114 = vrsqrt.pop %v7062
        %v7115 = vmul.f32 %v7062, %v7114
        %vm7116 = vcmp.eq.f32.partialorder %v7062, inf
        %v7117 = vsel %vm7116, %v7062, %v7115
        %vm7118 = vcmp.eq.f32.partialorder %v7062, 0.0
        %v7119 = vand.u32 %v7062, 2147483648
        %v7120 = vsel %vm7118, %v7119, %v7117
        %v7121 = vrsqrt.pop %v7063
        %v7122 = vmul.f32 %v7063, %v7121
        %vm7123 = vcmp.eq.f32.partialorder %v7063, inf
        %v7124 = vsel %vm7123, %v7063, %v7122
        %vm7125 = vcmp.eq.f32.partialorder %v7063, 0.0
        %v7126 = vand.u32 %v7063, 2147483648
        %v7127 = vsel %vm7125, %v7126, %v7124
        %v7128 = vrsqrt.pop %v7064
        %v7129 = vmul.f32 %v7064, %v7128
        %vm7130 = vcmp.eq.f32.partialorder %v7064, inf
        %v7131 = vsel %vm7130, %v7064, %v7129
        %vm7132 = vcmp.eq.f32.partialorder %v7064, 0.0
        %v7133 = vand.u32 %v7064, 2147483648
        %v7134 = vsel %vm7132, %v7133, %v7131
        %v7135 = vrsqrt.pop %v7065
        %v7136 = vmul.f32 %v7065, %v7135
        %vm7137 = vcmp.eq.f32.partialorder %v7065, inf
        %v7138 = vsel %vm7137, %v7065, %v7136
        %vm7139 = vcmp.eq.f32.partialorder %v7065, 0.0
        %v7140 = vand.u32 %v7065, 2147483648
        %v7141 = vsel %vm7139, %v7140, %v7138
        %v7142 = vrsqrt.pop %v7066
        %v7143 = vmul.f32 %v7066, %v7142
        %vm7144 = vcmp.eq.f32.partialorder %v7066, inf
        %v7145 = vsel %vm7144, %v7066, %v7143
        %vm7146 = vcmp.eq.f32.partialorder %v7066, 0.0
        %v7147 = vand.u32 %v7066, 2147483648
        %v7148 = vsel %vm7146, %v7147, %v7145
        %v7149 = vrsqrt.pop %v7067
        %v7150 = vmul.f32 %v7067, %v7149
        %vm7151 = vcmp.eq.f32.partialorder %v7067, inf
        %v7152 = vsel %vm7151, %v7067, %v7150
        %vm7153 = vcmp.eq.f32.partialorder %v7067, 0.0
        %v7154 = vand.u32 %v7067, 2147483648
        %v7155 = vsel %vm7153, %v7154, %v7152
        %v7156 = vrsqrt.pop %v7068
        %v7157 = vmul.f32 %v7068, %v7156
        %vm7158 = vcmp.eq.f32.partialorder %v7068, inf
        %v7159 = vsel %vm7158, %v7068, %v7157
        %vm7160 = vcmp.eq.f32.partialorder %v7068, 0.0
        %v7161 = vand.u32 %v7068, 2147483648
        %v7162 = vsel %vm7160, %v7161, %v7159
        %v7163 = vrsqrt.pop %v7069
        %v7164 = vmul.f32 %v7069, %v7163
        %vm7165 = vcmp.eq.f32.partialorder %v7069, inf
        %v7166 = vsel %vm7165, %v7069, %v7164
        %vm7167 = vcmp.eq.f32.partialorder %v7069, 0.0
        %v7168 = vand.u32 %v7069, 2147483648
        %v7169 = vsel %vm7167, %v7168, %v7166
        %v7170 = vrsqrt.pop %v7070
        %v7171 = vmul.f32 %v7070, %v7170
        %vm7172 = vcmp.eq.f32.partialorder %v7070, inf
        %v7173 = vsel %vm7172, %v7070, %v7171
        %vm7174 = vcmp.eq.f32.partialorder %v7070, 0.0
        %v7175 = vand.u32 %v7070, 2147483648
        %v7176 = vsel %vm7174, %v7175, %v7173
        %v7177 = vrsqrt.pop %v7071
        %v7178 = vmul.f32 %v7071, %v7177
        %vm7179 = vcmp.eq.f32.partialorder %v7071, inf
        %v7180 = vsel %vm7179, %v7071, %v7178
        %vm7181 = vcmp.eq.f32.partialorder %v7071, 0.0
        %v7182 = vand.u32 %v7071, 2147483648
        %v7183 = vsel %vm7181, %v7182, %v7180
        %v7184 = vadd.f32 %v6848, %v6928
        %v7185 = vadd.f32 %v6849, %v6929
        %v7186 = vadd.f32 %v6850, %v6930
        %v7187 = vadd.f32 %v6851, %v6931
        %v7188 = vadd.f32 %v6852, %v6932
        %v7189 = vadd.f32 %v6853, %v6933
        %v7190 = vadd.f32 %v6854, %v6934
        %v7191 = vadd.f32 %v6855, %v6935
        %v7192 = vadd.f32 %v6856, %v6936
        %v7193 = vadd.f32 %v6857, %v6937
        %v7194 = vadd.f32 %v6858, %v6938
        %v7195 = vadd.f32 %v6859, %v6939
        %v7196 = vadd.f32 %v6860, %v6940
        %v7197 = vadd.f32 %v6861, %v6941
        %v7198 = vadd.f32 %v6862, %v6942
        %v7199 = vadd.f32 %v6863, %v6943
        %v7200 = vmul.f32 %v7078, 2.0
        %v7201 = vmul.f32 %v7085, 2.0
        %v7202 = vmul.f32 %v7092, 2.0
        %v7203 = vmul.f32 %v7099, 2.0
        %v7204 = vmul.f32 %v7106, 2.0
        %v7205 = vmul.f32 %v7113, 2.0
        %v7206 = vmul.f32 %v7120, 2.0
        %v7207 = vmul.f32 %v7127, 2.0
        %v7208 = vmul.f32 %v7134, 2.0
        %v7209 = vmul.f32 %v7141, 2.0
        %v7210 = vmul.f32 %v7148, 2.0
        %v7211 = vmul.f32 %v7155, 2.0
        %v7212 = vmul.f32 %v7162, 2.0
        %v7213 = vmul.f32 %v7169, 2.0
        %v7214 = vmul.f32 %v7176, 2.0
        %v7215 = vmul.f32 %v7183, 2.0
        %v7216 = vadd.f32 %v7184, %v7200
        %v7217 = vadd.f32 %v7185, %v7201
        %v7218 = vadd.f32 %v7186, %v7202
        %v7219 = vadd.f32 %v7187, %v7203
        %v7220 = vadd.f32 %v7188, %v7204
        %v7221 = vadd.f32 %v7189, %v7205
        %v7222 = vadd.f32 %v7190, %v7206
        %v7223 = vadd.f32 %v7191, %v7207
        %v7224 = vadd.f32 %v7192, %v7208
        %v7225 = vadd.f32 %v7193, %v7209
        %v7226 = vadd.f32 %v7194, %v7210
        %v7227 = vadd.f32 %v7195, %v7211
        %v7228 = vadd.f32 %v7196, %v7212
        %v7229 = vadd.f32 %v7197, %v7213
        %v7230 = vadd.f32 %v7198, %v7214
        %v7231 = vadd.f32 %v7199, %v7215
        %v7232 = vrsqrt.pop %v7216
        %v7233 = vmul.f32 %v7216, %v7232
        %vm7234 = vcmp.eq.f32.partialorder %v7216, inf
        %v7235 = vsel %vm7234, %v7216, %v7233
        %vm7236 = vcmp.eq.f32.partialorder %v7216, 0.0
        %v7237 = vand.u32 %v7216, 2147483648
        %v7238 = vsel %vm7236, %v7237, %v7235
        %v7239 = vrsqrt.pop %v7217
        %v7240 = vmul.f32 %v7217, %v7239
        %vm7241 = vcmp.eq.f32.partialorder %v7217, inf
        %v7242 = vsel %vm7241, %v7217, %v7240
        %vm7243 = vcmp.eq.f32.partialorder %v7217, 0.0
        %v7244 = vand.u32 %v7217, 2147483648
        %v7245 = vsel %vm7243, %v7244, %v7242
        %v7246 = vrsqrt.pop %v7218
        %v7247 = vmul.f32 %v7218, %v7246
        %vm7248 = vcmp.eq.f32.partialorder %v7218, inf
        %v7249 = vsel %vm7248, %v7218, %v7247
        %vm7250 = vcmp.eq.f32.partialorder %v7218, 0.0
        %v7251 = vand.u32 %v7218, 2147483648
        %v7252 = vsel %vm7250, %v7251, %v7249
        %v7253 = vrsqrt.pop %v7219
        %v7254 = vmul.f32 %v7219, %v7253
        %vm7255 = vcmp.eq.f32.partialorder %v7219, inf
        %v7256 = vsel %vm7255, %v7219, %v7254
        %vm7257 = vcmp.eq.f32.partialorder %v7219, 0.0
        %v7258 = vand.u32 %v7219, 2147483648
        %v7259 = vsel %vm7257, %v7258, %v7256
        %v7260 = vrsqrt.pop %v7220
        %v7261 = vmul.f32 %v7220, %v7260
        %vm7262 = vcmp.eq.f32.partialorder %v7220, inf
        %v7263 = vsel %vm7262, %v7220, %v7261
        %vm7264 = vcmp.eq.f32.partialorder %v7220, 0.0
        %v7265 = vand.u32 %v7220, 2147483648
        %v7266 = vsel %vm7264, %v7265, %v7263
        %v7267 = vrsqrt.pop %v7221
        %v7268 = vmul.f32 %v7221, %v7267
        %vm7269 = vcmp.eq.f32.partialorder %v7221, inf
        %v7270 = vsel %vm7269, %v7221, %v7268
        %vm7271 = vcmp.eq.f32.partialorder %v7221, 0.0
        %v7272 = vand.u32 %v7221, 2147483648
        %v7273 = vsel %vm7271, %v7272, %v7270
        %v7274 = vrsqrt.pop %v7222
        %v7275 = vmul.f32 %v7222, %v7274
        %vm7276 = vcmp.eq.f32.partialorder %v7222, inf
        %v7277 = vsel %vm7276, %v7222, %v7275
        %vm7278 = vcmp.eq.f32.partialorder %v7222, 0.0
        %v7279 = vand.u32 %v7222, 2147483648
        %v7280 = vsel %vm7278, %v7279, %v7277
        %v7281 = vrsqrt.pop %v7223
        %v7282 = vmul.f32 %v7223, %v7281
        %vm7283 = vcmp.eq.f32.partialorder %v7223, inf
        %v7284 = vsel %vm7283, %v7223, %v7282
        %vm7285 = vcmp.eq.f32.partialorder %v7223, 0.0
        %v7286 = vand.u32 %v7223, 2147483648
        %v7287 = vsel %vm7285, %v7286, %v7284
        %v7288 = vrsqrt.pop %v7224
        %v7289 = vmul.f32 %v7224, %v7288
        %vm7290 = vcmp.eq.f32.partialorder %v7224, inf
        %v7291 = vsel %vm7290, %v7224, %v7289
        %vm7292 = vcmp.eq.f32.partialorder %v7224, 0.0
        %v7293 = vand.u32 %v7224, 2147483648
        %v7294 = vsel %vm7292, %v7293, %v7291
        %v7295 = vrsqrt.pop %v7225
        %v7296 = vmul.f32 %v7225, %v7295
        %vm7297 = vcmp.eq.f32.partialorder %v7225, inf
        %v7298 = vsel %vm7297, %v7225, %v7296
        %vm7299 = vcmp.eq.f32.partialorder %v7225, 0.0
        %v7300 = vand.u32 %v7225, 2147483648
        %v7301 = vsel %vm7299, %v7300, %v7298
        %v7302 = vrsqrt.pop %v7226
        %v7303 = vmul.f32 %v7226, %v7302
        %vm7304 = vcmp.eq.f32.partialorder %v7226, inf
        %v7305 = vsel %vm7304, %v7226, %v7303
        %vm7306 = vcmp.eq.f32.partialorder %v7226, 0.0
        %v7307 = vand.u32 %v7226, 2147483648
        %v7308 = vsel %vm7306, %v7307, %v7305
        %v7309 = vrsqrt.pop %v7227
        %v7310 = vmul.f32 %v7227, %v7309
        %vm7311 = vcmp.eq.f32.partialorder %v7227, inf
        %v7312 = vsel %vm7311, %v7227, %v7310
        %vm7313 = vcmp.eq.f32.partialorder %v7227, 0.0
        %v7314 = vand.u32 %v7227, 2147483648
        %v7315 = vsel %vm7313, %v7314, %v7312
        %v7316 = vrsqrt.pop %v7228
        %v7317 = vmul.f32 %v7228, %v7316
        %vm7318 = vcmp.eq.f32.partialorder %v7228, inf
        %v7319 = vsel %vm7318, %v7228, %v7317
        %vm7320 = vcmp.eq.f32.partialorder %v7228, 0.0
        %v7321 = vand.u32 %v7228, 2147483648
        %v7322 = vsel %vm7320, %v7321, %v7319
        %v7323 = vrsqrt.pop %v7229
        %v7324 = vmul.f32 %v7229, %v7323
        %vm7325 = vcmp.eq.f32.partialorder %v7229, inf
        %v7326 = vsel %vm7325, %v7229, %v7324
        %vm7327 = vcmp.eq.f32.partialorder %v7229, 0.0
        %v7328 = vand.u32 %v7229, 2147483648
        %v7329 = vsel %vm7327, %v7328, %v7326
        %v7330 = vrsqrt.pop %v7230
        %v7331 = vmul.f32 %v7230, %v7330
        %vm7332 = vcmp.eq.f32.partialorder %v7230, inf
        %v7333 = vsel %vm7332, %v7230, %v7331
        %vm7334 = vcmp.eq.f32.partialorder %v7230, 0.0
        %v7335 = vand.u32 %v7230, 2147483648
        %v7336 = vsel %vm7334, %v7335, %v7333
        %v7337 = vrsqrt.pop %v7231
        %v7338 = vmul.f32 %v7231, %v7337
        %vm7339 = vcmp.eq.f32.partialorder %v7231, inf
        %v7340 = vsel %vm7339, %v7231, %v7338
        %vm7341 = vcmp.eq.f32.partialorder %v7231, 0.0
        %v7342 = vand.u32 %v7231, 2147483648
        %v7343 = vsel %vm7341, %v7342, %v7340
        %v7344 = vmul.f32 %v7078, %v7238
        %v7345 = vmul.f32 %v7085, %v7245
        %v7346 = vmul.f32 %v7092, %v7252
        %v7347 = vmul.f32 %v7099, %v7259
        %v7348 = vmul.f32 %v7106, %v7266
        %v7349 = vmul.f32 %v7113, %v7273
        %v7350 = vmul.f32 %v7120, %v7280
        %v7351 = vmul.f32 %v7127, %v7287
        %v7352 = vmul.f32 %v7134, %v7294
        %v7353 = vmul.f32 %v7141, %v7301
        %v7354 = vmul.f32 %v7148, %v7308
        %v7355 = vmul.f32 %v7155, %v7315
        %v7356 = vmul.f32 %v7162, %v7322
        %v7357 = vmul.f32 %v7169, %v7329
        %v7358 = vmul.f32 %v7176, %v7336
        %v7359 = vmul.f32 %v7183, %v7343
        %v7360 = vrcp.pop %v7344
        %v7361 = vrcp.pop %v7345
        %v7362 = vrcp.pop %v7346
        %v7363 = vrcp.pop %v7347
        %v7364 = vrcp.pop %v7348
        %v7365 = vrcp.pop %v7349
        %v7366 = vrcp.pop %v7350
        %v7367 = vrcp.pop %v7351
        %v7368 = vrcp.pop %v7352
        %v7369 = vrcp.pop %v7353
        %v7370 = vrcp.pop %v7354
        %v7371 = vrcp.pop %v7355
        %v7372 = vrcp.pop %v7356
        %v7373 = vrcp.pop %v7357
        %v7374 = vrcp.pop %v7358
        %v7375 = vrcp.pop %v7359
        %v7376 = vadd.f32 %v6928, %v7078
        %v7377 = vadd.f32 %v6929, %v7085
        %v7378 = vadd.f32 %v6930, %v7092
        %v7379 = vadd.f32 %v6931, %v7099
        %v7380 = vadd.f32 %v6932, %v7106
        %v7381 = vadd.f32 %v6933, %v7113
        %v7382 = vadd.f32 %v6934, %v7120
        %v7383 = vadd.f32 %v6935, %v7127
        %v7384 = vadd.f32 %v6936, %v7134
        %v7385 = vadd.f32 %v6937, %v7141
        %v7386 = vadd.f32 %v6938, %v7148
        %v7387 = vadd.f32 %v6939, %v7155
        %v7388 = vadd.f32 %v6940, %v7162
        %v7389 = vadd.f32 %v6941, %v7169
        %v7390 = vadd.f32 %v6942, %v7176
        %v7391 = vadd.f32 %v6943, %v7183
        %v7392 = vmul.f32 %v7376, %v7360
        %v7393 = vmul.f32 %v7377, %v7361
        %v7394 = vmul.f32 %v7378, %v7362
        %v7395 = vmul.f32 %v7379, %v7363
        %v7396 = vmul.f32 %v7380, %v7364
        %v7397 = vmul.f32 %v7381, %v7365
        %v7398 = vmul.f32 %v7382, %v7366
        %v7399 = vmul.f32 %v7383, %v7367
        %v7400 = vmul.f32 %v7384, %v7368
        %v7401 = vmul.f32 %v7385, %v7369
        %v7402 = vmul.f32 %v7386, %v7370
        %v7403 = vmul.f32 %v7387, %v7371
        %v7404 = vmul.f32 %v7388, %v7372
        %v7405 = vmul.f32 %v7389, %v7373
        %v7406 = vmul.f32 %v7390, %v7374
        %v7407 = vmul.f32 %v7391, %v7375
        %v7408 = vadd.f32 %v6848, %v7078
        %v7409 = vadd.f32 %v6849, %v7085
        %v7410 = vadd.f32 %v6850, %v7092
        %v7411 = vadd.f32 %v6851, %v7099
        %v7412 = vadd.f32 %v6852, %v7106
        %v7413 = vadd.f32 %v6853, %v7113
        %v7414 = vadd.f32 %v6854, %v7120
        %v7415 = vadd.f32 %v6855, %v7127
        %v7416 = vadd.f32 %v6856, %v7134
        %v7417 = vadd.f32 %v6857, %v7141
        %v7418 = vadd.f32 %v6858, %v7148
        %v7419 = vadd.f32 %v6859, %v7155
        %v7420 = vadd.f32 %v6860, %v7162
        %v7421 = vadd.f32 %v6861, %v7169
        %v7422 = vadd.f32 %v6862, %v7176
        %v7423 = vadd.f32 %v6863, %v7183
        %v7424 = vmul.f32 %v7408, %v7360
        %v7425 = vmul.f32 %v7409, %v7361
        %v7426 = vmul.f32 %v7410, %v7362
        %v7427 = vmul.f32 %v7411, %v7363
        %v7428 = vmul.f32 %v7412, %v7364
        %v7429 = vmul.f32 %v7413, %v7365
        %v7430 = vmul.f32 %v7414, %v7366
        %v7431 = vmul.f32 %v7415, %v7367
        %v7432 = vmul.f32 %v7416, %v7368
        %v7433 = vmul.f32 %v7417, %v7369
        %v7434 = vmul.f32 %v7418, %v7370
        %v7435 = vmul.f32 %v7419, %v7371
        %v7436 = vmul.f32 %v7420, %v7372
        %v7437 = vmul.f32 %v7421, %v7373
        %v7438 = vmul.f32 %v7422, %v7374
        %v7439 = vmul.f32 %v7423, %v7375
        %v7440 = vsub.f32 0.0, %v6992
        %v7441 = vsub.f32 0.0, %v6993
        %v7442 = vsub.f32 0.0, %v6994
        %v7443 = vsub.f32 0.0, %v6995
        %v7444 = vsub.f32 0.0, %v6996
        %v7445 = vsub.f32 0.0, %v6997
        %v7446 = vsub.f32 0.0, %v6998
        %v7447 = vsub.f32 0.0, %v6999
        %v7448 = vsub.f32 0.0, %v7000
        %v7449 = vsub.f32 0.0, %v7001
        %v7450 = vsub.f32 0.0, %v7002
        %v7451 = vsub.f32 0.0, %v7003
        %v7452 = vsub.f32 0.0, %v7004
        %v7453 = vsub.f32 0.0, %v7005
        %v7454 = vsub.f32 0.0, %v7006
        %v7455 = vsub.f32 0.0, %v7007
        %v7456 = vmul.f32 %v7440, %v7360
        %v7457 = vmul.f32 %v7441, %v7361
        %v7458 = vmul.f32 %v7442, %v7362
        %v7459 = vmul.f32 %v7443, %v7363
        %v7460 = vmul.f32 %v7444, %v7364
        %v7461 = vmul.f32 %v7445, %v7365
        %v7462 = vmul.f32 %v7446, %v7366
        %v7463 = vmul.f32 %v7447, %v7367
        %v7464 = vmul.f32 %v7448, %v7368
        %v7465 = vmul.f32 %v7449, %v7369
        %v7466 = vmul.f32 %v7450, %v7370
        %v7467 = vmul.f32 %v7451, %v7371
        %v7468 = vmul.f32 %v7452, %v7372
        %v7469 = vmul.f32 %v7453, %v7373
        %v7470 = vmul.f32 %v7454, %v7374
        %v7471 = vmul.f32 %v7455, %v7375
        %v7472 = vmul.f32 %v7392, %v6752
        %v7473 = vmul.f32 %v7393, %v6753
        %v7474 = vmul.f32 %v7394, %v6754
        %v7475 = vmul.f32 %v7395, %v6755
        %v7476 = vmul.f32 %v7396, %v6756
        %v7477 = vmul.f32 %v7397, %v6757
        %v7478 = vmul.f32 %v7398, %v6758
        %v7479 = vmul.f32 %v7399, %v6759
        %v7480 = vmul.f32 %v7400, %v6760
        %v7481 = vmul.f32 %v7401, %v6761
        %v7482 = vmul.f32 %v7402, %v6762
        %v7483 = vmul.f32 %v7403, %v6763
        %v7484 = vmul.f32 %v7404, %v6764
        %v7485 = vmul.f32 %v7405, %v6765
        %v7486 = vmul.f32 %v7406, %v6766
        %v7487 = vmul.f32 %v7407, %v6767
        %v7488 = vmul.f32 %v7456, %v6768
        %v7489 = vmul.f32 %v7457, %v6769
        %v7490 = vmul.f32 %v7458, %v6770
        %v7491 = vmul.f32 %v7459, %v6771
        %v7492 = vmul.f32 %v7460, %v6772
        %v7493 = vmul.f32 %v7461, %v6773
        %v7494 = vmul.f32 %v7462, %v6774
        %v7495 = vmul.f32 %v7463, %v6775
        %v7496 = vmul.f32 %v7464, %v6776
        %v7497 = vmul.f32 %v7465, %v6777
        %v7498 = vmul.f32 %v7466, %v6778
        %v7499 = vmul.f32 %v7467, %v6779
        %v7500 = vmul.f32 %v7468, %v6780
        %v7501 = vmul.f32 %v7469, %v6781
        %v7502 = vmul.f32 %v7470, %v6782
        %v7503 = vmul.f32 %v7471, %v6783
        %v7504 = vadd.f32 %v7472, %v7488
        %v7505 = vadd.f32 %v7473, %v7489
        %v7506 = vadd.f32 %v7474, %v7490
        %v7507 = vadd.f32 %v7475, %v7491
        %v7508 = vadd.f32 %v7476, %v7492
        %v7509 = vadd.f32 %v7477, %v7493
        %v7510 = vadd.f32 %v7478, %v7494
        %v7511 = vadd.f32 %v7479, %v7495
        %v7512 = vadd.f32 %v7480, %v7496
        %v7513 = vadd.f32 %v7481, %v7497
        %v7514 = vadd.f32 %v7482, %v7498
        %v7515 = vadd.f32 %v7483, %v7499
        %v7516 = vadd.f32 %v7484, %v7500
        %v7517 = vadd.f32 %v7485, %v7501
        %v7518 = vadd.f32 %v7486, %v7502
        %v7519 = vadd.f32 %v7487, %v7503
        %v7520 = vmul.f32 %v7456, %v6752
        %v7521 = vmul.f32 %v7457, %v6753
        %v7522 = vmul.f32 %v7458, %v6754
        %v7523 = vmul.f32 %v7459, %v6755
        %v7524 = vmul.f32 %v7460, %v6756
        %v7525 = vmul.f32 %v7461, %v6757
        %v7526 = vmul.f32 %v7462, %v6758
        %v7527 = vmul.f32 %v7463, %v6759
        %v7528 = vmul.f32 %v7464, %v6760
        %v7529 = vmul.f32 %v7465, %v6761
        %v7530 = vmul.f32 %v7466, %v6762
        %v7531 = vmul.f32 %v7467, %v6763
        %v7532 = vmul.f32 %v7468, %v6764
        %v7533 = vmul.f32 %v7469, %v6765
        %v7534 = vmul.f32 %v7470, %v6766
        %v7535 = vmul.f32 %v7471, %v6767
        %v7536 = vmul.f32 %v7424, %v6768
        %v7537 = vmul.f32 %v7425, %v6769
        %v7538 = vmul.f32 %v7426, %v6770
        %v7539 = vmul.f32 %v7427, %v6771
        %v7540 = vmul.f32 %v7428, %v6772
        %v7541 = vmul.f32 %v7429, %v6773
        %v7542 = vmul.f32 %v7430, %v6774
        %v7543 = vmul.f32 %v7431, %v6775
        %v7544 = vmul.f32 %v7432, %v6776
        %v7545 = vmul.f32 %v7433, %v6777
        %v7546 = vmul.f32 %v7434, %v6778
        %v7547 = vmul.f32 %v7435, %v6779
        %v7548 = vmul.f32 %v7436, %v6780
        %v7549 = vmul.f32 %v7437, %v6781
        %v7550 = vmul.f32 %v7438, %v6782
        %v7551 = vmul.f32 %v7439, %v6783
        %v7552 = vadd.f32 %v7520, %v7536
        %v7553 = vadd.f32 %v7521, %v7537
        %v7554 = vadd.f32 %v7522, %v7538
        %v7555 = vadd.f32 %v7523, %v7539
        %v7556 = vadd.f32 %v7524, %v7540
        %v7557 = vadd.f32 %v7525, %v7541
        %v7558 = vadd.f32 %v7526, %v7542
        %v7559 = vadd.f32 %v7527, %v7543
        %v7560 = vadd.f32 %v7528, %v7544
        %v7561 = vadd.f32 %v7529, %v7545
        %v7562 = vadd.f32 %v7530, %v7546
        %v7563 = vadd.f32 %v7531, %v7547
        %v7564 = vadd.f32 %v7532, %v7548
        %v7565 = vadd.f32 %v7533, %v7549
        %v7566 = vadd.f32 %v7534, %v7550
        %v7567 = vadd.f32 %v7535, %v7551
        %v7568 = vlaneseq
        %v7569 = vshrl.u32 %v7568, 7
        %v7570 = vsub.s32 0, %v7569
        %v7571 = vrot.slane %v6654, %v7570
        %v7572 = vmul.f32 %v7571, %v7504
        %v7573 = vmul.f32 %v7571, %v7505
        %v7574 = vmul.f32 %v7571, %v7506
        %v7575 = vmul.f32 %v7571, %v7507
        %v7576 = vmul.f32 %v7571, %v7508
        %v7577 = vmul.f32 %v7571, %v7509
        %v7578 = vmul.f32 %v7571, %v7510
        %v7579 = vmul.f32 %v7571, %v7511
        %v7580 = vmul.f32 %v7571, %v7512
        %v7581 = vmul.f32 %v7571, %v7513
        %v7582 = vmul.f32 %v7571, %v7514
        %v7583 = vmul.f32 %v7571, %v7515
        %v7584 = vmul.f32 %v7571, %v7516
        %v7585 = vmul.f32 %v7571, %v7517
        %v7586 = vmul.f32 %v7571, %v7518
        %v7587 = vmul.f32 %v7571, %v7519
        %v7588 = vlaneseq
        %v7589 = vshrl.u32 %v7588, 7
        %v7590 = vsub.s32 1, %v7589
        %v7591 = vrot.slane %v6654, %v7590
        %v7592 = vmul.f32 %v7591, %v7552
        %v7593 = vmul.f32 %v7591, %v7553
        %v7594 = vmul.f32 %v7591, %v7554
        %v7595 = vmul.f32 %v7591, %v7555
        %v7596 = vmul.f32 %v7591, %v7556
        %v7597 = vmul.f32 %v7591, %v7557
        %v7598 = vmul.f32 %v7591, %v7558
        %v7599 = vmul.f32 %v7591, %v7559
        %v7600 = vmul.f32 %v7591, %v7560
        %v7601 = vmul.f32 %v7591, %v7561
        %v7602 = vmul.f32 %v7591, %v7562
        %v7603 = vmul.f32 %v7591, %v7563
        %v7604 = vmul.f32 %v7591, %v7564
        %v7605 = vmul.f32 %v7591, %v7565
        %v7606 = vmul.f32 %v7591, %v7566
        %v7607 = vmul.f32 %v7591, %v7567
        %v7608 = vadd.f32 %v7572, %v7592
        %v7609 = vadd.f32 %v7573, %v7593
        %v7610 = vadd.f32 %v7574, %v7594
        %v7611 = vadd.f32 %v7575, %v7595
        %v7612 = vadd.f32 %v7576, %v7596
        %v7613 = vadd.f32 %v7577, %v7597
        %v7614 = vadd.f32 %v7578, %v7598
        %v7615 = vadd.f32 %v7579, %v7599
        %v7616 = vadd.f32 %v7580, %v7600
        %v7617 = vadd.f32 %v7581, %v7601
        %v7618 = vadd.f32 %v7582, %v7602
        %v7619 = vadd.f32 %v7583, %v7603
        %v7620 = vadd.f32 %v7584, %v7604
        %v7621 = vadd.f32 %v7585, %v7605
        %v7622 = vadd.f32 %v7586, %v7606
        %v7623 = vadd.f32 %v7587, %v7607
        %v7624 = vlaneseq
        %v7625 = vshrl.u32 %v7624, 7
        %v7626 = vsub.s32 2, %v7625
        %v7627 = vrot.slane %v6654, %v7626
        %v7628 = vmul.f32 %v7627, %v7504
        %v7629 = vmul.f32 %v7627, %v7505
        %v7630 = vmul.f32 %v7627, %v7506
        %v7631 = vmul.f32 %v7627, %v7507
        %v7632 = vmul.f32 %v7627, %v7508
        %v7633 = vmul.f32 %v7627, %v7509
        %v7634 = vmul.f32 %v7627, %v7510
        %v7635 = vmul.f32 %v7627, %v7511
        %v7636 = vmul.f32 %v7627, %v7512
        %v7637 = vmul.f32 %v7627, %v7513
        %v7638 = vmul.f32 %v7627, %v7514
        %v7639 = vmul.f32 %v7627, %v7515
        %v7640 = vmul.f32 %v7627, %v7516
        %v7641 = vmul.f32 %v7627, %v7517
        %v7642 = vmul.f32 %v7627, %v7518
        %v7643 = vmul.f32 %v7627, %v7519
        %v7644 = vlaneseq
        %v7645 = vshrl.u32 %v7644, 7
        %v7646 = vsub.s32 3, %v7645
        %v7647 = vrot.slane %v6654, %v7646
        %v7648 = vmul.f32 %v7647, %v7552
        %v7649 = vmul.f32 %v7647, %v7553
        %v7650 = vmul.f32 %v7647, %v7554
        %v7651 = vmul.f32 %v7647, %v7555
        %v7652 = vmul.f32 %v7647, %v7556
        %v7653 = vmul.f32 %v7647, %v7557
        %v7654 = vmul.f32 %v7647, %v7558
        %v7655 = vmul.f32 %v7647, %v7559
        %v7656 = vmul.f32 %v7647, %v7560
        %v7657 = vmul.f32 %v7647, %v7561
        %v7658 = vmul.f32 %v7647, %v7562
        %v7659 = vmul.f32 %v7647, %v7563
        %v7660 = vmul.f32 %v7647, %v7564
        %v7661 = vmul.f32 %v7647, %v7565
        %v7662 = vmul.f32 %v7647, %v7566
        %v7663 = vmul.f32 %v7647, %v7567
        %v7664 = vadd.f32 %v7628, %v7648
        %v7665 = vadd.f32 %v7629, %v7649
        %v7666 = vadd.f32 %v7630, %v7650
        %v7667 = vadd.f32 %v7631, %v7651
        %v7668 = vadd.f32 %v7632, %v7652
        %v7669 = vadd.f32 %v7633, %v7653
        %v7670 = vadd.f32 %v7634, %v7654
        %v7671 = vadd.f32 %v7635, %v7655
        %v7672 = vadd.f32 %v7636, %v7656
        %v7673 = vadd.f32 %v7637, %v7657
        %v7674 = vadd.f32 %v7638, %v7658
        %v7675 = vadd.f32 %v7639, %v7659
        %v7676 = vadd.f32 %v7640, %v7660
        %v7677 = vadd.f32 %v7641, %v7661
        %v7678 = vadd.f32 %v7642, %v7662
        %v7679 = vadd.f32 %v7643, %v7663
        %v7681 = vlaneseq
        %v7682 = vshrl.u32 %v7681, 7
        %v7683 = vsub.s32 0, %v7682
        %v7684 = vrot.slane %v6655, %v7683
        %v7685 = vlaneseq
        %v7686 = vshrl.u32 %v7685, 7
        %v7687 = vsub.s32 1, %v7686
        %v7688 = vrot.slane %v6655, %v7687
        %v7691 = vadd.f32 %v7608, %v7684
        %v7692 = vadd.f32 %v7664, %v7688
        %v7693 = vadd.f32 %v7609, %v7684
        %v7694 = vadd.f32 %v7665, %v7688
        %v7695 = vadd.f32 %v7610, %v7684
        %v7696 = vadd.f32 %v7666, %v7688
        %v7697 = vadd.f32 %v7611, %v7684
        %v7698 = vadd.f32 %v7667, %v7688
        %v7699 = vadd.f32 %v7612, %v7684
        %v7700 = vadd.f32 %v7668, %v7688
        %v7701 = vadd.f32 %v7613, %v7684
        %v7702 = vadd.f32 %v7669, %v7688
        %v7703 = vadd.f32 %v7614, %v7684
        %v7704 = vadd.f32 %v7670, %v7688
        %v7705 = vadd.f32 %v7615, %v7684
        %v7706 = vadd.f32 %v7671, %v7688
        %v7707 = vadd.f32 %v7616, %v7684
        %v7708 = vadd.f32 %v7672, %v7688
        %v7709 = vadd.f32 %v7617, %v7684
        %v7710 = vadd.f32 %v7673, %v7688
        %v7711 = vadd.f32 %v7618, %v7684
        %v7712 = vadd.f32 %v7674, %v7688
        %v7713 = vadd.f32 %v7619, %v7684
        %v7714 = vadd.f32 %v7675, %v7688
        %v7715 = vadd.f32 %v7620, %v7684
        %v7716 = vadd.f32 %v7676, %v7688
        %v7717 = vadd.f32 %v7621, %v7684
        %v7718 = vadd.f32 %v7677, %v7688
        %v7719 = vadd.f32 %v7622, %v7684
        %v7720 = vadd.f32 %v7678, %v7688
        %v7721 = vadd.f32 %v7623, %v7684
        %v7722 = vadd.f32 %v7679, %v7688
        %7723 = vst [vmem:[%s530] sm:$0xff] %v7691
        %7724 = vst [vmem:[%s530 + $0x8] sm:$0xff] %v7692
        %7725 = vst [vmem:[%s530 + $0x10] sm:$0xff] %v7693
        %7726 = vst [vmem:[%s530 + $0x18] sm:$0xff] %v7694
        %7727 = vst [vmem:[%s530 + $0x20] sm:$0xff] %v7695
        %7728 = vst [vmem:[%s530 + $0x28] sm:$0xff] %v7696
        %7729 = vst [vmem:[%s530 + $0x30] sm:$0xff] %v7697
        %7730 = vst [vmem:[%s530 + $0x38] sm:$0xff] %v7698
        %7731 = vst [vmem:[%s530 + $0x40] sm:$0xff] %v7699
        %7732 = vst [vmem:[%s530 + $0x48] sm:$0xff] %v7700
        %7733 = vst [vmem:[%s530 + $0x50] sm:$0xff] %v7701
        %7734 = vst [vmem:[%s530 + $0x58] sm:$0xff] %v7702
        %7735 = vst [vmem:[%s530 + $0x60] sm:$0xff] %v7703
        %7736 = vst [vmem:[%s530 + $0x68] sm:$0xff] %v7704
        %7737 = vst [vmem:[%s530 + $0x70] sm:$0xff] %v7705
        %7738 = vst [vmem:[%s530 + $0x78] sm:$0xff] %v7706
        %7739 = vst [vmem:[%s530 + $0x80] sm:$0xff] %v7707
        %7740 = vst [vmem:[%s530 + $0x88] sm:$0xff] %v7708
        %7741 = vst [vmem:[%s530 + $0x90] sm:$0xff] %v7709
        %7742 = vst [vmem:[%s530 + $0x98] sm:$0xff] %v7710
        %7743 = vst [vmem:[%s530 + $0xa0] sm:$0xff] %v7711
        %7744 = vst [vmem:[%s530 + $0xa8] sm:$0xff] %v7712
        %7745 = vst [vmem:[%s530 + $0xb0] sm:$0xff] %v7713
        %7746 = vst [vmem:[%s530 + $0xb8] sm:$0xff] %v7714
        %7747 = vst [vmem:[%s530 + $0xc0] sm:$0xff] %v7715
        %7748 = vst [vmem:[%s530 + $0xc8] sm:$0xff] %v7716
        %7749 = vst [vmem:[%s530 + $0xd0] sm:$0xff] %v7717
        %7750 = vst [vmem:[%s530 + $0xd8] sm:$0xff] %v7718
        %7751 = vst [vmem:[%s530 + $0xe0] sm:$0xff] %v7719
        %7752 = vst [vmem:[%s530 + $0xe8] sm:$0xff] %v7720
        %7753 = vst [vmem:[%s530 + $0xf0] sm:$0xff] %v7721
        %7754 = vst [vmem:[%s530 + $0xf8] sm:$0xff] %v7722
        %s7755 = sand.u32 %s319, 1
        %s7756 = scalar_lea.sflag [#allocation4], %s7755
        %s7757 = sand.u32 %s319, 1
        %s7758 = smul.addr %s7757, 256
        %s7759 = scalar_lea.vmem [#allocation13], %s7758
        // Predicated region
        $region97: #{tpu_custom_call.1} parent=71 // pred_check
          %p7760 = pneg %p329
        $region98: #{tpu_custom_call.1} parent=71 // pred_check_branch
          %7762 = sbr.rel (%p7760) target = $region100
        $region99: #{tpu_custom_call.1} parent=71 // pred_region
          %s7763 = smul.u32 16, %s33
          %s7765 = ssub.s32 4096, 4096
          %7766 = vsyncadd %s7756, %s7765
          %s7767 = smul.addr %s7763, 2
          %s7768 = smul.addr %s7767, 128
          %s7769 = scalar_lea.hbm %s13, %s7768
          %s7770 = sshll.u32 %s7759, 4
          %s7771 = int_to_ptr.vmem [resolvable:$true] %s7770
          %7776 = dma.vmem_to_hbm [thread:$0]  %s7771, 4096, %s7769, %s7756, 256, 256, 16
        $region100: #{tpu_custom_call.1} parent=71 // pred_fallthru
          _
      $region72: #{tpu_custom_call.1} parent=5 // pred_fallthru
        _
      %p7777 = scmp.le.s32.totalorder 2, %s28
      // Predicated region
      $region101: #{tpu_custom_call.1} parent=5 // pred_check
        %p7778 = pneg %p7777
      $region102: #{tpu_custom_call.1} parent=5 // pred_check_branch
        %7780 = sbr.rel (%p7778) target = $region104
      $region103: #{tpu_custom_call.1} parent=5 // pred_region
        %s7781 = ssub.s32 %s28, 2
        // Predicated region
        $region105: #{tpu_custom_call.1} parent=103 // pred_check
          %p7782 = pneg %p335
        $region106: #{tpu_custom_call.1} parent=103 // pred_check_branch
          %7784 = sbr.rel (%p7782) target = $region108
        $region107: #{tpu_custom_call.1} parent=103 // pred_region
          %s7785 = sand.u32 %s320, 1
          %s7786 = scalar_lea.sflag [#allocation4], %s7785
          %s7787 = sand.u32 %s320, 1
          %s7788 = smul.addr %s7787, 256
          %s7789 = scalar_lea.vmem [#allocation13], %s7788
          %7790 = dma.done %s7786, 4096
        $region108: #{tpu_custom_call.1} parent=103 // pred_fallthru
          _
      $region104: #{tpu_custom_call.1} parent=5 // pred_fallthru
        _
    $region6: #{tpu_custom_call.1} parent=1 // loop_footer
      %s32 = sadd.s32 1, %s28
    $region7: #{tpu_custom_call.1} parent=1 // loop_footer_branch
      %27 = sbr.rel target = $region3
    $region8: #{tpu_custom_call.1} parent=1 // loop_exit
      _
    %7791 = vsyncpa [#allocation3], 1
    %s7792 = scalar_lea.sflag [#allocation3], 1
    %7793 = vsyncpa %s7792, 1
    %7794 = vsyncpa [#allocation6], 1
    %7795 = vsyncpa [#allocation9], 1
    %7796 = vsyncpa [#allocation12], 1
    %7797 = vsyncpa [#allocation4], 1
    %s7798 = scalar_lea.sflag [#allocation4], 1
    %7799 = vsyncpa %s7798, 1

</llo_original>
